<compile_context>
chip_gen: v6e
topology: v6e:2x2x1
jax: 0.10.0
libtpu: 0.0.40
codegen_flags: <defaults>
</compile_context>

<pallas_src>
import functools

import jax
import jax.numpy as jnp
from jax import lax
from jax.experimental import pallas as pl
from jax.experimental.pallas import tpu as pltpu

NEG = -1e9        # finite "masked" additive bias
SLAB = 128        # lane-dense output slab width

CFG = dict(
    vocab_size=64, dim=32, heads=4, head_dim=8, window=8,
    ffn_mult=4, num_shared_encoder_layers=1, num_lm_encoder_layers=1,
    num_compression_encoder_layers=1, num_queries=1,
    codebook_size=64, beta=0.25, entropy_delta=0.2, entropy_abs_threshold=None,
)

_PARALLEL = pltpu.CompilerParams(dimension_semantics=("parallel",))


# ---------------------------------------------------------------------------
# BlockSpec helpers: one batch row per grid step; weights replicated
# ---------------------------------------------------------------------------
def _rep_spec(shape):
    zeros = (0,) * len(shape)
    return pl.BlockSpec(shape, lambda b, _z=zeros: _z)


def _row_spec(shape):
    blk = (1,) + tuple(shape[1:])
    zeros = (0,) * (len(shape) - 1)
    return pl.BlockSpec(blk, lambda b, _z=zeros: (b,) + _z)


# ---------------------------------------------------------------------------
# in-kernel math helpers (all f32 elementwise — v5e-friendly)
# ---------------------------------------------------------------------------
def _rms(x, g):
    ms = jnp.mean(x * x, axis=-1, keepdims=True)
    return x * lax.rsqrt(ms + 1e-6) * g


def _gelu(x):
    return 0.5 * x * (1.0 + jnp.tanh(0.7978845608028654 * (x + 0.044715 * x * x * x)))


def _softmax_rows(s):
    """Row softmax over last axis; fully-masked rows -> 0 (not uniform)."""
    m = jnp.max(s, axis=-1, keepdims=True)
    e = jnp.exp(s - m)
    z = jnp.sum(e, axis=-1, keepdims=True)
    p = e * pl.reciprocal(z, approx=True)              # EUP reciprocal, ~free
    return jnp.where(m > 0.5 * NEG, p, 0.0)


def _head_masks(heads, head_dim, dtype):
    """(1, H*Dh) 0/1 lane masks per head, built from iota (hoisted out of layer loops)."""
    hd = heads * head_dim
    col = lax.broadcasted_iota(jnp.int32, (1, hd), 1)
    return [((col >= h * head_dim) & (col < (h + 1) * head_dim)).astype(dtype)
            for h in range(heads)]


# ---------------------------------------------------------------------------
# Fused encoder kernel: shared layers -> {LM layers + LM head} & {compression layers}
# One grid step = one batch row; all layers unrolled in-kernel (activations stay in VMEM).
# ---------------------------------------------------------------------------
def _encoder_kernel(x_ref, pad_ref,
                    n1_ref, wq_ref, bq_ref, wk_ref, bk_ref, wv_ref, bv_ref,
                    wo_ref, bo_ref, n2_ref, w1_ref, b1_ref, w2_ref, b2_ref,
                    gfin_ref, wl_ref, bl_ref,
                    hid_ref, slab_ref,
                    *, heads, head_dim, window, n_shared, n_lm, n_comp, vocab):
    x = x_ref[0]                                        # (S, D) f32
    S, D = x.shape
    HD = heads * head_dim

    # sliding-window causal mask + key-padding bias, built once, reused by every layer
    ii = lax.broadcasted_iota(jnp.int32, (S, S), 0)
    jj = lax.broadcasted_iota(jnp.int32, (S, S), 1)
    win_ok = (jj <= ii) & ((ii - jj) < window)
    bias = jnp.where(win_ok, 0.0, NEG).astype(jnp.float32) + pad_ref[0]     # (S, S)

    hmasks = _head_masks(heads, head_dim, jnp.bfloat16)

    def block(h_in, l):
        # ---- attention sub-layer (pre-norm), fused all-head projections ----
        xn = _rms(h_in, n1_ref[l])
        xnb = xn.astype(jnp.bfloat16)
        # 1/sqrt(head_dim) is pre-folded into wq/bq at init
        q = jnp.dot(xnb, wq_ref[l], preferred_element_type=jnp.float32) + bq_ref[l]
        k = jnp.dot(xnb, wk_ref[l], preferred_element_type=jnp.float32) + bk_ref[l]
        v = jnp.dot(xnb, wv_ref[l], preferred_element_type=jnp.float32) + bv_ref[l]
        qb, kb, vb = (q.astype(jnp.bfloat16), k.astype(jnp.bfloat16),
                      v.astype(jnp.bfloat16))
        o_cat = jnp.zeros((S, HD), jnp.float32)
        for mh in hmasks:
            # (q * mask_h) @ k^T  ==  q_h @ k_h^T   (cross-head columns multiply to 0)
            s = lax.dot_general(qb * mh, kb, (((1,), (1,)), ((), ())),
                                preferred_element_type=jnp.float32) + bias
            p = _softmax_rows(s)
            # p_h @ (v * mask_h) places the head-h output in its own columns
            o_cat = o_cat + jnp.dot(p.astype(jnp.bfloat16), vb * mh,
                                    preferred_element_type=jnp.float32)
        attn = jnp.dot(o_cat.astype(jnp.bfloat16), wo_ref[l],
                       preferred_element_type=jnp.float32) + bo_ref[l]
        h1 = h_in + attn
        # ---- FFN sub-layer (pre-norm) ----
        hn = _rms(h1, n2_ref[l])
        f = jnp.dot(hn.astype(jnp.bfloat16), w1_ref[l],
                    preferred_element_type=jnp.float32) + b1_ref[l]
        f = _gelu(f)
        f = jnp.dot(f.astype(jnp.bfloat16), w2_ref[l],
                    preferred_element_type=jnp.float32) + b2_ref[l]
        return h1 + f

    # shared trunk
    for l in range(n_shared):
        x = block(x, l)

    # LM branch + fused LM head (final RMSNorm + logits + token entropy)
    lm_x = x
    for l in range(n_shared, n_shared + n_lm):
        lm_x = block(lm_x, l)
    xn = _rms(lm_x, gfin_ref[...])
    logits = jnp.dot(xn.astype(jnp.bfloat16), wl_ref[...],
                     preferred_element_type=jnp.float32) + bl_ref[...]       # (S, V)
    m = jnp.max(logits, axis=-1, keepdims=True)
    e = jnp.exp(logits - m)
    z = jnp.sum(e, axis=-1, keepdims=True)
    p = e / z
    logp = (logits - m) - jnp.log(z)
    ent = -jnp.sum(p * logp, axis=-1, keepdims=True)                          # (S, 1)
    # lane-dense 128-wide slab: [0:V) logits | [V:128) entropy (broadcast)
    slab_ref[0] = jnp.concatenate(
        [logits, jnp.broadcast_to(ent, (S, SLAB - vocab))], axis=-1)

    # compression branch (hidden feeds the pooler); stored bf16 to halve HBM traffic
    hid = x
    for l in range(n_shared + n_lm, n_shared + n_lm + n_comp):
        hid = block(hid, l)
    hid_ref[0] = hid.astype(jnp.bfloat16)


def encoder_forward(x, pad_bias, stacked, lm_head_p, cfg, *, n_shared, n_lm, n_comp):
    B, S, D = x.shape
    V = cfg['vocab_size']
    assert V + 1 <= SLAB
    kernel = functools.partial(
        _encoder_kernel, heads=cfg['heads'], head_dim=cfg['head_dim'],
        window=cfg['window'], n_shared=n_shared, n_lm=n_lm, n_comp=n_comp, vocab=V)
    weights = (stacked['norm1'], stacked['wq'], stacked['bq'], stacked['wk'],
               stacked['bk'], stacked['wv'], stacked['bv'], stacked['wo'],
               stacked['bo'], stacked['norm2'], stacked['w1'], stacked['b1'],
               stacked['w2'], stacked['b2'],
               lm_head_p['g'], lm_head_p['w'], lm_head_p['b'])
    hidden, slab = pl.pallas_call(
        kernel,
        out_shape=(jax.ShapeDtypeStruct((B, S, D), jnp.bfloat16),
                   jax.ShapeDtypeStruct((B, S, SLAB), jnp.float32)),
        grid=(B,),
        in_specs=[_row_spec(x.shape), _row_spec(pad_bias.shape)]
                 + [_rep_spec(w.shape) for w in weights],
        out_specs=(_row_spec((B, S, D)), _row_spec((B, S, SLAB))),
        compiler_params=_PARALLEL,
    )(x, pad_bias, *weights)
    logits = slab[:, :, :V]
    entropy = slab[:, :, V]
    return hidden, logits, entropy


# ---------------------------------------------------------------------------
# Fused learned-query segment pooler + VQ kernel
# ---------------------------------------------------------------------------
def _pool_vq_kernel(hid_ref, seg_ref, pad_ref, qt_ref,
                    wq_ref, bq_ref, wk_ref, bk_ref, wv_ref, bv_ref, wo_ref, bo_ref,
                    cb_ref, slab_ref, *, heads, head_dim, num_queries):
    hid = hid_ref[0]                                    # (S, D) bf16
    S, D = hid.shape
    HD = heads * head_dim
    L = num_queries
    Q = slab_ref.shape[1]                               # S_hat * L (static)

    hidb = hid.astype(jnp.bfloat16)
    qtb = qt_ref[...].astype(jnp.bfloat16)              # (L, D)

    # segment mask: query slot q attends only to keys with seg_id == q // L, plus padding
    seg = seg_ref[0]                                    # (1, S) int32
    qidx = lax.broadcasted_iota(jnp.int32, (Q, S), 0)
    qseg = qidx if L == 1 else qidx // L
    bias = jnp.where(seg == qseg, 0.0, NEG).astype(jnp.float32) + pad_ref[0]  # (Q, S)

    hmasks = _head_masks(heads, head_dim, jnp.bfloat16)

    # fused all-head projections (1/sqrt(head_dim) pre-folded into wq/bq)
    q = jnp.dot(qtb, wq_ref[...], preferred_element_type=jnp.float32) + bq_ref[...]   # (L, HD)
    k = jnp.dot(hidb, wk_ref[...], preferred_element_type=jnp.float32) + bk_ref[...]  # (S, HD)
    v = jnp.dot(hidb, wv_ref[...], preferred_element_type=jnp.float32) + bv_ref[...]
    qb, kb, vb = q.astype(jnp.bfloat16), k.astype(jnp.bfloat16), v.astype(jnp.bfloat16)

    o_cat = jnp.zeros((Q, HD), jnp.float32)
    for mh in hmasks:
        st = lax.dot_general(qb * mh, kb, (((1,), (1,)), ((), ())),
                             preferred_element_type=jnp.float32)              # (L, S)
        if L == 1:
            s = jnp.broadcast_to(st, (Q, S)) + bias      # same query template per segment slot
        else:
            s = jnp.broadcast_to(st[None], (Q // L, L, S)).reshape(Q, S) + bias
        p = _softmax_rows(s)                             # empty segment slots -> 0
        o_cat = o_cat + jnp.dot(p.astype(jnp.bfloat16), vb * mh,
                                preferred_element_type=jnp.float32)
    pooled = jnp.dot(o_cat.astype(jnp.bfloat16), wo_ref[...],
                     preferred_element_type=jnp.float32) + bo_ref[...]        # (Q, D)

    # ---- VQ: f32 distances (exact argmin), codebook-row select via exact one-hot matmul ----
    cb = cb_ref[...]                                     # (K, D) f32
    K = cb.shape[0]
    zz = jnp.sum(pooled * pooled, axis=-1, keepdims=True)                     # (Q, 1)
    ee = jnp.sum(cb * cb, axis=-1)[None, :]                                   # (1, K)
    cross = lax.dot_general(pooled, cb, (((1,), (1,)), ((), ())),
                            preferred_element_type=jnp.float32)               # (Q, K) f32
    d = zz - 2.0 * cross + ee
    dmin = jnp.min(d, axis=-1, keepdims=True)
    kcol = lax.broadcasted_iota(jnp.int32, (Q, K), 1)
    codes = jnp.min(jnp.where(d <= dmin, kcol, K), axis=-1, keepdims=True)    # (Q, 1) int32
    onehot = (kcol == codes).astype(jnp.float32)
    zq = jnp.dot(onehot, cb, preferred_element_type=jnp.float32)              # (Q, D)

    # lane-dense 128-wide slab: [0:D) pooled | [D:2D) zq | [2D:128) codes (as f32, broadcast)
    codes_f = jnp.broadcast_to(codes.astype(jnp.float32), (Q, SLAB - 2 * D))
    slab_ref[0] = jnp.concatenate([pooled, zq, codes_f], axis=-1)


def pool_and_vq(hidden, seg_id, pad_bias, pooler_p, codebook, cfg, s_hat):
    B, S, D = hidden.shape
    assert 2 * D + 1 <= SLAB
    L, H = cfg['num_queries'], cfg['heads']
    Q = s_hat * L
    seg3 = seg_id[:, None, :].astype(jnp.int32)          # (B, 1, S)
    kernel = functools.partial(_pool_vq_kernel, heads=H, head_dim=D // H, num_queries=L)
    weights = (pooler_p['query_template'], pooler_p['wq'], pooler_p['bq'],
               pooler_p['wk'], pooler_p['bk'], pooler_p['wv'], pooler_p['bv'],
               pooler_p['wo'], pooler_p['bo'], codebook)
    slab = pl.pallas_call(
        kernel,
        out_shape=jax.ShapeDtypeStruct((B, Q, SLAB), jnp.float32),
        grid=(B,),
        in_specs=[_row_spec(hidden.shape), _row_spec(seg3.shape), _row_spec(pad_bias.shape)]
                 + [_rep_spec(w.shape) for w in weights],
        out_specs=_row_spec((B, Q, SLAB)),
        compiler_params=_PARALLEL,
    )(hidden, seg3, pad_bias, *weights)
    pooled = slab[:, :, :D]
    zq = slab[:, :, D:2 * D]
    codes = slab[:, :, 2 * D].astype(jnp.int32)           # exact small ints in f32
    return pooled, zq, codes


# ---------------------------------------------------------------------------
# glue (plain JAX; whole forward is one jax.jit)
# ---------------------------------------------------------------------------
def entropy_segments(entropy, increase_delta, abs_threshold=None):
    B, S = entropy.shape
    inc = entropy[:, 1:] > (entropy[:, :-1] + increase_delta)
    if abs_threshold is not None:
        inc = inc | (entropy[:, 1:] > abs_threshold)
    starts = jnp.concatenate([jnp.zeros((B, 1), dtype=bool), inc], axis=1)
    return jnp.cumsum(starts.astype(jnp.int32), axis=1)


def _forward(params, token_ids, key_padding_mask, *, cfg):
    B, S = token_ids.shape
    K = cfg['codebook_size']

    pad_bias = jnp.where(key_padding_mask, NEG, 0.0).astype(jnp.float32)[:, None, :]  # (B,1,S)

    x = jnp.take(params['embedding'], token_ids, axis=0)                              # (B,S,D)

    # stack all layers (shared, then lm, then compression) along a leading layer axis
    layers = (params['shared_layers'] + params['lm_layers'] + params['compression_layers'])
    stacked = {k: jnp.stack([lyr[k] for lyr in layers]) for k in layers[0]}

    hidden, logits, entropy = encoder_forward(
        x, pad_bias, stacked,
        dict(g=params['lm_final_norm'], w=params['logit_w'], b=params['logit_b']),
        cfg,
        n_shared=len(params['shared_layers']),
        n_lm=len(params['lm_layers']),
        n_comp=len(params['compression_layers']))

    seg_id = entropy_segments(entropy, cfg['entropy_delta'], cfg['entropy_abs_threshold'])
    patch_end_mask = jnp.concatenate([seg_id[:, 1:] != seg_id[:, :-1],
                                      jnp.ones((B, 1), dtype=bool)], axis=1)
    num_segments = seg_id[:, -1] + 1
    s_hat = S                                     # static upper bound -> jit-friendly shapes
    valid_mask = jnp.arange(s_hat)[None, :] < num_segments[:, None]

    pooled, zq, codes = pool_and_vq(hidden, seg_id, pad_bias, params['pooler'],
                                    params['vq_codebook'], cfg, s_hat)

    # VQ losses + straight-through estimator (forward value of `continuous` == zq)
    codebook_loss = jnp.mean((lax.stop_gradient(pooled) - zq) ** 2)
    commit_loss = jnp.mean((pooled - lax.stop_gradient(zq)) ** 2)
    vq_loss = codebook_loss + cfg['beta'] * commit_loss
    quantised = pooled + lax.stop_gradient(zq - pooled)

    flat = codes.reshape(-1)
    onehot = jax.nn.one_hot(flat, K, dtype=jnp.float32)
    pc = jnp.mean(onehot, axis=0)
    smoothed_perplexity = jnp.exp(-jnp.sum(jnp.where(pc > 0, pc * jnp.log(pc), 0.0)))

    counts = jnp.bincount(jnp.clip(flat, 0, K - 1), length=K)
    p_codes = counts.astype(jnp.float32) / flat.shape[0]
    ent_c = -jnp.sum(jnp.where(p_codes > 0, p_codes * jnp.log(p_codes), 0.0))
    current_perplexity = jnp.exp(ent_c)

    return {
        'continuous': quantised,
        'codes': codes,
        'vq_loss': vq_loss,
        'valid_mask': valid_mask,
        'patch_end_mask': patch_end_mask,
        'encoder_logits': logits,
        'current_codebook_perplexity': current_perplexity,
        'smoothed_codebook_perplexity': smoothed_perplexity,
        'pre_vq_embeddings': pooled,
    }


@functools.lru_cache(maxsize=None)
def _cached_forward(cfg_items):
    return jax.jit(functools.partial(_forward, cfg=dict(cfg_items)))


def byte_segment_compressor(params, token_ids, key_padding_mask, cfg):
    B, S = token_ids.shape
    if key_padding_mask is None:
        key_padding_mask = jnp.zeros((B, S), dtype=bool)
    fwd = _cached_forward(tuple(sorted(cfg.items())))
    return fwd(params, token_ids, key_padding_mask)


# ---------------------------------------------------------------------------
# deterministic parameter init — fused (D, H*Dh)/(H*Dh, D) projection layout,
# matmul weights bf16 (f32 MXU accumulation), 1/sqrt(head_dim) folded into wq/bq.
# ---------------------------------------------------------------------------
def init_params(key, cfg):
    D, H, Dh = cfg['dim'], cfg['heads'], cfg['head_dim']
    HD = H * Dh
    F = D * cfg['ffn_mult']
    V, K, L = cfg['vocab_size'], cfg['codebook_size'], cfg['num_queries']
    scale = 1.0 / (Dh ** 0.5)
    keys = iter(jax.random.split(key, 512))
    WDT = jnp.bfloat16

    def nrm(shape, s=0.02, dtype=jnp.float32):
        return (jax.random.normal(next(keys), shape, jnp.float32) * s).astype(dtype)

    def zeros(shape):
        return jnp.zeros(shape, jnp.float32)

    def block():
        return dict(
            norm1=jnp.ones((1, D), jnp.float32), norm2=jnp.ones((1, D), jnp.float32),
            wq=nrm((D, HD), 0.02 * scale, WDT), bq=zeros((1, HD)),   # scale pre-folded
            wk=nrm((D, HD), dtype=WDT), bk=zeros((1, HD)),
            wv=nrm((D, HD), dtype=WDT), bv=zeros((1, HD)),
            wo=nrm((HD, D), dtype=WDT), bo=zeros((1, D)),
            w1=nrm((D, F), dtype=WDT), b1=zeros((1, F)),
            w2=nrm((F, D), dtype=WDT), b2=zeros((1, D)),
        )

    Dp = D // H                      # pooler head dim
    scale_p = 1.0 / (Dp ** 0.5)
    return dict(
        embedding=nrm((V, D), 1.0),
        shared_layers=[block() for _ in range(cfg['num_shared_encoder_layers'])],
        lm_layers=[block() for _ in range(cfg['num_lm_encoder_layers'])],
        compression_layers=[block() for _ in range(cfg['num_compression_encoder_layers'])],
        lm_final_norm=jnp.ones((1, D), jnp.float32),
        logit_w=nrm((D, V), dtype=WDT), logit_b=zeros((1, V)),
        pooler=dict(
            query_template=nrm((L, D), 1.0),
            wq=nrm((D, D), 0.02 * scale_p, WDT), bq=zeros((1, D)),   # scale pre-folded
            wk=nrm((D, D), dtype=WDT), bk=zeros((1, D)),
            wv=nrm((D, D), dtype=WDT), bv=zeros((1, D)),
            wo=nrm((D, D), dtype=WDT), bo=zeros((1, D)),
        ),
        vq_codebook=nrm((K, D), 1.0),
    )


if __name__ == "__main__":
    cfg = CFG
    key = jax.random.PRNGKey(0)
    k_tok, k_param = jax.random.split(key)

    B, S = 2, 16
    token_ids = jax.random.randint(k_tok, (B, S), 0, cfg['vocab_size'], dtype=jnp.int32)
    params = init_params(k_param, cfg)

    out = byte_segment_compressor(params, token_ids, key_padding_mask=None, cfg=cfg)
    out = jax.block_until_ready(out)

    Q = S * cfg['num_queries']
    assert out['continuous'].shape == (B, Q, cfg['dim'])
    assert out['codes'].shape == (B, Q)
    assert out['valid_mask'].shape == (B, S)
    assert out['patch_end_mask'].shape == (B, S)
    assert out['encoder_logits'].shape == (B, S, cfg['vocab_size'])
    assert out['pre_vq_embeddings'].shape == (B, Q, cfg['dim'])
    assert bool(jnp.all(jnp.isfinite(out['continuous'])))
    assert bool(jnp.all(jnp.isfinite(out['encoder_logits'])))
    assert bool(jnp.all(out['codes'] >= 0)) and bool(jnp.all(out['codes'] < cfg['codebook_size']))
    assert bool(jnp.isfinite(out['vq_loss']))
    print("KERNEL_OK")
</pallas_src>

<mosaic_0001>
module attributes {stable_mosaic.version = 11 : i64} {
  func.func private @main(%arg0: i32) attributes {dimension_semantics = [#tpu.dimension_semantics<core_parallel>], iteration_bounds = array<i64: 2>, tpu.core_type = #tpu.core_type<sc_scalar_subcore>, window_params = []} {
    return
  }
}

module attributes {stable_mosaic.version = 11 : i64} {
  func.func private @main(%arg0: i32) attributes {dimension_semantics = [#tpu.dimension_semantics<core_parallel>], iteration_bounds = array<i64: 2>, tpu.core_type = #tpu.core_type<sc_scalar_subcore>, window_params = []} {
    return
  }
}

module attributes {stable_mosaic.version = 11 : i64} {
  func.func @_pool_vq_kernel(%arg0: i32, %arg1: memref<1x16x32xbf16, #tpu.memory_space<vmem>>, %arg2: memref<1x1x16xi32, #tpu.memory_space<vmem>>, %arg3: memref<1x1x16xf32, #tpu.memory_space<vmem>>, %arg4: memref<1x32xf32, #tpu.memory_space<vmem>>, %arg5: memref<32x32xbf16, #tpu.memory_space<vmem>>, %arg6: memref<1x32xf32, #tpu.memory_space<vmem>>, %arg7: memref<32x32xbf16, #tpu.memory_space<vmem>>, %arg8: memref<1x32xf32, #tpu.memory_space<vmem>>, %arg9: memref<32x32xbf16, #tpu.memory_space<vmem>>, %arg10: memref<1x32xf32, #tpu.memory_space<vmem>>, %arg11: memref<32x32xbf16, #tpu.memory_space<vmem>>, %arg12: memref<1x32xf32, #tpu.memory_space<vmem>>, %arg13: memref<64x32xf32, #tpu.memory_space<vmem>>, %arg14: memref<1x16x128xf32, #tpu.memory_space<vmem>>) attributes {dimension_semantics = [#tpu.dimension_semantics<parallel>], iteration_bounds = array<i64: 2>, scalar_prefetch = 0 : i64, scratch_operands = 0 : i64, tpu.core_type = #tpu.core_type<tc>, window_params = [{transform_indices = @transform_0, window_bounds = array<i64: 1, 16, 32>}, {transform_indices = @transform_1, window_bounds = array<i64: 1, 1, 16>}, {transform_indices = @transform_2, window_bounds = array<i64: 1, 1, 16>}, {pipeline_mode = #tpu.pipeline_mode<synchronous>, transform_indices = @transform_3, window_bounds = array<i64: 1, 32>}, {pipeline_mode = #tpu.pipeline_mode<synchronous>, transform_indices = @transform_4, window_bounds = array<i64: 32, 32>}, {pipeline_mode = #tpu.pipeline_mode<synchronous>, transform_indices = @transform_5, window_bounds = array<i64: 1, 32>}, {pipeline_mode = #tpu.pipeline_mode<synchronous>, transform_indices = @transform_6, window_bounds = array<i64: 32, 32>}, {pipeline_mode = #tpu.pipeline_mode<synchronous>, transform_indices = @transform_7, window_bounds = array<i64: 1, 32>}, {pipeline_mode = #tpu.pipeline_mode<synchronous>, transform_indices = @transform_8, window_bounds = array<i64: 32, 32>}, {pipeline_mode = #tpu.pipeline_mode<synchronous>, transform_indices = @transform_9, window_bounds = array<i64: 1, 32>}, {pipeline_mode = #tpu.pipeline_mode<synchronous>, transform_indices = @transform_10, window_bounds = array<i64: 32, 32>}, {pipeline_mode = #tpu.pipeline_mode<synchronous>, transform_indices = @transform_11, window_bounds = array<i64: 1, 32>}, {pipeline_mode = #tpu.pipeline_mode<synchronous>, transform_indices = @transform_12, window_bounds = array<i64: 64, 32>}, {transform_indices = @transform_13, window_bounds = array<i64: 1, 16, 128>}]} {
    %c0 = arith.constant 0 : index
    %c0_0 = arith.constant 0 : index
    %c0_1 = arith.constant 0 : index
    %0 = vector.load %arg1[%c0, %c0_0, %c0_1] : memref<1x16x32xbf16, #tpu.memory_space<vmem>>, vector<1x16x32xbf16>
    %1 = vector.shape_cast %0 : vector<1x16x32xbf16> to vector<16x32xbf16>
    %c0_2 = arith.constant 0 : index
    %c0_3 = arith.constant 0 : index
    %2 = vector.load %arg4[%c0_2, %c0_3] : memref<1x32xf32, #tpu.memory_space<vmem>>, vector<1x32xf32>
    %3 = arith.truncf %2 : vector<1x32xf32> to vector<1x32xbf16>
    %c0_4 = arith.constant 0 : index
    %c0_5 = arith.constant 0 : index
    %c0_6 = arith.constant 0 : index
    %4 = vector.load %arg2[%c0_4, %c0_5, %c0_6] : memref<1x1x16xi32, #tpu.memory_space<vmem>>, vector<1x1x16xi32>
    %5 = vector.shape_cast %4 : vector<1x1x16xi32> to vector<1x16xi32>
    %6 = tpu.iota {dimensions = array<i32: 0>} : vector<16x16xi32>
    %7 = vector.broadcast %5 : vector<1x16xi32> to vector<16x16xi32>
    %8 = arith.cmpi eq, %7, %6 : vector<16x16xi32>
    %cst = arith.constant 0.000000e+00 : f32
    %cst_7 = arith.constant -1.000000e+09 : f32
    %9 = vector.broadcast %cst : f32 to vector<16x16xf32>
    %10 = vector.broadcast %cst_7 : f32 to vector<16x16xf32>
    %11 = arith.select %8, %9, %10 : vector<16x16xi1>, vector<16x16xf32>
    %c0_8 = arith.constant 0 : index
    %c0_9 = arith.constant 0 : index
    %c0_10 = arith.constant 0 : index
    %12 = vector.load %arg3[%c0_8, %c0_9, %c0_10] : memref<1x1x16xf32, #tpu.memory_space<vmem>>, vector<1x1x16xf32>
    %13 = vector.shape_cast %12 : vector<1x1x16xf32> to vector<1x16xf32>
    %14 = vector.broadcast %13 : vector<1x16xf32> to vector<16x16xf32>
    %15 = arith.addf %11, %14 : vector<16x16xf32>
    %16 = tpu.iota {dimensions = array<i32: 1>} : vector<1x32xi32>
    %c0_i32 = arith.constant 0 : i32
    %17 = vector.broadcast %c0_i32 : i32 to vector<1x32xi32>
    %18 = arith.cmpi sge, %16, %17 : vector<1x32xi32>
    %c8_i32 = arith.constant 8 : i32
    %19 = vector.broadcast %c8_i32 : i32 to vector<1x32xi32>
    %20 = arith.cmpi slt, %16, %19 : vector<1x32xi32>
    %21 = arith.andi %18, %20 : vector<1x32xi1>
    %22 = arith.extui %21 : vector<1x32xi1> to vector<1x32xi32>
    %23 = arith.sitofp %22 : vector<1x32xi32> to vector<1x32xf32>
    %24 = arith.truncf %23 : vector<1x32xf32> to vector<1x32xbf16>
    %c8_i32_11 = arith.constant 8 : i32
    %25 = vector.broadcast %c8_i32_11 : i32 to vector<1x32xi32>
    %26 = arith.cmpi sge, %16, %25 : vector<1x32xi32>
    %c16_i32 = arith.constant 16 : i32
    %27 = vector.broadcast %c16_i32 : i32 to vector<1x32xi32>
    %28 = arith.cmpi slt, %16, %27 : vector<1x32xi32>
    %29 = arith.andi %26, %28 : vector<1x32xi1>
    %30 = arith.extui %29 : vector<1x32xi1> to vector<1x32xi32>
    %31 = arith.sitofp %30 : vector<1x32xi32> to vector<1x32xf32>
    %32 = arith.truncf %31 : vector<1x32xf32> to vector<1x32xbf16>
    %c16_i32_12 = arith.constant 16 : i32
    %33 = vector.broadcast %c16_i32_12 : i32 to vector<1x32xi32>
    %34 = arith.cmpi sge, %16, %33 : vector<1x32xi32>
    %c24_i32 = arith.constant 24 : i32
    %35 = vector.broadcast %c24_i32 : i32 to vector<1x32xi32>
    %36 = arith.cmpi slt, %16, %35 : vector<1x32xi32>
    %37 = arith.andi %34, %36 : vector<1x32xi1>
    %38 = arith.extui %37 : vector<1x32xi1> to vector<1x32xi32>
    %39 = arith.sitofp %38 : vector<1x32xi32> to vector<1x32xf32>
    %40 = arith.truncf %39 : vector<1x32xf32> to vector<1x32xbf16>
    %c24_i32_13 = arith.constant 24 : i32
    %41 = vector.broadcast %c24_i32_13 : i32 to vector<1x32xi32>
    %42 = arith.cmpi sge, %16, %41 : vector<1x32xi32>
    %c32_i32 = arith.constant 32 : i32
    %43 = vector.broadcast %c32_i32 : i32 to vector<1x32xi32>
    %44 = arith.cmpi slt, %16, %43 : vector<1x32xi32>
    %45 = arith.andi %42, %44 : vector<1x32xi1>
    %46 = arith.extui %45 : vector<1x32xi1> to vector<1x32xi32>
    %47 = arith.sitofp %46 : vector<1x32xi32> to vector<1x32xf32>
    %48 = arith.truncf %47 : vector<1x32xf32> to vector<1x32xbf16>
    %c0_14 = arith.constant 0 : index
    %c0_15 = arith.constant 0 : index
    %49 = vector.load %arg5[%c0_14, %c0_15] : memref<32x32xbf16, #tpu.memory_space<vmem>>, vector<32x32xbf16>
    %cst_16 = arith.constant dense<0.000000e+00> : vector<1x32xf32>
    %50 = tpu.matmul %3, %49, %cst_16 {dimension_numbers = #tpu.dot_dimension_numbers<[1], [0], [0], [1], [0, 0, 1, 1], [], []>} : vector<1x32xbf16>, vector<32x32xbf16>, vector<1x32xf32> -> vector<1x32xf32>
    %c0_17 = arith.constant 0 : index
    %c0_18 = arith.constant 0 : index
    %51 = vector.load %arg6[%c0_17, %c0_18] : memref<1x32xf32, #tpu.memory_space<vmem>>, vector<1x32xf32>
    %52 = arith.addf %50, %51 : vector<1x32xf32>
    %c0_19 = arith.constant 0 : index
    %c0_20 = arith.constant 0 : index
    %53 = vector.load %arg7[%c0_19, %c0_20] : memref<32x32xbf16, #tpu.memory_space<vmem>>, vector<32x32xbf16>
    %cst_21 = arith.constant dense<0.000000e+00> : vector<16x32xf32>
    %54 = tpu.matmul %1, %53, %cst_21 {dimension_numbers = #tpu.dot_dimension_numbers<[1], [0], [0], [1], [0, 0, 1, 1], [], []>} : vector<16x32xbf16>, vector<32x32xbf16>, vector<16x32xf32> -> vector<16x32xf32>
    %c0_22 = arith.constant 0 : index
    %c0_23 = arith.constant 0 : index
    %55 = vector.load %arg8[%c0_22, %c0_23] : memref<1x32xf32, #tpu.memory_space<vmem>>, vector<1x32xf32>
    %56 = vector.broadcast %55 : vector<1x32xf32> to vector<16x32xf32>
    %57 = arith.addf %54, %56 : vector<16x32xf32>
    %c0_24 = arith.constant 0 : index
    %c0_25 = arith.constant 0 : index
    %58 = vector.load %arg9[%c0_24, %c0_25] : memref<32x32xbf16, #tpu.memory_space<vmem>>, vector<32x32xbf16>
    %cst_26 = arith.constant dense<0.000000e+00> : vector<16x32xf32>
    %59 = tpu.matmul %1, %58, %cst_26 {dimension_numbers = #tpu.dot_dimension_numbers<[1], [0], [0], [1], [0, 0, 1, 1], [], []>} : vector<16x32xbf16>, vector<32x32xbf16>, vector<16x32xf32> -> vector<16x32xf32>
    %c0_27 = arith.constant 0 : index
    %c0_28 = arith.constant 0 : index
    %60 = vector.load %arg10[%c0_27, %c0_28] : memref<1x32xf32, #tpu.memory_space<vmem>>, vector<1x32xf32>
    %61 = vector.broadcast %60 : vector<1x32xf32> to vector<16x32xf32>
    %62 = arith.addf %59, %61 : vector<16x32xf32>
    %63 = arith.truncf %52 : vector<1x32xf32> to vector<1x32xbf16>
    %64 = arith.truncf %57 : vector<16x32xf32> to vector<16x32xbf16>
    %65 = arith.truncf %62 : vector<16x32xf32> to vector<16x32xbf16>
    %cst_29 = arith.constant 0.000000e+00 : f32
    %66 = vector.broadcast %cst_29 : f32 to vector<16x32xf32>
    %67 = arith.mulf %63, %24 : vector<1x32xbf16>
    %cst_30 = arith.constant dense<0.000000e+00> : vector<1x16xf32>
    %68 = tpu.matmul %67, %64, %cst_30 {dimension_numbers = #tpu.dot_dimension_numbers<[1], [1], [0], [0], [0, 0, 1, 0], [], []>} : vector<1x32xbf16>, vector<16x32xbf16>, vector<1x16xf32> -> vector<1x16xf32>
    %69 = vector.shape_cast %68 : vector<1x16xf32> to vector<1x16xf32>
    %70 = vector.broadcast %69 : vector<1x16xf32> to vector<16x16xf32>
    %71 = arith.addf %70, %15 : vector<16x16xf32>
    %cst_31 = arith.constant dense<0xFF800000> : vector<16xf32>
    %72 = vector.multi_reduction <maximumf>, %71, %cst_31 [1] : vector<16x16xf32> to vector<16xf32>
    %73 = vector.shape_cast %72 : vector<16xf32> to vector<16x1xf32>
    %74 = vector.broadcast %73 : vector<16x1xf32> to vector<16x16xf32>
    %75 = arith.subf %71, %74 : vector<16x16xf32>
    %76 = math.exp %75 : vector<16x16xf32>
    %cst_32 = arith.constant dense<0.000000e+00> : vector<16xf32>
    %77 = vector.multi_reduction <add>, %76, %cst_32 [1] : vector<16x16xf32> to vector<16xf32>
    %78 = vector.shape_cast %77 : vector<16xf32> to vector<16x1xf32>
    %79 = tpu.reciprocal %78 {approx = true} : vector<16x1xf32> -> vector<16x1xf32>
    %80 = vector.broadcast %79 : vector<16x1xf32> to vector<16x16xf32>
    %81 = arith.mulf %76, %80 : vector<16x16xf32>
    %cst_33 = arith.constant -5.000000e+08 : f32
    %82 = vector.broadcast %cst_33 : f32 to vector<16x1xf32>
    %83 = arith.cmpf ogt, %73, %82 : vector<16x1xf32>
    %cst_34 = arith.constant 0.000000e+00 : f32
    %84 = vector.shape_cast %83 : vector<16x1xi1> to vector<16x1xi1>
    %85 = vector.broadcast %84 : vector<16x1xi1> to vector<16x16xi1>
    %86 = vector.broadcast %cst_34 : f32 to vector<16x16xf32>
    %87 = arith.select %85, %81, %86 : vector<16x16xi1>, vector<16x16xf32>
    %88 = arith.truncf %87 : vector<16x16xf32> to vector<16x16xbf16>
    %89 = vector.broadcast %24 : vector<1x32xbf16> to vector<16x32xbf16>
    %90 = arith.mulf %65, %89 : vector<16x32xbf16>
    %cst_35 = arith.constant dense<0.000000e+00> : vector<16x32xf32>
    %91 = tpu.matmul %88, %90, %cst_35 {dimension_numbers = #tpu.dot_dimension_numbers<[1], [0], [0], [1], [0, 0, 1, 1], [], []>} : vector<16x16xbf16>, vector<16x32xbf16>, vector<16x32xf32> -> vector<16x32xf32>
    %92 = arith.addf %66, %91 : vector<16x32xf32>
    %93 = arith.mulf %63, %32 : vector<1x32xbf16>
    %cst_36 = arith.constant dense<0.000000e+00> : vector<1x16xf32>
    %94 = tpu.matmul %93, %64, %cst_36 {dimension_numbers = #tpu.dot_dimension_numbers<[1], [1], [0], [0], [0, 0, 1, 0], [], []>} : vector<1x32xbf16>, vector<16x32xbf16>, vector<1x16xf32> -> vector<1x16xf32>
    %95 = vector.shape_cast %94 : vector<1x16xf32> to vector<1x16xf32>
    %96 = vector.broadcast %95 : vector<1x16xf32> to vector<16x16xf32>
    %97 = arith.addf %96, %15 : vector<16x16xf32>
    %cst_37 = arith.constant dense<0xFF800000> : vector<16xf32>
    %98 = vector.multi_reduction <maximumf>, %97, %cst_37 [1] : vector<16x16xf32> to vector<16xf32>
    %99 = vector.shape_cast %98 : vector<16xf32> to vector<16x1xf32>
    %100 = vector.broadcast %99 : vector<16x1xf32> to vector<16x16xf32>
    %101 = arith.subf %97, %100 : vector<16x16xf32>
    %102 = math.exp %101 : vector<16x16xf32>
    %cst_38 = arith.constant dense<0.000000e+00> : vector<16xf32>
    %103 = vector.multi_reduction <add>, %102, %cst_38 [1] : vector<16x16xf32> to vector<16xf32>
    %104 = vector.shape_cast %103 : vector<16xf32> to vector<16x1xf32>
    %105 = tpu.reciprocal %104 {approx = true} : vector<16x1xf32> -> vector<16x1xf32>
    %106 = vector.broadcast %105 : vector<16x1xf32> to vector<16x16xf32>
    %107 = arith.mulf %102, %106 : vector<16x16xf32>
    %cst_39 = arith.constant -5.000000e+08 : f32
    %108 = vector.broadcast %cst_39 : f32 to vector<16x1xf32>
    %109 = arith.cmpf ogt, %99, %108 : vector<16x1xf32>
    %cst_40 = arith.constant 0.000000e+00 : f32
    %110 = vector.shape_cast %109 : vector<16x1xi1> to vector<16x1xi1>
    %111 = vector.broadcast %110 : vector<16x1xi1> to vector<16x16xi1>
    %112 = vector.broadcast %cst_40 : f32 to vector<16x16xf32>
    %113 = arith.select %111, %107, %112 : vector<16x16xi1>, vector<16x16xf32>
    %114 = arith.truncf %113 : vector<16x16xf32> to vector<16x16xbf16>
    %115 = vector.broadcast %32 : vector<1x32xbf16> to vector<16x32xbf16>
    %116 = arith.mulf %65, %115 : vector<16x32xbf16>
    %cst_41 = arith.constant dense<0.000000e+00> : vector<16x32xf32>
    %117 = tpu.matmul %114, %116, %cst_41 {dimension_numbers = #tpu.dot_dimension_numbers<[1], [0], [0], [1], [0, 0, 1, 1], [], []>} : vector<16x16xbf16>, vector<16x32xbf16>, vector<16x32xf32> -> vector<16x32xf32>
    %118 = arith.addf %92, %117 : vector<16x32xf32>
    %119 = arith.mulf %63, %40 : vector<1x32xbf16>
    %cst_42 = arith.constant dense<0.000000e+00> : vector<1x16xf32>
    %120 = tpu.matmul %119, %64, %cst_42 {dimension_numbers = #tpu.dot_dimension_numbers<[1], [1], [0], [0], [0, 0, 1, 0], [], []>} : vector<1x32xbf16>, vector<16x32xbf16>, vector<1x16xf32> -> vector<1x16xf32>
    %121 = vector.shape_cast %120 : vector<1x16xf32> to vector<1x16xf32>
    %122 = vector.broadcast %121 : vector<1x16xf32> to vector<16x16xf32>
    %123 = arith.addf %122, %15 : vector<16x16xf32>
    %cst_43 = arith.constant dense<0xFF800000> : vector<16xf32>
    %124 = vector.multi_reduction <maximumf>, %123, %cst_43 [1] : vector<16x16xf32> to vector<16xf32>
    %125 = vector.shape_cast %124 : vector<16xf32> to vector<16x1xf32>
    %126 = vector.broadcast %125 : vector<16x1xf32> to vector<16x16xf32>
    %127 = arith.subf %123, %126 : vector<16x16xf32>
    %128 = math.exp %127 : vector<16x16xf32>
    %cst_44 = arith.constant dense<0.000000e+00> : vector<16xf32>
    %129 = vector.multi_reduction <add>, %128, %cst_44 [1] : vector<16x16xf32> to vector<16xf32>
    %130 = vector.shape_cast %129 : vector<16xf32> to vector<16x1xf32>
    %131 = tpu.reciprocal %130 {approx = true} : vector<16x1xf32> -> vector<16x1xf32>
    %132 = vector.broadcast %131 : vector<16x1xf32> to vector<16x16xf32>
    %133 = arith.mulf %128, %132 : vector<16x16xf32>
    %cst_45 = arith.constant -5.000000e+08 : f32
    %134 = vector.broadcast %cst_45 : f32 to vector<16x1xf32>
    %135 = arith.cmpf ogt, %125, %134 : vector<16x1xf32>
    %cst_46 = arith.constant 0.000000e+00 : f32
    %136 = vector.shape_cast %135 : vector<16x1xi1> to vector<16x1xi1>
    %137 = vector.broadcast %136 : vector<16x1xi1> to vector<16x16xi1>
    %138 = vector.broadcast %cst_46 : f32 to vector<16x16xf32>
    %139 = arith.select %137, %133, %138 : vector<16x16xi1>, vector<16x16xf32>
    %140 = arith.truncf %139 : vector<16x16xf32> to vector<16x16xbf16>
    %141 = vector.broadcast %40 : vector<1x32xbf16> to vector<16x32xbf16>
    %142 = arith.mulf %65, %141 : vector<16x32xbf16>
    %cst_47 = arith.constant dense<0.000000e+00> : vector<16x32xf32>
    %143 = tpu.matmul %140, %142, %cst_47 {dimension_numbers = #tpu.dot_dimension_numbers<[1], [0], [0], [1], [0, 0, 1, 1], [], []>} : vector<16x16xbf16>, vector<16x32xbf16>, vector<16x32xf32> -> vector<16x32xf32>
    %144 = arith.addf %118, %143 : vector<16x32xf32>
    %145 = arith.mulf %63, %48 : vector<1x32xbf16>
    %cst_48 = arith.constant dense<0.000000e+00> : vector<1x16xf32>
    %146 = tpu.matmul %145, %64, %cst_48 {dimension_numbers = #tpu.dot_dimension_numbers<[1], [1], [0], [0], [0, 0, 1, 0], [], []>} : vector<1x32xbf16>, vector<16x32xbf16>, vector<1x16xf32> -> vector<1x16xf32>
    %147 = vector.shape_cast %146 : vector<1x16xf32> to vector<1x16xf32>
    %148 = vector.broadcast %147 : vector<1x16xf32> to vector<16x16xf32>
    %149 = arith.addf %148, %15 : vector<16x16xf32>
    %cst_49 = arith.constant dense<0xFF800000> : vector<16xf32>
    %150 = vector.multi_reduction <maximumf>, %149, %cst_49 [1] : vector<16x16xf32> to vector<16xf32>
    %151 = vector.shape_cast %150 : vector<16xf32> to vector<16x1xf32>
    %152 = vector.broadcast %151 : vector<16x1xf32> to vector<16x16xf32>
    %153 = arith.subf %149, %152 : vector<16x16xf32>
    %154 = math.exp %153 : vector<16x16xf32>
    %cst_50 = arith.constant dense<0.000000e+00> : vector<16xf32>
    %155 = vector.multi_reduction <add>, %154, %cst_50 [1] : vector<16x16xf32> to vector<16xf32>
    %156 = vector.shape_cast %155 : vector<16xf32> to vector<16x1xf32>
    %157 = tpu.reciprocal %156 {approx = true} : vector<16x1xf32> -> vector<16x1xf32>
    %158 = vector.broadcast %157 : vector<16x1xf32> to vector<16x16xf32>
    %159 = arith.mulf %154, %158 : vector<16x16xf32>
    %cst_51 = arith.constant -5.000000e+08 : f32
    %160 = vector.broadcast %cst_51 : f32 to vector<16x1xf32>
    %161 = arith.cmpf ogt, %151, %160 : vector<16x1xf32>
    %cst_52 = arith.constant 0.000000e+00 : f32
    %162 = vector.shape_cast %161 : vector<16x1xi1> to vector<16x1xi1>
    %163 = vector.broadcast %162 : vector<16x1xi1> to vector<16x16xi1>
    %164 = vector.broadcast %cst_52 : f32 to vector<16x16xf32>
    %165 = arith.select %163, %159, %164 : vector<16x16xi1>, vector<16x16xf32>
    %166 = arith.truncf %165 : vector<16x16xf32> to vector<16x16xbf16>
    %167 = vector.broadcast %48 : vector<1x32xbf16> to vector<16x32xbf16>
    %168 = arith.mulf %65, %167 : vector<16x32xbf16>
    %cst_53 = arith.constant dense<0.000000e+00> : vector<16x32xf32>
    %169 = tpu.matmul %166, %168, %cst_53 {dimension_numbers = #tpu.dot_dimension_numbers<[1], [0], [0], [1], [0, 0, 1, 1], [], []>} : vector<16x16xbf16>, vector<16x32xbf16>, vector<16x32xf32> -> vector<16x32xf32>
    %170 = arith.addf %144, %169 : vector<16x32xf32>
    %171 = arith.truncf %170 : vector<16x32xf32> to vector<16x32xbf16>
    %c0_54 = arith.constant 0 : index
    %c0_55 = arith.constant 0 : index
    %172 = vector.load %arg11[%c0_54, %c0_55] : memref<32x32xbf16, #tpu.memory_space<vmem>>, vector<32x32xbf16>
    %cst_56 = arith.constant dense<0.000000e+00> : vector<16x32xf32>
    %173 = tpu.matmul %171, %172, %cst_56 {dimension_numbers = #tpu.dot_dimension_numbers<[1], [0], [0], [1], [0, 0, 1, 1], [], []>} : vector<16x32xbf16>, vector<32x32xbf16>, vector<16x32xf32> -> vector<16x32xf32>
    %c0_57 = arith.constant 0 : index
    %c0_58 = arith.constant 0 : index
    %174 = vector.load %arg12[%c0_57, %c0_58] : memref<1x32xf32, #tpu.memory_space<vmem>>, vector<1x32xf32>
    %175 = vector.broadcast %174 : vector<1x32xf32> to vector<16x32xf32>
    %176 = arith.addf %173, %175 : vector<16x32xf32>
    %c0_59 = arith.constant 0 : index
    %c0_60 = arith.constant 0 : index
    %177 = vector.load %arg13[%c0_59, %c0_60] : memref<64x32xf32, #tpu.memory_space<vmem>>, vector<64x32xf32>
    %178 = arith.mulf %176, %176 : vector<16x32xf32>
    %cst_61 = arith.constant dense<0.000000e+00> : vector<16xf32>
    %179 = vector.multi_reduction <add>, %178, %cst_61 [1] : vector<16x32xf32> to vector<16xf32>
    %180 = vector.shape_cast %179 : vector<16xf32> to vector<16x1xf32>
    %181 = arith.mulf %177, %177 : vector<64x32xf32>
    %cst_62 = arith.constant dense<0.000000e+00> : vector<64xf32>
    %182 = vector.multi_reduction <add>, %181, %cst_62 [1] : vector<64x32xf32> to vector<64xf32>
    %183 = vector.shape_cast %182 : vector<64xf32> to vector<1x64xf32>
    %cst_63 = arith.constant dense<0.000000e+00> : vector<16x64xf32>
    %184 = tpu.matmul %176, %177, %cst_63 {dimension_numbers = #tpu.dot_dimension_numbers<[1], [1], [0], [0], [0, 0, 1, 0], [], []>} : vector<16x32xf32>, vector<64x32xf32>, vector<16x64xf32> -> vector<16x64xf32>
    %cst_64 = arith.constant 2.000000e+00 : f32
    %185 = vector.broadcast %cst_64 : f32 to vector<16x64xf32>
    %186 = arith.mulf %185, %184 : vector<16x64xf32>
    %187 = vector.broadcast %180 : vector<16x1xf32> to vector<16x64xf32>
    %188 = arith.subf %187, %186 : vector<16x64xf32>
    %189 = vector.broadcast %183 : vector<1x64xf32> to vector<16x64xf32>
    %190 = arith.addf %188, %189 : vector<16x64xf32>
    %cst_65 = arith.constant dense<0x7F800000> : vector<16xf32>
    %191 = vector.multi_reduction <minimumf>, %190, %cst_65 [1] : vector<16x64xf32> to vector<16xf32>
    %192 = vector.shape_cast %191 : vector<16xf32> to vector<16x1xf32>
    %193 = tpu.iota {dimensions = array<i32: 1>} : vector<16x64xi32>
    %194 = vector.broadcast %192 : vector<16x1xf32> to vector<16x64xf32>
    %195 = arith.cmpf ole, %190, %194 : vector<16x64xf32>
    %c64_i32 = arith.constant 64 : i32
    %196 = vector.broadcast %c64_i32 : i32 to vector<16x64xi32>
    %197 = arith.select %195, %193, %196 : vector<16x64xi1>, vector<16x64xi32>
    %cst_66 = arith.constant dense<2147483647> : vector<16xi32>
    %198 = vector.multi_reduction <minsi>, %197, %cst_66 [1] : vector<16x64xi32> to vector<16xi32>
    %199 = vector.shape_cast %198 : vector<16xi32> to vector<16x1xi32>
    %200 = vector.broadcast %199 : vector<16x1xi32> to vector<16x64xi32>
    %201 = arith.cmpi eq, %193, %200 : vector<16x64xi32>
    %202 = arith.extui %201 : vector<16x64xi1> to vector<16x64xi32>
    %203 = arith.sitofp %202 : vector<16x64xi32> to vector<16x64xf32>
    %cst_67 = arith.constant dense<0.000000e+00> : vector<16x32xf32>
    %204 = tpu.matmul %203, %177, %cst_67 {dimension_numbers = #tpu.dot_dimension_numbers<[1], [0], [0], [1], [0, 0, 1, 1], [], []>} : vector<16x64xf32>, vector<64x32xf32>, vector<16x32xf32> -> vector<16x32xf32>
    %205 = arith.sitofp %199 : vector<16x1xi32> to vector<16x1xf32>
    %206 = vector.shape_cast %205 : vector<16x1xf32> to vector<16x1xf32>
    %207 = vector.broadcast %206 : vector<16x1xf32> to vector<16x64xf32>
    %208 = tpu.concatenate %176, %204, %207 in 1 : vector<16x32xf32>, vector<16x32xf32>, vector<16x64xf32> -> vector<16x128xf32>
    %c0_68 = arith.constant 0 : index
    %c0_69 = arith.constant 0 : index
    %c0_70 = arith.constant 0 : index
    %209 = vector.load %arg14[%c0_68, %c0_69, %c0_70] : memref<1x16x128xf32, #tpu.memory_space<vmem>>, vector<1x16x128xf32>
    %210 = vector.shape_cast %209 : vector<1x16x128xf32> to vector<16x128xf32>
    %211 = vector.shape_cast %208 : vector<16x128xf32> to vector<1x16x128xf32>
    tpu.vector_store %arg14[%c0_68, %c0_69, %c0_70], %211 {strides = array<i32>} : memref<1x16x128xf32, #tpu.memory_space<vmem>>, vector<1x16x128xf32>,
    return
  }
  func.func @transform_0(%arg0: i32) -> (i32, i32, i32) {
    %c0_i32 = arith.constant 0 : i32
    %c0_i32_0 = arith.constant 0 : i32
    %c0_i32_1 = arith.constant 0 : i32
    return %arg0, %c0_i32, %c0_i32_0 : i32, i32, i32
  }
  func.func @transform_1(%arg0: i32) -> (i32, i32, i32) {
    %c0_i32 = arith.constant 0 : i32
    %c0_i32_0 = arith.constant 0 : i32
    %c0_i32_1 = arith.constant 0 : i32
    return %arg0, %c0_i32, %c0_i32_0 : i32, i32, i32
  }
  func.func @transform_2(%arg0: i32) -> (i32, i32, i32) {
    %c0_i32 = arith.constant 0 : i32
    %c0_i32_0 = arith.constant 0 : i32
    %c0_i32_1 = arith.constant 0 : i32
    return %arg0, %c0_i32, %c0_i32_0 : i32, i32, i32
  }
  func.func @transform_3(%arg0: i32) -> (i32, i32) {
    %c0_i32 = arith.constant 0 : i32
    %c0_i32_0 = arith.constant 0 : i32
    %c0_i32_1 = arith.constant 0 : i32
    return %c0_i32, %c0_i32_0 : i32, i32
  }
  func.func @transform_4(%arg0: i32) -> (i32, i32) {
    %c0_i32 = arith.constant 0 : i32
    %c0_i32_0 = arith.constant 0 : i32
    %c0_i32_1 = arith.constant 0 : i32
    return %c0_i32, %c0_i32_0 : i32, i32
  }
  func.func @transform_5(%arg0: i32) -> (i32, i32) {
    %c0_i32 = arith.constant 0 : i32
    %c0_i32_0 = arith.constant 0 : i32
    %c0_i32_1 = arith.constant 0 : i32
    return %c0_i32, %c0_i32_0 : i32, i32
  }
  func.func @transform_6(%arg0: i32) -> (i32, i32) {
    %c0_i32 = arith.constant 0 : i32
    %c0_i32_0 = arith.constant 0 : i32
    %c0_i32_1 = arith.constant 0 : i32
    return %c0_i32, %c0_i32_0 : i32, i32
  }
  func.func @transform_7(%arg0: i32) -> (i32, i32) {
    %c0_i32 = arith.constant 0 : i32
    %c0_i32_0 = arith.constant 0 : i32
    %c0_i32_1 = arith.constant 0 : i32
    return %c0_i32, %c0_i32_0 : i32, i32
  }
  func.func @transform_8(%arg0: i32) -> (i32, i32) {
    %c0_i32 = arith.constant 0 : i32
    %c0_i32_0 = arith.constant 0 : i32
    %c0_i32_1 = arith.constant 0 : i32
    return %c0_i32, %c0_i32_0 : i32, i32
  }
  func.func @transform_9(%arg0: i32) -> (i32, i32) {
    %c0_i32 = arith.constant 0 : i32
    %c0_i32_0 = arith.constant 0 : i32
    %c0_i32_1 = arith.constant 0 : i32
    return %c0_i32, %c0_i32_0 : i32, i32
  }
  func.func @transform_10(%arg0: i32) -> (i32, i32) {
    %c0_i32 = arith.constant 0 : i32
    %c0_i32_0 = arith.constant 0 : i32
    %c0_i32_1 = arith.constant 0 : i32
    return %c0_i32, %c0_i32_0 : i32, i32
  }
  func.func @transform_11(%arg0: i32) -> (i32, i32) {
    %c0_i32 = arith.constant 0 : i32
    %c0_i32_0 = arith.constant 0 : i32
    %c0_i32_1 = arith.constant 0 : i32
    return %c0_i32, %c0_i32_0 : i32, i32
  }
  func.func @transform_12(%arg0: i32) -> (i32, i32) {
    %c0_i32 = arith.constant 0 : i32
    %c0_i32_0 = arith.constant 0 : i32
    %c0_i32_1 = arith.constant 0 : i32
    return %c0_i32, %c0_i32_0 : i32, i32
  }
  func.func @transform_13(%arg0: i32) -> (i32, i32, i32) {
    %c0_i32 = arith.constant 0 : i32
    %c0_i32_0 = arith.constant 0 : i32
    %c0_i32_1 = arith.constant 0 : i32
    return %arg0, %c0_i32, %c0_i32_0 : i32, i32, i32
  }
}

module attributes {stable_mosaic.version = 11 : i64} {
  func.func @_encoder_kernel(%arg0: i32, %arg1: memref<1x16x32xf32, #tpu.memory_space<vmem>>, %arg2: memref<1x1x16xf32, #tpu.memory_space<vmem>>, %arg3: memref<3x1x32xf32, #tpu.memory_space<vmem>>, %arg4: memref<3x32x32xbf16, #tpu.memory_space<vmem>>, %arg5: memref<3x1x32xf32, #tpu.memory_space<vmem>>, %arg6: memref<3x32x32xbf16, #tpu.memory_space<vmem>>, %arg7: memref<3x1x32xf32, #tpu.memory_space<vmem>>, %arg8: memref<3x32x32xbf16, #tpu.memory_space<vmem>>, %arg9: memref<3x1x32xf32, #tpu.memory_space<vmem>>, %arg10: memref<3x32x32xbf16, #tpu.memory_space<vmem>>, %arg11: memref<3x1x32xf32, #tpu.memory_space<vmem>>, %arg12: memref<3x1x32xf32, #tpu.memory_space<vmem>>, %arg13: memref<3x32x128xbf16, #tpu.memory_space<vmem>>, %arg14: memref<3x1x128xf32, #tpu.memory_space<vmem>>, %arg15: memref<3x128x32xbf16, #tpu.memory_space<vmem>>, %arg16: memref<3x1x32xf32, #tpu.memory_space<vmem>>, %arg17: memref<1x32xf32, #tpu.memory_space<vmem>>, %arg18: memref<32x64xbf16, #tpu.memory_space<vmem>>, %arg19: memref<1x64xf32, #tpu.memory_space<vmem>>, %arg20: memref<1x16x32xbf16, #tpu.memory_space<vmem>>, %arg21: memref<1x16x128xf32, #tpu.memory_space<vmem>>) attributes {dimension_semantics = [#tpu.dimension_semantics<parallel>], iteration_bounds = array<i64: 2>, scalar_prefetch = 0 : i64, scratch_operands = 0 : i64, tpu.core_type = #tpu.core_type<tc>, window_params = [{transform_indices = @transform_0, window_bounds = array<i64: 1, 16, 32>}, {transform_indices = @transform_1, window_bounds = array<i64: 1, 1, 16>}, {pipeline_mode = #tpu.pipeline_mode<synchronous>, transform_indices = @transform_2, window_bounds = array<i64: 3, 1, 32>}, {pipeline_mode = #tpu.pipeline_mode<synchronous>, transform_indices = @transform_3, window_bounds = array<i64: 3, 32, 32>}, {pipeline_mode = #tpu.pipeline_mode<synchronous>, transform_indices = @transform_4, window_bounds = array<i64: 3, 1, 32>}, {pipeline_mode = #tpu.pipeline_mode<synchronous>, transform_indices = @transform_5, window_bounds = array<i64: 3, 32, 32>}, {pipeline_mode = #tpu.pipeline_mode<synchronous>, transform_indices = @transform_6, window_bounds = array<i64: 3, 1, 32>}, {pipeline_mode = #tpu.pipeline_mode<synchronous>, transform_indices = @transform_7, window_bounds = array<i64: 3, 32, 32>}, {pipeline_mode = #tpu.pipeline_mode<synchronous>, transform_indices = @transform_8, window_bounds = array<i64: 3, 1, 32>}, {pipeline_mode = #tpu.pipeline_mode<synchronous>, transform_indices = @transform_9, window_bounds = array<i64: 3, 32, 32>}, {pipeline_mode = #tpu.pipeline_mode<synchronous>, transform_indices = @transform_10, window_bounds = array<i64: 3, 1, 32>}, {pipeline_mode = #tpu.pipeline_mode<synchronous>, transform_indices = @transform_11, window_bounds = array<i64: 3, 1, 32>}, {pipeline_mode = #tpu.pipeline_mode<synchronous>, transform_indices = @transform_12, window_bounds = array<i64: 3, 32, 128>}, {pipeline_mode = #tpu.pipeline_mode<synchronous>, transform_indices = @transform_13, window_bounds = array<i64: 3, 1, 128>}, {pipeline_mode = #tpu.pipeline_mode<synchronous>, transform_indices = @transform_14, window_bounds = array<i64: 3, 128, 32>}, {pipeline_mode = #tpu.pipeline_mode<synchronous>, transform_indices = @transform_15, window_bounds = array<i64: 3, 1, 32>}, {pipeline_mode = #tpu.pipeline_mode<synchronous>, transform_indices = @transform_16, window_bounds = array<i64: 1, 32>}, {pipeline_mode = #tpu.pipeline_mode<synchronous>, transform_indices = @transform_17, window_bounds = array<i64: 32, 64>}, {pipeline_mode = #tpu.pipeline_mode<synchronous>, transform_indices = @transform_18, window_bounds = array<i64: 1, 64>}, {transform_indices = @transform_19, window_bounds = array<i64: 1, 16, 32>}, {transform_indices = @transform_20, window_bounds = array<i64: 1, 16, 128>}]} {
    %c0 = arith.constant 0 : index
    %c0_0 = arith.constant 0 : index
    %c0_1 = arith.constant 0 : index
    %0 = vector.load %arg1[%c0, %c0_0, %c0_1] : memref<1x16x32xf32, #tpu.memory_space<vmem>>, vector<1x16x32xf32>
    %1 = vector.shape_cast %0 : vector<1x16x32xf32> to vector<16x32xf32>
    %2 = tpu.iota {dimensions = array<i32: 0>} : vector<16x16xi32>
    %3 = tpu.iota {dimensions = array<i32: 1>} : vector<16x16xi32>
    %4 = arith.cmpi sle, %3, %2 : vector<16x16xi32>
    %5 = arith.subi %2, %3 : vector<16x16xi32>
    %c8_i32 = arith.constant 8 : i32
    %6 = vector.broadcast %c8_i32 : i32 to vector<16x16xi32>
    %7 = arith.cmpi slt, %5, %6 : vector<16x16xi32>
    %8 = arith.andi %4, %7 : vector<16x16xi1>
    %cst = arith.constant 0.000000e+00 : f32
    %cst_2 = arith.constant -1.000000e+09 : f32
    %9 = vector.broadcast %cst : f32 to vector<16x16xf32>
    %10 = vector.broadcast %cst_2 : f32 to vector<16x16xf32>
    %11 = arith.select %8, %9, %10 : vector<16x16xi1>, vector<16x16xf32>
    %c0_3 = arith.constant 0 : index
    %c0_4 = arith.constant 0 : index
    %c0_5 = arith.constant 0 : index
    %12 = vector.load %arg2[%c0_3, %c0_4, %c0_5] : memref<1x1x16xf32, #tpu.memory_space<vmem>>, vector<1x1x16xf32>
    %13 = vector.shape_cast %12 : vector<1x1x16xf32> to vector<1x16xf32>
    %14 = vector.broadcast %13 : vector<1x16xf32> to vector<16x16xf32>
    %15 = arith.addf %11, %14 : vector<16x16xf32>
    %16 = tpu.iota {dimensions = array<i32: 1>} : vector<1x32xi32>
    %c0_i32 = arith.constant 0 : i32
    %17 = vector.broadcast %c0_i32 : i32 to vector<1x32xi32>
    %18 = arith.cmpi sge, %16, %17 : vector<1x32xi32>
    %c8_i32_6 = arith.constant 8 : i32
    %19 = vector.broadcast %c8_i32_6 : i32 to vector<1x32xi32>
    %20 = arith.cmpi slt, %16, %19 : vector<1x32xi32>
    %21 = arith.andi %18, %20 : vector<1x32xi1>
    %22 = arith.extui %21 : vector<1x32xi1> to vector<1x32xi32>
    %23 = arith.sitofp %22 : vector<1x32xi32> to vector<1x32xf32>
    %24 = arith.truncf %23 : vector<1x32xf32> to vector<1x32xbf16>
    %c8_i32_7 = arith.constant 8 : i32
    %25 = vector.broadcast %c8_i32_7 : i32 to vector<1x32xi32>
    %26 = arith.cmpi sge, %16, %25 : vector<1x32xi32>
    %c16_i32 = arith.constant 16 : i32
    %27 = vector.broadcast %c16_i32 : i32 to vector<1x32xi32>
    %28 = arith.cmpi slt, %16, %27 : vector<1x32xi32>
    %29 = arith.andi %26, %28 : vector<1x32xi1>
    %30 = arith.extui %29 : vector<1x32xi1> to vector<1x32xi32>
    %31 = arith.sitofp %30 : vector<1x32xi32> to vector<1x32xf32>
    %32 = arith.truncf %31 : vector<1x32xf32> to vector<1x32xbf16>
    %c16_i32_8 = arith.constant 16 : i32
    %33 = vector.broadcast %c16_i32_8 : i32 to vector<1x32xi32>
    %34 = arith.cmpi sge, %16, %33 : vector<1x32xi32>
    %c24_i32 = arith.constant 24 : i32
    %35 = vector.broadcast %c24_i32 : i32 to vector<1x32xi32>
    %36 = arith.cmpi slt, %16, %35 : vector<1x32xi32>
    %37 = arith.andi %34, %36 : vector<1x32xi1>
    %38 = arith.extui %37 : vector<1x32xi1> to vector<1x32xi32>
    %39 = arith.sitofp %38 : vector<1x32xi32> to vector<1x32xf32>
    %40 = arith.truncf %39 : vector<1x32xf32> to vector<1x32xbf16>
    %c24_i32_9 = arith.constant 24 : i32
    %41 = vector.broadcast %c24_i32_9 : i32 to vector<1x32xi32>
    %42 = arith.cmpi sge, %16, %41 : vector<1x32xi32>
    %c32_i32 = arith.constant 32 : i32
    %43 = vector.broadcast %c32_i32 : i32 to vector<1x32xi32>
    %44 = arith.cmpi slt, %16, %43 : vector<1x32xi32>
    %45 = arith.andi %42, %44 : vector<1x32xi1>
    %46 = arith.extui %45 : vector<1x32xi1> to vector<1x32xi32>
    %47 = arith.sitofp %46 : vector<1x32xi32> to vector<1x32xf32>
    %48 = arith.truncf %47 : vector<1x32xf32> to vector<1x32xbf16>
    %c0_10 = arith.constant 0 : index
    %c0_11 = arith.constant 0 : index
    %c0_12 = arith.constant 0 : index
    %49 = vector.load %arg3[%c0_10, %c0_11, %c0_12] : memref<3x1x32xf32, #tpu.memory_space<vmem>>, vector<1x1x32xf32>
    %50 = vector.shape_cast %49 : vector<1x1x32xf32> to vector<1x32xf32>
    %51 = arith.mulf %1, %1 : vector<16x32xf32>
    %cst_13 = arith.constant dense<0.000000e+00> : vector<16xf32>
    %52 = vector.multi_reduction <add>, %51, %cst_13 [1] : vector<16x32xf32> to vector<16xf32>
    %53 = vector.shape_cast %52 : vector<16xf32> to vector<16x1xf32>
    %cst_14 = arith.constant 3.200000e+01 : f32
    %54 = vector.broadcast %cst_14 : f32 to vector<16x1xf32>
    %55 = arith.divf %53, %54 : vector<16x1xf32>
    %cst_15 = arith.constant 9.99999997E-7 : f32
    %56 = vector.broadcast %cst_15 : f32 to vector<16x1xf32>
    %57 = arith.addf %55, %56 : vector<16x1xf32>
    %58 = math.rsqrt %57 : vector<16x1xf32>
    %59 = vector.broadcast %58 : vector<16x1xf32> to vector<16x32xf32>
    %60 = arith.mulf %1, %59 : vector<16x32xf32>
    %61 = vector.broadcast %50 : vector<1x32xf32> to vector<16x32xf32>
    %62 = arith.mulf %60, %61 : vector<16x32xf32>
    %63 = arith.truncf %62 : vector<16x32xf32> to vector<16x32xbf16>
    %c0_16 = arith.constant 0 : index
    %c0_17 = arith.constant 0 : index
    %c0_18 = arith.constant 0 : index
    %64 = vector.load %arg4[%c0_16, %c0_17, %c0_18] : memref<3x32x32xbf16, #tpu.memory_space<vmem>>, vector<1x32x32xbf16>
    %65 = vector.shape_cast %64 : vector<1x32x32xbf16> to vector<32x32xbf16>
    %cst_19 = arith.constant dense<0.000000e+00> : vector<16x32xf32>
    %66 = tpu.matmul %63, %65, %cst_19 {dimension_numbers = #tpu.dot_dimension_numbers<[1], [0], [0], [1], [0, 0, 1, 1], [], []>} : vector<16x32xbf16>, vector<32x32xbf16>, vector<16x32xf32> -> vector<16x32xf32>
    %c0_20 = arith.constant 0 : index
    %c0_21 = arith.constant 0 : index
    %c0_22 = arith.constant 0 : index
    %67 = vector.load %arg5[%c0_20, %c0_21, %c0_22] : memref<3x1x32xf32, #tpu.memory_space<vmem>>, vector<1x1x32xf32>
    %68 = vector.shape_cast %67 : vector<1x1x32xf32> to vector<1x32xf32>
    %69 = vector.broadcast %68 : vector<1x32xf32> to vector<16x32xf32>
    %70 = arith.addf %66, %69 : vector<16x32xf32>
    %c0_23 = arith.constant 0 : index
    %c0_24 = arith.constant 0 : index
    %c0_25 = arith.constant 0 : index
    %71 = vector.load %arg6[%c0_23, %c0_24, %c0_25] : memref<3x32x32xbf16, #tpu.memory_space<vmem>>, vector<1x32x32xbf16>
    %72 = vector.shape_cast %71 : vector<1x32x32xbf16> to vector<32x32xbf16>
    %cst_26 = arith.constant dense<0.000000e+00> : vector<16x32xf32>
    %73 = tpu.matmul %63, %72, %cst_26 {dimension_numbers = #tpu.dot_dimension_numbers<[1], [0], [0], [1], [0, 0, 1, 1], [], []>} : vector<16x32xbf16>, vector<32x32xbf16>, vector<16x32xf32> -> vector<16x32xf32>
    %c0_27 = arith.constant 0 : index
    %c0_28 = arith.constant 0 : index
    %c0_29 = arith.constant 0 : index
    %74 = vector.load %arg7[%c0_27, %c0_28, %c0_29] : memref<3x1x32xf32, #tpu.memory_space<vmem>>, vector<1x1x32xf32>
    %75 = vector.shape_cast %74 : vector<1x1x32xf32> to vector<1x32xf32>
    %76 = vector.broadcast %75 : vector<1x32xf32> to vector<16x32xf32>
    %77 = arith.addf %73, %76 : vector<16x32xf32>
    %c0_30 = arith.constant 0 : index
    %c0_31 = arith.constant 0 : index
    %c0_32 = arith.constant 0 : index
    %78 = vector.load %arg8[%c0_30, %c0_31, %c0_32] : memref<3x32x32xbf16, #tpu.memory_space<vmem>>, vector<1x32x32xbf16>
    %79 = vector.shape_cast %78 : vector<1x32x32xbf16> to vector<32x32xbf16>
    %cst_33 = arith.constant dense<0.000000e+00> : vector<16x32xf32>
    %80 = tpu.matmul %63, %79, %cst_33 {dimension_numbers = #tpu.dot_dimension_numbers<[1], [0], [0], [1], [0, 0, 1, 1], [], []>} : vector<16x32xbf16>, vector<32x32xbf16>, vector<16x32xf32> -> vector<16x32xf32>
    %c0_34 = arith.constant 0 : index
    %c0_35 = arith.constant 0 : index
    %c0_36 = arith.constant 0 : index
    %81 = vector.load %arg9[%c0_34, %c0_35, %c0_36] : memref<3x1x32xf32, #tpu.memory_space<vmem>>, vector<1x1x32xf32>
    %82 = vector.shape_cast %81 : vector<1x1x32xf32> to vector<1x32xf32>
    %83 = vector.broadcast %82 : vector<1x32xf32> to vector<16x32xf32>
    %84 = arith.addf %80, %83 : vector<16x32xf32>
    %85 = arith.truncf %70 : vector<16x32xf32> to vector<16x32xbf16>
    %86 = arith.truncf %77 : vector<16x32xf32> to vector<16x32xbf16>
    %87 = arith.truncf %84 : vector<16x32xf32> to vector<16x32xbf16>
    %cst_37 = arith.constant 0.000000e+00 : f32
    %88 = vector.broadcast %cst_37 : f32 to vector<16x32xf32>
    %89 = vector.broadcast %24 : vector<1x32xbf16> to vector<16x32xbf16>
    %90 = arith.mulf %85, %89 : vector<16x32xbf16>
    %cst_38 = arith.constant dense<0.000000e+00> : vector<16x16xf32>
    %91 = tpu.matmul %90, %86, %cst_38 {dimension_numbers = #tpu.dot_dimension_numbers<[1], [1], [0], [0], [0, 0, 1, 0], [], []>} : vector<16x32xbf16>, vector<16x32xbf16>, vector<16x16xf32> -> vector<16x16xf32>
    %92 = arith.addf %91, %15 : vector<16x16xf32>
    %cst_39 = arith.constant dense<0xFF800000> : vector<16xf32>
    %93 = vector.multi_reduction <maximumf>, %92, %cst_39 [1] : vector<16x16xf32> to vector<16xf32>
    %94 = vector.shape_cast %93 : vector<16xf32> to vector<16x1xf32>
    %95 = vector.broadcast %94 : vector<16x1xf32> to vector<16x16xf32>
    %96 = arith.subf %92, %95 : vector<16x16xf32>
    %97 = math.exp %96 : vector<16x16xf32>
    %cst_40 = arith.constant dense<0.000000e+00> : vector<16xf32>
    %98 = vector.multi_reduction <add>, %97, %cst_40 [1] : vector<16x16xf32> to vector<16xf32>
    %99 = vector.shape_cast %98 : vector<16xf32> to vector<16x1xf32>
    %100 = tpu.reciprocal %99 {approx = true} : vector<16x1xf32> -> vector<16x1xf32>
    %101 = vector.broadcast %100 : vector<16x1xf32> to vector<16x16xf32>
    %102 = arith.mulf %97, %101 : vector<16x16xf32>
    %cst_41 = arith.constant -5.000000e+08 : f32
    %103 = vector.broadcast %cst_41 : f32 to vector<16x1xf32>
    %104 = arith.cmpf ogt, %94, %103 : vector<16x1xf32>
    %cst_42 = arith.constant 0.000000e+00 : f32
    %105 = vector.shape_cast %104 : vector<16x1xi1> to vector<16x1xi1>
    %106 = vector.broadcast %105 : vector<16x1xi1> to vector<16x16xi1>
    %107 = vector.broadcast %cst_42 : f32 to vector<16x16xf32>
    %108 = arith.select %106, %102, %107 : vector<16x16xi1>, vector<16x16xf32>
    %109 = arith.truncf %108 : vector<16x16xf32> to vector<16x16xbf16>
    %110 = vector.broadcast %24 : vector<1x32xbf16> to vector<16x32xbf16>
    %111 = arith.mulf %87, %110 : vector<16x32xbf16>
    %cst_43 = arith.constant dense<0.000000e+00> : vector<16x32xf32>
    %112 = tpu.matmul %109, %111, %cst_43 {dimension_numbers = #tpu.dot_dimension_numbers<[1], [0], [0], [1], [0, 0, 1, 1], [], []>} : vector<16x16xbf16>, vector<16x32xbf16>, vector<16x32xf32> -> vector<16x32xf32>
    %113 = arith.addf %88, %112 : vector<16x32xf32>
    %114 = vector.broadcast %32 : vector<1x32xbf16> to vector<16x32xbf16>
    %115 = arith.mulf %85, %114 : vector<16x32xbf16>
    %cst_44 = arith.constant dense<0.000000e+00> : vector<16x16xf32>
    %116 = tpu.matmul %115, %86, %cst_44 {dimension_numbers = #tpu.dot_dimension_numbers<[1], [1], [0], [0], [0, 0, 1, 0], [], []>} : vector<16x32xbf16>, vector<16x32xbf16>, vector<16x16xf32> -> vector<16x16xf32>
    %117 = arith.addf %116, %15 : vector<16x16xf32>
    %cst_45 = arith.constant dense<0xFF800000> : vector<16xf32>
    %118 = vector.multi_reduction <maximumf>, %117, %cst_45 [1] : vector<16x16xf32> to vector<16xf32>
    %119 = vector.shape_cast %118 : vector<16xf32> to vector<16x1xf32>
    %120 = vector.broadcast %119 : vector<16x1xf32> to vector<16x16xf32>
    %121 = arith.subf %117, %120 : vector<16x16xf32>
    %122 = math.exp %121 : vector<16x16xf32>
    %cst_46 = arith.constant dense<0.000000e+00> : vector<16xf32>
    %123 = vector.multi_reduction <add>, %122, %cst_46 [1] : vector<16x16xf32> to vector<16xf32>
    %124 = vector.shape_cast %123 : vector<16xf32> to vector<16x1xf32>
    %125 = tpu.reciprocal %124 {approx = true} : vector<16x1xf32> -> vector<16x1xf32>
    %126 = vector.broadcast %125 : vector<16x1xf32> to vector<16x16xf32>
    %127 = arith.mulf %122, %126 : vector<16x16xf32>
    %cst_47 = arith.constant -5.000000e+08 : f32
    %128 = vector.broadcast %cst_47 : f32 to vector<16x1xf32>
    %129 = arith.cmpf ogt, %119, %128 : vector<16x1xf32>
    %cst_48 = arith.constant 0.000000e+00 : f32
    %130 = vector.shape_cast %129 : vector<16x1xi1> to vector<16x1xi1>
    %131 = vector.broadcast %130 : vector<16x1xi1> to vector<16x16xi1>
    %132 = vector.broadcast %cst_48 : f32 to vector<16x16xf32>
    %133 = arith.select %131, %127, %132 : vector<16x16xi1>, vector<16x16xf32>
    %134 = arith.truncf %133 : vector<16x16xf32> to vector<16x16xbf16>
    %135 = vector.broadcast %32 : vector<1x32xbf16> to vector<16x32xbf16>
    %136 = arith.mulf %87, %135 : vector<16x32xbf16>
    %cst_49 = arith.constant dense<0.000000e+00> : vector<16x32xf32>
    %137 = tpu.matmul %134, %136, %cst_49 {dimension_numbers = #tpu.dot_dimension_numbers<[1], [0], [0], [1], [0, 0, 1, 1], [], []>} : vector<16x16xbf16>, vector<16x32xbf16>, vector<16x32xf32> -> vector<16x32xf32>
    %138 = arith.addf %113, %137 : vector<16x32xf32>
    %139 = vector.broadcast %40 : vector<1x32xbf16> to vector<16x32xbf16>
    %140 = arith.mulf %85, %139 : vector<16x32xbf16>
    %cst_50 = arith.constant dense<0.000000e+00> : vector<16x16xf32>
    %141 = tpu.matmul %140, %86, %cst_50 {dimension_numbers = #tpu.dot_dimension_numbers<[1], [1], [0], [0], [0, 0, 1, 0], [], []>} : vector<16x32xbf16>, vector<16x32xbf16>, vector<16x16xf32> -> vector<16x16xf32>
    %142 = arith.addf %141, %15 : vector<16x16xf32>
    %cst_51 = arith.constant dense<0xFF800000> : vector<16xf32>
    %143 = vector.multi_reduction <maximumf>, %142, %cst_51 [1] : vector<16x16xf32> to vector<16xf32>
    %144 = vector.shape_cast %143 : vector<16xf32> to vector<16x1xf32>
    %145 = vector.broadcast %144 : vector<16x1xf32> to vector<16x16xf32>
    %146 = arith.subf %142, %145 : vector<16x16xf32>
    %147 = math.exp %146 : vector<16x16xf32>
    %cst_52 = arith.constant dense<0.000000e+00> : vector<16xf32>
    %148 = vector.multi_reduction <add>, %147, %cst_52 [1] : vector<16x16xf32> to vector<16xf32>
    %149 = vector.shape_cast %148 : vector<16xf32> to vector<16x1xf32>
    %150 = tpu.reciprocal %149 {approx = true} : vector<16x1xf32> -> vector<16x1xf32>
    %151 = vector.broadcast %150 : vector<16x1xf32> to vector<16x16xf32>
    %152 = arith.mulf %147, %151 : vector<16x16xf32>
    %cst_53 = arith.constant -5.000000e+08 : f32
    %153 = vector.broadcast %cst_53 : f32 to vector<16x1xf32>
    %154 = arith.cmpf ogt, %144, %153 : vector<16x1xf32>
    %cst_54 = arith.constant 0.000000e+00 : f32
    %155 = vector.shape_cast %154 : vector<16x1xi1> to vector<16x1xi1>
    %156 = vector.broadcast %155 : vector<16x1xi1> to vector<16x16xi1>
    %157 = vector.broadcast %cst_54 : f32 to vector<16x16xf32>
    %158 = arith.select %156, %152, %157 : vector<16x16xi1>, vector<16x16xf32>
    %159 = arith.truncf %158 : vector<16x16xf32> to vector<16x16xbf16>
    %160 = vector.broadcast %40 : vector<1x32xbf16> to vector<16x32xbf16>
    %161 = arith.mulf %87, %160 : vector<16x32xbf16>
    %cst_55 = arith.constant dense<0.000000e+00> : vector<16x32xf32>
    %162 = tpu.matmul %159, %161, %cst_55 {dimension_numbers = #tpu.dot_dimension_numbers<[1], [0], [0], [1], [0, 0, 1, 1], [], []>} : vector<16x16xbf16>, vector<16x32xbf16>, vector<16x32xf32> -> vector<16x32xf32>
    %163 = arith.addf %138, %162 : vector<16x32xf32>
    %164 = vector.broadcast %48 : vector<1x32xbf16> to vector<16x32xbf16>
    %165 = arith.mulf %85, %164 : vector<16x32xbf16>
    %cst_56 = arith.constant dense<0.000000e+00> : vector<16x16xf32>
    %166 = tpu.matmul %165, %86, %cst_56 {dimension_numbers = #tpu.dot_dimension_numbers<[1], [1], [0], [0], [0, 0, 1, 0], [], []>} : vector<16x32xbf16>, vector<16x32xbf16>, vector<16x16xf32> -> vector<16x16xf32>
    %167 = arith.addf %166, %15 : vector<16x16xf32>
    %cst_57 = arith.constant dense<0xFF800000> : vector<16xf32>
    %168 = vector.multi_reduction <maximumf>, %167, %cst_57 [1] : vector<16x16xf32> to vector<16xf32>
    %169 = vector.shape_cast %168 : vector<16xf32> to vector<16x1xf32>
    %170 = vector.broadcast %169 : vector<16x1xf32> to vector<16x16xf32>
    %171 = arith.subf %167, %170 : vector<16x16xf32>
    %172 = math.exp %171 : vector<16x16xf32>
    %cst_58 = arith.constant dense<0.000000e+00> : vector<16xf32>
    %173 = vector.multi_reduction <add>, %172, %cst_58 [1] : vector<16x16xf32> to vector<16xf32>
    %174 = vector.shape_cast %173 : vector<16xf32> to vector<16x1xf32>
    %175 = tpu.reciprocal %174 {approx = true} : vector<16x1xf32> -> vector<16x1xf32>
    %176 = vector.broadcast %175 : vector<16x1xf32> to vector<16x16xf32>
    %177 = arith.mulf %172, %176 : vector<16x16xf32>
    %cst_59 = arith.constant -5.000000e+08 : f32
    %178 = vector.broadcast %cst_59 : f32 to vector<16x1xf32>
    %179 = arith.cmpf ogt, %169, %178 : vector<16x1xf32>
    %cst_60 = arith.constant 0.000000e+00 : f32
    %180 = vector.shape_cast %179 : vector<16x1xi1> to vector<16x1xi1>
    %181 = vector.broadcast %180 : vector<16x1xi1> to vector<16x16xi1>
    %182 = vector.broadcast %cst_60 : f32 to vector<16x16xf32>
    %183 = arith.select %181, %177, %182 : vector<16x16xi1>, vector<16x16xf32>
    %184 = arith.truncf %183 : vector<16x16xf32> to vector<16x16xbf16>
    %185 = vector.broadcast %48 : vector<1x32xbf16> to vector<16x32xbf16>
    %186 = arith.mulf %87, %185 : vector<16x32xbf16>
    %cst_61 = arith.constant dense<0.000000e+00> : vector<16x32xf32>
    %187 = tpu.matmul %184, %186, %cst_61 {dimension_numbers = #tpu.dot_dimension_numbers<[1], [0], [0], [1], [0, 0, 1, 1], [], []>} : vector<16x16xbf16>, vector<16x32xbf16>, vector<16x32xf32> -> vector<16x32xf32>
    %188 = arith.addf %163, %187 : vector<16x32xf32>
    %189 = arith.truncf %188 : vector<16x32xf32> to vector<16x32xbf16>
    %c0_62 = arith.constant 0 : index
    %c0_63 = arith.constant 0 : index
    %c0_64 = arith.constant 0 : index
    %190 = vector.load %arg10[%c0_62, %c0_63, %c0_64] : memref<3x32x32xbf16, #tpu.memory_space<vmem>>, vector<1x32x32xbf16>
    %191 = vector.shape_cast %190 : vector<1x32x32xbf16> to vector<32x32xbf16>
    %cst_65 = arith.constant dense<0.000000e+00> : vector<16x32xf32>
    %192 = tpu.matmul %189, %191, %cst_65 {dimension_numbers = #tpu.dot_dimension_numbers<[1], [0], [0], [1], [0, 0, 1, 1], [], []>} : vector<16x32xbf16>, vector<32x32xbf16>, vector<16x32xf32> -> vector<16x32xf32>
    %c0_66 = arith.constant 0 : index
    %c0_67 = arith.constant 0 : index
    %c0_68 = arith.constant 0 : index
    %193 = vector.load %arg11[%c0_66, %c0_67, %c0_68] : memref<3x1x32xf32, #tpu.memory_space<vmem>>, vector<1x1x32xf32>
    %194 = vector.shape_cast %193 : vector<1x1x32xf32> to vector<1x32xf32>
    %195 = vector.broadcast %194 : vector<1x32xf32> to vector<16x32xf32>
    %196 = arith.addf %192, %195 : vector<16x32xf32>
    %197 = arith.addf %1, %196 : vector<16x32xf32>
    %c0_69 = arith.constant 0 : index
    %c0_70 = arith.constant 0 : index
    %c0_71 = arith.constant 0 : index
    %198 = vector.load %arg12[%c0_69, %c0_70, %c0_71] : memref<3x1x32xf32, #tpu.memory_space<vmem>>, vector<1x1x32xf32>
    %199 = vector.shape_cast %198 : vector<1x1x32xf32> to vector<1x32xf32>
    %200 = arith.mulf %197, %197 : vector<16x32xf32>
    %cst_72 = arith.constant dense<0.000000e+00> : vector<16xf32>
    %201 = vector.multi_reduction <add>, %200, %cst_72 [1] : vector<16x32xf32> to vector<16xf32>
    %202 = vector.shape_cast %201 : vector<16xf32> to vector<16x1xf32>
    %cst_73 = arith.constant 3.200000e+01 : f32
    %203 = vector.broadcast %cst_73 : f32 to vector<16x1xf32>
    %204 = arith.divf %202, %203 : vector<16x1xf32>
    %cst_74 = arith.constant 9.99999997E-7 : f32
    %205 = vector.broadcast %cst_74 : f32 to vector<16x1xf32>
    %206 = arith.addf %204, %205 : vector<16x1xf32>
    %207 = math.rsqrt %206 : vector<16x1xf32>
    %208 = vector.broadcast %207 : vector<16x1xf32> to vector<16x32xf32>
    %209 = arith.mulf %197, %208 : vector<16x32xf32>
    %210 = vector.broadcast %199 : vector<1x32xf32> to vector<16x32xf32>
    %211 = arith.mulf %209, %210 : vector<16x32xf32>
    %212 = arith.truncf %211 : vector<16x32xf32> to vector<16x32xbf16>
    %c0_75 = arith.constant 0 : index
    %c0_76 = arith.constant 0 : index
    %c0_77 = arith.constant 0 : index
    %213 = vector.load %arg13[%c0_75, %c0_76, %c0_77] : memref<3x32x128xbf16, #tpu.memory_space<vmem>>, vector<1x32x128xbf16>
    %214 = vector.shape_cast %213 : vector<1x32x128xbf16> to vector<32x128xbf16>
    %cst_78 = arith.constant dense<0.000000e+00> : vector<16x128xf32>
    %215 = tpu.matmul %212, %214, %cst_78 {dimension_numbers = #tpu.dot_dimension_numbers<[1], [0], [0], [1], [0, 0, 1, 1], [], []>} : vector<16x32xbf16>, vector<32x128xbf16>, vector<16x128xf32> -> vector<16x128xf32>
    %c0_79 = arith.constant 0 : index
    %c0_80 = arith.constant 0 : index
    %c0_81 = arith.constant 0 : index
    %216 = vector.load %arg14[%c0_79, %c0_80, %c0_81] : memref<3x1x128xf32, #tpu.memory_space<vmem>>, vector<1x1x128xf32>
    %217 = vector.shape_cast %216 : vector<1x1x128xf32> to vector<1x128xf32>
    %218 = vector.broadcast %217 : vector<1x128xf32> to vector<16x128xf32>
    %219 = arith.addf %215, %218 : vector<16x128xf32>
    %cst_82 = arith.constant 5.000000e-01 : f32
    %220 = vector.broadcast %cst_82 : f32 to vector<16x128xf32>
    %221 = arith.mulf %220, %219 : vector<16x128xf32>
    %cst_83 = arith.constant 4.471500e-02 : f32
    %222 = vector.broadcast %cst_83 : f32 to vector<16x128xf32>
    %223 = arith.mulf %222, %219 : vector<16x128xf32>
    %224 = arith.mulf %223, %219 : vector<16x128xf32>
    %225 = arith.mulf %224, %219 : vector<16x128xf32>
    %226 = arith.addf %219, %225 : vector<16x128xf32>
    %cst_84 = arith.constant 0.797884583 : f32
    %227 = vector.broadcast %cst_84 : f32 to vector<16x128xf32>
    %228 = arith.mulf %227, %226 : vector<16x128xf32>
    %229 = math.tanh %228 : vector<16x128xf32>
    %cst_85 = arith.constant 1.000000e+00 : f32
    %230 = vector.broadcast %cst_85 : f32 to vector<16x128xf32>
    %231 = arith.addf %230, %229 : vector<16x128xf32>
    %232 = arith.mulf %221, %231 : vector<16x128xf32>
    %233 = arith.truncf %232 : vector<16x128xf32> to vector<16x128xbf16>
    %c0_86 = arith.constant 0 : index
    %c0_87 = arith.constant 0 : index
    %c0_88 = arith.constant 0 : index
    %234 = vector.load %arg15[%c0_86, %c0_87, %c0_88] : memref<3x128x32xbf16, #tpu.memory_space<vmem>>, vector<1x128x32xbf16>
    %235 = vector.shape_cast %234 : vector<1x128x32xbf16> to vector<128x32xbf16>
    %cst_89 = arith.constant dense<0.000000e+00> : vector<16x32xf32>
    %236 = tpu.matmul %233, %235, %cst_89 {dimension_numbers = #tpu.dot_dimension_numbers<[1], [0], [0], [1], [0, 0, 1, 1], [], []>} : vector<16x128xbf16>, vector<128x32xbf16>, vector<16x32xf32> -> vector<16x32xf32>
    %c0_90 = arith.constant 0 : index
    %c0_91 = arith.constant 0 : index
    %c0_92 = arith.constant 0 : index
    %237 = vector.load %arg16[%c0_90, %c0_91, %c0_92] : memref<3x1x32xf32, #tpu.memory_space<vmem>>, vector<1x1x32xf32>
    %238 = vector.shape_cast %237 : vector<1x1x32xf32> to vector<1x32xf32>
    %239 = vector.broadcast %238 : vector<1x32xf32> to vector<16x32xf32>
    %240 = arith.addf %236, %239 : vector<16x32xf32>
    %241 = arith.addf %197, %240 : vector<16x32xf32>
    %c1 = arith.constant 1 : index
    %c0_93 = arith.constant 0 : index
    %c0_94 = arith.constant 0 : index
    %242 = vector.load %arg3[%c1, %c0_93, %c0_94] : memref<3x1x32xf32, #tpu.memory_space<vmem>>, vector<1x1x32xf32>
    %243 = vector.shape_cast %242 : vector<1x1x32xf32> to vector<1x32xf32>
    %244 = arith.mulf %241, %241 : vector<16x32xf32>
    %cst_95 = arith.constant dense<0.000000e+00> : vector<16xf32>
    %245 = vector.multi_reduction <add>, %244, %cst_95 [1] : vector<16x32xf32> to vector<16xf32>
    %246 = vector.shape_cast %245 : vector<16xf32> to vector<16x1xf32>
    %cst_96 = arith.constant 3.200000e+01 : f32
    %247 = vector.broadcast %cst_96 : f32 to vector<16x1xf32>
    %248 = arith.divf %246, %247 : vector<16x1xf32>
    %cst_97 = arith.constant 9.99999997E-7 : f32
    %249 = vector.broadcast %cst_97 : f32 to vector<16x1xf32>
    %250 = arith.addf %248, %249 : vector<16x1xf32>
    %251 = math.rsqrt %250 : vector<16x1xf32>
    %252 = vector.broadcast %251 : vector<16x1xf32> to vector<16x32xf32>
    %253 = arith.mulf %241, %252 : vector<16x32xf32>
    %254 = vector.broadcast %243 : vector<1x32xf32> to vector<16x32xf32>
    %255 = arith.mulf %253, %254 : vector<16x32xf32>
    %256 = arith.truncf %255 : vector<16x32xf32> to vector<16x32xbf16>
    %c1_98 = arith.constant 1 : index
    %c0_99 = arith.constant 0 : index
    %c0_100 = arith.constant 0 : index
    %257 = vector.load %arg4[%c1_98, %c0_99, %c0_100] : memref<3x32x32xbf16, #tpu.memory_space<vmem>>, vector<1x32x32xbf16>
    %258 = vector.shape_cast %257 : vector<1x32x32xbf16> to vector<32x32xbf16>
    %cst_101 = arith.constant dense<0.000000e+00> : vector<16x32xf32>
    %259 = tpu.matmul %256, %258, %cst_101 {dimension_numbers = #tpu.dot_dimension_numbers<[1], [0], [0], [1], [0, 0, 1, 1], [], []>} : vector<16x32xbf16>, vector<32x32xbf16>, vector<16x32xf32> -> vector<16x32xf32>
    %c1_102 = arith.constant 1 : index
    %c0_103 = arith.constant 0 : index
    %c0_104 = arith.constant 0 : index
    %260 = vector.load %arg5[%c1_102, %c0_103, %c0_104] : memref<3x1x32xf32, #tpu.memory_space<vmem>>, vector<1x1x32xf32>
    %261 = vector.shape_cast %260 : vector<1x1x32xf32> to vector<1x32xf32>
    %262 = vector.broadcast %261 : vector<1x32xf32> to vector<16x32xf32>
    %263 = arith.addf %259, %262 : vector<16x32xf32>
    %c1_105 = arith.constant 1 : index
    %c0_106 = arith.constant 0 : index
    %c0_107 = arith.constant 0 : index
    %264 = vector.load %arg6[%c1_105, %c0_106, %c0_107] : memref<3x32x32xbf16, #tpu.memory_space<vmem>>, vector<1x32x32xbf16>
    %265 = vector.shape_cast %264 : vector<1x32x32xbf16> to vector<32x32xbf16>
    %cst_108 = arith.constant dense<0.000000e+00> : vector<16x32xf32>
    %266 = tpu.matmul %256, %265, %cst_108 {dimension_numbers = #tpu.dot_dimension_numbers<[1], [0], [0], [1], [0, 0, 1, 1], [], []>} : vector<16x32xbf16>, vector<32x32xbf16>, vector<16x32xf32> -> vector<16x32xf32>
    %c1_109 = arith.constant 1 : index
    %c0_110 = arith.constant 0 : index
    %c0_111 = arith.constant 0 : index
    %267 = vector.load %arg7[%c1_109, %c0_110, %c0_111] : memref<3x1x32xf32, #tpu.memory_space<vmem>>, vector<1x1x32xf32>
    %268 = vector.shape_cast %267 : vector<1x1x32xf32> to vector<1x32xf32>
    %269 = vector.broadcast %268 : vector<1x32xf32> to vector<16x32xf32>
    %270 = arith.addf %266, %269 : vector<16x32xf32>
    %c1_112 = arith.constant 1 : index
    %c0_113 = arith.constant 0 : index
    %c0_114 = arith.constant 0 : index
    %271 = vector.load %arg8[%c1_112, %c0_113, %c0_114] : memref<3x32x32xbf16, #tpu.memory_space<vmem>>, vector<1x32x32xbf16>
    %272 = vector.shape_cast %271 : vector<1x32x32xbf16> to vector<32x32xbf16>
    %cst_115 = arith.constant dense<0.000000e+00> : vector<16x32xf32>
    %273 = tpu.matmul %256, %272, %cst_115 {dimension_numbers = #tpu.dot_dimension_numbers<[1], [0], [0], [1], [0, 0, 1, 1], [], []>} : vector<16x32xbf16>, vector<32x32xbf16>, vector<16x32xf32> -> vector<16x32xf32>
    %c1_116 = arith.constant 1 : index
    %c0_117 = arith.constant 0 : index
    %c0_118 = arith.constant 0 : index
    %274 = vector.load %arg9[%c1_116, %c0_117, %c0_118] : memref<3x1x32xf32, #tpu.memory_space<vmem>>, vector<1x1x32xf32>
    %275 = vector.shape_cast %274 : vector<1x1x32xf32> to vector<1x32xf32>
    %276 = vector.broadcast %275 : vector<1x32xf32> to vector<16x32xf32>
    %277 = arith.addf %273, %276 : vector<16x32xf32>
    %278 = arith.truncf %263 : vector<16x32xf32> to vector<16x32xbf16>
    %279 = arith.truncf %270 : vector<16x32xf32> to vector<16x32xbf16>
    %280 = arith.truncf %277 : vector<16x32xf32> to vector<16x32xbf16>
    %cst_119 = arith.constant 0.000000e+00 : f32
    %281 = vector.broadcast %cst_119 : f32 to vector<16x32xf32>
    %282 = vector.broadcast %24 : vector<1x32xbf16> to vector<16x32xbf16>
    %283 = arith.mulf %278, %282 : vector<16x32xbf16>
    %cst_120 = arith.constant dense<0.000000e+00> : vector<16x16xf32>
    %284 = tpu.matmul %283, %279, %cst_120 {dimension_numbers = #tpu.dot_dimension_numbers<[1], [1], [0], [0], [0, 0, 1, 0], [], []>} : vector<16x32xbf16>, vector<16x32xbf16>, vector<16x16xf32> -> vector<16x16xf32>
    %285 = arith.addf %284, %15 : vector<16x16xf32>
    %cst_121 = arith.constant dense<0xFF800000> : vector<16xf32>
    %286 = vector.multi_reduction <maximumf>, %285, %cst_121 [1] : vector<16x16xf32> to vector<16xf32>
    %287 = vector.shape_cast %286 : vector<16xf32> to vector<16x1xf32>
    %288 = vector.broadcast %287 : vector<16x1xf32> to vector<16x16xf32>
    %289 = arith.subf %285, %288 : vector<16x16xf32>
    %290 = math.exp %289 : vector<16x16xf32>
    %cst_122 = arith.constant dense<0.000000e+00> : vector<16xf32>
    %291 = vector.multi_reduction <add>, %290, %cst_122 [1] : vector<16x16xf32> to vector<16xf32>
    %292 = vector.shape_cast %291 : vector<16xf32> to vector<16x1xf32>
    %293 = tpu.reciprocal %292 {approx = true} : vector<16x1xf32> -> vector<16x1xf32>
    %294 = vector.broadcast %293 : vector<16x1xf32> to vector<16x16xf32>
    %295 = arith.mulf %290, %294 : vector<16x16xf32>
    %cst_123 = arith.constant -5.000000e+08 : f32
    %296 = vector.broadcast %cst_123 : f32 to vector<16x1xf32>
    %297 = arith.cmpf ogt, %287, %296 : vector<16x1xf32>
    %cst_124 = arith.constant 0.000000e+00 : f32
    %298 = vector.shape_cast %297 : vector<16x1xi1> to vector<16x1xi1>
    %299 = vector.broadcast %298 : vector<16x1xi1> to vector<16x16xi1>
    %300 = vector.broadcast %cst_124 : f32 to vector<16x16xf32>
    %301 = arith.select %299, %295, %300 : vector<16x16xi1>, vector<16x16xf32>
    %302 = arith.truncf %301 : vector<16x16xf32> to vector<16x16xbf16>
    %303 = vector.broadcast %24 : vector<1x32xbf16> to vector<16x32xbf16>
    %304 = arith.mulf %280, %303 : vector<16x32xbf16>
    %cst_125 = arith.constant dense<0.000000e+00> : vector<16x32xf32>
    %305 = tpu.matmul %302, %304, %cst_125 {dimension_numbers = #tpu.dot_dimension_numbers<[1], [0], [0], [1], [0, 0, 1, 1], [], []>} : vector<16x16xbf16>, vector<16x32xbf16>, vector<16x32xf32> -> vector<16x32xf32>
    %306 = arith.addf %281, %305 : vector<16x32xf32>
    %307 = vector.broadcast %32 : vector<1x32xbf16> to vector<16x32xbf16>
    %308 = arith.mulf %278, %307 : vector<16x32xbf16>
    %cst_126 = arith.constant dense<0.000000e+00> : vector<16x16xf32>
    %309 = tpu.matmul %308, %279, %cst_126 {dimension_numbers = #tpu.dot_dimension_numbers<[1], [1], [0], [0], [0, 0, 1, 0], [], []>} : vector<16x32xbf16>, vector<16x32xbf16>, vector<16x16xf32> -> vector<16x16xf32>
    %310 = arith.addf %309, %15 : vector<16x16xf32>
    %cst_127 = arith.constant dense<0xFF800000> : vector<16xf32>
    %311 = vector.multi_reduction <maximumf>, %310, %cst_127 [1] : vector<16x16xf32> to vector<16xf32>
    %312 = vector.shape_cast %311 : vector<16xf32> to vector<16x1xf32>
    %313 = vector.broadcast %312 : vector<16x1xf32> to vector<16x16xf32>
    %314 = arith.subf %310, %313 : vector<16x16xf32>
    %315 = math.exp %314 : vector<16x16xf32>
    %cst_128 = arith.constant dense<0.000000e+00> : vector<16xf32>
    %316 = vector.multi_reduction <add>, %315, %cst_128 [1] : vector<16x16xf32> to vector<16xf32>
    %317 = vector.shape_cast %316 : vector<16xf32> to vector<16x1xf32>
    %318 = tpu.reciprocal %317 {approx = true} : vector<16x1xf32> -> vector<16x1xf32>
    %319 = vector.broadcast %318 : vector<16x1xf32> to vector<16x16xf32>
    %320 = arith.mulf %315, %319 : vector<16x16xf32>
    %cst_129 = arith.constant -5.000000e+08 : f32
    %321 = vector.broadcast %cst_129 : f32 to vector<16x1xf32>
    %322 = arith.cmpf ogt, %312, %321 : vector<16x1xf32>
    %cst_130 = arith.constant 0.000000e+00 : f32
    %323 = vector.shape_cast %322 : vector<16x1xi1> to vector<16x1xi1>
    %324 = vector.broadcast %323 : vector<16x1xi1> to vector<16x16xi1>
    %325 = vector.broadcast %cst_130 : f32 to vector<16x16xf32>
    %326 = arith.select %324, %320, %325 : vector<16x16xi1>, vector<16x16xf32>
    %327 = arith.truncf %326 : vector<16x16xf32> to vector<16x16xbf16>
    %328 = vector.broadcast %32 : vector<1x32xbf16> to vector<16x32xbf16>
    %329 = arith.mulf %280, %328 : vector<16x32xbf16>
    %cst_131 = arith.constant dense<0.000000e+00> : vector<16x32xf32>
    %330 = tpu.matmul %327, %329, %cst_131 {dimension_numbers = #tpu.dot_dimension_numbers<[1], [0], [0], [1], [0, 0, 1, 1], [], []>} : vector<16x16xbf16>, vector<16x32xbf16>, vector<16x32xf32> -> vector<16x32xf32>
    %331 = arith.addf %306, %330 : vector<16x32xf32>
    %332 = vector.broadcast %40 : vector<1x32xbf16> to vector<16x32xbf16>
    %333 = arith.mulf %278, %332 : vector<16x32xbf16>
    %cst_132 = arith.constant dense<0.000000e+00> : vector<16x16xf32>
    %334 = tpu.matmul %333, %279, %cst_132 {dimension_numbers = #tpu.dot_dimension_numbers<[1], [1], [0], [0], [0, 0, 1, 0], [], []>} : vector<16x32xbf16>, vector<16x32xbf16>, vector<16x16xf32> -> vector<16x16xf32>
    %335 = arith.addf %334, %15 : vector<16x16xf32>
    %cst_133 = arith.constant dense<0xFF800000> : vector<16xf32>
    %336 = vector.multi_reduction <maximumf>, %335, %cst_133 [1] : vector<16x16xf32> to vector<16xf32>
    %337 = vector.shape_cast %336 : vector<16xf32> to vector<16x1xf32>
    %338 = vector.broadcast %337 : vector<16x1xf32> to vector<16x16xf32>
    %339 = arith.subf %335, %338 : vector<16x16xf32>
    %340 = math.exp %339 : vector<16x16xf32>
    %cst_134 = arith.constant dense<0.000000e+00> : vector<16xf32>
    %341 = vector.multi_reduction <add>, %340, %cst_134 [1] : vector<16x16xf32> to vector<16xf32>
    %342 = vector.shape_cast %341 : vector<16xf32> to vector<16x1xf32>
    %343 = tpu.reciprocal %342 {approx = true} : vector<16x1xf32> -> vector<16x1xf32>
    %344 = vector.broadcast %343 : vector<16x1xf32> to vector<16x16xf32>
    %345 = arith.mulf %340, %344 : vector<16x16xf32>
    %cst_135 = arith.constant -5.000000e+08 : f32
    %346 = vector.broadcast %cst_135 : f32 to vector<16x1xf32>
    %347 = arith.cmpf ogt, %337, %346 : vector<16x1xf32>
    %cst_136 = arith.constant 0.000000e+00 : f32
    %348 = vector.shape_cast %347 : vector<16x1xi1> to vector<16x1xi1>
    %349 = vector.broadcast %348 : vector<16x1xi1> to vector<16x16xi1>
    %350 = vector.broadcast %cst_136 : f32 to vector<16x16xf32>
    %351 = arith.select %349, %345, %350 : vector<16x16xi1>, vector<16x16xf32>
    %352 = arith.truncf %351 : vector<16x16xf32> to vector<16x16xbf16>
    %353 = vector.broadcast %40 : vector<1x32xbf16> to vector<16x32xbf16>
    %354 = arith.mulf %280, %353 : vector<16x32xbf16>
    %cst_137 = arith.constant dense<0.000000e+00> : vector<16x32xf32>
    %355 = tpu.matmul %352, %354, %cst_137 {dimension_numbers = #tpu.dot_dimension_numbers<[1], [0], [0], [1], [0, 0, 1, 1], [], []>} : vector<16x16xbf16>, vector<16x32xbf16>, vector<16x32xf32> -> vector<16x32xf32>
    %356 = arith.addf %331, %355 : vector<16x32xf32>
    %357 = vector.broadcast %48 : vector<1x32xbf16> to vector<16x32xbf16>
    %358 = arith.mulf %278, %357 : vector<16x32xbf16>
    %cst_138 = arith.constant dense<0.000000e+00> : vector<16x16xf32>
    %359 = tpu.matmul %358, %279, %cst_138 {dimension_numbers = #tpu.dot_dimension_numbers<[1], [1], [0], [0], [0, 0, 1, 0], [], []>} : vector<16x32xbf16>, vector<16x32xbf16>, vector<16x16xf32> -> vector<16x16xf32>
    %360 = arith.addf %359, %15 : vector<16x16xf32>
    %cst_139 = arith.constant dense<0xFF800000> : vector<16xf32>
    %361 = vector.multi_reduction <maximumf>, %360, %cst_139 [1] : vector<16x16xf32> to vector<16xf32>
    %362 = vector.shape_cast %361 : vector<16xf32> to vector<16x1xf32>
    %363 = vector.broadcast %362 : vector<16x1xf32> to vector<16x16xf32>
    %364 = arith.subf %360, %363 : vector<16x16xf32>
    %365 = math.exp %364 : vector<16x16xf32>
    %cst_140 = arith.constant dense<0.000000e+00> : vector<16xf32>
    %366 = vector.multi_reduction <add>, %365, %cst_140 [1] : vector<16x16xf32> to vector<16xf32>
    %367 = vector.shape_cast %366 : vector<16xf32> to vector<16x1xf32>
    %368 = tpu.reciprocal %367 {approx = true} : vector<16x1xf32> -> vector<16x1xf32>
    %369 = vector.broadcast %368 : vector<16x1xf32> to vector<16x16xf32>
    %370 = arith.mulf %365, %369 : vector<16x16xf32>
    %cst_141 = arith.constant -5.000000e+08 : f32
    %371 = vector.broadcast %cst_141 : f32 to vector<16x1xf32>
    %372 = arith.cmpf ogt, %362, %371 : vector<16x1xf32>
    %cst_142 = arith.constant 0.000000e+00 : f32
    %373 = vector.shape_cast %372 : vector<16x1xi1> to vector<16x1xi1>
    %374 = vector.broadcast %373 : vector<16x1xi1> to vector<16x16xi1>
    %375 = vector.broadcast %cst_142 : f32 to vector<16x16xf32>
    %376 = arith.select %374, %370, %375 : vector<16x16xi1>, vector<16x16xf32>
    %377 = arith.truncf %376 : vector<16x16xf32> to vector<16x16xbf16>
    %378 = vector.broadcast %48 : vector<1x32xbf16> to vector<16x32xbf16>
    %379 = arith.mulf %280, %378 : vector<16x32xbf16>
    %cst_143 = arith.constant dense<0.000000e+00> : vector<16x32xf32>
    %380 = tpu.matmul %377, %379, %cst_143 {dimension_numbers = #tpu.dot_dimension_numbers<[1], [0], [0], [1], [0, 0, 1, 1], [], []>} : vector<16x16xbf16>, vector<16x32xbf16>, vector<16x32xf32> -> vector<16x32xf32>
    %381 = arith.addf %356, %380 : vector<16x32xf32>
    %382 = arith.truncf %381 : vector<16x32xf32> to vector<16x32xbf16>
    %c1_144 = arith.constant 1 : index
    %c0_145 = arith.constant 0 : index
    %c0_146 = arith.constant 0 : index
    %383 = vector.load %arg10[%c1_144, %c0_145, %c0_146] : memref<3x32x32xbf16, #tpu.memory_space<vmem>>, vector<1x32x32xbf16>
    %384 = vector.shape_cast %383 : vector<1x32x32xbf16> to vector<32x32xbf16>
    %cst_147 = arith.constant dense<0.000000e+00> : vector<16x32xf32>
    %385 = tpu.matmul %382, %384, %cst_147 {dimension_numbers = #tpu.dot_dimension_numbers<[1], [0], [0], [1], [0, 0, 1, 1], [], []>} : vector<16x32xbf16>, vector<32x32xbf16>, vector<16x32xf32> -> vector<16x32xf32>
    %c1_148 = arith.constant 1 : index
    %c0_149 = arith.constant 0 : index
    %c0_150 = arith.constant 0 : index
    %386 = vector.load %arg11[%c1_148, %c0_149, %c0_150] : memref<3x1x32xf32, #tpu.memory_space<vmem>>, vector<1x1x32xf32>
    %387 = vector.shape_cast %386 : vector<1x1x32xf32> to vector<1x32xf32>
    %388 = vector.broadcast %387 : vector<1x32xf32> to vector<16x32xf32>
    %389 = arith.addf %385, %388 : vector<16x32xf32>
    %390 = arith.addf %241, %389 : vector<16x32xf32>
    %c1_151 = arith.constant 1 : index
    %c0_152 = arith.constant 0 : index
    %c0_153 = arith.constant 0 : index
    %391 = vector.load %arg12[%c1_151, %c0_152, %c0_153] : memref<3x1x32xf32, #tpu.memory_space<vmem>>, vector<1x1x32xf32>
    %392 = vector.shape_cast %391 : vector<1x1x32xf32> to vector<1x32xf32>
    %393 = arith.mulf %390, %390 : vector<16x32xf32>
    %cst_154 = arith.constant dense<0.000000e+00> : vector<16xf32>
    %394 = vector.multi_reduction <add>, %393, %cst_154 [1] : vector<16x32xf32> to vector<16xf32>
    %395 = vector.shape_cast %394 : vector<16xf32> to vector<16x1xf32>
    %cst_155 = arith.constant 3.200000e+01 : f32
    %396 = vector.broadcast %cst_155 : f32 to vector<16x1xf32>
    %397 = arith.divf %395, %396 : vector<16x1xf32>
    %cst_156 = arith.constant 9.99999997E-7 : f32
    %398 = vector.broadcast %cst_156 : f32 to vector<16x1xf32>
    %399 = arith.addf %397, %398 : vector<16x1xf32>
    %400 = math.rsqrt %399 : vector<16x1xf32>
    %401 = vector.broadcast %400 : vector<16x1xf32> to vector<16x32xf32>
    %402 = arith.mulf %390, %401 : vector<16x32xf32>
    %403 = vector.broadcast %392 : vector<1x32xf32> to vector<16x32xf32>
    %404 = arith.mulf %402, %403 : vector<16x32xf32>
    %405 = arith.truncf %404 : vector<16x32xf32> to vector<16x32xbf16>
    %c1_157 = arith.constant 1 : index
    %c0_158 = arith.constant 0 : index
    %c0_159 = arith.constant 0 : index
    %406 = vector.load %arg13[%c1_157, %c0_158, %c0_159] : memref<3x32x128xbf16, #tpu.memory_space<vmem>>, vector<1x32x128xbf16>
    %407 = vector.shape_cast %406 : vector<1x32x128xbf16> to vector<32x128xbf16>
    %cst_160 = arith.constant dense<0.000000e+00> : vector<16x128xf32>
    %408 = tpu.matmul %405, %407, %cst_160 {dimension_numbers = #tpu.dot_dimension_numbers<[1], [0], [0], [1], [0, 0, 1, 1], [], []>} : vector<16x32xbf16>, vector<32x128xbf16>, vector<16x128xf32> -> vector<16x128xf32>
    %c1_161 = arith.constant 1 : index
    %c0_162 = arith.constant 0 : index
    %c0_163 = arith.constant 0 : index
    %409 = vector.load %arg14[%c1_161, %c0_162, %c0_163] : memref<3x1x128xf32, #tpu.memory_space<vmem>>, vector<1x1x128xf32>
    %410 = vector.shape_cast %409 : vector<1x1x128xf32> to vector<1x128xf32>
    %411 = vector.broadcast %410 : vector<1x128xf32> to vector<16x128xf32>
    %412 = arith.addf %408, %411 : vector<16x128xf32>
    %cst_164 = arith.constant 5.000000e-01 : f32
    %413 = vector.broadcast %cst_164 : f32 to vector<16x128xf32>
    %414 = arith.mulf %413, %412 : vector<16x128xf32>
    %cst_165 = arith.constant 4.471500e-02 : f32
    %415 = vector.broadcast %cst_165 : f32 to vector<16x128xf32>
    %416 = arith.mulf %415, %412 : vector<16x128xf32>
    %417 = arith.mulf %416, %412 : vector<16x128xf32>
    %418 = arith.mulf %417, %412 : vector<16x128xf32>
    %419 = arith.addf %412, %418 : vector<16x128xf32>
    %cst_166 = arith.constant 0.797884583 : f32
    %420 = vector.broadcast %cst_166 : f32 to vector<16x128xf32>
    %421 = arith.mulf %420, %419 : vector<16x128xf32>
    %422 = math.tanh %421 : vector<16x128xf32>
    %cst_167 = arith.constant 1.000000e+00 : f32
    %423 = vector.broadcast %cst_167 : f32 to vector<16x128xf32>
    %424 = arith.addf %423, %422 : vector<16x128xf32>
    %425 = arith.mulf %414, %424 : vector<16x128xf32>
    %426 = arith.truncf %425 : vector<16x128xf32> to vector<16x128xbf16>
    %c1_168 = arith.constant 1 : index
    %c0_169 = arith.constant 0 : index
    %c0_170 = arith.constant 0 : index
    %427 = vector.load %arg15[%c1_168, %c0_169, %c0_170] : memref<3x128x32xbf16, #tpu.memory_space<vmem>>, vector<1x128x32xbf16>
    %428 = vector.shape_cast %427 : vector<1x128x32xbf16> to vector<128x32xbf16>
    %cst_171 = arith.constant dense<0.000000e+00> : vector<16x32xf32>
    %429 = tpu.matmul %426, %428, %cst_171 {dimension_numbers = #tpu.dot_dimension_numbers<[1], [0], [0], [1], [0, 0, 1, 1], [], []>} : vector<16x128xbf16>, vector<128x32xbf16>, vector<16x32xf32> -> vector<16x32xf32>
    %c1_172 = arith.constant 1 : index
    %c0_173 = arith.constant 0 : index
    %c0_174 = arith.constant 0 : index
    %430 = vector.load %arg16[%c1_172, %c0_173, %c0_174] : memref<3x1x32xf32, #tpu.memory_space<vmem>>, vector<1x1x32xf32>
    %431 = vector.shape_cast %430 : vector<1x1x32xf32> to vector<1x32xf32>
    %432 = vector.broadcast %431 : vector<1x32xf32> to vector<16x32xf32>
    %433 = arith.addf %429, %432 : vector<16x32xf32>
    %434 = arith.addf %390, %433 : vector<16x32xf32>
    %c0_175 = arith.constant 0 : index
    %c0_176 = arith.constant 0 : index
    %435 = vector.load %arg17[%c0_175, %c0_176] : memref<1x32xf32, #tpu.memory_space<vmem>>, vector<1x32xf32>
    %436 = arith.mulf %434, %434 : vector<16x32xf32>
    %cst_177 = arith.constant dense<0.000000e+00> : vector<16xf32>
    %437 = vector.multi_reduction <add>, %436, %cst_177 [1] : vector<16x32xf32> to vector<16xf32>
    %438 = vector.shape_cast %437 : vector<16xf32> to vector<16x1xf32>
    %cst_178 = arith.constant 3.200000e+01 : f32
    %439 = vector.broadcast %cst_178 : f32 to vector<16x1xf32>
    %440 = arith.divf %438, %439 : vector<16x1xf32>
    %cst_179 = arith.constant 9.99999997E-7 : f32
    %441 = vector.broadcast %cst_179 : f32 to vector<16x1xf32>
    %442 = arith.addf %440, %441 : vector<16x1xf32>
    %443 = math.rsqrt %442 : vector<16x1xf32>
    %444 = vector.broadcast %443 : vector<16x1xf32> to vector<16x32xf32>
    %445 = arith.mulf %434, %444 : vector<16x32xf32>
    %446 = vector.broadcast %435 : vector<1x32xf32> to vector<16x32xf32>
    %447 = arith.mulf %445, %446 : vector<16x32xf32>
    %448 = arith.truncf %447 : vector<16x32xf32> to vector<16x32xbf16>
    %c0_180 = arith.constant 0 : index
    %c0_181 = arith.constant 0 : index
    %449 = vector.load %arg18[%c0_180, %c0_181] : memref<32x64xbf16, #tpu.memory_space<vmem>>, vector<32x64xbf16>
    %cst_182 = arith.constant dense<0.000000e+00> : vector<16x64xf32>
    %450 = tpu.matmul %448, %449, %cst_182 {dimension_numbers = #tpu.dot_dimension_numbers<[1], [0], [0], [1], [0, 0, 1, 1], [], []>} : vector<16x32xbf16>, vector<32x64xbf16>, vector<16x64xf32> -> vector<16x64xf32>
    %c0_183 = arith.constant 0 : index
    %c0_184 = arith.constant 0 : index
    %451 = vector.load %arg19[%c0_183, %c0_184] : memref<1x64xf32, #tpu.memory_space<vmem>>, vector<1x64xf32>
    %452 = vector.broadcast %451 : vector<1x64xf32> to vector<16x64xf32>
    %453 = arith.addf %450, %452 : vector<16x64xf32>
    %cst_185 = arith.constant dense<0xFF800000> : vector<16xf32>
    %454 = vector.multi_reduction <maximumf>, %453, %cst_185 [1] : vector<16x64xf32> to vector<16xf32>
    %455 = vector.shape_cast %454 : vector<16xf32> to vector<16x1xf32>
    %456 = vector.broadcast %455 : vector<16x1xf32> to vector<16x64xf32>
    %457 = arith.subf %453, %456 : vector<16x64xf32>
    %458 = math.exp %457 : vector<16x64xf32>
    %cst_186 = arith.constant dense<0.000000e+00> : vector<16xf32>
    %459 = vector.multi_reduction <add>, %458, %cst_186 [1] : vector<16x64xf32> to vector<16xf32>
    %460 = vector.shape_cast %459 : vector<16xf32> to vector<16x1xf32>
    %461 = vector.broadcast %460 : vector<16x1xf32> to vector<16x64xf32>
    %462 = arith.divf %458, %461 : vector<16x64xf32>
    %463 = vector.broadcast %455 : vector<16x1xf32> to vector<16x64xf32>
    %464 = arith.subf %453, %463 : vector<16x64xf32>
    %465 = math.log %460 : vector<16x1xf32>
    %466 = vector.broadcast %465 : vector<16x1xf32> to vector<16x64xf32>
    %467 = arith.subf %464, %466 : vector<16x64xf32>
    %468 = arith.mulf %462, %467 : vector<16x64xf32>
    %cst_187 = arith.constant dense<0.000000e+00> : vector<16xf32>
    %469 = vector.multi_reduction <add>, %468, %cst_187 [1] : vector<16x64xf32> to vector<16xf32>
    %470 = vector.shape_cast %469 : vector<16xf32> to vector<16x1xf32>
    %cst_188 = arith.constant 0.000000e+00 : f32
    %471 = vector.broadcast %cst_188 : f32 to vector<16x1xf32>
    %472 = arith.subf %471, %470 : vector<16x1xf32>
    %473 = vector.shape_cast %472 : vector<16x1xf32> to vector<16x1xf32>
    %474 = vector.broadcast %473 : vector<16x1xf32> to vector<16x64xf32>
    %475 = tpu.concatenate %453, %474 in 1 : vector<16x64xf32>, vector<16x64xf32> -> vector<16x128xf32>
    %c0_189 = arith.constant 0 : index
    %c0_190 = arith.constant 0 : index
    %c0_191 = arith.constant 0 : index
    %476 = vector.load %arg21[%c0_189, %c0_190, %c0_191] : memref<1x16x128xf32, #tpu.memory_space<vmem>>, vector<1x16x128xf32>
    %477 = vector.shape_cast %476 : vector<1x16x128xf32> to vector<16x128xf32>
    %478 = vector.shape_cast %475 : vector<16x128xf32> to vector<1x16x128xf32>
    tpu.vector_store %arg21[%c0_189, %c0_190, %c0_191], %478 {strides = array<i32>} : memref<1x16x128xf32, #tpu.memory_space<vmem>>, vector<1x16x128xf32>,
    %c2 = arith.constant 2 : index
    %c0_192 = arith.constant 0 : index
    %c0_193 = arith.constant 0 : index
    %479 = vector.load %arg3[%c2, %c0_192, %c0_193] : memref<3x1x32xf32, #tpu.memory_space<vmem>>, vector<1x1x32xf32>
    %480 = vector.shape_cast %479 : vector<1x1x32xf32> to vector<1x32xf32>
    %481 = arith.mulf %241, %241 : vector<16x32xf32>
    %cst_194 = arith.constant dense<0.000000e+00> : vector<16xf32>
    %482 = vector.multi_reduction <add>, %481, %cst_194 [1] : vector<16x32xf32> to vector<16xf32>
    %483 = vector.shape_cast %482 : vector<16xf32> to vector<16x1xf32>
    %cst_195 = arith.constant 3.200000e+01 : f32
    %484 = vector.broadcast %cst_195 : f32 to vector<16x1xf32>
    %485 = arith.divf %483, %484 : vector<16x1xf32>
    %cst_196 = arith.constant 9.99999997E-7 : f32
    %486 = vector.broadcast %cst_196 : f32 to vector<16x1xf32>
    %487 = arith.addf %485, %486 : vector<16x1xf32>
    %488 = math.rsqrt %487 : vector<16x1xf32>
    %489 = vector.broadcast %488 : vector<16x1xf32> to vector<16x32xf32>
    %490 = arith.mulf %241, %489 : vector<16x32xf32>
    %491 = vector.broadcast %480 : vector<1x32xf32> to vector<16x32xf32>
    %492 = arith.mulf %490, %491 : vector<16x32xf32>
    %493 = arith.truncf %492 : vector<16x32xf32> to vector<16x32xbf16>
    %c2_197 = arith.constant 2 : index
    %c0_198 = arith.constant 0 : index
    %c0_199 = arith.constant 0 : index
    %494 = vector.load %arg4[%c2_197, %c0_198, %c0_199] : memref<3x32x32xbf16, #tpu.memory_space<vmem>>, vector<1x32x32xbf16>
    %495 = vector.shape_cast %494 : vector<1x32x32xbf16> to vector<32x32xbf16>
    %cst_200 = arith.constant dense<0.000000e+00> : vector<16x32xf32>
    %496 = tpu.matmul %493, %495, %cst_200 {dimension_numbers = #tpu.dot_dimension_numbers<[1], [0], [0], [1], [0, 0, 1, 1], [], []>} : vector<16x32xbf16>, vector<32x32xbf16>, vector<16x32xf32> -> vector<16x32xf32>
    %c2_201 = arith.constant 2 : index
    %c0_202 = arith.constant 0 : index
    %c0_203 = arith.constant 0 : index
    %497 = vector.load %arg5[%c2_201, %c0_202, %c0_203] : memref<3x1x32xf32, #tpu.memory_space<vmem>>, vector<1x1x32xf32>
    %498 = vector.shape_cast %497 : vector<1x1x32xf32> to vector<1x32xf32>
    %499 = vector.broadcast %498 : vector<1x32xf32> to vector<16x32xf32>
    %500 = arith.addf %496, %499 : vector<16x32xf32>
    %c2_204 = arith.constant 2 : index
    %c0_205 = arith.constant 0 : index
    %c0_206 = arith.constant 0 : index
    %501 = vector.load %arg6[%c2_204, %c0_205, %c0_206] : memref<3x32x32xbf16, #tpu.memory_space<vmem>>, vector<1x32x32xbf16>
    %502 = vector.shape_cast %501 : vector<1x32x32xbf16> to vector<32x32xbf16>
    %cst_207 = arith.constant dense<0.000000e+00> : vector<16x32xf32>
    %503 = tpu.matmul %493, %502, %cst_207 {dimension_numbers = #tpu.dot_dimension_numbers<[1], [0], [0], [1], [0, 0, 1, 1], [], []>} : vector<16x32xbf16>, vector<32x32xbf16>, vector<16x32xf32> -> vector<16x32xf32>
    %c2_208 = arith.constant 2 : index
    %c0_209 = arith.constant 0 : index
    %c0_210 = arith.constant 0 : index
    %504 = vector.load %arg7[%c2_208, %c0_209, %c0_210] : memref<3x1x32xf32, #tpu.memory_space<vmem>>, vector<1x1x32xf32>
    %505 = vector.shape_cast %504 : vector<1x1x32xf32> to vector<1x32xf32>
    %506 = vector.broadcast %505 : vector<1x32xf32> to vector<16x32xf32>
    %507 = arith.addf %503, %506 : vector<16x32xf32>
    %c2_211 = arith.constant 2 : index
    %c0_212 = arith.constant 0 : index
    %c0_213 = arith.constant 0 : index
    %508 = vector.load %arg8[%c2_211, %c0_212, %c0_213] : memref<3x32x32xbf16, #tpu.memory_space<vmem>>, vector<1x32x32xbf16>
    %509 = vector.shape_cast %508 : vector<1x32x32xbf16> to vector<32x32xbf16>
    %cst_214 = arith.constant dense<0.000000e+00> : vector<16x32xf32>
    %510 = tpu.matmul %493, %509, %cst_214 {dimension_numbers = #tpu.dot_dimension_numbers<[1], [0], [0], [1], [0, 0, 1, 1], [], []>} : vector<16x32xbf16>, vector<32x32xbf16>, vector<16x32xf32> -> vector<16x32xf32>
    %c2_215 = arith.constant 2 : index
    %c0_216 = arith.constant 0 : index
    %c0_217 = arith.constant 0 : index
    %511 = vector.load %arg9[%c2_215, %c0_216, %c0_217] : memref<3x1x32xf32, #tpu.memory_space<vmem>>, vector<1x1x32xf32>
    %512 = vector.shape_cast %511 : vector<1x1x32xf32> to vector<1x32xf32>
    %513 = vector.broadcast %512 : vector<1x32xf32> to vector<16x32xf32>
    %514 = arith.addf %510, %513 : vector<16x32xf32>
    %515 = arith.truncf %500 : vector<16x32xf32> to vector<16x32xbf16>
    %516 = arith.truncf %507 : vector<16x32xf32> to vector<16x32xbf16>
    %517 = arith.truncf %514 : vector<16x32xf32> to vector<16x32xbf16>
    %cst_218 = arith.constant 0.000000e+00 : f32
    %518 = vector.broadcast %cst_218 : f32 to vector<16x32xf32>
    %519 = vector.broadcast %24 : vector<1x32xbf16> to vector<16x32xbf16>
    %520 = arith.mulf %515, %519 : vector<16x32xbf16>
    %cst_219 = arith.constant dense<0.000000e+00> : vector<16x16xf32>
    %521 = tpu.matmul %520, %516, %cst_219 {dimension_numbers = #tpu.dot_dimension_numbers<[1], [1], [0], [0], [0, 0, 1, 0], [], []>} : vector<16x32xbf16>, vector<16x32xbf16>, vector<16x16xf32> -> vector<16x16xf32>
    %522 = arith.addf %521, %15 : vector<16x16xf32>
    %cst_220 = arith.constant dense<0xFF800000> : vector<16xf32>
    %523 = vector.multi_reduction <maximumf>, %522, %cst_220 [1] : vector<16x16xf32> to vector<16xf32>
    %524 = vector.shape_cast %523 : vector<16xf32> to vector<16x1xf32>
    %525 = vector.broadcast %524 : vector<16x1xf32> to vector<16x16xf32>
    %526 = arith.subf %522, %525 : vector<16x16xf32>
    %527 = math.exp %526 : vector<16x16xf32>
    %cst_221 = arith.constant dense<0.000000e+00> : vector<16xf32>
    %528 = vector.multi_reduction <add>, %527, %cst_221 [1] : vector<16x16xf32> to vector<16xf32>
    %529 = vector.shape_cast %528 : vector<16xf32> to vector<16x1xf32>
    %530 = tpu.reciprocal %529 {approx = true} : vector<16x1xf32> -> vector<16x1xf32>
    %531 = vector.broadcast %530 : vector<16x1xf32> to vector<16x16xf32>
    %532 = arith.mulf %527, %531 : vector<16x16xf32>
    %cst_222 = arith.constant -5.000000e+08 : f32
    %533 = vector.broadcast %cst_222 : f32 to vector<16x1xf32>
    %534 = arith.cmpf ogt, %524, %533 : vector<16x1xf32>
    %cst_223 = arith.constant 0.000000e+00 : f32
    %535 = vector.shape_cast %534 : vector<16x1xi1> to vector<16x1xi1>
    %536 = vector.broadcast %535 : vector<16x1xi1> to vector<16x16xi1>
    %537 = vector.broadcast %cst_223 : f32 to vector<16x16xf32>
    %538 = arith.select %536, %532, %537 : vector<16x16xi1>, vector<16x16xf32>
    %539 = arith.truncf %538 : vector<16x16xf32> to vector<16x16xbf16>
    %540 = vector.broadcast %24 : vector<1x32xbf16> to vector<16x32xbf16>
    %541 = arith.mulf %517, %540 : vector<16x32xbf16>
    %cst_224 = arith.constant dense<0.000000e+00> : vector<16x32xf32>
    %542 = tpu.matmul %539, %541, %cst_224 {dimension_numbers = #tpu.dot_dimension_numbers<[1], [0], [0], [1], [0, 0, 1, 1], [], []>} : vector<16x16xbf16>, vector<16x32xbf16>, vector<16x32xf32> -> vector<16x32xf32>
    %543 = arith.addf %518, %542 : vector<16x32xf32>
    %544 = vector.broadcast %32 : vector<1x32xbf16> to vector<16x32xbf16>
    %545 = arith.mulf %515, %544 : vector<16x32xbf16>
    %cst_225 = arith.constant dense<0.000000e+00> : vector<16x16xf32>
    %546 = tpu.matmul %545, %516, %cst_225 {dimension_numbers = #tpu.dot_dimension_numbers<[1], [1], [0], [0], [0, 0, 1, 0], [], []>} : vector<16x32xbf16>, vector<16x32xbf16>, vector<16x16xf32> -> vector<16x16xf32>
    %547 = arith.addf %546, %15 : vector<16x16xf32>
    %cst_226 = arith.constant dense<0xFF800000> : vector<16xf32>
    %548 = vector.multi_reduction <maximumf>, %547, %cst_226 [1] : vector<16x16xf32> to vector<16xf32>
    %549 = vector.shape_cast %548 : vector<16xf32> to vector<16x1xf32>
    %550 = vector.broadcast %549 : vector<16x1xf32> to vector<16x16xf32>
    %551 = arith.subf %547, %550 : vector<16x16xf32>
    %552 = math.exp %551 : vector<16x16xf32>
    %cst_227 = arith.constant dense<0.000000e+00> : vector<16xf32>
    %553 = vector.multi_reduction <add>, %552, %cst_227 [1] : vector<16x16xf32> to vector<16xf32>
    %554 = vector.shape_cast %553 : vector<16xf32> to vector<16x1xf32>
    %555 = tpu.reciprocal %554 {approx = true} : vector<16x1xf32> -> vector<16x1xf32>
    %556 = vector.broadcast %555 : vector<16x1xf32> to vector<16x16xf32>
    %557 = arith.mulf %552, %556 : vector<16x16xf32>
    %cst_228 = arith.constant -5.000000e+08 : f32
    %558 = vector.broadcast %cst_228 : f32 to vector<16x1xf32>
    %559 = arith.cmpf ogt, %549, %558 : vector<16x1xf32>
    %cst_229 = arith.constant 0.000000e+00 : f32
    %560 = vector.shape_cast %559 : vector<16x1xi1> to vector<16x1xi1>
    %561 = vector.broadcast %560 : vector<16x1xi1> to vector<16x16xi1>
    %562 = vector.broadcast %cst_229 : f32 to vector<16x16xf32>
    %563 = arith.select %561, %557, %562 : vector<16x16xi1>, vector<16x16xf32>
    %564 = arith.truncf %563 : vector<16x16xf32> to vector<16x16xbf16>
    %565 = vector.broadcast %32 : vector<1x32xbf16> to vector<16x32xbf16>
    %566 = arith.mulf %517, %565 : vector<16x32xbf16>
    %cst_230 = arith.constant dense<0.000000e+00> : vector<16x32xf32>
    %567 = tpu.matmul %564, %566, %cst_230 {dimension_numbers = #tpu.dot_dimension_numbers<[1], [0], [0], [1], [0, 0, 1, 1], [], []>} : vector<16x16xbf16>, vector<16x32xbf16>, vector<16x32xf32> -> vector<16x32xf32>
    %568 = arith.addf %543, %567 : vector<16x32xf32>
    %569 = vector.broadcast %40 : vector<1x32xbf16> to vector<16x32xbf16>
    %570 = arith.mulf %515, %569 : vector<16x32xbf16>
    %cst_231 = arith.constant dense<0.000000e+00> : vector<16x16xf32>
    %571 = tpu.matmul %570, %516, %cst_231 {dimension_numbers = #tpu.dot_dimension_numbers<[1], [1], [0], [0], [0, 0, 1, 0], [], []>} : vector<16x32xbf16>, vector<16x32xbf16>, vector<16x16xf32> -> vector<16x16xf32>
    %572 = arith.addf %571, %15 : vector<16x16xf32>
    %cst_232 = arith.constant dense<0xFF800000> : vector<16xf32>
    %573 = vector.multi_reduction <maximumf>, %572, %cst_232 [1] : vector<16x16xf32> to vector<16xf32>
    %574 = vector.shape_cast %573 : vector<16xf32> to vector<16x1xf32>
    %575 = vector.broadcast %574 : vector<16x1xf32> to vector<16x16xf32>
    %576 = arith.subf %572, %575 : vector<16x16xf32>
    %577 = math.exp %576 : vector<16x16xf32>
    %cst_233 = arith.constant dense<0.000000e+00> : vector<16xf32>
    %578 = vector.multi_reduction <add>, %577, %cst_233 [1] : vector<16x16xf32> to vector<16xf32>
    %579 = vector.shape_cast %578 : vector<16xf32> to vector<16x1xf32>
    %580 = tpu.reciprocal %579 {approx = true} : vector<16x1xf32> -> vector<16x1xf32>
    %581 = vector.broadcast %580 : vector<16x1xf32> to vector<16x16xf32>
    %582 = arith.mulf %577, %581 : vector<16x16xf32>
    %cst_234 = arith.constant -5.000000e+08 : f32
    %583 = vector.broadcast %cst_234 : f32 to vector<16x1xf32>
    %584 = arith.cmpf ogt, %574, %583 : vector<16x1xf32>
    %cst_235 = arith.constant 0.000000e+00 : f32
    %585 = vector.shape_cast %584 : vector<16x1xi1> to vector<16x1xi1>
    %586 = vector.broadcast %585 : vector<16x1xi1> to vector<16x16xi1>
    %587 = vector.broadcast %cst_235 : f32 to vector<16x16xf32>
    %588 = arith.select %586, %582, %587 : vector<16x16xi1>, vector<16x16xf32>
    %589 = arith.truncf %588 : vector<16x16xf32> to vector<16x16xbf16>
    %590 = vector.broadcast %40 : vector<1x32xbf16> to vector<16x32xbf16>
    %591 = arith.mulf %517, %590 : vector<16x32xbf16>
    %cst_236 = arith.constant dense<0.000000e+00> : vector<16x32xf32>
    %592 = tpu.matmul %589, %591, %cst_236 {dimension_numbers = #tpu.dot_dimension_numbers<[1], [0], [0], [1], [0, 0, 1, 1], [], []>} : vector<16x16xbf16>, vector<16x32xbf16>, vector<16x32xf32> -> vector<16x32xf32>
    %593 = arith.addf %568, %592 : vector<16x32xf32>
    %594 = vector.broadcast %48 : vector<1x32xbf16> to vector<16x32xbf16>
    %595 = arith.mulf %515, %594 : vector<16x32xbf16>
    %cst_237 = arith.constant dense<0.000000e+00> : vector<16x16xf32>
    %596 = tpu.matmul %595, %516, %cst_237 {dimension_numbers = #tpu.dot_dimension_numbers<[1], [1], [0], [0], [0, 0, 1, 0], [], []>} : vector<16x32xbf16>, vector<16x32xbf16>, vector<16x16xf32> -> vector<16x16xf32>
    %597 = arith.addf %596, %15 : vector<16x16xf32>
    %cst_238 = arith.constant dense<0xFF800000> : vector<16xf32>
    %598 = vector.multi_reduction <maximumf>, %597, %cst_238 [1] : vector<16x16xf32> to vector<16xf32>
    %599 = vector.shape_cast %598 : vector<16xf32> to vector<16x1xf32>
    %600 = vector.broadcast %599 : vector<16x1xf32> to vector<16x16xf32>
    %601 = arith.subf %597, %600 : vector<16x16xf32>
    %602 = math.exp %601 : vector<16x16xf32>
    %cst_239 = arith.constant dense<0.000000e+00> : vector<16xf32>
    %603 = vector.multi_reduction <add>, %602, %cst_239 [1] : vector<16x16xf32> to vector<16xf32>
    %604 = vector.shape_cast %603 : vector<16xf32> to vector<16x1xf32>
    %605 = tpu.reciprocal %604 {approx = true} : vector<16x1xf32> -> vector<16x1xf32>
    %606 = vector.broadcast %605 : vector<16x1xf32> to vector<16x16xf32>
    %607 = arith.mulf %602, %606 : vector<16x16xf32>
    %cst_240 = arith.constant -5.000000e+08 : f32
    %608 = vector.broadcast %cst_240 : f32 to vector<16x1xf32>
    %609 = arith.cmpf ogt, %599, %608 : vector<16x1xf32>
    %cst_241 = arith.constant 0.000000e+00 : f32
    %610 = vector.shape_cast %609 : vector<16x1xi1> to vector<16x1xi1>
    %611 = vector.broadcast %610 : vector<16x1xi1> to vector<16x16xi1>
    %612 = vector.broadcast %cst_241 : f32 to vector<16x16xf32>
    %613 = arith.select %611, %607, %612 : vector<16x16xi1>, vector<16x16xf32>
    %614 = arith.truncf %613 : vector<16x16xf32> to vector<16x16xbf16>
    %615 = vector.broadcast %48 : vector<1x32xbf16> to vector<16x32xbf16>
    %616 = arith.mulf %517, %615 : vector<16x32xbf16>
    %cst_242 = arith.constant dense<0.000000e+00> : vector<16x32xf32>
    %617 = tpu.matmul %614, %616, %cst_242 {dimension_numbers = #tpu.dot_dimension_numbers<[1], [0], [0], [1], [0, 0, 1, 1], [], []>} : vector<16x16xbf16>, vector<16x32xbf16>, vector<16x32xf32> -> vector<16x32xf32>
    %618 = arith.addf %593, %617 : vector<16x32xf32>
    %619 = arith.truncf %618 : vector<16x32xf32> to vector<16x32xbf16>
    %c2_243 = arith.constant 2 : index
    %c0_244 = arith.constant 0 : index
    %c0_245 = arith.constant 0 : index
    %620 = vector.load %arg10[%c2_243, %c0_244, %c0_245] : memref<3x32x32xbf16, #tpu.memory_space<vmem>>, vector<1x32x32xbf16>
    %621 = vector.shape_cast %620 : vector<1x32x32xbf16> to vector<32x32xbf16>
    %cst_246 = arith.constant dense<0.000000e+00> : vector<16x32xf32>
    %622 = tpu.matmul %619, %621, %cst_246 {dimension_numbers = #tpu.dot_dimension_numbers<[1], [0], [0], [1], [0, 0, 1, 1], [], []>} : vector<16x32xbf16>, vector<32x32xbf16>, vector<16x32xf32> -> vector<16x32xf32>
    %c2_247 = arith.constant 2 : index
    %c0_248 = arith.constant 0 : index
    %c0_249 = arith.constant 0 : index
    %623 = vector.load %arg11[%c2_247, %c0_248, %c0_249] : memref<3x1x32xf32, #tpu.memory_space<vmem>>, vector<1x1x32xf32>
    %624 = vector.shape_cast %623 : vector<1x1x32xf32> to vector<1x32xf32>
    %625 = vector.broadcast %624 : vector<1x32xf32> to vector<16x32xf32>
    %626 = arith.addf %622, %625 : vector<16x32xf32>
    %627 = arith.addf %241, %626 : vector<16x32xf32>
    %c2_250 = arith.constant 2 : index
    %c0_251 = arith.constant 0 : index
    %c0_252 = arith.constant 0 : index
    %628 = vector.load %arg12[%c2_250, %c0_251, %c0_252] : memref<3x1x32xf32, #tpu.memory_space<vmem>>, vector<1x1x32xf32>
    %629 = vector.shape_cast %628 : vector<1x1x32xf32> to vector<1x32xf32>
    %630 = arith.mulf %627, %627 : vector<16x32xf32>
    %cst_253 = arith.constant dense<0.000000e+00> : vector<16xf32>
    %631 = vector.multi_reduction <add>, %630, %cst_253 [1] : vector<16x32xf32> to vector<16xf32>
    %632 = vector.shape_cast %631 : vector<16xf32> to vector<16x1xf32>
    %cst_254 = arith.constant 3.200000e+01 : f32
    %633 = vector.broadcast %cst_254 : f32 to vector<16x1xf32>
    %634 = arith.divf %632, %633 : vector<16x1xf32>
    %cst_255 = arith.constant 9.99999997E-7 : f32
    %635 = vector.broadcast %cst_255 : f32 to vector<16x1xf32>
    %636 = arith.addf %634, %635 : vector<16x1xf32>
    %637 = math.rsqrt %636 : vector<16x1xf32>
    %638 = vector.broadcast %637 : vector<16x1xf32> to vector<16x32xf32>
    %639 = arith.mulf %627, %638 : vector<16x32xf32>
    %640 = vector.broadcast %629 : vector<1x32xf32> to vector<16x32xf32>
    %641 = arith.mulf %639, %640 : vector<16x32xf32>
    %642 = arith.truncf %641 : vector<16x32xf32> to vector<16x32xbf16>
    %c2_256 = arith.constant 2 : index
    %c0_257 = arith.constant 0 : index
    %c0_258 = arith.constant 0 : index
    %643 = vector.load %arg13[%c2_256, %c0_257, %c0_258] : memref<3x32x128xbf16, #tpu.memory_space<vmem>>, vector<1x32x128xbf16>
    %644 = vector.shape_cast %643 : vector<1x32x128xbf16> to vector<32x128xbf16>
    %cst_259 = arith.constant dense<0.000000e+00> : vector<16x128xf32>
    %645 = tpu.matmul %642, %644, %cst_259 {dimension_numbers = #tpu.dot_dimension_numbers<[1], [0], [0], [1], [0, 0, 1, 1], [], []>} : vector<16x32xbf16>, vector<32x128xbf16>, vector<16x128xf32> -> vector<16x128xf32>
    %c2_260 = arith.constant 2 : index
    %c0_261 = arith.constant 0 : index
    %c0_262 = arith.constant 0 : index
    %646 = vector.load %arg14[%c2_260, %c0_261, %c0_262] : memref<3x1x128xf32, #tpu.memory_space<vmem>>, vector<1x1x128xf32>
    %647 = vector.shape_cast %646 : vector<1x1x128xf32> to vector<1x128xf32>
    %648 = vector.broadcast %647 : vector<1x128xf32> to vector<16x128xf32>
    %649 = arith.addf %645, %648 : vector<16x128xf32>
    %cst_263 = arith.constant 5.000000e-01 : f32
    %650 = vector.broadcast %cst_263 : f32 to vector<16x128xf32>
    %651 = arith.mulf %650, %649 : vector<16x128xf32>
    %cst_264 = arith.constant 4.471500e-02 : f32
    %652 = vector.broadcast %cst_264 : f32 to vector<16x128xf32>
    %653 = arith.mulf %652, %649 : vector<16x128xf32>
    %654 = arith.mulf %653, %649 : vector<16x128xf32>
    %655 = arith.mulf %654, %649 : vector<16x128xf32>
    %656 = arith.addf %649, %655 : vector<16x128xf32>
    %cst_265 = arith.constant 0.797884583 : f32
    %657 = vector.broadcast %cst_265 : f32 to vector<16x128xf32>
    %658 = arith.mulf %657, %656 : vector<16x128xf32>
    %659 = math.tanh %658 : vector<16x128xf32>
    %cst_266 = arith.constant 1.000000e+00 : f32
    %660 = vector.broadcast %cst_266 : f32 to vector<16x128xf32>
    %661 = arith.addf %660, %659 : vector<16x128xf32>
    %662 = arith.mulf %651, %661 : vector<16x128xf32>
    %663 = arith.truncf %662 : vector<16x128xf32> to vector<16x128xbf16>
    %c2_267 = arith.constant 2 : index
    %c0_268 = arith.constant 0 : index
    %c0_269 = arith.constant 0 : index
    %664 = vector.load %arg15[%c2_267, %c0_268, %c0_269] : memref<3x128x32xbf16, #tpu.memory_space<vmem>>, vector<1x128x32xbf16>
    %665 = vector.shape_cast %664 : vector<1x128x32xbf16> to vector<128x32xbf16>
    %cst_270 = arith.constant dense<0.000000e+00> : vector<16x32xf32>
    %666 = tpu.matmul %663, %665, %cst_270 {dimension_numbers = #tpu.dot_dimension_numbers<[1], [0], [0], [1], [0, 0, 1, 1], [], []>} : vector<16x128xbf16>, vector<128x32xbf16>, vector<16x32xf32> -> vector<16x32xf32>
    %c2_271 = arith.constant 2 : index
    %c0_272 = arith.constant 0 : index
    %c0_273 = arith.constant 0 : index
    %667 = vector.load %arg16[%c2_271, %c0_272, %c0_273] : memref<3x1x32xf32, #tpu.memory_space<vmem>>, vector<1x1x32xf32>
    %668 = vector.shape_cast %667 : vector<1x1x32xf32> to vector<1x32xf32>
    %669 = vector.broadcast %668 : vector<1x32xf32> to vector<16x32xf32>
    %670 = arith.addf %666, %669 : vector<16x32xf32>
    %671 = arith.addf %627, %670 : vector<16x32xf32>
    %672 = arith.truncf %671 : vector<16x32xf32> to vector<16x32xbf16>
    %c0_274 = arith.constant 0 : index
    %c0_275 = arith.constant 0 : index
    %c0_276 = arith.constant 0 : index
    %673 = vector.load %arg20[%c0_274, %c0_275, %c0_276] : memref<1x16x32xbf16, #tpu.memory_space<vmem>>, vector<1x16x32xbf16>
    %674 = vector.shape_cast %673 : vector<1x16x32xbf16> to vector<16x32xbf16>
    %675 = vector.shape_cast %672 : vector<16x32xbf16> to vector<1x16x32xbf16>
    tpu.vector_store %arg20[%c0_274, %c0_275, %c0_276], %675 {strides = array<i32>} : memref<1x16x32xbf16, #tpu.memory_space<vmem>>, vector<1x16x32xbf16>,
    return
  }
  func.func @transform_0(%arg0: i32) -> (i32, i32, i32) {
    %c0_i32 = arith.constant 0 : i32
    %c0_i32_0 = arith.constant 0 : i32
    %c0_i32_1 = arith.constant 0 : i32
    return %arg0, %c0_i32, %c0_i32_0 : i32, i32, i32
  }
  func.func @transform_1(%arg0: i32) -> (i32, i32, i32) {
    %c0_i32 = arith.constant 0 : i32
    %c0_i32_0 = arith.constant 0 : i32
    %c0_i32_1 = arith.constant 0 : i32
    return %arg0, %c0_i32, %c0_i32_0 : i32, i32, i32
  }
  func.func @transform_2(%arg0: i32) -> (i32, i32, i32) {
    %c0_i32 = arith.constant 0 : i32
    %c0_i32_0 = arith.constant 0 : i32
    %c0_i32_1 = arith.constant 0 : i32
    %c0_i32_2 = arith.constant 0 : i32
    return %c0_i32, %c0_i32_0, %c0_i32_1 : i32, i32, i32
  }
  func.func @transform_3(%arg0: i32) -> (i32, i32, i32) {
    %c0_i32 = arith.constant 0 : i32
    %c0_i32_0 = arith.constant 0 : i32
    %c0_i32_1 = arith.constant 0 : i32
    %c0_i32_2 = arith.constant 0 : i32
    return %c0_i32, %c0_i32_0, %c0_i32_1 : i32, i32, i32
  }
  func.func @transform_4(%arg0: i32) -> (i32, i32, i32) {
    %c0_i32 = arith.constant 0 : i32
    %c0_i32_0 = arith.constant 0 : i32
    %c0_i32_1 = arith.constant 0 : i32
    %c0_i32_2 = arith.constant 0 : i32
    return %c0_i32, %c0_i32_0, %c0_i32_1 : i32, i32, i32
  }
  func.func @transform_5(%arg0: i32) -> (i32, i32, i32) {
    %c0_i32 = arith.constant 0 : i32
    %c0_i32_0 = arith.constant 0 : i32
    %c0_i32_1 = arith.constant 0 : i32
    %c0_i32_2 = arith.constant 0 : i32
    return %c0_i32, %c0_i32_0, %c0_i32_1 : i32, i32, i32
  }
  func.func @transform_6(%arg0: i32) -> (i32, i32, i32) {
    %c0_i32 = arith.constant 0 : i32
    %c0_i32_0 = arith.constant 0 : i32
    %c0_i32_1 = arith.constant 0 : i32
    %c0_i32_2 = arith.constant 0 : i32
    return %c0_i32, %c0_i32_0, %c0_i32_1 : i32, i32, i32
  }
  func.func @transform_7(%arg0: i32) -> (i32, i32, i32) {
    %c0_i32 = arith.constant 0 : i32
    %c0_i32_0 = arith.constant 0 : i32
    %c0_i32_1 = arith.constant 0 : i32
    %c0_i32_2 = arith.constant 0 : i32
    return %c0_i32, %c0_i32_0, %c0_i32_1 : i32, i32, i32
  }
  func.func @transform_8(%arg0: i32) -> (i32, i32, i32) {
    %c0_i32 = arith.constant 0 : i32
    %c0_i32_0 = arith.constant 0 : i32
    %c0_i32_1 = arith.constant 0 : i32
    %c0_i32_2 = arith.constant 0 : i32
    return %c0_i32, %c0_i32_0, %c0_i32_1 : i32, i32, i32
  }
  func.func @transform_9(%arg0: i32) -> (i32, i32, i32) {
    %c0_i32 = arith.constant 0 : i32
    %c0_i32_0 = arith.constant 0 : i32
    %c0_i32_1 = arith.constant 0 : i32
    %c0_i32_2 = arith.constant 0 : i32
    return %c0_i32, %c0_i32_0, %c0_i32_1 : i32, i32, i32
  }
  func.func @transform_10(%arg0: i32) -> (i32, i32, i32) {
    %c0_i32 = arith.constant 0 : i32
    %c0_i32_0 = arith.constant 0 : i32
    %c0_i32_1 = arith.constant 0 : i32
    %c0_i32_2 = arith.constant 0 : i32
    return %c0_i32, %c0_i32_0, %c0_i32_1 : i32, i32, i32
  }
  func.func @transform_11(%arg0: i32) -> (i32, i32, i32) {
    %c0_i32 = arith.constant 0 : i32
    %c0_i32_0 = arith.constant 0 : i32
    %c0_i32_1 = arith.constant 0 : i32
    %c0_i32_2 = arith.constant 0 : i32
    return %c0_i32, %c0_i32_0, %c0_i32_1 : i32, i32, i32
  }
  func.func @transform_12(%arg0: i32) -> (i32, i32, i32) {
    %c0_i32 = arith.constant 0 : i32
    %c0_i32_0 = arith.constant 0 : i32
    %c0_i32_1 = arith.constant 0 : i32
    %c0_i32_2 = arith.constant 0 : i32
    return %c0_i32, %c0_i32_0, %c0_i32_1 : i32, i32, i32
  }
  func.func @transform_13(%arg0: i32) -> (i32, i32, i32) {
    %c0_i32 = arith.constant 0 : i32
    %c0_i32_0 = arith.constant 0 : i32
    %c0_i32_1 = arith.constant 0 : i32
    %c0_i32_2 = arith.constant 0 : i32
    return %c0_i32, %c0_i32_0, %c0_i32_1 : i32, i32, i32
  }
  func.func @transform_14(%arg0: i32) -> (i32, i32, i32) {
    %c0_i32 = arith.constant 0 : i32
    %c0_i32_0 = arith.constant 0 : i32
    %c0_i32_1 = arith.constant 0 : i32
    %c0_i32_2 = arith.constant 0 : i32
    return %c0_i32, %c0_i32_0, %c0_i32_1 : i32, i32, i32
  }
  func.func @transform_15(%arg0: i32) -> (i32, i32, i32) {
    %c0_i32 = arith.constant 0 : i32
    %c0_i32_0 = arith.constant 0 : i32
    %c0_i32_1 = arith.constant 0 : i32
    %c0_i32_2 = arith.constant 0 : i32
    return %c0_i32, %c0_i32_0, %c0_i32_1 : i32, i32, i32
  }
  func.func @transform_16(%arg0: i32) -> (i32, i32) {
    %c0_i32 = arith.constant 0 : i32
    %c0_i32_0 = arith.constant 0 : i32
    %c0_i32_1 = arith.constant 0 : i32
    return %c0_i32, %c0_i32_0 : i32, i32
  }
  func.func @transform_17(%arg0: i32) -> (i32, i32) {
    %c0_i32 = arith.constant 0 : i32
    %c0_i32_0 = arith.constant 0 : i32
    %c0_i32_1 = arith.constant 0 : i32
    return %c0_i32, %c0_i32_0 : i32, i32
  }
  func.func @transform_18(%arg0: i32) -> (i32, i32) {
    %c0_i32 = arith.constant 0 : i32
    %c0_i32_0 = arith.constant 0 : i32
    %c0_i32_1 = arith.constant 0 : i32
    return %c0_i32, %c0_i32_0 : i32, i32
  }
  func.func @transform_19(%arg0: i32) -> (i32, i32, i32) {
    %c0_i32 = arith.constant 0 : i32
    %c0_i32_0 = arith.constant 0 : i32
    %c0_i32_1 = arith.constant 0 : i32
    return %arg0, %c0_i32, %c0_i32_0 : i32, i32, i32
  }
  func.func @transform_20(%arg0: i32) -> (i32, i32, i32) {
    %c0_i32 = arith.constant 0 : i32
    %c0_i32_0 = arith.constant 0 : i32
    %c0_i32_1 = arith.constant 0 : i32
    return %arg0, %c0_i32, %c0_i32_0 : i32, i32, i32
  }
}

</mosaic_0001>

<llo_original>
// kernel: _forward.3
$region0: #{_forward.3}
  #allocation0 [shape = 'u32[]', space=smem, size = 0x4, offset = 0x4, fixed_abs, tag = 'smem constant byte address 0x4 - core index']
  #allocation1 [shape = 'u32[144,128]{1,0:T(1,128)}', space=vmem, size = 0x12000, scoped, tag = 'internal scratch']
  %s0 = inlined_call_operand.vmem [shape: bf16[2,16,32], index: 0, kind: input, shape index: {}]
  %s1 = inlined_call_operand.vmem [shape: s32[2,1,16], index: 1, kind: input, shape index: {}]
  %s2 = inlined_call_operand.vmem [shape: f32[2,1,16], index: 2, kind: input, shape index: {}]
  %s3 = inlined_call_operand.vmem [shape: f32[1,32], index: 3, kind: input, shape index: {}]
  %s4 = inlined_call_operand.vmem [shape: bf16[32,32], index: 4, kind: input, shape index: {}]
  %s5 = inlined_call_operand.vmem [shape: f32[1,32], index: 5, kind: input, shape index: {}]
  %s6 = inlined_call_operand.vmem [shape: bf16[32,32], index: 6, kind: input, shape index: {}]
  %s7 = inlined_call_operand.vmem [shape: f32[1,32], index: 7, kind: input, shape index: {}]
  %s8 = inlined_call_operand.vmem [shape: bf16[32,32], index: 8, kind: input, shape index: {}]
  %s9 = inlined_call_operand.vmem [shape: f32[1,32], index: 9, kind: input, shape index: {}]
  %s10 = inlined_call_operand.vmem [shape: bf16[32,32], index: 10, kind: input, shape index: {}]
  %s11 = inlined_call_operand.vmem [shape: f32[1,32], index: 11, kind: input, shape index: {}]
  %s12 = inlined_call_operand.vmem [shape: f32[64,32], index: 12, kind: input, shape index: {}]
  %s13 = inlined_call_operand.vmem [shape: f32[2,16,128], index: 13, kind: output, shape index: {}]
  %s14 = sld [smem:[#allocation0]]
  $region85: #{_forward.3} parent=0
    _
  %s16 = ssub.s32 1, %s14
  %s17 = scalar_select 0, %s16, %s14
  loop: start=0, step=1, limit=4
  $region2: #{_forward.3} parent=0 // loop_pre_header
    _
  $region3: #{_forward.3} parent=0 // loop_header
    %s19 = sphi 0, %s23
    %p20 = scmp.ge.s32.totalorder %s19, 4
    %s29 = sphi 0, %s31
    %s32 = sphi 0, %s29
    %s33 = sphi 0, %s32
    %s49 = sphi 0, %s33
    %s55 = sphi 0, %s57
    %s58 = sphi 0, %s55
    %s59 = sphi 0, %s58
    %s75 = sphi 0, %s59
    %s81 = sphi 0, %s83
    %s84 = sphi 0, %s81
    %s85 = sphi 0, %s84
    %s101 = sphi 0, %s85
    %s105 = sphi 0, %s105
    %s107 = sphi 0, %s105
    %s108 = sphi 0, %s107
    %s122 = sphi 0, %s108
    %s126 = sphi 0, %s126
    %s128 = sphi 0, %s126
    %s129 = sphi 0, %s128
    %s143 = sphi 0, %s129
    %s147 = sphi 0, %s147
    %s149 = sphi 0, %s147
    %s150 = sphi 0, %s149
    %s164 = sphi 0, %s150
    %s168 = sphi 0, %s168
    %s170 = sphi 0, %s168
    %s171 = sphi 0, %s170
    %s185 = sphi 0, %s171
    %s189 = sphi 0, %s189
    %s191 = sphi 0, %s189
    %s192 = sphi 0, %s191
    %s206 = sphi 0, %s192
    %s210 = sphi 0, %s210
    %s212 = sphi 0, %s210
    %s213 = sphi 0, %s212
    %s227 = sphi 0, %s213
    %s231 = sphi 0, %s231
    %s233 = sphi 0, %s231
    %s234 = sphi 0, %s233
    %s248 = sphi 0, %s234
    %s252 = sphi 0, %s252
    %s254 = sphi 0, %s252
    %s255 = sphi 0, %s254
    %s269 = sphi 0, %s255
    %s273 = sphi 0, %s273
    %s275 = sphi 0, %s273
    %s276 = sphi 0, %s275
    %s290 = sphi 0, %s276
    %s294 = sphi 0, %s294
    %s296 = sphi 0, %s294
    %s297 = sphi 0, %s296
    %s311 = sphi 0, %s297
    %s317 = sphi 0, %s319
    %s320 = sphi 0, %s317
    %s321 = sphi 0, %s320
    %s337 = sphi 0, %s321
  $region4: #{_forward.3} parent=0 // loop_header_branch
    %22 = sbr.rel (%p20) target = $region8
  $region5: #{_forward.3} parent=0 // loop_body
    %s24 = ssub.s32 %s19, 1
    %s25 = ssub.s32 %s19, 2
    %s26 = sadd.s32 %s19, 1
    %s27 = ssub.s32 %s19, %s26
    %p28 = scmp.eq.s32.totalorder %s27, 0
    %s30 = sadd.s32 %s29, 1
    %s31 = scalar_select %p28, %s29, %s30
    %p34 = pneg %p28
    %p35 = scmp.eq.s32.totalorder %s19, 1
    %p36 = por %p34, %p35
    %p37 = scmp.ne.s32.totalorder %s29, %s32
    %p38 = scmp.eq.s32.totalorder %s19, 0
    %p39 = por %p37, %p38
    %p40 = scmp.ne.s32.totalorder %s29, %s32
    %p41 = scmp.eq.s32.totalorder %s24, 1
    %p42 = por %p40, %p41
    %p43 = scmp.ne.s32.totalorder %s32, %s33
    %p44 = scmp.eq.s32.totalorder %s24, 0
    %p45 = por %p43, %p44
    %p46 = scmp.ne.s32.totalorder %s32, %s33
    %p47 = scmp.eq.s32.totalorder %s25, 1
    %p48 = por %p46, %p47
    %p50 = scmp.ne.s32.totalorder %s33, %s49
    %p51 = scmp.eq.s32.totalorder %s25, 0
    %p52 = por %p50, %p51
    %s53 = ssub.s32 %s19, %s26
    %p54 = scmp.eq.s32.totalorder %s53, 0
    %s56 = sadd.s32 %s55, 1
    %s57 = scalar_select %p54, %s55, %s56
    %p60 = pneg %p54
    %p61 = scmp.eq.s32.totalorder %s19, 1
    %p62 = por %p60, %p61
    %p63 = scmp.ne.s32.totalorder %s55, %s58
    %p64 = scmp.eq.s32.totalorder %s19, 0
    %p65 = por %p63, %p64
    %p66 = scmp.ne.s32.totalorder %s55, %s58
    %p67 = scmp.eq.s32.totalorder %s24, 1
    %p68 = por %p66, %p67
    %p69 = scmp.ne.s32.totalorder %s58, %s59
    %p70 = scmp.eq.s32.totalorder %s24, 0
    %p71 = por %p69, %p70
    %p72 = scmp.ne.s32.totalorder %s58, %s59
    %p73 = scmp.eq.s32.totalorder %s25, 1
    %p74 = por %p72, %p73
    %p76 = scmp.ne.s32.totalorder %s59, %s75
    %p77 = scmp.eq.s32.totalorder %s25, 0
    %p78 = por %p76, %p77
    %s79 = ssub.s32 %s19, %s26
    %p80 = scmp.eq.s32.totalorder %s79, 0
    %s82 = sadd.s32 %s81, 1
    %s83 = scalar_select %p80, %s81, %s82
    %p86 = pneg %p80
    %p87 = scmp.eq.s32.totalorder %s19, 1
    %p88 = por %p86, %p87
    %p89 = scmp.ne.s32.totalorder %s81, %s84
    %p90 = scmp.eq.s32.totalorder %s19, 0
    %p91 = por %p89, %p90
    %p92 = scmp.ne.s32.totalorder %s81, %s84
    %p93 = scmp.eq.s32.totalorder %s24, 1
    %p94 = por %p92, %p93
    %p95 = scmp.ne.s32.totalorder %s84, %s85
    %p96 = scmp.eq.s32.totalorder %s24, 0
    %p97 = por %p95, %p96
    %p98 = scmp.ne.s32.totalorder %s84, %s85
    %p99 = scmp.eq.s32.totalorder %s25, 1
    %p100 = por %p98, %p99
    %p102 = scmp.ne.s32.totalorder %s85, %s101
    %p103 = scmp.eq.s32.totalorder %s25, 0
    %p104 = por %p102, %p103
    %s106 = sadd.s32 %s105, 1
    %p109 = scmp.eq.s32.totalorder %s19, 1
    %p110 = scmp.ne.s32.totalorder %s105, %s107
    %p111 = scmp.eq.s32.totalorder %s19, 0
    %p112 = por %p110, %p111
    %p113 = scmp.ne.s32.totalorder %s105, %s107
    %p114 = scmp.eq.s32.totalorder %s24, 1
    %p115 = por %p113, %p114
    %p116 = scmp.ne.s32.totalorder %s107, %s108
    %p117 = scmp.eq.s32.totalorder %s24, 0
    %p118 = por %p116, %p117
    %p119 = scmp.ne.s32.totalorder %s107, %s108
    %p120 = scmp.eq.s32.totalorder %s25, 1
    %p121 = por %p119, %p120
    %p123 = scmp.ne.s32.totalorder %s108, %s122
    %p124 = scmp.eq.s32.totalorder %s25, 0
    %p125 = por %p123, %p124
    %s127 = sadd.s32 %s126, 1
    %p130 = scmp.eq.s32.totalorder %s19, 1
    %p131 = scmp.ne.s32.totalorder %s126, %s128
    %p132 = scmp.eq.s32.totalorder %s19, 0
    %p133 = por %p131, %p132
    %p134 = scmp.ne.s32.totalorder %s126, %s128
    %p135 = scmp.eq.s32.totalorder %s24, 1
    %p136 = por %p134, %p135
    %p137 = scmp.ne.s32.totalorder %s128, %s129
    %p138 = scmp.eq.s32.totalorder %s24, 0
    %p139 = por %p137, %p138
    %p140 = scmp.ne.s32.totalorder %s128, %s129
    %p141 = scmp.eq.s32.totalorder %s25, 1
    %p142 = por %p140, %p141
    %p144 = scmp.ne.s32.totalorder %s129, %s143
    %p145 = scmp.eq.s32.totalorder %s25, 0
    %p146 = por %p144, %p145
    %s148 = sadd.s32 %s147, 1
    %p151 = scmp.eq.s32.totalorder %s19, 1
    %p152 = scmp.ne.s32.totalorder %s147, %s149
    %p153 = scmp.eq.s32.totalorder %s19, 0
    %p154 = por %p152, %p153
    %p155 = scmp.ne.s32.totalorder %s147, %s149
    %p156 = scmp.eq.s32.totalorder %s24, 1
    %p157 = por %p155, %p156
    %p158 = scmp.ne.s32.totalorder %s149, %s150
    %p159 = scmp.eq.s32.totalorder %s24, 0
    %p160 = por %p158, %p159
    %p161 = scmp.ne.s32.totalorder %s149, %s150
    %p162 = scmp.eq.s32.totalorder %s25, 1
    %p163 = por %p161, %p162
    %p165 = scmp.ne.s32.totalorder %s150, %s164
    %p166 = scmp.eq.s32.totalorder %s25, 0
    %p167 = por %p165, %p166
    %s169 = sadd.s32 %s168, 1
    %p172 = scmp.eq.s32.totalorder %s19, 1
    %p173 = scmp.ne.s32.totalorder %s168, %s170
    %p174 = scmp.eq.s32.totalorder %s19, 0
    %p175 = por %p173, %p174
    %p176 = scmp.ne.s32.totalorder %s168, %s170
    %p177 = scmp.eq.s32.totalorder %s24, 1
    %p178 = por %p176, %p177
    %p179 = scmp.ne.s32.totalorder %s170, %s171
    %p180 = scmp.eq.s32.totalorder %s24, 0
    %p181 = por %p179, %p180
    %p182 = scmp.ne.s32.totalorder %s170, %s171
    %p183 = scmp.eq.s32.totalorder %s25, 1
    %p184 = por %p182, %p183
    %p186 = scmp.ne.s32.totalorder %s171, %s185
    %p187 = scmp.eq.s32.totalorder %s25, 0
    %p188 = por %p186, %p187
    %s190 = sadd.s32 %s189, 1
    %p193 = scmp.eq.s32.totalorder %s19, 1
    %p194 = scmp.ne.s32.totalorder %s189, %s191
    %p195 = scmp.eq.s32.totalorder %s19, 0
    %p196 = por %p194, %p195
    %p197 = scmp.ne.s32.totalorder %s189, %s191
    %p198 = scmp.eq.s32.totalorder %s24, 1
    %p199 = por %p197, %p198
    %p200 = scmp.ne.s32.totalorder %s191, %s192
    %p201 = scmp.eq.s32.totalorder %s24, 0
    %p202 = por %p200, %p201
    %p203 = scmp.ne.s32.totalorder %s191, %s192
    %p204 = scmp.eq.s32.totalorder %s25, 1
    %p205 = por %p203, %p204
    %p207 = scmp.ne.s32.totalorder %s192, %s206
    %p208 = scmp.eq.s32.totalorder %s25, 0
    %p209 = por %p207, %p208
    %s211 = sadd.s32 %s210, 1
    %p214 = scmp.eq.s32.totalorder %s19, 1
    %p215 = scmp.ne.s32.totalorder %s210, %s212
    %p216 = scmp.eq.s32.totalorder %s19, 0
    %p217 = por %p215, %p216
    %p218 = scmp.ne.s32.totalorder %s210, %s212
    %p219 = scmp.eq.s32.totalorder %s24, 1
    %p220 = por %p218, %p219
    %p221 = scmp.ne.s32.totalorder %s212, %s213
    %p222 = scmp.eq.s32.totalorder %s24, 0
    %p223 = por %p221, %p222
    %p224 = scmp.ne.s32.totalorder %s212, %s213
    %p225 = scmp.eq.s32.totalorder %s25, 1
    %p226 = por %p224, %p225
    %p228 = scmp.ne.s32.totalorder %s213, %s227
    %p229 = scmp.eq.s32.totalorder %s25, 0
    %p230 = por %p228, %p229
    %s232 = sadd.s32 %s231, 1
    %p235 = scmp.eq.s32.totalorder %s19, 1
    %p236 = scmp.ne.s32.totalorder %s231, %s233
    %p237 = scmp.eq.s32.totalorder %s19, 0
    %p238 = por %p236, %p237
    %p239 = scmp.ne.s32.totalorder %s231, %s233
    %p240 = scmp.eq.s32.totalorder %s24, 1
    %p241 = por %p239, %p240
    %p242 = scmp.ne.s32.totalorder %s233, %s234
    %p243 = scmp.eq.s32.totalorder %s24, 0
    %p244 = por %p242, %p243
    %p245 = scmp.ne.s32.totalorder %s233, %s234
    %p246 = scmp.eq.s32.totalorder %s25, 1
    %p247 = por %p245, %p246
    %p249 = scmp.ne.s32.totalorder %s234, %s248
    %p250 = scmp.eq.s32.totalorder %s25, 0
    %p251 = por %p249, %p250
    %s253 = sadd.s32 %s252, 1
    %p256 = scmp.eq.s32.totalorder %s19, 1
    %p257 = scmp.ne.s32.totalorder %s252, %s254
    %p258 = scmp.eq.s32.totalorder %s19, 0
    %p259 = por %p257, %p258
    %p260 = scmp.ne.s32.totalorder %s252, %s254
    %p261 = scmp.eq.s32.totalorder %s24, 1
    %p262 = por %p260, %p261
    %p263 = scmp.ne.s32.totalorder %s254, %s255
    %p264 = scmp.eq.s32.totalorder %s24, 0
    %p265 = por %p263, %p264
    %p266 = scmp.ne.s32.totalorder %s254, %s255
    %p267 = scmp.eq.s32.totalorder %s25, 1
    %p268 = por %p266, %p267
    %p270 = scmp.ne.s32.totalorder %s255, %s269
    %p271 = scmp.eq.s32.totalorder %s25, 0
    %p272 = por %p270, %p271
    %s274 = sadd.s32 %s273, 1
    %p277 = scmp.eq.s32.totalorder %s19, 1
    %p278 = scmp.ne.s32.totalorder %s273, %s275
    %p279 = scmp.eq.s32.totalorder %s19, 0
    %p280 = por %p278, %p279
    %p281 = scmp.ne.s32.totalorder %s273, %s275
    %p282 = scmp.eq.s32.totalorder %s24, 1
    %p283 = por %p281, %p282
    %p284 = scmp.ne.s32.totalorder %s275, %s276
    %p285 = scmp.eq.s32.totalorder %s24, 0
    %p286 = por %p284, %p285
    %p287 = scmp.ne.s32.totalorder %s275, %s276
    %p288 = scmp.eq.s32.totalorder %s25, 1
    %p289 = por %p287, %p288
    %p291 = scmp.ne.s32.totalorder %s276, %s290
    %p292 = scmp.eq.s32.totalorder %s25, 0
    %p293 = por %p291, %p292
    %s295 = sadd.s32 %s294, 1
    %p298 = scmp.eq.s32.totalorder %s19, 1
    %p299 = scmp.ne.s32.totalorder %s294, %s296
    %p300 = scmp.eq.s32.totalorder %s19, 0
    %p301 = por %p299, %p300
    %p302 = scmp.ne.s32.totalorder %s294, %s296
    %p303 = scmp.eq.s32.totalorder %s24, 1
    %p304 = por %p302, %p303
    %p305 = scmp.ne.s32.totalorder %s296, %s297
    %p306 = scmp.eq.s32.totalorder %s24, 0
    %p307 = por %p305, %p306
    %p308 = scmp.ne.s32.totalorder %s296, %s297
    %p309 = scmp.eq.s32.totalorder %s25, 1
    %p310 = por %p308, %p309
    %p312 = scmp.ne.s32.totalorder %s297, %s311
    %p313 = scmp.eq.s32.totalorder %s25, 0
    %p314 = por %p312, %p313
    %s315 = ssub.s32 %s19, %s26
    %p316 = scmp.eq.s32.totalorder %s315, 0
    %s318 = sadd.s32 %s317, 1
    %s319 = scalar_select %p316, %s317, %s318
    %p322 = pneg %p316
    %p323 = scmp.eq.s32.totalorder %s19, 1
    %p324 = por %p322, %p323
    %p325 = scmp.ne.s32.totalorder %s317, %s320
    %p326 = scmp.eq.s32.totalorder %s19, 0
    %p327 = por %p325, %p326
    %p328 = scmp.ne.s32.totalorder %s317, %s320
    %p329 = scmp.eq.s32.totalorder %s24, 1
    %p330 = por %p328, %p329
    %p331 = scmp.ne.s32.totalorder %s320, %s321
    %p332 = scmp.eq.s32.totalorder %s24, 0
    %p333 = por %p331, %p332
    %p334 = scmp.ne.s32.totalorder %s320, %s321
    %p335 = scmp.eq.s32.totalorder %s25, 1
    %p336 = por %p334, %p335
    %p338 = scmp.ne.s32.totalorder %s321, %s337
    %p339 = scmp.eq.s32.totalorder %s25, 0
    %p340 = por %p338, %p339
    %p341 = scmp.le.s32.totalorder 1, %s19
    %p342 = scmp.lt.s32.totalorder %s19, 3
    %p343 = pnand %p341, %p342
    %p344 = pneg %p343
    // Predicated region
    $region9: #{_forward.3} parent=5 // pred_check
      _
    $region10: #{_forward.3} parent=5 // pred_check_branch
      %346 = sbr.rel (%p343) target = $region12
    $region11: #{_forward.3} parent=5 // pred_region
      %s347 = ssub.s32 %s19, 1
      // Predicated region
      $region13: #{_forward.3} parent=11 // pred_check
        %p348 = pneg %p118
      $region14: #{_forward.3} parent=11 // pred_check_branch
        %350 = sbr.rel (%p348) target = $region16
      $region15: #{_forward.3} parent=11 // pred_region
        _
      $region16: #{_forward.3} parent=11 // pred_fallthru
        _
      // Predicated region
      $region17: #{_forward.3} parent=11 // pred_check
        %p351 = pneg %p139
      $region18: #{_forward.3} parent=11 // pred_check_branch
        %353 = sbr.rel (%p351) target = $region20
      $region19: #{_forward.3} parent=11 // pred_region
        _
      $region20: #{_forward.3} parent=11 // pred_fallthru
        _
      // Predicated region
      $region21: #{_forward.3} parent=11 // pred_check
        %p354 = pneg %p160
      $region22: #{_forward.3} parent=11 // pred_check_branch
        %356 = sbr.rel (%p354) target = $region24
      $region23: #{_forward.3} parent=11 // pred_region
        _
      $region24: #{_forward.3} parent=11 // pred_fallthru
        _
      // Predicated region
      $region25: #{_forward.3} parent=11 // pred_check
        %p357 = pneg %p181
      $region26: #{_forward.3} parent=11 // pred_check_branch
        %359 = sbr.rel (%p357) target = $region28
      $region27: #{_forward.3} parent=11 // pred_region
        _
      $region28: #{_forward.3} parent=11 // pred_fallthru
        _
      // Predicated region
      $region29: #{_forward.3} parent=11 // pred_check
        %p360 = pneg %p202
      $region30: #{_forward.3} parent=11 // pred_check_branch
        %362 = sbr.rel (%p360) target = $region32
      $region31: #{_forward.3} parent=11 // pred_region
        _
      $region32: #{_forward.3} parent=11 // pred_fallthru
        _
      // Predicated region
      $region33: #{_forward.3} parent=11 // pred_check
        %p363 = pneg %p223
      $region34: #{_forward.3} parent=11 // pred_check_branch
        %365 = sbr.rel (%p363) target = $region36
      $region35: #{_forward.3} parent=11 // pred_region
        _
      $region36: #{_forward.3} parent=11 // pred_fallthru
        _
      // Predicated region
      $region37: #{_forward.3} parent=11 // pred_check
        %p366 = pneg %p244
      $region38: #{_forward.3} parent=11 // pred_check_branch
        %368 = sbr.rel (%p366) target = $region40
      $region39: #{_forward.3} parent=11 // pred_region
        _
      $region40: #{_forward.3} parent=11 // pred_fallthru
        _
      // Predicated region
      $region41: #{_forward.3} parent=11 // pred_check
        %p369 = pneg %p265
      $region42: #{_forward.3} parent=11 // pred_check_branch
        %371 = sbr.rel (%p369) target = $region44
      $region43: #{_forward.3} parent=11 // pred_region
        _
      $region44: #{_forward.3} parent=11 // pred_fallthru
        _
      // Predicated region
      $region45: #{_forward.3} parent=11 // pred_check
        %p372 = pneg %p286
      $region46: #{_forward.3} parent=11 // pred_check_branch
        %374 = sbr.rel (%p372) target = $region48
      $region47: #{_forward.3} parent=11 // pred_region
        _
      $region48: #{_forward.3} parent=11 // pred_fallthru
        _
      // Predicated region
      $region49: #{_forward.3} parent=11 // pred_check
        %p375 = pneg %p307
      $region50: #{_forward.3} parent=11 // pred_check_branch
        %377 = sbr.rel (%p375) target = $region52
      $region51: #{_forward.3} parent=11 // pred_region
        _
      $region52: #{_forward.3} parent=11 // pred_fallthru
        _
    $region12: #{_forward.3} parent=5 // pred_fallthru
      _
    %p378 = scmp.lt.s32.totalorder %s19, 2
    // Predicated region
    $region53: #{_forward.3} parent=5 // pred_check
      %p379 = pneg %p378
    $region54: #{_forward.3} parent=5 // pred_check_branch
      %381 = sbr.rel (%p379) target = $region56
    $region55: #{_forward.3} parent=5 // pred_region
      // Predicated region
      $region57: #{_forward.3} parent=55 // pred_check
        %p382 = pneg %p39
      $region58: #{_forward.3} parent=55 // pred_check_branch
        %384 = sbr.rel (%p382) target = $region60
      $region59: #{_forward.3} parent=55 // pred_region
        %p385 = scmp.lt.s32.totalorder %s19, 1
        %s386 = scalar_select %p385, %s19, 1
        %s387 = smul.addr %s386, 2
        %s388 = smul.addr %s387, 4
        %s389 = scalar_lea.vmem %s0, %s388
      $region60: #{_forward.3} parent=55 // pred_fallthru
        _
      // Predicated region
      $region61: #{_forward.3} parent=55 // pred_check
        %p390 = pneg %p65
      $region62: #{_forward.3} parent=55 // pred_check_branch
        %392 = sbr.rel (%p390) target = $region64
      $region63: #{_forward.3} parent=55 // pred_region
        %p393 = scmp.lt.s32.totalorder %s19, 1
        %s394 = scalar_select %p393, %s19, 1
        %s395 = scalar_lea.vmem %s1, %s394
      $region64: #{_forward.3} parent=55 // pred_fallthru
        _
      // Predicated region
      $region65: #{_forward.3} parent=55 // pred_check
        %p396 = pneg %p91
      $region66: #{_forward.3} parent=55 // pred_check_branch
        %398 = sbr.rel (%p396) target = $region68
      $region67: #{_forward.3} parent=55 // pred_region
        %p399 = scmp.lt.s32.totalorder %s19, 1
        %s400 = scalar_select %p399, %s19, 1
        %s401 = scalar_lea.vmem %s2, %s400
      $region68: #{_forward.3} parent=55 // pred_fallthru
        _
    $region56: #{_forward.3} parent=5 // pred_fallthru
      _
    %p402 = scmp.le.s32.totalorder 1, %s19
    %p403 = scmp.lt.s32.totalorder %s19, 3
    %p404 = pnand %p402, %p403
    %p405 = pneg %p404
    // Predicated region
    $region69: #{_forward.3} parent=5 // pred_check
      _
    $region70: #{_forward.3} parent=5 // pred_check_branch
      %407 = sbr.rel (%p404) target = $region72
    $region71: #{_forward.3} parent=5 // pred_region
      %s408 = ssub.s32 %s19, 1
      %p409 = scmp.lt.s32.totalorder %s24, 1
      %s410 = scalar_select %p409, %s24, 1
      %s411 = smul.addr %s410, 2
      %s412 = smul.addr %s411, 4
      %s413 = scalar_lea.vmem %s0, %s412
      %p414 = pneg %p45
      %p415 = pneg %p42
      %p416 = scmp.lt.s32.totalorder %s24, 1
      %s417 = scalar_select %p416, %s24, 1
      %s418 = scalar_lea.vmem %s1, %s417
      %p419 = pneg %p71
      %p420 = pneg %p68
      %p421 = scmp.lt.s32.totalorder %s24, 1
      %s422 = scalar_select %p421, %s24, 1
      %s423 = scalar_lea.vmem %s2, %s422
      %p424 = pneg %p97
      %p425 = pneg %p94
      %p426 = pneg %p118
      %p427 = pneg %p115
      %p428 = pneg %p139
      %p429 = pneg %p136
      %p430 = pneg %p160
      %p431 = pneg %p157
      %p432 = pneg %p181
      %p433 = pneg %p178
      %p434 = pneg %p202
      %p435 = pneg %p199
      %p436 = pneg %p223
      %p437 = pneg %p220
      %p438 = pneg %p244
      %p439 = pneg %p241
      %p440 = pneg %p265
      %p441 = pneg %p262
      %p442 = pneg %p286
      %p443 = pneg %p283
      %p444 = pneg %p307
      %p445 = pneg %p304
      %p446 = pneg %p333
      %p447 = pneg %p330
      %p448 = scmp.lt.s32.totalorder %s24, 1
      %s449 = scalar_select %p448, %s24, 1
      %s450 = smul.addr %s449, 2
      %s451 = smul.addr %s450, 8
      %s452 = scalar_lea.vmem %s13, %s451
      %p453 = scmp.lt.s32.totalorder %s24, 1
      %s454 = scalar_select %p453, %s24, 1
      %s455 = smul.addr %s454, 2
      %s456 = smul.addr %s455, 4
      %s457 = scalar_lea.vmem %s0, %s456
      %p458 = scmp.lt.s32.totalorder %s24, 1
      %s459 = scalar_select %p458, %s24, 1
      %s460 = scalar_lea.vmem %s1, %s459
      %p461 = scmp.lt.s32.totalorder %s24, 1
      %s462 = scalar_select %p461, %s24, 1
      %s463 = scalar_lea.vmem %s2, %s462
      %p464 = scmp.lt.s32.totalorder %s24, 1
      %s465 = scalar_select %p464, %s24, 1
      %s466 = smul.addr %s465, 2
      %s467 = smul.addr %s466, 8
      %s468 = scalar_lea.vmem %s13, %s467
      %v470 = vld [vmem:[%s457] sm:$0xf]
      %v471 = vld [vmem:[%s457 + $0x4] sm:$0xf]
      %v472 = vld [vmem:[%s3] sm:$0x1]
      %v473 = vpack.c.bf16 %v472, %v472
      %v474 = vld [vmem:[%s460] sm:$0x1]
      %v475 = vlaneseq
      %v476 = vshrl.u32 %v475, 7
      %v477 = vadd.s32 %v476, 8
      %v478 = vlaneseq
      %v479 = vshrl.u32 %v478, 7
      %v480 = vsub.s32 0, %v479
      %v481 = vrot.slane %v474, %v480
      %vm482 = vcmp.eq.s32.totalorder %v481, %v476
      %vm483 = vcmp.eq.s32.totalorder %v481, %v477
      %v484 = vsel %vm482, 0.0, -1e+09
      %v485 = vsel %vm483, 0.0, -1e+09
      %v486 = vld [vmem:[%s463] sm:$0x1]
      %v488 = vlaneseq
      %v489 = vshrl.u32 %v488, 7
      %v490 = vsub.s32 0, %v489
      %v491 = vrot.slane %v486, %v490
      %v493 = vadd.f32 %v484, %v491
      %v494 = vadd.f32 %v485, %v491
      %v495 = vlaneseq
      %v496 = vand.u32 %v495, 127
      %vm497 = vcmp.ge.s32.totalorder %v496, 0
      %vm498 = vcmp.lt.s32.totalorder %v496, 8
      %vm499 = vmand %vm497, %vm498
      %v500 = vsel %vm499, 1, 0
      %v501 = vcvt.s32.f32 %v500
      %v502 = vpack.c.bf16 %v501, %v501
      %vm503 = vcmp.ge.s32.totalorder %v496, 8
      %vm504 = vcmp.lt.s32.totalorder %v496, 16
      %vm505 = vmand %vm503, %vm504
      %v506 = vsel %vm505, 1, 0
      %v507 = vcvt.s32.f32 %v506
      %v508 = vpack.c.bf16 %v507, %v507
      %vm509 = vcmp.ge.s32.totalorder %v496, 16
      %vm510 = vcmp.lt.s32.totalorder %v496, 24
      %vm511 = vmand %vm509, %vm510
      %v512 = vsel %vm511, 1, 0
      %v513 = vcvt.s32.f32 %v512
      %v514 = vpack.c.bf16 %v513, %v513
      %vm515 = vcmp.ge.s32.totalorder %v496, 24
      %vm516 = vcmp.lt.s32.totalorder %v496, 32
      %vm517 = vmand %vm515, %vm516
      %v518 = vsel %vm517, 1, 0
      %v519 = vcvt.s32.f32 %v518
      %v520 = vpack.c.bf16 %v519, %v519
      %v521 = vld [vmem:[%s4] sm:$0xf]
      %v522 = vld [vmem:[%s4 + $0x4] sm:$0xf]
      %v523 = vld [vmem:[%s4 + $0x8] sm:$0xf]
      %v524 = vld [vmem:[%s4 + $0xc] sm:$0xf]
      %v525 = vld [vmem:[%s5] sm:$0x1]
      %v530 = vunpack.c.l.b16 %v521
      %v531 = vunpack.c.l.b16 %v522
      %v532 = vunpack.c.l.b16 %v523
      %v533 = vunpack.c.l.b16 %v524
      %v534 = vpack.c.b16 %v531, %v530
      %v535 = vpack.c.b16 %v533, %v532
      %vm538 = vcmask 261120
      %v540 = vsel %vm538, %v473, 0
      %542 = vmatprep.subr.bf16.mxu0 0
      %543 = vmatpush1.bf16.msra.mxu0 0
      %544 = vmatprep.subr.bf16.mxu0 0
      %545 = vmatpush1.bf16.msra.mxu0 0
      %546 = vmatprep.subr.bf16.mxu0 0
      %547 = vmatpush1.bf16.msra.mxu0 0
      %548 = vmatprep.subr.bf16.mxu0 0
      %549 = vmatpush1.bf16.msra.mxu0 0
      %550 = vmatprep.subr.bf16.mxu0 0
      %551 = vmatpush1.bf16.msra.mxu0 0
      %552 = vmatprep.subr.bf16.mxu0 0
      %553 = vmatpush1.bf16.msra.mxu0 0
      %554 = vmatprep.subr.bf16.mxu0 0
      %555 = vmatpush1.bf16.msra.mxu0 %v535
      %556 = vmatprep.subr.bf16.mxu0 0
      %557 = vmatpush1.bf16.msra.mxu0 %v534
      %558 = vmatprep.subr.bf16.mxu0 0
      %559 = vmatpush2.bf16.msra.mxu0 0
      %560 = vmatprep.subr.bf16.mxu0 0
      %561 = vmatpush2.bf16.msra.mxu0 0
      %562 = vmatprep.subr.bf16.mxu0 0
      %563 = vmatpush2.bf16.msra.mxu0 0
      %564 = vmatprep.subr.bf16.mxu0 0
      %565 = vmatpush2.bf16.msra.mxu0 0
      %566 = vmatprep.subr.bf16.mxu0 0
      %567 = vmatpush2.bf16.msra.mxu0 0
      %568 = vmatprep.subr.bf16.mxu0 0
      %569 = vmatpush2.bf16.msra.mxu0 0
      %570 = vmatprep.subr.bf16.mxu0 0
      %571 = vmatpush2.bf16.msra.mxu0 0
      %572 = vmatprep.subr.bf16.mxu0 0
      %573 = vmatpush2.bf16.msra.mxu0 0
      %574 = vmatprep.mubr.bf16.mxu0 0
      %575 = vmatmul.mubr.bf16.gmra.mxu0 %v540
      %v576 = vpop.f32.mrf.mxu0
      %v577 = vadd.f32 %v525, %v576
      %v578 = vpop.f32.mrf.mxu0
      %v579 = vpop.f32.mrf.mxu0
      %v580 = vpop.f32.mrf.mxu0
      %581 = vdwg.mxu0
      %v582 = vld [vmem:[%s6] sm:$0xf]
      %v583 = vld [vmem:[%s6 + $0x4] sm:$0xf]
      %v584 = vld [vmem:[%s6 + $0x8] sm:$0xf]
      %v585 = vld [vmem:[%s6 + $0xc] sm:$0xf]
      %v586 = vld [vmem:[%s7] sm:$0x1]
      %v588 = vlaneseq
      %v589 = vshrl.u32 %v588, 7
      %v590 = vsub.s32 0, %v589
      %v591 = vrot.slane %v586, %v590
      %v595 = vunpack.c.l.b16 %v470
      %v596 = vunpack.c.l.b16 %v471
      %v597 = vpack.c.b16 %v596, %v595
      %v602 = vunpack.c.l.b16 %v582
      %v603 = vunpack.c.l.b16 %v583
      %v604 = vunpack.c.l.b16 %v584
      %v605 = vunpack.c.l.b16 %v585
      %v606 = vpack.c.b16 %v603, %v602
      %v607 = vpack.c.b16 %v605, %v604
      %v611 = vsel %vm538, %v597, 0
      %613 = vmatprep.subr.bf16.mxu0 0
      %614 = vmatpush1.bf16.msra.mxu0 0
      %615 = vmatprep.subr.bf16.mxu0 0
      %616 = vmatpush1.bf16.msra.mxu0 0
      %617 = vmatprep.subr.bf16.mxu0 0
      %618 = vmatpush1.bf16.msra.mxu0 0
      %619 = vmatprep.subr.bf16.mxu0 0
      %620 = vmatpush1.bf16.msra.mxu0 0
      %621 = vmatprep.subr.bf16.mxu0 0
      %622 = vmatpush1.bf16.msra.mxu0 0
      %623 = vmatprep.subr.bf16.mxu0 0
      %624 = vmatpush1.bf16.msra.mxu0 0
      %625 = vmatprep.subr.bf16.mxu0 0
      %626 = vmatpush1.bf16.msra.mxu0 %v607
      %627 = vmatprep.subr.bf16.mxu0 0
      %628 = vmatpush1.bf16.msra.mxu0 %v606
      %629 = vmatprep.subr.bf16.mxu0 0
      %630 = vmatpush2.bf16.msra.mxu0 0
      %631 = vmatprep.subr.bf16.mxu0 0
      %632 = vmatpush2.bf16.msra.mxu0 0
      %633 = vmatprep.subr.bf16.mxu0 0
      %634 = vmatpush2.bf16.msra.mxu0 0
      %635 = vmatprep.subr.bf16.mxu0 0
      %636 = vmatpush2.bf16.msra.mxu0 0
      %637 = vmatprep.subr.bf16.mxu0 0
      %638 = vmatpush2.bf16.msra.mxu0 0
      %639 = vmatprep.subr.bf16.mxu0 0
      %640 = vmatpush2.bf16.msra.mxu0 0
      %641 = vmatprep.subr.bf16.mxu0 0
      %642 = vmatpush2.bf16.msra.mxu0 0
      %643 = vmatprep.subr.bf16.mxu0 0
      %644 = vmatpush2.bf16.msra.mxu0 0
      %645 = vmatprep.mubr.bf16.mxu0 0
      %646 = vmatmul.mubr.bf16.gmra.mxu0 %v611
      %v647 = vpop.f32.mrf.mxu0
      %v648 = vadd.f32 %v591, %v647
      %v649 = vpop.f32.mrf.mxu0
      %v650 = vpop.f32.mrf.mxu0
      %v651 = vadd.f32 %v591, %v650
      %v652 = vpop.f32.mrf.mxu0
      %653 = vdwg.mxu0
      %v654 = vld [vmem:[%s8] sm:$0xf]
      %v655 = vld [vmem:[%s8 + $0x4] sm:$0xf]
      %v656 = vld [vmem:[%s8 + $0x8] sm:$0xf]
      %v657 = vld [vmem:[%s8 + $0xc] sm:$0xf]
      %v658 = vld [vmem:[%s9] sm:$0x1]
      %v660 = vlaneseq
      %v661 = vshrl.u32 %v660, 7
      %v662 = vsub.s32 0, %v661
      %v663 = vrot.slane %v658, %v662
      %v669 = vunpack.c.l.b16 %v654
      %v670 = vunpack.c.l.b16 %v655
      %v671 = vunpack.c.l.b16 %v656
      %v672 = vunpack.c.l.b16 %v657
      %v673 = vpack.c.b16 %v670, %v669
      %v674 = vpack.c.b16 %v672, %v671
      %677 = vmatprep.subr.bf16.mxu0 0
      %678 = vmatpush1.bf16.msra.mxu0 0
      %679 = vmatprep.subr.bf16.mxu0 0
      %680 = vmatpush1.bf16.msra.mxu0 0
      %681 = vmatprep.subr.bf16.mxu0 0
      %682 = vmatpush1.bf16.msra.mxu0 0
      %683 = vmatprep.subr.bf16.mxu0 0
      %684 = vmatpush1.bf16.msra.mxu0 0
      %685 = vmatprep.subr.bf16.mxu0 0
      %686 = vmatpush1.bf16.msra.mxu0 0
      %687 = vmatprep.subr.bf16.mxu0 0
      %688 = vmatpush1.bf16.msra.mxu0 0
      %689 = vmatprep.subr.bf16.mxu0 0
      %690 = vmatpush1.bf16.msra.mxu0 %v674
      %691 = vmatprep.subr.bf16.mxu0 0
      %692 = vmatpush1.bf16.msra.mxu0 %v673
      %693 = vmatprep.subr.bf16.mxu0 0
      %694 = vmatpush2.bf16.msra.mxu0 0
      %695 = vmatprep.subr.bf16.mxu0 0
      %696 = vmatpush2.bf16.msra.mxu0 0
      %697 = vmatprep.subr.bf16.mxu0 0
      %698 = vmatpush2.bf16.msra.mxu0 0
      %699 = vmatprep.subr.bf16.mxu0 0
      %700 = vmatpush2.bf16.msra.mxu0 0
      %701 = vmatprep.subr.bf16.mxu0 0
      %702 = vmatpush2.bf16.msra.mxu0 0
      %703 = vmatprep.subr.bf16.mxu0 0
      %704 = vmatpush2.bf16.msra.mxu0 0
      %705 = vmatprep.subr.bf16.mxu0 0
      %706 = vmatpush2.bf16.msra.mxu0 0
      %707 = vmatprep.subr.bf16.mxu0 0
      %708 = vmatpush2.bf16.msra.mxu0 0
      %709 = vmatprep.mubr.bf16.mxu0 0
      %710 = vmatmul.mubr.bf16.gmra.mxu0 %v611
      %v711 = vpop.f32.mrf.mxu0
      %v712 = vadd.f32 %v663, %v711
      %v713 = vpop.f32.mrf.mxu0
      %v714 = vpop.f32.mrf.mxu0
      %v715 = vadd.f32 %v663, %v714
      %v716 = vpop.f32.mrf.mxu0
      %717 = vdwg.mxu0
      %v718 = vpack.c.bf16 %v577, %v577
      %v719 = vpack.c.bf16 %v651, %v648
      %v720 = vpack.c.bf16 %v715, %v712
      %v721 = vmul.bf16 %v718, %v502
      %v723 = vsel %vm538, %v721, 0
      %v726 = vsel %vm538, %v719, 0
      %728 = vmatprep.subr.bf16.mxu0 0
      %729 = vmatpush1.bf16.xpose.msra.mxu0 0
      %730 = vmatprep.subr.bf16.mxu0 0
      %731 = vmatpush1.bf16.xpose.msra.mxu0 0
      %732 = vmatprep.subr.bf16.mxu0 0
      %733 = vmatpush1.bf16.xpose.msra.mxu0 0
      %734 = vmatprep.subr.bf16.mxu0 0
      %735 = vmatpush1.bf16.xpose.msra.mxu0 0
      %736 = vmatprep.subr.bf16.mxu0 0
      %737 = vmatpush1.bf16.xpose.msra.mxu0 0
      %738 = vmatprep.subr.bf16.mxu0 0
      %739 = vmatpush1.bf16.xpose.msra.mxu0 0
      %740 = vmatprep.subr.bf16.mxu0 0
      %741 = vmatpush1.bf16.xpose.msra.mxu0 0
      %742 = vmatprep.subr.bf16.mxu0 0
      %743 = vmatpush1.bf16.xpose.msra.mxu0 %v726
      %744 = vmatprep.subr.bf16.mxu0 0
      %745 = vmatpush2.bf16.xpose.msra.mxu0 0
      %746 = vmatprep.subr.bf16.mxu0 0
      %747 = vmatpush2.bf16.xpose.msra.mxu0 0
      %748 = vmatprep.subr.bf16.mxu0 0
      %749 = vmatpush2.bf16.xpose.msra.mxu0 0
      %750 = vmatprep.subr.bf16.mxu0 0
      %751 = vmatpush2.bf16.xpose.msra.mxu0 0
      %752 = vmatprep.subr.bf16.mxu0 0
      %753 = vmatpush2.bf16.xpose.msra.mxu0 0
      %754 = vmatprep.subr.bf16.mxu0 0
      %755 = vmatpush2.bf16.xpose.msra.mxu0 0
      %756 = vmatprep.subr.bf16.mxu0 0
      %757 = vmatpush2.bf16.xpose.msra.mxu0 0
      %758 = vmatprep.subr.bf16.mxu0 0
      %759 = vmatpush2.bf16.xpose.msra.mxu0 0
      %760 = vmatprep.mubr.bf16.mxu0 0
      %761 = vmatmul.mubr.bf16.gmra.mxu0 %v723
      %v762 = vpop.f32.mrf.mxu0
      %v763 = vadd.f32 0.0, %v762
      %v764 = vpop.f32.mrf.mxu0
      %v765 = vpop.f32.mrf.mxu0
      %v766 = vpop.f32.mrf.mxu0
      %767 = vdwg.mxu0
      %v768 = vlaneseq
      %v769 = vshrl.u32 %v768, 7
      %v770 = vsub.s32 0, %v769
      %v771 = vrot.slane %v763, %v770
      %v772 = vadd.f32 %v771, %v493
      %v773 = vadd.f32 %v771, %v494
      %vm774 = vcmask 130048
      %v775 = vsel %vm774, %v772, -inf
      %776 = vmax.xlane.f32.xlu0 %v775
      %v777 = vpop.xlane.xlu0 %776
      %v778 = vsel %vm774, %v773, -inf
      %779 = vmax.xlane.f32.xlu0 %v778
      %v780 = vpop.xlane.xlu0 %779
      %v781 = vsub.f32 %v772, %v777
      %v782 = vsub.f32 %v773, %v780
      %v783 = vmul.f32 %v781, 1.442695
      %v784 = vpow.pop %v783
      %v785 = vmul.f32 %v782, 1.442695
      %v786 = vpow.pop %v785
      %v787 = vsel %vm774, %v784, 0.0
      %788 = vadd.xlane.f32.xlu0 %v787
      %v789 = vpop.xlane.xlu0 %788
      %v790 = vsel %vm774, %v786, 0.0
      %791 = vadd.xlane.f32.xlu0 %v790
      %v792 = vpop.xlane.xlu0 %791
      %v793 = vrcp.pop %v789
      %v794 = vrcp.pop %v792
      %v795 = vmul.f32 %v784, %v793
      %v796 = vmul.f32 %v786, %v794
      %vm797 = vcmp.gt.f32.partialorder %v777, -5e+08
      %vm798 = vcmp.gt.f32.partialorder %v780, -5e+08
      %v799 = vsel %vm797, 1, 0
      %v800 = vsel %vm798, 1, 0
      %vm801 = vcmp.eq.s32.totalorder %v799, 1
      %vm802 = vcmp.eq.s32.totalorder %v800, 1
      %v803 = vsel %vm801, %v795, 0.0
      %v804 = vsel %vm802, %v796, 0.0
      %v805 = vpack.c.bf16 %v804, %v803
      %v806 = vmul.bf16 %v720, %v502
      %v807 = vmul.bf16 %v718, %v508
      %v809 = vsel %vm538, %v807, 0
      %811 = vmatprep.subr.bf16.mxu0 0
      %812 = vmatpush1.bf16.xpose.msra.mxu0 0
      %813 = vmatprep.subr.bf16.mxu0 0
      %814 = vmatpush1.bf16.xpose.msra.mxu0 0
      %815 = vmatprep.subr.bf16.mxu0 0
      %816 = vmatpush1.bf16.xpose.msra.mxu0 0
      %817 = vmatprep.subr.bf16.mxu0 0
      %818 = vmatpush1.bf16.xpose.msra.mxu0 0
      %819 = vmatprep.subr.bf16.mxu0 0
      %820 = vmatpush1.bf16.xpose.msra.mxu0 0
      %821 = vmatprep.subr.bf16.mxu0 0
      %822 = vmatpush1.bf16.xpose.msra.mxu0 0
      %823 = vmatprep.subr.bf16.mxu0 0
      %824 = vmatpush1.bf16.xpose.msra.mxu0 0
      %825 = vmatprep.subr.bf16.mxu0 0
      %826 = vmatpush1.bf16.xpose.msra.mxu0 %v726
      %827 = vmatprep.subr.bf16.mxu0 0
      %828 = vmatpush2.bf16.xpose.msra.mxu0 0
      %829 = vmatprep.subr.bf16.mxu0 0
      %830 = vmatpush2.bf16.xpose.msra.mxu0 0
      %831 = vmatprep.subr.bf16.mxu0 0
      %832 = vmatpush2.bf16.xpose.msra.mxu0 0
      %833 = vmatprep.subr.bf16.mxu0 0
      %834 = vmatpush2.bf16.xpose.msra.mxu0 0
      %835 = vmatprep.subr.bf16.mxu0 0
      %836 = vmatpush2.bf16.xpose.msra.mxu0 0
      %837 = vmatprep.subr.bf16.mxu0 0
      %838 = vmatpush2.bf16.xpose.msra.mxu0 0
      %839 = vmatprep.subr.bf16.mxu0 0
      %840 = vmatpush2.bf16.xpose.msra.mxu0 0
      %841 = vmatprep.subr.bf16.mxu0 0
      %842 = vmatpush2.bf16.xpose.msra.mxu0 0
      %843 = vmatprep.mubr.bf16.mxu0 0
      %844 = vmatmul.mubr.bf16.gmra.mxu0 %v809
      %v845 = vpop.f32.mrf.mxu0
      %v846 = vadd.f32 0.0, %v845
      %v847 = vpop.f32.mrf.mxu0
      %v848 = vpop.f32.mrf.mxu0
      %v849 = vpop.f32.mrf.mxu0
      %850 = vdwg.mxu0
      %v851 = vlaneseq
      %v852 = vshrl.u32 %v851, 7
      %v853 = vsub.s32 0, %v852
      %v854 = vrot.slane %v846, %v853
      %v855 = vadd.f32 %v854, %v493
      %v856 = vadd.f32 %v854, %v494
      %v857 = vsel %vm774, %v855, -inf
      %858 = vmax.xlane.f32.xlu0 %v857
      %v859 = vpop.xlane.xlu0 %858
      %v860 = vsel %vm774, %v856, -inf
      %861 = vmax.xlane.f32.xlu0 %v860
      %v862 = vpop.xlane.xlu0 %861
      %v863 = vsub.f32 %v855, %v859
      %v864 = vsub.f32 %v856, %v862
      %v865 = vmul.f32 %v863, 1.442695
      %v866 = vpow.pop %v865
      %v867 = vmul.f32 %v864, 1.442695
      %v868 = vpow.pop %v867
      %v869 = vsel %vm774, %v866, 0.0
      %870 = vadd.xlane.f32.xlu0 %v869
      %v871 = vpop.xlane.xlu0 %870
      %v872 = vsel %vm774, %v868, 0.0
      %873 = vadd.xlane.f32.xlu0 %v872
      %v874 = vpop.xlane.xlu0 %873
      %v875 = vrcp.pop %v871
      %v876 = vrcp.pop %v874
      %v877 = vmul.f32 %v866, %v875
      %v878 = vmul.f32 %v868, %v876
      %vm879 = vcmp.gt.f32.partialorder %v859, -5e+08
      %vm880 = vcmp.gt.f32.partialorder %v862, -5e+08
      %v881 = vsel %vm879, 1, 0
      %v882 = vsel %vm880, 1, 0
      %vm883 = vcmp.eq.s32.totalorder %v881, 1
      %vm884 = vcmp.eq.s32.totalorder %v882, 1
      %v885 = vsel %vm883, %v877, 0.0
      %v886 = vsel %vm884, %v878, 0.0
      %v887 = vpack.c.bf16 %v886, %v885
      %v888 = vmul.bf16 %v720, %v508
      %v890 = vsel %vm774, %v887, 0
      %892 = vmatprep.subr.bf16.mxu0 0
      %893 = vmatpush1.bf16.msra.mxu0 0
      %894 = vmatprep.subr.bf16.mxu0 0
      %895 = vmatpush1.bf16.msra.mxu0 0
      %896 = vmatprep.subr.bf16.mxu0 0
      %897 = vmatpush1.bf16.msra.mxu0 0
      %898 = vmatprep.subr.bf16.mxu0 0
      %899 = vmatpush1.bf16.msra.mxu0 0
      %900 = vmatprep.subr.bf16.mxu0 0
      %901 = vmatpush1.bf16.msra.mxu0 0
      %902 = vmatprep.subr.bf16.mxu0 0
      %903 = vmatpush1.bf16.msra.mxu0 0
      %904 = vmatprep.subr.bf16.mxu0 0
      %905 = vmatpush1.bf16.msra.mxu0 0
      %906 = vmatprep.subr.bf16.mxu0 0
      %907 = vmatpush1.bf16.msra.mxu0 %v888
      %908 = vmatprep.subr.bf16.mxu0 0
      %909 = vmatpush2.bf16.msra.mxu0 0
      %910 = vmatprep.subr.bf16.mxu0 0
      %911 = vmatpush2.bf16.msra.mxu0 0
      %912 = vmatprep.subr.bf16.mxu0 0
      %913 = vmatpush2.bf16.msra.mxu0 0
      %914 = vmatprep.subr.bf16.mxu0 0
      %915 = vmatpush2.bf16.msra.mxu0 0
      %916 = vmatprep.subr.bf16.mxu0 0
      %917 = vmatpush2.bf16.msra.mxu0 0
      %918 = vmatprep.subr.bf16.mxu0 0
      %919 = vmatpush2.bf16.msra.mxu0 0
      %920 = vmatprep.subr.bf16.mxu0 0
      %921 = vmatpush2.bf16.msra.mxu0 0
      %922 = vmatprep.subr.bf16.mxu0 0
      %923 = vmatpush2.bf16.msra.mxu0 0
      %924 = vmatprep.mubr.bf16.mxu0 0
      %925 = vmatmul.mubr.bf16.gmra.mxu0 %v890
      %v926 = vpop.f32.mrf.mxu0
      %v927 = vadd.f32 0.0, %v926
      %v928 = vpop.f32.mrf.mxu0
      %v929 = vpop.f32.mrf.mxu0
      %v930 = vadd.f32 0.0, %v929
      %v931 = vpop.f32.mrf.mxu0
      %932 = vdwg.mxu0
      %v934 = vsel %vm774, %v805, 0
      %936 = vmatprep.subr.bf16.mxu0 0
      %937 = vmatpush1.bf16.msra.mxu0 0
      %938 = vmatprep.subr.bf16.mxu0 0
      %939 = vmatpush1.bf16.msra.mxu0 0
      %940 = vmatprep.subr.bf16.mxu0 0
      %941 = vmatpush1.bf16.msra.mxu0 0
      %942 = vmatprep.subr.bf16.mxu0 0
      %943 = vmatpush1.bf16.msra.mxu0 0
      %944 = vmatprep.subr.bf16.mxu0 0
      %945 = vmatpush1.bf16.msra.mxu0 0
      %946 = vmatprep.subr.bf16.mxu0 0
      %947 = vmatpush1.bf16.msra.mxu0 0
      %948 = vmatprep.subr.bf16.mxu0 0
      %949 = vmatpush1.bf16.msra.mxu0 0
      %950 = vmatprep.subr.bf16.mxu0 0
      %951 = vmatpush1.bf16.msra.mxu0 %v806
      %952 = vmatprep.subr.bf16.mxu0 0
      %953 = vmatpush2.bf16.msra.mxu0 0
      %954 = vmatprep.subr.bf16.mxu0 0
      %955 = vmatpush2.bf16.msra.mxu0 0
      %956 = vmatprep.subr.bf16.mxu0 0
      %957 = vmatpush2.bf16.msra.mxu0 0
      %958 = vmatprep.subr.bf16.mxu0 0
      %959 = vmatpush2.bf16.msra.mxu0 0
      %960 = vmatprep.subr.bf16.mxu0 0
      %961 = vmatpush2.bf16.msra.mxu0 0
      %962 = vmatprep.subr.bf16.mxu0 0
      %963 = vmatpush2.bf16.msra.mxu0 0
      %964 = vmatprep.subr.bf16.mxu0 0
      %965 = vmatpush2.bf16.msra.mxu0 0
      %966 = vmatprep.subr.bf16.mxu0 0
      %967 = vmatpush2.bf16.msra.mxu0 0
      %968 = vmatprep.mubr.bf16.mxu0 0
      %969 = vmatmul.mubr.bf16.gmra.mxu0 %v934
      %v970 = vpop.f32.mrf.mxu0
      %v971 = vadd.f32 %v927, %v970
      %v972 = vpop.f32.mrf.mxu0
      %v973 = vpop.f32.mrf.mxu0
      %v974 = vadd.f32 %v930, %v973
      %v975 = vpop.f32.mrf.mxu0
      %976 = vdwg.mxu0
      %v977 = vmul.bf16 %v718, %v514
      %v979 = vsel %vm538, %v977, 0
      %981 = vmatprep.subr.bf16.mxu0 0
      %982 = vmatpush1.bf16.xpose.msra.mxu0 0
      %983 = vmatprep.subr.bf16.mxu0 0
      %984 = vmatpush1.bf16.xpose.msra.mxu0 0
      %985 = vmatprep.subr.bf16.mxu0 0
      %986 = vmatpush1.bf16.xpose.msra.mxu0 0
      %987 = vmatprep.subr.bf16.mxu0 0
      %988 = vmatpush1.bf16.xpose.msra.mxu0 0
      %989 = vmatprep.subr.bf16.mxu0 0
      %990 = vmatpush1.bf16.xpose.msra.mxu0 0
      %991 = vmatprep.subr.bf16.mxu0 0
      %992 = vmatpush1.bf16.xpose.msra.mxu0 0
      %993 = vmatprep.subr.bf16.mxu0 0
      %994 = vmatpush1.bf16.xpose.msra.mxu0 0
      %995 = vmatprep.subr.bf16.mxu0 0
      %996 = vmatpush1.bf16.xpose.msra.mxu0 %v726
      %997 = vmatprep.subr.bf16.mxu0 0
      %998 = vmatpush2.bf16.xpose.msra.mxu0 0
      %999 = vmatprep.subr.bf16.mxu0 0
      %1000 = vmatpush2.bf16.xpose.msra.mxu0 0
      %1001 = vmatprep.subr.bf16.mxu0 0
      %1002 = vmatpush2.bf16.xpose.msra.mxu0 0
      %1003 = vmatprep.subr.bf16.mxu0 0
      %1004 = vmatpush2.bf16.xpose.msra.mxu0 0
      %1005 = vmatprep.subr.bf16.mxu0 0
      %1006 = vmatpush2.bf16.xpose.msra.mxu0 0
      %1007 = vmatprep.subr.bf16.mxu0 0
      %1008 = vmatpush2.bf16.xpose.msra.mxu0 0
      %1009 = vmatprep.subr.bf16.mxu0 0
      %1010 = vmatpush2.bf16.xpose.msra.mxu0 0
      %1011 = vmatprep.subr.bf16.mxu0 0
      %1012 = vmatpush2.bf16.xpose.msra.mxu0 0
      %1013 = vmatprep.mubr.bf16.mxu0 0
      %1014 = vmatmul.mubr.bf16.gmra.mxu0 %v979
      %v1015 = vpop.f32.mrf.mxu0
      %v1016 = vadd.f32 0.0, %v1015
      %v1017 = vpop.f32.mrf.mxu0
      %v1018 = vpop.f32.mrf.mxu0
      %v1019 = vpop.f32.mrf.mxu0
      %1020 = vdwg.mxu0
      %v1021 = vlaneseq
      %v1022 = vshrl.u32 %v1021, 7
      %v1023 = vsub.s32 0, %v1022
      %v1024 = vrot.slane %v1016, %v1023
      %v1025 = vadd.f32 %v1024, %v493
      %v1026 = vadd.f32 %v1024, %v494
      %v1027 = vsel %vm774, %v1025, -inf
      %1028 = vmax.xlane.f32.xlu0 %v1027
      %v1029 = vpop.xlane.xlu0 %1028
      %v1030 = vsel %vm774, %v1026, -inf
      %1031 = vmax.xlane.f32.xlu0 %v1030
      %v1032 = vpop.xlane.xlu0 %1031
      %v1033 = vsub.f32 %v1025, %v1029
      %v1034 = vsub.f32 %v1026, %v1032
      %v1035 = vmul.f32 %v1033, 1.442695
      %v1036 = vpow.pop %v1035
      %v1037 = vmul.f32 %v1034, 1.442695
      %v1038 = vpow.pop %v1037
      %v1039 = vsel %vm774, %v1036, 0.0
      %1040 = vadd.xlane.f32.xlu0 %v1039
      %v1041 = vpop.xlane.xlu0 %1040
      %v1042 = vsel %vm774, %v1038, 0.0
      %1043 = vadd.xlane.f32.xlu0 %v1042
      %v1044 = vpop.xlane.xlu0 %1043
      %v1045 = vrcp.pop %v1041
      %v1046 = vrcp.pop %v1044
      %v1047 = vmul.f32 %v1036, %v1045
      %v1048 = vmul.f32 %v1038, %v1046
      %vm1049 = vcmp.gt.f32.partialorder %v1029, -5e+08
      %vm1050 = vcmp.gt.f32.partialorder %v1032, -5e+08
      %v1051 = vsel %vm1049, 1, 0
      %v1052 = vsel %vm1050, 1, 0
      %vm1053 = vcmp.eq.s32.totalorder %v1051, 1
      %vm1054 = vcmp.eq.s32.totalorder %v1052, 1
      %v1055 = vsel %vm1053, %v1047, 0.0
      %v1056 = vsel %vm1054, %v1048, 0.0
      %v1057 = vpack.c.bf16 %v1056, %v1055
      %v1058 = vmul.bf16 %v720, %v514
      %v1060 = vsel %vm774, %v1057, 0
      %1062 = vmatprep.subr.bf16.mxu0 0
      %1063 = vmatpush1.bf16.msra.mxu0 0
      %1064 = vmatprep.subr.bf16.mxu0 0
      %1065 = vmatpush1.bf16.msra.mxu0 0
      %1066 = vmatprep.subr.bf16.mxu0 0
      %1067 = vmatpush1.bf16.msra.mxu0 0
      %1068 = vmatprep.subr.bf16.mxu0 0
      %1069 = vmatpush1.bf16.msra.mxu0 0
      %1070 = vmatprep.subr.bf16.mxu0 0
      %1071 = vmatpush1.bf16.msra.mxu0 0
      %1072 = vmatprep.subr.bf16.mxu0 0
      %1073 = vmatpush1.bf16.msra.mxu0 0
      %1074 = vmatprep.subr.bf16.mxu0 0
      %1075 = vmatpush1.bf16.msra.mxu0 0
      %1076 = vmatprep.subr.bf16.mxu0 0
      %1077 = vmatpush1.bf16.msra.mxu0 %v1058
      %1078 = vmatprep.subr.bf16.mxu0 0
      %1079 = vmatpush2.bf16.msra.mxu0 0
      %1080 = vmatprep.subr.bf16.mxu0 0
      %1081 = vmatpush2.bf16.msra.mxu0 0
      %1082 = vmatprep.subr.bf16.mxu0 0
      %1083 = vmatpush2.bf16.msra.mxu0 0
      %1084 = vmatprep.subr.bf16.mxu0 0
      %1085 = vmatpush2.bf16.msra.mxu0 0
      %1086 = vmatprep.subr.bf16.mxu0 0
      %1087 = vmatpush2.bf16.msra.mxu0 0
      %1088 = vmatprep.subr.bf16.mxu0 0
      %1089 = vmatpush2.bf16.msra.mxu0 0
      %1090 = vmatprep.subr.bf16.mxu0 0
      %1091 = vmatpush2.bf16.msra.mxu0 0
      %1092 = vmatprep.subr.bf16.mxu0 0
      %1093 = vmatpush2.bf16.msra.mxu0 0
      %1094 = vmatprep.mubr.bf16.mxu0 0
      %1095 = vmatmul.mubr.bf16.gmra.mxu0 %v1060
      %v1096 = vpop.f32.mrf.mxu0
      %v1097 = vadd.f32 0.0, %v1096
      %v1098 = vpop.f32.mrf.mxu0
      %v1099 = vpop.f32.mrf.mxu0
      %v1100 = vadd.f32 0.0, %v1099
      %v1101 = vpop.f32.mrf.mxu0
      %1102 = vdwg.mxu0
      %v1103 = vadd.f32 %v971, %v1097
      %v1104 = vadd.f32 %v974, %v1100
      %v1105 = vmul.bf16 %v718, %v520
      %v1107 = vsel %vm538, %v1105, 0
      %1109 = vmatprep.subr.bf16.mxu0 0
      %1110 = vmatpush1.bf16.xpose.msra.mxu0 0
      %1111 = vmatprep.subr.bf16.mxu0 0
      %1112 = vmatpush1.bf16.xpose.msra.mxu0 0
      %1113 = vmatprep.subr.bf16.mxu0 0
      %1114 = vmatpush1.bf16.xpose.msra.mxu0 0
      %1115 = vmatprep.subr.bf16.mxu0 0
      %1116 = vmatpush1.bf16.xpose.msra.mxu0 0
      %1117 = vmatprep.subr.bf16.mxu0 0
      %1118 = vmatpush1.bf16.xpose.msra.mxu0 0
      %1119 = vmatprep.subr.bf16.mxu0 0
      %1120 = vmatpush1.bf16.xpose.msra.mxu0 0
      %1121 = vmatprep.subr.bf16.mxu0 0
      %1122 = vmatpush1.bf16.xpose.msra.mxu0 0
      %1123 = vmatprep.subr.bf16.mxu0 0
      %1124 = vmatpush1.bf16.xpose.msra.mxu0 %v726
      %1125 = vmatprep.subr.bf16.mxu0 0
      %1126 = vmatpush2.bf16.xpose.msra.mxu0 0
      %1127 = vmatprep.subr.bf16.mxu0 0
      %1128 = vmatpush2.bf16.xpose.msra.mxu0 0
      %1129 = vmatprep.subr.bf16.mxu0 0
      %1130 = vmatpush2.bf16.xpose.msra.mxu0 0
      %1131 = vmatprep.subr.bf16.mxu0 0
      %1132 = vmatpush2.bf16.xpose.msra.mxu0 0
      %1133 = vmatprep.subr.bf16.mxu0 0
      %1134 = vmatpush2.bf16.xpose.msra.mxu0 0
      %1135 = vmatprep.subr.bf16.mxu0 0
      %1136 = vmatpush2.bf16.xpose.msra.mxu0 0
      %1137 = vmatprep.subr.bf16.mxu0 0
      %1138 = vmatpush2.bf16.xpose.msra.mxu0 0
      %1139 = vmatprep.subr.bf16.mxu0 0
      %1140 = vmatpush2.bf16.xpose.msra.mxu0 0
      %1141 = vmatprep.mubr.bf16.mxu0 0
      %1142 = vmatmul.mubr.bf16.gmra.mxu0 %v1107
      %v1143 = vpop.f32.mrf.mxu0
      %v1144 = vadd.f32 0.0, %v1143
      %v1145 = vpop.f32.mrf.mxu0
      %v1146 = vpop.f32.mrf.mxu0
      %v1147 = vpop.f32.mrf.mxu0
      %1148 = vdwg.mxu0
      %v1149 = vlaneseq
      %v1150 = vshrl.u32 %v1149, 7
      %v1151 = vsub.s32 0, %v1150
      %v1152 = vrot.slane %v1144, %v1151
      %v1153 = vadd.f32 %v1152, %v493
      %v1154 = vadd.f32 %v1152, %v494
      %v1155 = vsel %vm774, %v1153, -inf
      %1156 = vmax.xlane.f32.xlu0 %v1155
      %v1157 = vpop.xlane.xlu0 %1156
      %v1158 = vsel %vm774, %v1154, -inf
      %1159 = vmax.xlane.f32.xlu0 %v1158
      %v1160 = vpop.xlane.xlu0 %1159
      %v1161 = vsub.f32 %v1153, %v1157
      %v1162 = vsub.f32 %v1154, %v1160
      %v1163 = vmul.f32 %v1161, 1.442695
      %v1164 = vpow.pop %v1163
      %v1165 = vmul.f32 %v1162, 1.442695
      %v1166 = vpow.pop %v1165
      %v1167 = vsel %vm774, %v1164, 0.0
      %1168 = vadd.xlane.f32.xlu0 %v1167
      %v1169 = vpop.xlane.xlu0 %1168
      %v1170 = vsel %vm774, %v1166, 0.0
      %1171 = vadd.xlane.f32.xlu0 %v1170
      %v1172 = vpop.xlane.xlu0 %1171
      %v1173 = vrcp.pop %v1169
      %v1174 = vrcp.pop %v1172
      %v1175 = vmul.f32 %v1164, %v1173
      %v1176 = vmul.f32 %v1166, %v1174
      %vm1177 = vcmp.gt.f32.partialorder %v1157, -5e+08
      %vm1178 = vcmp.gt.f32.partialorder %v1160, -5e+08
      %v1179 = vsel %vm1177, 1, 0
      %v1180 = vsel %vm1178, 1, 0
      %vm1181 = vcmp.eq.s32.totalorder %v1179, 1
      %vm1182 = vcmp.eq.s32.totalorder %v1180, 1
      %v1183 = vsel %vm1181, %v1175, 0.0
      %v1184 = vsel %vm1182, %v1176, 0.0
      %v1185 = vpack.c.bf16 %v1184, %v1183
      %v1186 = vmul.bf16 %v720, %v520
      %v1188 = vsel %vm774, %v1185, 0
      %1190 = vmatprep.subr.bf16.mxu0 0
      %1191 = vmatpush1.bf16.msra.mxu0 0
      %1192 = vmatprep.subr.bf16.mxu0 0
      %1193 = vmatpush1.bf16.msra.mxu0 0
      %1194 = vmatprep.subr.bf16.mxu0 0
      %1195 = vmatpush1.bf16.msra.mxu0 0
      %1196 = vmatprep.subr.bf16.mxu0 0
      %1197 = vmatpush1.bf16.msra.mxu0 0
      %1198 = vmatprep.subr.bf16.mxu0 0
      %1199 = vmatpush1.bf16.msra.mxu0 0
      %1200 = vmatprep.subr.bf16.mxu0 0
      %1201 = vmatpush1.bf16.msra.mxu0 0
      %1202 = vmatprep.subr.bf16.mxu0 0
      %1203 = vmatpush1.bf16.msra.mxu0 0
      %1204 = vmatprep.subr.bf16.mxu0 0
      %1205 = vmatpush1.bf16.msra.mxu0 %v1186
      %1206 = vmatprep.subr.bf16.mxu0 0
      %1207 = vmatpush2.bf16.msra.mxu0 0
      %1208 = vmatprep.subr.bf16.mxu0 0
      %1209 = vmatpush2.bf16.msra.mxu0 0
      %1210 = vmatprep.subr.bf16.mxu0 0
      %1211 = vmatpush2.bf16.msra.mxu0 0
      %1212 = vmatprep.subr.bf16.mxu0 0
      %1213 = vmatpush2.bf16.msra.mxu0 0
      %1214 = vmatprep.subr.bf16.mxu0 0
      %1215 = vmatpush2.bf16.msra.mxu0 0
      %1216 = vmatprep.subr.bf16.mxu0 0
      %1217 = vmatpush2.bf16.msra.mxu0 0
      %1218 = vmatprep.subr.bf16.mxu0 0
      %1219 = vmatpush2.bf16.msra.mxu0 0
      %1220 = vmatprep.subr.bf16.mxu0 0
      %1221 = vmatpush2.bf16.msra.mxu0 0
      %1222 = vmatprep.mubr.bf16.mxu0 0
      %1223 = vmatmul.mubr.bf16.gmra.mxu0 %v1188
      %v1224 = vpop.f32.mrf.mxu0
      %v1225 = vadd.f32 0.0, %v1224
      %v1226 = vpop.f32.mrf.mxu0
      %v1227 = vpop.f32.mrf.mxu0
      %v1228 = vadd.f32 0.0, %v1227
      %v1229 = vpop.f32.mrf.mxu0
      %1230 = vdwg.mxu0
      %v1231 = vadd.f32 %v1103, %v1225
      %v1232 = vadd.f32 %v1104, %v1228
      %v1233 = vpack.c.bf16 %v1232, %v1231
      %v1234 = vld [vmem:[%s10] sm:$0xf]
      %v1235 = vld [vmem:[%s10 + $0x4] sm:$0xf]
      %v1236 = vld [vmem:[%s10 + $0x8] sm:$0xf]
      %v1237 = vld [vmem:[%s10 + $0xc] sm:$0xf]
      %v1238 = vld [vmem:[%s11] sm:$0x1]
      %v1240 = vlaneseq
      %v1241 = vshrl.u32 %v1240, 7
      %v1242 = vsub.s32 0, %v1241
      %v1243 = vrot.slane %v1238, %v1242
      %v1249 = vunpack.c.l.b16 %v1234
      %v1250 = vunpack.c.l.b16 %v1235
      %v1251 = vunpack.c.l.b16 %v1236
      %v1252 = vunpack.c.l.b16 %v1237
      %v1253 = vpack.c.b16 %v1250, %v1249
      %v1254 = vpack.c.b16 %v1252, %v1251
      %v1258 = vsel %vm538, %v1233, 0
      %1260 = vmatprep.subr.bf16.mxu0 0
      %1261 = vmatpush1.bf16.msra.mxu0 0
      %1262 = vmatprep.subr.bf16.mxu0 0
      %1263 = vmatpush1.bf16.msra.mxu0 0
      %1264 = vmatprep.subr.bf16.mxu0 0
      %1265 = vmatpush1.bf16.msra.mxu0 0
      %1266 = vmatprep.subr.bf16.mxu0 0
      %1267 = vmatpush1.bf16.msra.mxu0 0
      %1268 = vmatprep.subr.bf16.mxu0 0
      %1269 = vmatpush1.bf16.msra.mxu0 0
      %1270 = vmatprep.subr.bf16.mxu0 0
      %1271 = vmatpush1.bf16.msra.mxu0 0
      %1272 = vmatprep.subr.bf16.mxu0 0
      %1273 = vmatpush1.bf16.msra.mxu0 %v1254
      %1274 = vmatprep.subr.bf16.mxu0 0
      %1275 = vmatpush1.bf16.msra.mxu0 %v1253
      %1276 = vmatprep.subr.bf16.mxu0 0
      %1277 = vmatpush2.bf16.msra.mxu0 0
      %1278 = vmatprep.subr.bf16.mxu0 0
      %1279 = vmatpush2.bf16.msra.mxu0 0
      %1280 = vmatprep.subr.bf16.mxu0 0
      %1281 = vmatpush2.bf16.msra.mxu0 0
      %1282 = vmatprep.subr.bf16.mxu0 0
      %1283 = vmatpush2.bf16.msra.mxu0 0
      %1284 = vmatprep.subr.bf16.mxu0 0
      %1285 = vmatpush2.bf16.msra.mxu0 0
      %1286 = vmatprep.subr.bf16.mxu0 0
      %1287 = vmatpush2.bf16.msra.mxu0 0
      %1288 = vmatprep.subr.bf16.mxu0 0
      %1289 = vmatpush2.bf16.msra.mxu0 0
      %1290 = vmatprep.subr.bf16.mxu0 0
      %1291 = vmatpush2.bf16.msra.mxu0 0
      %1292 = vmatprep.mubr.bf16.mxu0 0
      %1293 = vmatmul.mubr.bf16.gmra.mxu0 %v1258
      %v1294 = vpop.f32.mrf.mxu0
      %v1295 = vadd.f32 %v1243, %v1294
      %v1296 = vpop.f32.mrf.mxu0
      %v1297 = vpop.f32.mrf.mxu0
      %v1298 = vadd.f32 %v1243, %v1297
      %v1299 = vpop.f32.mrf.mxu0
      %1300 = vdwg.mxu0
      %v1301 = vld [vmem:[%s12] sm:$0xff]
      %v1302 = vld [vmem:[%s12 + $0x8] sm:$0xff]
      %v1303 = vld [vmem:[%s12 + $0x10] sm:$0xff]
      %v1304 = vld [vmem:[%s12 + $0x18] sm:$0xff]
      %v1305 = vld [vmem:[%s12 + $0x20] sm:$0xff]
      %v1306 = vld [vmem:[%s12 + $0x28] sm:$0xff]
      %v1307 = vld [vmem:[%s12 + $0x30] sm:$0xff]
      %v1308 = vld [vmem:[%s12 + $0x38] sm:$0xff]
      %v1309 = vmul.f32 %v1295, %v1295
      %v1310 = vmul.f32 %v1298, %v1298
      %v1311 = vsel %vm538, %v1309, 0.0
      %1312 = vadd.xlane.f32.xlu0 %v1311
      %v1313 = vpop.xlane.xlu0 %1312
      %v1314 = vsel %vm538, %v1310, 0.0
      %1315 = vadd.xlane.f32.xlu0 %v1314
      %v1316 = vpop.xlane.xlu0 %1315
      %v1317 = vmul.f32 %v1301, %v1301
      %v1318 = vmul.f32 %v1302, %v1302
      %v1319 = vmul.f32 %v1303, %v1303
      %v1320 = vmul.f32 %v1304, %v1304
      %v1321 = vmul.f32 %v1305, %v1305
      %v1322 = vmul.f32 %v1306, %v1306
      %v1323 = vmul.f32 %v1307, %v1307
      %v1324 = vmul.f32 %v1308, %v1308
      %v1325 = vsel %vm538, %v1317, 0.0
      %1326 = vadd.xlane.f32.xlu0 %v1325
      %v1327 = vpop.xlane.xlu0 %1326
      %v1328 = vsel %vm538, %v1318, 0.0
      %1329 = vadd.xlane.f32.xlu0 %v1328
      %v1330 = vpop.xlane.xlu0 %1329
      %v1331 = vsel %vm538, %v1319, 0.0
      %1332 = vadd.xlane.f32.xlu0 %v1331
      %v1333 = vpop.xlane.xlu0 %1332
      %v1334 = vsel %vm538, %v1320, 0.0
      %1335 = vadd.xlane.f32.xlu0 %v1334
      %v1336 = vpop.xlane.xlu0 %1335
      %v1337 = vsel %vm538, %v1321, 0.0
      %1338 = vadd.xlane.f32.xlu0 %v1337
      %v1339 = vpop.xlane.xlu0 %1338
      %v1340 = vsel %vm538, %v1322, 0.0
      %1341 = vadd.xlane.f32.xlu0 %v1340
      %v1342 = vpop.xlane.xlu0 %1341
      %v1343 = vsel %vm538, %v1323, 0.0
      %1344 = vadd.xlane.f32.xlu0 %v1343
      %v1345 = vpop.xlane.xlu0 %1344
      %v1346 = vsel %vm538, %v1324, 0.0
      %1347 = vadd.xlane.f32.xlu0 %v1346
      %v1348 = vpop.xlane.xlu0 %1347
      %v1350 = vsel %vm538, %v1295, 0
      %v1353 = vsel %vm538, %v1298, 0
      %v1356 = vsel %vm538, %v1301, 0
      %v1359 = vsel %vm538, %v1302, 0
      %v1362 = vsel %vm538, %v1303, 0
      %v1365 = vsel %vm538, %v1304, 0
      %v1368 = vsel %vm538, %v1305, 0
      %v1371 = vsel %vm538, %v1306, 0
      %v1374 = vsel %vm538, %v1307, 0
      %v1377 = vsel %vm538, %v1308, 0
      %1379 = vmatprep.subr.mxu0 0.0
      %1380 = vmatpush1.xpose.msra.mxu0 0.0
      %1381 = vmatprep.subr.mxu0 0.0
      %1382 = vmatpush1.xpose.msra.mxu0 0.0
      %1383 = vmatprep.subr.mxu0 0.0
      %1384 = vmatpush1.xpose.msra.mxu0 0.0
      %1385 = vmatprep.subr.mxu0 0.0
      %1386 = vmatpush1.xpose.msra.mxu0 0.0
      %1387 = vmatprep.subr.mxu0 0.0
      %1388 = vmatpush1.xpose.msra.mxu0 0.0
      %1389 = vmatprep.subr.mxu0 0.0
      %1390 = vmatpush1.xpose.msra.mxu0 0.0
      %1391 = vmatprep.subr.mxu0 0.0
      %1392 = vmatpush1.xpose.msra.mxu0 0.0
      %1393 = vmatprep.subr.mxu0 0.0
      %1394 = vmatpush1.xpose.msra.mxu0 0.0
      %1395 = vmatprep.subr.mxu0 0.0
      %1396 = vmatpush1.xpose.msra.mxu0 %v1377
      %1397 = vmatprep.subr.mxu0 0.0
      %1398 = vmatpush1.xpose.msra.mxu0 %v1374
      %1399 = vmatprep.subr.mxu0 0.0
      %1400 = vmatpush1.xpose.msra.mxu0 %v1371
      %1401 = vmatprep.subr.mxu0 0.0
      %1402 = vmatpush1.xpose.msra.mxu0 %v1368
      %1403 = vmatprep.subr.mxu0 0.0
      %1404 = vmatpush1.xpose.msra.mxu0 %v1365
      %1405 = vmatprep.subr.mxu0 0.0
      %1406 = vmatpush1.xpose.msra.mxu0 %v1362
      %1407 = vmatprep.subr.mxu0 0.0
      %1408 = vmatpush1.xpose.msra.mxu0 %v1359
      %1409 = vmatprep.subr.mxu0 0.0
      %1410 = vmatpush1.xpose.msra.mxu0 %v1356
      %1411 = vmatprep.subr.mxu0 0.0
      %1412 = vmatpush2.xpose.msra.mxu0 0.0
      %1413 = vmatprep.subr.mxu0 0.0
      %1414 = vmatpush2.xpose.msra.mxu0 0.0
      %1415 = vmatprep.subr.mxu0 0.0
      %1416 = vmatpush2.xpose.msra.mxu0 0.0
      %1417 = vmatprep.subr.mxu0 0.0
      %1418 = vmatpush2.xpose.msra.mxu0 0.0
      %1419 = vmatprep.subr.mxu0 0.0
      %1420 = vmatpush2.xpose.msra.mxu0 0.0
      %1421 = vmatprep.subr.mxu0 0.0
      %1422 = vmatpush2.xpose.msra.mxu0 0.0
      %1423 = vmatprep.subr.mxu0 0.0
      %1424 = vmatpush2.xpose.msra.mxu0 0.0
      %1425 = vmatprep.subr.mxu0 0.0
      %1426 = vmatpush2.xpose.msra.mxu0 0.0
      %1427 = vmatprep.subr.mxu0 0.0
      %1428 = vmatpush2.xpose.msra.mxu0 0.0
      %1429 = vmatprep.subr.mxu0 0.0
      %1430 = vmatpush2.xpose.msra.mxu0 0.0
      %1431 = vmatprep.subr.mxu0 0.0
      %1432 = vmatpush2.xpose.msra.mxu0 0.0
      %1433 = vmatprep.subr.mxu0 0.0
      %1434 = vmatpush2.xpose.msra.mxu0 0.0
      %1435 = vmatprep.subr.mxu0 0.0
      %1436 = vmatpush2.xpose.msra.mxu0 0.0
      %1437 = vmatprep.subr.mxu0 0.0
      %1438 = vmatpush2.xpose.msra.mxu0 0.0
      %1439 = vmatprep.subr.mxu0 0.0
      %1440 = vmatpush2.xpose.msra.mxu0 0.0
      %1441 = vmatprep.subr.mxu0 0.0
      %1442 = vmatpush2.xpose.msra.mxu0 0.0
      %1443 = vmatprep.mubr.f32.mxu0 0.0
      %1444 = vmatmul.mubr.f32.gmra.mxu0 %v1350
      %v1445 = vpop.f32.mrf.mxu0
      %v1446 = vadd.f32 0.0, %v1445
      %v1447 = vpop.f32.mrf.mxu0
      %1448 = vmatprep.mubr.f32.mxu0 0.0
      %1449 = vmatmul.mubr.f32.gmra.mxu0 %v1353
      %v1450 = vpop.f32.mrf.mxu0
      %v1451 = vadd.f32 0.0, %v1450
      %v1452 = vpop.f32.mrf.mxu0
      %1453 = vdwg.mxu0
      %v1454 = vmul.f32 %v1446, 2.0
      %v1455 = vmul.f32 %v1451, 2.0
      %v1456 = vsub.f32 %v1313, %v1454
      %v1457 = vsub.f32 %v1316, %v1455
      %v1466 = vlaneseq
      %v1467 = vshrl.u32 %v1466, 7
      %v1468 = vsub.s32 %v496, %v1467
      %v1469 = vrot.slane %v1327, %v1468
      %v1470 = vadd.s32 %v496, 4294967288
      %v1471 = vlaneseq
      %v1472 = vshrl.u32 %v1471, 7
      %v1473 = vsub.s32 %v1470, %v1472
      %v1474 = vrot.slane %v1330, %v1473
      %vm1475 = vcmask 130112
      %v1476 = vsel %vm1475, %v1474, %v1469
      %v1477 = vadd.s32 %v496, 4294967280
      %v1478 = vlaneseq
      %v1479 = vshrl.u32 %v1478, 7
      %v1480 = vsub.s32 %v1477, %v1479
      %v1481 = vrot.slane %v1333, %v1480
      %vm1482 = vcmask 195712
      %v1483 = vsel %vm1482, %v1481, %v1476
      %v1484 = vadd.s32 %v496, 4294967272
      %v1485 = vlaneseq
      %v1486 = vshrl.u32 %v1485, 7
      %v1487 = vsub.s32 %v1484, %v1486
      %v1488 = vrot.slane %v1336, %v1487
      %vm1489 = vcmask 261312
      %v1490 = vsel %vm1489, %v1488, %v1483
      %v1491 = vadd.s32 %v496, 4294967264
      %v1492 = vlaneseq
      %v1493 = vshrl.u32 %v1492, 7
      %v1494 = vsub.s32 %v1491, %v1493
      %v1495 = vrot.slane %v1339, %v1494
      %vm1496 = vcmask 326912
      %v1497 = vsel %vm1496, %v1495, %v1490
      %v1498 = vadd.s32 %v496, 4294967256
      %v1499 = vlaneseq
      %v1500 = vshrl.u32 %v1499, 7
      %v1501 = vsub.s32 %v1498, %v1500
      %v1502 = vrot.slane %v1342, %v1501
      %vm1503 = vcmask 392512
      %v1504 = vsel %vm1503, %v1502, %v1497
      %v1505 = vadd.s32 %v496, 4294967248
      %v1506 = vlaneseq
      %v1507 = vshrl.u32 %v1506, 7
      %v1508 = vsub.s32 %v1505, %v1507
      %v1509 = vrot.slane %v1345, %v1508
      %vm1510 = vcmask 458112
      %v1511 = vsel %vm1510, %v1509, %v1504
      %v1512 = vadd.s32 %v496, 4294967240
      %v1513 = vlaneseq
      %v1514 = vshrl.u32 %v1513, 7
      %v1515 = vsub.s32 %v1512, %v1514
      %v1516 = vrot.slane %v1348, %v1515
      %vm1517 = vcmask 523712
      %v1518 = vsel %vm1517, %v1516, %v1511
      %vm1519 = vcmask 1042434
      %v1520 = vsel %vm1519, %v1518, %v1518
      %vm1521 = vcmask 1043459
      %v1522 = vsel %vm1521, %v1518, %v1520
      %vm1523 = vcmask 1044484
      %v1524 = vsel %vm1523, %v1518, %v1522
      %vm1525 = vcmask 1045509
      %v1526 = vsel %vm1525, %v1518, %v1524
      %vm1527 = vcmask 1046534
      %v1528 = vsel %vm1527, %v1518, %v1526
      %vm1529 = vcmask 1047559
      %v1530 = vsel %vm1529, %v1518, %v1528
      %v1532 = vadd.f32 %v1456, %v1530
      %v1533 = vadd.f32 %v1457, %v1530
      %vm1534 = vcmask 523264
      %v1535 = vsel %vm1534, %v1532, inf
      %1536 = vmin.xlane.f32.xlu0 %v1535
      %v1537 = vpop.xlane.xlu0 %1536
      %v1538 = vsel %vm1534, %v1533, inf
      %1539 = vmin.xlane.f32.xlu0 %v1538
      %v1540 = vpop.xlane.xlu0 %1539
      %vm1541 = vcmp.le.f32.partialorder %v1532, %v1537
      %vm1542 = vcmp.le.f32.partialorder %v1533, %v1540
      %v1543 = vsel %vm1541, %v496, 64
      %v1544 = vsel %vm1542, %v496, 64
      %v1545 = vsel %vm1534, %v1543, 2147483647
      %v1546 = vand.u32 %v1545, 65535
      %v1547 = vshra.s32 %v1545, 16
      %v1548 = vcvt.s32.f32 %v1546
      %v1549 = vcvt.s32.f32 %v1547
      %1550 = vmin.xlane.f32.xlu0 %v1549
      %v1551 = vpop.xlane.xlu0 %1550
      %vm1552 = vcmp.eq.f32.partialorder %v1549, %v1551
      %v1553 = vsel %vm1552, %v1548, inf
      %1554 = vmin.xlane.f32.xlu0 %v1553
      %v1555 = vpop.xlane.xlu0 %1554
      %v1556 = vcvt.f32.s32 %v1555
      %v1557 = vcvt.f32.s32 %v1551
      %v1558 = vshll.u32 %v1557, 16
      %v1559 = vadd.s32 %v1558, %v1556
      %v1560 = vsel %vm1534, %v1544, 2147483647
      %v1561 = vand.u32 %v1560, 65535
      %v1562 = vshra.s32 %v1560, 16
      %v1563 = vcvt.s32.f32 %v1561
      %v1564 = vcvt.s32.f32 %v1562
      %1565 = vmin.xlane.f32.xlu0 %v1564
      %v1566 = vpop.xlane.xlu0 %1565
      %vm1567 = vcmp.eq.f32.partialorder %v1564, %v1566
      %v1568 = vsel %vm1567, %v1563, inf
      %1569 = vmin.xlane.f32.xlu0 %v1568
      %v1570 = vpop.xlane.xlu0 %1569
      %v1571 = vcvt.f32.s32 %v1570
      %v1572 = vcvt.f32.s32 %v1566
      %v1573 = vshll.u32 %v1572, 16
      %v1574 = vadd.s32 %v1573, %v1571
      %vm1575 = vcmp.eq.s32.totalorder %v496, %v1559
      %vm1576 = vcmp.eq.s32.totalorder %v496, %v1574
      %v1577 = vsel %vm1575, 1, 0
      %v1578 = vsel %vm1576, 1, 0
      %v1579 = vcvt.s32.f32 %v1577
      %v1580 = vcvt.s32.f32 %v1578
      %v1582 = vsel %vm1534, %v1579, 0
      %v1585 = vsel %vm1534, %v1580, 0
      %1587 = vmatprep.subr.mxu0 0.0
      %1588 = vmatpush1.msra.mxu0 0.0
      %1589 = vmatprep.subr.mxu0 0.0
      %1590 = vmatpush1.msra.mxu0 0.0
      %1591 = vmatprep.subr.mxu0 0.0
      %1592 = vmatpush1.msra.mxu0 0.0
      %1593 = vmatprep.subr.mxu0 0.0
      %1594 = vmatpush1.msra.mxu0 0.0
      %1595 = vmatprep.subr.mxu0 0.0
      %1596 = vmatpush1.msra.mxu0 0.0
      %1597 = vmatprep.subr.mxu0 0.0
      %1598 = vmatpush1.msra.mxu0 0.0
      %1599 = vmatprep.subr.mxu0 0.0
      %1600 = vmatpush1.msra.mxu0 0.0
      %1601 = vmatprep.subr.mxu0 0.0
      %1602 = vmatpush1.msra.mxu0 0.0
      %1603 = vmatprep.subr.mxu0 0.0
      %1604 = vmatpush1.msra.mxu0 %v1308
      %1605 = vmatprep.subr.mxu0 0.0
      %1606 = vmatpush1.msra.mxu0 %v1307
      %1607 = vmatprep.subr.mxu0 0.0
      %1608 = vmatpush1.msra.mxu0 %v1306
      %1609 = vmatprep.subr.mxu0 0.0
      %1610 = vmatpush1.msra.mxu0 %v1305
      %1611 = vmatprep.subr.mxu0 0.0
      %1612 = vmatpush1.msra.mxu0 %v1304
      %1613 = vmatprep.subr.mxu0 0.0
      %1614 = vmatpush1.msra.mxu0 %v1303
      %1615 = vmatprep.subr.mxu0 0.0
      %1616 = vmatpush1.msra.mxu0 %v1302
      %1617 = vmatprep.subr.mxu0 0.0
      %1618 = vmatpush1.msra.mxu0 %v1301
      %1619 = vmatprep.subr.mxu0 0.0
      %1620 = vmatpush2.msra.mxu0 0.0
      %1621 = vmatprep.subr.mxu0 0.0
      %1622 = vmatpush2.msra.mxu0 0.0
      %1623 = vmatprep.subr.mxu0 0.0
      %1624 = vmatpush2.msra.mxu0 0.0
      %1625 = vmatprep.subr.mxu0 0.0
      %1626 = vmatpush2.msra.mxu0 0.0
      %1627 = vmatprep.subr.mxu0 0.0
      %1628 = vmatpush2.msra.mxu0 0.0
      %1629 = vmatprep.subr.mxu0 0.0
      %1630 = vmatpush2.msra.mxu0 0.0
      %1631 = vmatprep.subr.mxu0 0.0
      %1632 = vmatpush2.msra.mxu0 0.0
      %1633 = vmatprep.subr.mxu0 0.0
      %1634 = vmatpush2.msra.mxu0 0.0
      %1635 = vmatprep.subr.mxu0 0.0
      %1636 = vmatpush2.msra.mxu0 0.0
      %1637 = vmatprep.subr.mxu0 0.0
      %1638 = vmatpush2.msra.mxu0 0.0
      %1639 = vmatprep.subr.mxu0 0.0
      %1640 = vmatpush2.msra.mxu0 0.0
      %1641 = vmatprep.subr.mxu0 0.0
      %1642 = vmatpush2.msra.mxu0 0.0
      %1643 = vmatprep.subr.mxu0 0.0
      %1644 = vmatpush2.msra.mxu0 0.0
      %1645 = vmatprep.subr.mxu0 0.0
      %1646 = vmatpush2.msra.mxu0 0.0
      %1647 = vmatprep.subr.mxu0 0.0
      %1648 = vmatpush2.msra.mxu0 0.0
      %1649 = vmatprep.subr.mxu0 0.0
      %1650 = vmatpush2.msra.mxu0 0.0
      %1651 = vmatprep.mubr.f32.mxu0 0.0
      %1652 = vmatmul.mubr.f32.gmra.mxu0 %v1582
      %v1653 = vpop.f32.mrf.mxu0
      %v1654 = vadd.f32 0.0, %v1653
      %v1655 = vpop.f32.mrf.mxu0
      %1656 = vmatprep.mubr.f32.mxu0 0.0
      %1657 = vmatmul.mubr.f32.gmra.mxu0 %v1585
      %v1658 = vpop.f32.mrf.mxu0
      %v1659 = vadd.f32 0.0, %v1658
      %v1660 = vpop.f32.mrf.mxu0
      %1661 = vdwg.mxu0
      %v1662 = vcvt.s32.f32 %v1559
      %v1663 = vcvt.s32.f32 %v1574
      %1666 = vrot.lane.b32.xlu0 %v1654, 32
      %v1667 = vpop.permute.xlu0 %1666
      %1668 = vrot.lane.b32.xlu0 %v1659, 32
      %v1669 = vpop.permute.xlu0 %1668
      %v1672 = vsel %vm538, %v1295, %v1667
      %v1673 = vsel %vm538, %v1298, %v1669
      %v1674 = vsel %vm1534, %v1672, %v1662
      %v1675 = vsel %vm1534, %v1673, %v1663
      %1676 = vst [vmem:[%s468] sm:$0xff] %v1674
      %1677 = vst [vmem:[%s468 + $0x8] sm:$0xff] %v1675
      %p1678 = scmp.lt.s32.totalorder %s24, 1
      %s1679 = scalar_select %p1678, %s24, 1
      %s1680 = smul.addr %s1679, 2
      %s1681 = smul.addr %s1680, 8
      %s1682 = scalar_lea.vmem %s13, %s1681
      // Predicated region
      $region73: #{_forward.3} parent=71 // pred_check
        %p1683 = pneg %p330
      $region74: #{_forward.3} parent=71 // pred_check_branch
        %1685 = sbr.rel (%p1683) target = $region76
      $region75: #{_forward.3} parent=71 // pred_region
        _
      $region76: #{_forward.3} parent=71 // pred_fallthru
        _
    $region72: #{_forward.3} parent=5 // pred_fallthru
      _
    %p1686 = scmp.le.s32.totalorder 2, %s19
    // Predicated region
    $region77: #{_forward.3} parent=5 // pred_check
      %p1687 = pneg %p1686
    $region78: #{_forward.3} parent=5 // pred_check_branch
      %1689 = sbr.rel (%p1687) target = $region80
    $region79: #{_forward.3} parent=5 // pred_region
      %s1690 = ssub.s32 %s19, 2
      // Predicated region
      $region81: #{_forward.3} parent=79 // pred_check
        %p1691 = pneg %p336
      $region82: #{_forward.3} parent=79 // pred_check_branch
        %1693 = sbr.rel (%p1691) target = $region84
      $region83: #{_forward.3} parent=79 // pred_region
        %p1694 = scmp.lt.s32.totalorder %s25, 1
        %s1695 = scalar_select %p1694, %s25, 1
        %s1696 = smul.addr %s1695, 2
        %s1697 = smul.addr %s1696, 8
        %s1698 = scalar_lea.vmem %s13, %s1697
      $region84: #{_forward.3} parent=79 // pred_fallthru
        _
    $region80: #{_forward.3} parent=5 // pred_fallthru
      _
  $region6: #{_forward.3} parent=0 // loop_footer
    %s23 = sadd.s32 1, %s19
  $region7: #{_forward.3} parent=0 // loop_footer_branch
    %18 = sbr.rel target = $region3
  $region8: #{_forward.3} parent=0 // loop_exit
    _

// kernel: _forward.2
$region0: #{_forward.2}
  #allocation0 [shape = 'u32[]', space=smem, size = 0x4, offset = 0x4, fixed_abs, tag = 'smem constant byte address 0x4 - core index']
  #allocation1 [shape = 'u32[144,128]{1,0:T(1,128)}', space=vmem, size = 0x12000, scoped, tag = 'internal scratch']
  %s0 = inlined_call_operand.vmem [shape: f32[2,16,32], index: 0, kind: input, shape index: {}]
  %s1 = inlined_call_operand.vmem [shape: f32[2,1,16], index: 1, kind: input, shape index: {}]
  %s2 = inlined_call_operand.vmem [shape: f32[3,1,32], index: 2, kind: input, shape index: {}]
  %s3 = inlined_call_operand.vmem [shape: bf16[3,32,32], index: 3, kind: input, shape index: {}]
  %s4 = inlined_call_operand.vmem [shape: f32[3,1,32], index: 4, kind: input, shape index: {}]
  %s5 = inlined_call_operand.vmem [shape: bf16[3,32,32], index: 5, kind: input, shape index: {}]
  %s6 = inlined_call_operand.vmem [shape: f32[3,1,32], index: 6, kind: input, shape index: {}]
  %s7 = inlined_call_operand.vmem [shape: bf16[3,32,32], index: 7, kind: input, shape index: {}]
  %s8 = inlined_call_operand.vmem [shape: f32[3,1,32], index: 8, kind: input, shape index: {}]
  %s9 = inlined_call_operand.vmem [shape: bf16[3,32,32], index: 9, kind: input, shape index: {}]
  %s10 = inlined_call_operand.vmem [shape: f32[3,1,32], index: 10, kind: input, shape index: {}]
  %s11 = inlined_call_operand.vmem [shape: f32[3,1,32], index: 11, kind: input, shape index: {}]
  %s12 = inlined_call_operand.vmem [shape: bf16[3,32,128], index: 12, kind: input, shape index: {}]
  %s13 = inlined_call_operand.vmem [shape: f32[3,1,128], index: 13, kind: input, shape index: {}]
  %s14 = inlined_call_operand.vmem [shape: bf16[3,128,32], index: 14, kind: input, shape index: {}]
  %s15 = inlined_call_operand.vmem [shape: f32[3,1,32], index: 15, kind: input, shape index: {}]
  %s16 = inlined_call_operand.vmem [shape: f32[1,32], index: 16, kind: input, shape index: {}]
  %s17 = inlined_call_operand.vmem [shape: bf16[32,64], index: 17, kind: input, shape index: {}]
  %s18 = inlined_call_operand.vmem [shape: f32[1,64], index: 18, kind: input, shape index: {}]
  %s19 = inlined_call_operand.vmem [shape: bf16[2,16,32], index: 19, kind: output, shape index: {0}]
  %s20 = inlined_call_operand.vmem [shape: f32[2,16,128], index: 20, kind: output, shape index: {1}]
  %21 = xla_tuple %s19, %s20
  %s22 = sld [smem:[#allocation0]]
  $region117: #{_forward.2} parent=0
    _
  %s24 = ssub.s32 1, %s22
  %s25 = scalar_select 0, %s24, %s22
  loop: start=0, step=1, limit=4
  $region2: #{_forward.2} parent=0 // loop_pre_header
    _
  $region3: #{_forward.2} parent=0 // loop_header
    %s27 = sphi 0, %s31
    %p28 = scmp.ge.s32.totalorder %s27, 4
    %s37 = sphi 0, %s39
    %s40 = sphi 0, %s37
    %s41 = sphi 0, %s40
    %s57 = sphi 0, %s41
    %s63 = sphi 0, %s65
    %s66 = sphi 0, %s63
    %s67 = sphi 0, %s66
    %s83 = sphi 0, %s67
    %s87 = sphi 0, %s87
    %s89 = sphi 0, %s87
    %s90 = sphi 0, %s89
    %s104 = sphi 0, %s90
    %s108 = sphi 0, %s108
    %s110 = sphi 0, %s108
    %s111 = sphi 0, %s110
    %s125 = sphi 0, %s111
    %s129 = sphi 0, %s129
    %s131 = sphi 0, %s129
    %s132 = sphi 0, %s131
    %s146 = sphi 0, %s132
    %s150 = sphi 0, %s150
    %s152 = sphi 0, %s150
    %s153 = sphi 0, %s152
    %s167 = sphi 0, %s153
    %s171 = sphi 0, %s171
    %s173 = sphi 0, %s171
    %s174 = sphi 0, %s173
    %s188 = sphi 0, %s174
    %s192 = sphi 0, %s192
    %s194 = sphi 0, %s192
    %s195 = sphi 0, %s194
    %s209 = sphi 0, %s195
    %s213 = sphi 0, %s213
    %s215 = sphi 0, %s213
    %s216 = sphi 0, %s215
    %s230 = sphi 0, %s216
    %s234 = sphi 0, %s234
    %s236 = sphi 0, %s234
    %s237 = sphi 0, %s236
    %s251 = sphi 0, %s237
    %s255 = sphi 0, %s255
    %s257 = sphi 0, %s255
    %s258 = sphi 0, %s257
    %s272 = sphi 0, %s258
    %s276 = sphi 0, %s276
    %s278 = sphi 0, %s276
    %s279 = sphi 0, %s278
    %s293 = sphi 0, %s279
    %s297 = sphi 0, %s297
    %s299 = sphi 0, %s297
    %s300 = sphi 0, %s299
    %s314 = sphi 0, %s300
    %s318 = sphi 0, %s318
    %s320 = sphi 0, %s318
    %s321 = sphi 0, %s320
    %s335 = sphi 0, %s321
    %s339 = sphi 0, %s339
    %s341 = sphi 0, %s339
    %s342 = sphi 0, %s341
    %s356 = sphi 0, %s342
    %s360 = sphi 0, %s360
    %s362 = sphi 0, %s360
    %s363 = sphi 0, %s362
    %s377 = sphi 0, %s363
    %s381 = sphi 0, %s381
    %s383 = sphi 0, %s381
    %s384 = sphi 0, %s383
    %s398 = sphi 0, %s384
    %s402 = sphi 0, %s402
    %s404 = sphi 0, %s402
    %s405 = sphi 0, %s404
    %s419 = sphi 0, %s405
    %s423 = sphi 0, %s423
    %s425 = sphi 0, %s423
    %s426 = sphi 0, %s425
    %s440 = sphi 0, %s426
    %s446 = sphi 0, %s448
    %s449 = sphi 0, %s446
    %s450 = sphi 0, %s449
    %s466 = sphi 0, %s450
    %s472 = sphi 0, %s474
    %s475 = sphi 0, %s472
    %s476 = sphi 0, %s475
    %s492 = sphi 0, %s476
  $region4: #{_forward.2} parent=0 // loop_header_branch
    %30 = sbr.rel (%p28) target = $region8
  $region5: #{_forward.2} parent=0 // loop_body
    %s32 = ssub.s32 %s27, 1
    %s33 = ssub.s32 %s27, 2
    %s34 = sadd.s32 %s27, 1
    %s35 = ssub.s32 %s27, %s34
    %p36 = scmp.eq.s32.totalorder %s35, 0
    %s38 = sadd.s32 %s37, 1
    %s39 = scalar_select %p36, %s37, %s38
    %p42 = pneg %p36
    %p43 = scmp.eq.s32.totalorder %s27, 1
    %p44 = por %p42, %p43
    %p45 = scmp.ne.s32.totalorder %s37, %s40
    %p46 = scmp.eq.s32.totalorder %s27, 0
    %p47 = por %p45, %p46
    %p48 = scmp.ne.s32.totalorder %s37, %s40
    %p49 = scmp.eq.s32.totalorder %s32, 1
    %p50 = por %p48, %p49
    %p51 = scmp.ne.s32.totalorder %s40, %s41
    %p52 = scmp.eq.s32.totalorder %s32, 0
    %p53 = por %p51, %p52
    %p54 = scmp.ne.s32.totalorder %s40, %s41
    %p55 = scmp.eq.s32.totalorder %s33, 1
    %p56 = por %p54, %p55
    %p58 = scmp.ne.s32.totalorder %s41, %s57
    %p59 = scmp.eq.s32.totalorder %s33, 0
    %p60 = por %p58, %p59
    %s61 = ssub.s32 %s27, %s34
    %p62 = scmp.eq.s32.totalorder %s61, 0
    %s64 = sadd.s32 %s63, 1
    %s65 = scalar_select %p62, %s63, %s64
    %p68 = pneg %p62
    %p69 = scmp.eq.s32.totalorder %s27, 1
    %p70 = por %p68, %p69
    %p71 = scmp.ne.s32.totalorder %s63, %s66
    %p72 = scmp.eq.s32.totalorder %s27, 0
    %p73 = por %p71, %p72
    %p74 = scmp.ne.s32.totalorder %s63, %s66
    %p75 = scmp.eq.s32.totalorder %s32, 1
    %p76 = por %p74, %p75
    %p77 = scmp.ne.s32.totalorder %s66, %s67
    %p78 = scmp.eq.s32.totalorder %s32, 0
    %p79 = por %p77, %p78
    %p80 = scmp.ne.s32.totalorder %s66, %s67
    %p81 = scmp.eq.s32.totalorder %s33, 1
    %p82 = por %p80, %p81
    %p84 = scmp.ne.s32.totalorder %s67, %s83
    %p85 = scmp.eq.s32.totalorder %s33, 0
    %p86 = por %p84, %p85
    %s88 = sadd.s32 %s87, 1
    %p91 = scmp.eq.s32.totalorder %s27, 1
    %p92 = scmp.ne.s32.totalorder %s87, %s89
    %p93 = scmp.eq.s32.totalorder %s27, 0
    %p94 = por %p92, %p93
    %p95 = scmp.ne.s32.totalorder %s87, %s89
    %p96 = scmp.eq.s32.totalorder %s32, 1
    %p97 = por %p95, %p96
    %p98 = scmp.ne.s32.totalorder %s89, %s90
    %p99 = scmp.eq.s32.totalorder %s32, 0
    %p100 = por %p98, %p99
    %p101 = scmp.ne.s32.totalorder %s89, %s90
    %p102 = scmp.eq.s32.totalorder %s33, 1
    %p103 = por %p101, %p102
    %p105 = scmp.ne.s32.totalorder %s90, %s104
    %p106 = scmp.eq.s32.totalorder %s33, 0
    %p107 = por %p105, %p106
    %s109 = sadd.s32 %s108, 1
    %p112 = scmp.eq.s32.totalorder %s27, 1
    %p113 = scmp.ne.s32.totalorder %s108, %s110
    %p114 = scmp.eq.s32.totalorder %s27, 0
    %p115 = por %p113, %p114
    %p116 = scmp.ne.s32.totalorder %s108, %s110
    %p117 = scmp.eq.s32.totalorder %s32, 1
    %p118 = por %p116, %p117
    %p119 = scmp.ne.s32.totalorder %s110, %s111
    %p120 = scmp.eq.s32.totalorder %s32, 0
    %p121 = por %p119, %p120
    %p122 = scmp.ne.s32.totalorder %s110, %s111
    %p123 = scmp.eq.s32.totalorder %s33, 1
    %p124 = por %p122, %p123
    %p126 = scmp.ne.s32.totalorder %s111, %s125
    %p127 = scmp.eq.s32.totalorder %s33, 0
    %p128 = por %p126, %p127
    %s130 = sadd.s32 %s129, 1
    %p133 = scmp.eq.s32.totalorder %s27, 1
    %p134 = scmp.ne.s32.totalorder %s129, %s131
    %p135 = scmp.eq.s32.totalorder %s27, 0
    %p136 = por %p134, %p135
    %p137 = scmp.ne.s32.totalorder %s129, %s131
    %p138 = scmp.eq.s32.totalorder %s32, 1
    %p139 = por %p137, %p138
    %p140 = scmp.ne.s32.totalorder %s131, %s132
    %p141 = scmp.eq.s32.totalorder %s32, 0
    %p142 = por %p140, %p141
    %p143 = scmp.ne.s32.totalorder %s131, %s132
    %p144 = scmp.eq.s32.totalorder %s33, 1
    %p145 = por %p143, %p144
    %p147 = scmp.ne.s32.totalorder %s132, %s146
    %p148 = scmp.eq.s32.totalorder %s33, 0
    %p149 = por %p147, %p148
    %s151 = sadd.s32 %s150, 1
    %p154 = scmp.eq.s32.totalorder %s27, 1
    %p155 = scmp.ne.s32.totalorder %s150, %s152
    %p156 = scmp.eq.s32.totalorder %s27, 0
    %p157 = por %p155, %p156
    %p158 = scmp.ne.s32.totalorder %s150, %s152
    %p159 = scmp.eq.s32.totalorder %s32, 1
    %p160 = por %p158, %p159
    %p161 = scmp.ne.s32.totalorder %s152, %s153
    %p162 = scmp.eq.s32.totalorder %s32, 0
    %p163 = por %p161, %p162
    %p164 = scmp.ne.s32.totalorder %s152, %s153
    %p165 = scmp.eq.s32.totalorder %s33, 1
    %p166 = por %p164, %p165
    %p168 = scmp.ne.s32.totalorder %s153, %s167
    %p169 = scmp.eq.s32.totalorder %s33, 0
    %p170 = por %p168, %p169
    %s172 = sadd.s32 %s171, 1
    %p175 = scmp.eq.s32.totalorder %s27, 1
    %p176 = scmp.ne.s32.totalorder %s171, %s173
    %p177 = scmp.eq.s32.totalorder %s27, 0
    %p178 = por %p176, %p177
    %p179 = scmp.ne.s32.totalorder %s171, %s173
    %p180 = scmp.eq.s32.totalorder %s32, 1
    %p181 = por %p179, %p180
    %p182 = scmp.ne.s32.totalorder %s173, %s174
    %p183 = scmp.eq.s32.totalorder %s32, 0
    %p184 = por %p182, %p183
    %p185 = scmp.ne.s32.totalorder %s173, %s174
    %p186 = scmp.eq.s32.totalorder %s33, 1
    %p187 = por %p185, %p186
    %p189 = scmp.ne.s32.totalorder %s174, %s188
    %p190 = scmp.eq.s32.totalorder %s33, 0
    %p191 = por %p189, %p190
    %s193 = sadd.s32 %s192, 1
    %p196 = scmp.eq.s32.totalorder %s27, 1
    %p197 = scmp.ne.s32.totalorder %s192, %s194
    %p198 = scmp.eq.s32.totalorder %s27, 0
    %p199 = por %p197, %p198
    %p200 = scmp.ne.s32.totalorder %s192, %s194
    %p201 = scmp.eq.s32.totalorder %s32, 1
    %p202 = por %p200, %p201
    %p203 = scmp.ne.s32.totalorder %s194, %s195
    %p204 = scmp.eq.s32.totalorder %s32, 0
    %p205 = por %p203, %p204
    %p206 = scmp.ne.s32.totalorder %s194, %s195
    %p207 = scmp.eq.s32.totalorder %s33, 1
    %p208 = por %p206, %p207
    %p210 = scmp.ne.s32.totalorder %s195, %s209
    %p211 = scmp.eq.s32.totalorder %s33, 0
    %p212 = por %p210, %p211
    %s214 = sadd.s32 %s213, 1
    %p217 = scmp.eq.s32.totalorder %s27, 1
    %p218 = scmp.ne.s32.totalorder %s213, %s215
    %p219 = scmp.eq.s32.totalorder %s27, 0
    %p220 = por %p218, %p219
    %p221 = scmp.ne.s32.totalorder %s213, %s215
    %p222 = scmp.eq.s32.totalorder %s32, 1
    %p223 = por %p221, %p222
    %p224 = scmp.ne.s32.totalorder %s215, %s216
    %p225 = scmp.eq.s32.totalorder %s32, 0
    %p226 = por %p224, %p225
    %p227 = scmp.ne.s32.totalorder %s215, %s216
    %p228 = scmp.eq.s32.totalorder %s33, 1
    %p229 = por %p227, %p228
    %p231 = scmp.ne.s32.totalorder %s216, %s230
    %p232 = scmp.eq.s32.totalorder %s33, 0
    %p233 = por %p231, %p232
    %s235 = sadd.s32 %s234, 1
    %p238 = scmp.eq.s32.totalorder %s27, 1
    %p239 = scmp.ne.s32.totalorder %s234, %s236
    %p240 = scmp.eq.s32.totalorder %s27, 0
    %p241 = por %p239, %p240
    %p242 = scmp.ne.s32.totalorder %s234, %s236
    %p243 = scmp.eq.s32.totalorder %s32, 1
    %p244 = por %p242, %p243
    %p245 = scmp.ne.s32.totalorder %s236, %s237
    %p246 = scmp.eq.s32.totalorder %s32, 0
    %p247 = por %p245, %p246
    %p248 = scmp.ne.s32.totalorder %s236, %s237
    %p249 = scmp.eq.s32.totalorder %s33, 1
    %p250 = por %p248, %p249
    %p252 = scmp.ne.s32.totalorder %s237, %s251
    %p253 = scmp.eq.s32.totalorder %s33, 0
    %p254 = por %p252, %p253
    %s256 = sadd.s32 %s255, 1
    %p259 = scmp.eq.s32.totalorder %s27, 1
    %p260 = scmp.ne.s32.totalorder %s255, %s257
    %p261 = scmp.eq.s32.totalorder %s27, 0
    %p262 = por %p260, %p261
    %p263 = scmp.ne.s32.totalorder %s255, %s257
    %p264 = scmp.eq.s32.totalorder %s32, 1
    %p265 = por %p263, %p264
    %p266 = scmp.ne.s32.totalorder %s257, %s258
    %p267 = scmp.eq.s32.totalorder %s32, 0
    %p268 = por %p266, %p267
    %p269 = scmp.ne.s32.totalorder %s257, %s258
    %p270 = scmp.eq.s32.totalorder %s33, 1
    %p271 = por %p269, %p270
    %p273 = scmp.ne.s32.totalorder %s258, %s272
    %p274 = scmp.eq.s32.totalorder %s33, 0
    %p275 = por %p273, %p274
    %s277 = sadd.s32 %s276, 1
    %p280 = scmp.eq.s32.totalorder %s27, 1
    %p281 = scmp.ne.s32.totalorder %s276, %s278
    %p282 = scmp.eq.s32.totalorder %s27, 0
    %p283 = por %p281, %p282
    %p284 = scmp.ne.s32.totalorder %s276, %s278
    %p285 = scmp.eq.s32.totalorder %s32, 1
    %p286 = por %p284, %p285
    %p287 = scmp.ne.s32.totalorder %s278, %s279
    %p288 = scmp.eq.s32.totalorder %s32, 0
    %p289 = por %p287, %p288
    %p290 = scmp.ne.s32.totalorder %s278, %s279
    %p291 = scmp.eq.s32.totalorder %s33, 1
    %p292 = por %p290, %p291
    %p294 = scmp.ne.s32.totalorder %s279, %s293
    %p295 = scmp.eq.s32.totalorder %s33, 0
    %p296 = por %p294, %p295
    %s298 = sadd.s32 %s297, 1
    %p301 = scmp.eq.s32.totalorder %s27, 1
    %p302 = scmp.ne.s32.totalorder %s297, %s299
    %p303 = scmp.eq.s32.totalorder %s27, 0
    %p304 = por %p302, %p303
    %p305 = scmp.ne.s32.totalorder %s297, %s299
    %p306 = scmp.eq.s32.totalorder %s32, 1
    %p307 = por %p305, %p306
    %p308 = scmp.ne.s32.totalorder %s299, %s300
    %p309 = scmp.eq.s32.totalorder %s32, 0
    %p310 = por %p308, %p309
    %p311 = scmp.ne.s32.totalorder %s299, %s300
    %p312 = scmp.eq.s32.totalorder %s33, 1
    %p313 = por %p311, %p312
    %p315 = scmp.ne.s32.totalorder %s300, %s314
    %p316 = scmp.eq.s32.totalorder %s33, 0
    %p317 = por %p315, %p316
    %s319 = sadd.s32 %s318, 1
    %p322 = scmp.eq.s32.totalorder %s27, 1
    %p323 = scmp.ne.s32.totalorder %s318, %s320
    %p324 = scmp.eq.s32.totalorder %s27, 0
    %p325 = por %p323, %p324
    %p326 = scmp.ne.s32.totalorder %s318, %s320
    %p327 = scmp.eq.s32.totalorder %s32, 1
    %p328 = por %p326, %p327
    %p329 = scmp.ne.s32.totalorder %s320, %s321
    %p330 = scmp.eq.s32.totalorder %s32, 0
    %p331 = por %p329, %p330
    %p332 = scmp.ne.s32.totalorder %s320, %s321
    %p333 = scmp.eq.s32.totalorder %s33, 1
    %p334 = por %p332, %p333
    %p336 = scmp.ne.s32.totalorder %s321, %s335
    %p337 = scmp.eq.s32.totalorder %s33, 0
    %p338 = por %p336, %p337
    %s340 = sadd.s32 %s339, 1
    %p343 = scmp.eq.s32.totalorder %s27, 1
    %p344 = scmp.ne.s32.totalorder %s339, %s341
    %p345 = scmp.eq.s32.totalorder %s27, 0
    %p346 = por %p344, %p345
    %p347 = scmp.ne.s32.totalorder %s339, %s341
    %p348 = scmp.eq.s32.totalorder %s32, 1
    %p349 = por %p347, %p348
    %p350 = scmp.ne.s32.totalorder %s341, %s342
    %p351 = scmp.eq.s32.totalorder %s32, 0
    %p352 = por %p350, %p351
    %p353 = scmp.ne.s32.totalorder %s341, %s342
    %p354 = scmp.eq.s32.totalorder %s33, 1
    %p355 = por %p353, %p354
    %p357 = scmp.ne.s32.totalorder %s342, %s356
    %p358 = scmp.eq.s32.totalorder %s33, 0
    %p359 = por %p357, %p358
    %s361 = sadd.s32 %s360, 1
    %p364 = scmp.eq.s32.totalorder %s27, 1
    %p365 = scmp.ne.s32.totalorder %s360, %s362
    %p366 = scmp.eq.s32.totalorder %s27, 0
    %p367 = por %p365, %p366
    %p368 = scmp.ne.s32.totalorder %s360, %s362
    %p369 = scmp.eq.s32.totalorder %s32, 1
    %p370 = por %p368, %p369
    %p371 = scmp.ne.s32.totalorder %s362, %s363
    %p372 = scmp.eq.s32.totalorder %s32, 0
    %p373 = por %p371, %p372
    %p374 = scmp.ne.s32.totalorder %s362, %s363
    %p375 = scmp.eq.s32.totalorder %s33, 1
    %p376 = por %p374, %p375
    %p378 = scmp.ne.s32.totalorder %s363, %s377
    %p379 = scmp.eq.s32.totalorder %s33, 0
    %p380 = por %p378, %p379
    %s382 = sadd.s32 %s381, 1
    %p385 = scmp.eq.s32.totalorder %s27, 1
    %p386 = scmp.ne.s32.totalorder %s381, %s383
    %p387 = scmp.eq.s32.totalorder %s27, 0
    %p388 = por %p386, %p387
    %p389 = scmp.ne.s32.totalorder %s381, %s383
    %p390 = scmp.eq.s32.totalorder %s32, 1
    %p391 = por %p389, %p390
    %p392 = scmp.ne.s32.totalorder %s383, %s384
    %p393 = scmp.eq.s32.totalorder %s32, 0
    %p394 = por %p392, %p393
    %p395 = scmp.ne.s32.totalorder %s383, %s384
    %p396 = scmp.eq.s32.totalorder %s33, 1
    %p397 = por %p395, %p396
    %p399 = scmp.ne.s32.totalorder %s384, %s398
    %p400 = scmp.eq.s32.totalorder %s33, 0
    %p401 = por %p399, %p400
    %s403 = sadd.s32 %s402, 1
    %p406 = scmp.eq.s32.totalorder %s27, 1
    %p407 = scmp.ne.s32.totalorder %s402, %s404
    %p408 = scmp.eq.s32.totalorder %s27, 0
    %p409 = por %p407, %p408
    %p410 = scmp.ne.s32.totalorder %s402, %s404
    %p411 = scmp.eq.s32.totalorder %s32, 1
    %p412 = por %p410, %p411
    %p413 = scmp.ne.s32.totalorder %s404, %s405
    %p414 = scmp.eq.s32.totalorder %s32, 0
    %p415 = por %p413, %p414
    %p416 = scmp.ne.s32.totalorder %s404, %s405
    %p417 = scmp.eq.s32.totalorder %s33, 1
    %p418 = por %p416, %p417
    %p420 = scmp.ne.s32.totalorder %s405, %s419
    %p421 = scmp.eq.s32.totalorder %s33, 0
    %p422 = por %p420, %p421
    %s424 = sadd.s32 %s423, 1
    %p427 = scmp.eq.s32.totalorder %s27, 1
    %p428 = scmp.ne.s32.totalorder %s423, %s425
    %p429 = scmp.eq.s32.totalorder %s27, 0
    %p430 = por %p428, %p429
    %p431 = scmp.ne.s32.totalorder %s423, %s425
    %p432 = scmp.eq.s32.totalorder %s32, 1
    %p433 = por %p431, %p432
    %p434 = scmp.ne.s32.totalorder %s425, %s426
    %p435 = scmp.eq.s32.totalorder %s32, 0
    %p436 = por %p434, %p435
    %p437 = scmp.ne.s32.totalorder %s425, %s426
    %p438 = scmp.eq.s32.totalorder %s33, 1
    %p439 = por %p437, %p438
    %p441 = scmp.ne.s32.totalorder %s426, %s440
    %p442 = scmp.eq.s32.totalorder %s33, 0
    %p443 = por %p441, %p442
    %s444 = ssub.s32 %s27, %s34
    %p445 = scmp.eq.s32.totalorder %s444, 0
    %s447 = sadd.s32 %s446, 1
    %s448 = scalar_select %p445, %s446, %s447
    %p451 = pneg %p445
    %p452 = scmp.eq.s32.totalorder %s27, 1
    %p453 = por %p451, %p452
    %p454 = scmp.ne.s32.totalorder %s446, %s449
    %p455 = scmp.eq.s32.totalorder %s27, 0
    %p456 = por %p454, %p455
    %p457 = scmp.ne.s32.totalorder %s446, %s449
    %p458 = scmp.eq.s32.totalorder %s32, 1
    %p459 = por %p457, %p458
    %p460 = scmp.ne.s32.totalorder %s449, %s450
    %p461 = scmp.eq.s32.totalorder %s32, 0
    %p462 = por %p460, %p461
    %p463 = scmp.ne.s32.totalorder %s449, %s450
    %p464 = scmp.eq.s32.totalorder %s33, 1
    %p465 = por %p463, %p464
    %p467 = scmp.ne.s32.totalorder %s450, %s466
    %p468 = scmp.eq.s32.totalorder %s33, 0
    %p469 = por %p467, %p468
    %s470 = ssub.s32 %s27, %s34
    %p471 = scmp.eq.s32.totalorder %s470, 0
    %s473 = sadd.s32 %s472, 1
    %s474 = scalar_select %p471, %s472, %s473
    %p477 = pneg %p471
    %p478 = scmp.eq.s32.totalorder %s27, 1
    %p479 = por %p477, %p478
    %p480 = scmp.ne.s32.totalorder %s472, %s475
    %p481 = scmp.eq.s32.totalorder %s27, 0
    %p482 = por %p480, %p481
    %p483 = scmp.ne.s32.totalorder %s472, %s475
    %p484 = scmp.eq.s32.totalorder %s32, 1
    %p485 = por %p483, %p484
    %p486 = scmp.ne.s32.totalorder %s475, %s476
    %p487 = scmp.eq.s32.totalorder %s32, 0
    %p488 = por %p486, %p487
    %p489 = scmp.ne.s32.totalorder %s475, %s476
    %p490 = scmp.eq.s32.totalorder %s33, 1
    %p491 = por %p489, %p490
    %p493 = scmp.ne.s32.totalorder %s476, %s492
    %p494 = scmp.eq.s32.totalorder %s33, 0
    %p495 = por %p493, %p494
    %p496 = scmp.le.s32.totalorder 1, %s27
    %p497 = scmp.lt.s32.totalorder %s27, 3
    %p498 = pnand %p496, %p497
    %p499 = pneg %p498
    // Predicated region
    $region9: #{_forward.2} parent=5 // pred_check
      _
    $region10: #{_forward.2} parent=5 // pred_check_branch
      %501 = sbr.rel (%p498) target = $region12
    $region11: #{_forward.2} parent=5 // pred_region
      %s502 = ssub.s32 %s27, 1
      // Predicated region
      $region13: #{_forward.2} parent=11 // pred_check
        %p503 = pneg %p100
      $region14: #{_forward.2} parent=11 // pred_check_branch
        %505 = sbr.rel (%p503) target = $region16
      $region15: #{_forward.2} parent=11 // pred_region
        _
      $region16: #{_forward.2} parent=11 // pred_fallthru
        _
      // Predicated region
      $region17: #{_forward.2} parent=11 // pred_check
        %p506 = pneg %p121
      $region18: #{_forward.2} parent=11 // pred_check_branch
        %508 = sbr.rel (%p506) target = $region20
      $region19: #{_forward.2} parent=11 // pred_region
        _
      $region20: #{_forward.2} parent=11 // pred_fallthru
        _
      // Predicated region
      $region21: #{_forward.2} parent=11 // pred_check
        %p509 = pneg %p142
      $region22: #{_forward.2} parent=11 // pred_check_branch
        %511 = sbr.rel (%p509) target = $region24
      $region23: #{_forward.2} parent=11 // pred_region
        _
      $region24: #{_forward.2} parent=11 // pred_fallthru
        _
      // Predicated region
      $region25: #{_forward.2} parent=11 // pred_check
        %p512 = pneg %p163
      $region26: #{_forward.2} parent=11 // pred_check_branch
        %514 = sbr.rel (%p512) target = $region28
      $region27: #{_forward.2} parent=11 // pred_region
        _
      $region28: #{_forward.2} parent=11 // pred_fallthru
        _
      // Predicated region
      $region29: #{_forward.2} parent=11 // pred_check
        %p515 = pneg %p184
      $region30: #{_forward.2} parent=11 // pred_check_branch
        %517 = sbr.rel (%p515) target = $region32
      $region31: #{_forward.2} parent=11 // pred_region
        _
      $region32: #{_forward.2} parent=11 // pred_fallthru
        _
      // Predicated region
      $region33: #{_forward.2} parent=11 // pred_check
        %p518 = pneg %p205
      $region34: #{_forward.2} parent=11 // pred_check_branch
        %520 = sbr.rel (%p518) target = $region36
      $region35: #{_forward.2} parent=11 // pred_region
        _
      $region36: #{_forward.2} parent=11 // pred_fallthru
        _
      // Predicated region
      $region37: #{_forward.2} parent=11 // pred_check
        %p521 = pneg %p226
      $region38: #{_forward.2} parent=11 // pred_check_branch
        %523 = sbr.rel (%p521) target = $region40
      $region39: #{_forward.2} parent=11 // pred_region
        _
      $region40: #{_forward.2} parent=11 // pred_fallthru
        _
      // Predicated region
      $region41: #{_forward.2} parent=11 // pred_check
        %p524 = pneg %p247
      $region42: #{_forward.2} parent=11 // pred_check_branch
        %526 = sbr.rel (%p524) target = $region44
      $region43: #{_forward.2} parent=11 // pred_region
        _
      $region44: #{_forward.2} parent=11 // pred_fallthru
        _
      // Predicated region
      $region45: #{_forward.2} parent=11 // pred_check
        %p527 = pneg %p268
      $region46: #{_forward.2} parent=11 // pred_check_branch
        %529 = sbr.rel (%p527) target = $region48
      $region47: #{_forward.2} parent=11 // pred_region
        _
      $region48: #{_forward.2} parent=11 // pred_fallthru
        _
      // Predicated region
      $region49: #{_forward.2} parent=11 // pred_check
        %p530 = pneg %p289
      $region50: #{_forward.2} parent=11 // pred_check_branch
        %532 = sbr.rel (%p530) target = $region52
      $region51: #{_forward.2} parent=11 // pred_region
        _
      $region52: #{_forward.2} parent=11 // pred_fallthru
        _
      // Predicated region
      $region53: #{_forward.2} parent=11 // pred_check
        %p533 = pneg %p310
      $region54: #{_forward.2} parent=11 // pred_check_branch
        %535 = sbr.rel (%p533) target = $region56
      $region55: #{_forward.2} parent=11 // pred_region
        _
      $region56: #{_forward.2} parent=11 // pred_fallthru
        _
      // Predicated region
      $region57: #{_forward.2} parent=11 // pred_check
        %p536 = pneg %p331
      $region58: #{_forward.2} parent=11 // pred_check_branch
        %538 = sbr.rel (%p536) target = $region60
      $region59: #{_forward.2} parent=11 // pred_region
        _
      $region60: #{_forward.2} parent=11 // pred_fallthru
        _
      // Predicated region
      $region61: #{_forward.2} parent=11 // pred_check
        %p539 = pneg %p352
      $region62: #{_forward.2} parent=11 // pred_check_branch
        %541 = sbr.rel (%p539) target = $region64
      $region63: #{_forward.2} parent=11 // pred_region
        _
      $region64: #{_forward.2} parent=11 // pred_fallthru
        _
      // Predicated region
      $region65: #{_forward.2} parent=11 // pred_check
        %p542 = pneg %p373
      $region66: #{_forward.2} parent=11 // pred_check_branch
        %544 = sbr.rel (%p542) target = $region68
      $region67: #{_forward.2} parent=11 // pred_region
        _
      $region68: #{_forward.2} parent=11 // pred_fallthru
        _
      // Predicated region
      $region69: #{_forward.2} parent=11 // pred_check
        %p545 = pneg %p394
      $region70: #{_forward.2} parent=11 // pred_check_branch
        %547 = sbr.rel (%p545) target = $region72
      $region71: #{_forward.2} parent=11 // pred_region
        _
      $region72: #{_forward.2} parent=11 // pred_fallthru
        _
      // Predicated region
      $region73: #{_forward.2} parent=11 // pred_check
        %p548 = pneg %p415
      $region74: #{_forward.2} parent=11 // pred_check_branch
        %550 = sbr.rel (%p548) target = $region76
      $region75: #{_forward.2} parent=11 // pred_region
        _
      $region76: #{_forward.2} parent=11 // pred_fallthru
        _
      // Predicated region
      $region77: #{_forward.2} parent=11 // pred_check
        %p551 = pneg %p436
      $region78: #{_forward.2} parent=11 // pred_check_branch
        %553 = sbr.rel (%p551) target = $region80
      $region79: #{_forward.2} parent=11 // pred_region
        _
      $region80: #{_forward.2} parent=11 // pred_fallthru
        _
    $region12: #{_forward.2} parent=5 // pred_fallthru
      _
    %p554 = scmp.lt.s32.totalorder %s27, 2
    // Predicated region
    $region81: #{_forward.2} parent=5 // pred_check
      %p555 = pneg %p554
    $region82: #{_forward.2} parent=5 // pred_check_branch
      %557 = sbr.rel (%p555) target = $region84
    $region83: #{_forward.2} parent=5 // pred_region
      // Predicated region
      $region85: #{_forward.2} parent=83 // pred_check
        %p558 = pneg %p47
      $region86: #{_forward.2} parent=83 // pred_check_branch
        %560 = sbr.rel (%p558) target = $region88
      $region87: #{_forward.2} parent=83 // pred_region
        %p561 = scmp.lt.s32.totalorder %s27, 1
        %s562 = scalar_select %p561, %s27, 1
        %s563 = smul.addr %s562, 2
        %s564 = smul.addr %s563, 8
        %s565 = scalar_lea.vmem %s0, %s564
      $region88: #{_forward.2} parent=83 // pred_fallthru
        _
      // Predicated region
      $region89: #{_forward.2} parent=83 // pred_check
        %p566 = pneg %p73
      $region90: #{_forward.2} parent=83 // pred_check_branch
        %568 = sbr.rel (%p566) target = $region92
      $region91: #{_forward.2} parent=83 // pred_region
        %p569 = scmp.lt.s32.totalorder %s27, 1
        %s570 = scalar_select %p569, %s27, 1
        %s571 = scalar_lea.vmem %s1, %s570
      $region92: #{_forward.2} parent=83 // pred_fallthru
        _
    $region84: #{_forward.2} parent=5 // pred_fallthru
      _
    %p572 = scmp.le.s32.totalorder 1, %s27
    %p573 = scmp.lt.s32.totalorder %s27, 3
    %p574 = pnand %p572, %p573
    %p575 = pneg %p574
    // Predicated region
    $region93: #{_forward.2} parent=5 // pred_check
      _
    $region94: #{_forward.2} parent=5 // pred_check_branch
      %577 = sbr.rel (%p574) target = $region96
    $region95: #{_forward.2} parent=5 // pred_region
      %s578 = ssub.s32 %s27, 1
      %p579 = scmp.lt.s32.totalorder %s32, 1
      %s580 = scalar_select %p579, %s32, 1
      %s581 = smul.addr %s580, 2
      %s582 = smul.addr %s581, 8
      %s583 = scalar_lea.vmem %s0, %s582
      %p584 = pneg %p53
      %p585 = pneg %p50
      %p586 = scmp.lt.s32.totalorder %s32, 1
      %s587 = scalar_select %p586, %s32, 1
      %s588 = scalar_lea.vmem %s1, %s587
      %p589 = pneg %p79
      %p590 = pneg %p76
      %p591 = pneg %p100
      %p592 = pneg %p97
      %p593 = pneg %p121
      %p594 = pneg %p118
      %p595 = pneg %p142
      %p596 = pneg %p139
      %p597 = pneg %p163
      %p598 = pneg %p160
      %p599 = pneg %p184
      %p600 = pneg %p181
      %p601 = pneg %p205
      %p602 = pneg %p202
      %p603 = pneg %p226
      %p604 = pneg %p223
      %p605 = pneg %p247
      %p606 = pneg %p244
      %p607 = pneg %p268
      %p608 = pneg %p265
      %p609 = pneg %p289
      %p610 = pneg %p286
      %p611 = pneg %p310
      %p612 = pneg %p307
      %p613 = pneg %p331
      %p614 = pneg %p328
      %p615 = pneg %p352
      %p616 = pneg %p349
      %p617 = pneg %p373
      %p618 = pneg %p370
      %p619 = pneg %p394
      %p620 = pneg %p391
      %p621 = pneg %p415
      %p622 = pneg %p412
      %p623 = pneg %p436
      %p624 = pneg %p433
      %p625 = pneg %p462
      %p626 = pneg %p459
      %p627 = scmp.lt.s32.totalorder %s32, 1
      %s628 = scalar_select %p627, %s32, 1
      %s629 = smul.addr %s628, 2
      %s630 = smul.addr %s629, 4
      %s631 = scalar_lea.vmem %s19, %s630
      %p632 = pneg %p488
      %p633 = pneg %p485
      %p634 = scmp.lt.s32.totalorder %s32, 1
      %s635 = scalar_select %p634, %s32, 1
      %s636 = smul.addr %s635, 2
      %s637 = smul.addr %s636, 8
      %s638 = scalar_lea.vmem %s20, %s637
      %p639 = scmp.lt.s32.totalorder %s32, 1
      %s640 = scalar_select %p639, %s32, 1
      %s641 = smul.addr %s640, 2
      %s642 = smul.addr %s641, 8
      %s643 = scalar_lea.vmem %s0, %s642
      %p644 = scmp.lt.s32.totalorder %s32, 1
      %s645 = scalar_select %p644, %s32, 1
      %s646 = scalar_lea.vmem %s1, %s645
      %p647 = scmp.lt.s32.totalorder %s32, 1
      %s648 = scalar_select %p647, %s32, 1
      %s649 = smul.addr %s648, 2
      %s650 = smul.addr %s649, 4
      %s651 = scalar_lea.vmem %s19, %s650
      %p652 = scmp.lt.s32.totalorder %s32, 1
      %s653 = scalar_select %p652, %s32, 1
      %s654 = smul.addr %s653, 2
      %s655 = smul.addr %s654, 8
      %s656 = scalar_lea.vmem %s20, %s655
      %v658 = vld [vmem:[%s643] sm:$0xff]
      %v659 = vld [vmem:[%s643 + $0x8] sm:$0xff]
      %v660 = vlaneseq
      %v661 = vshrl.u32 %v660, 7
      %v662 = vadd.s32 %v661, 8
      %v663 = vlaneseq
      %v664 = vand.u32 %v663, 127
      %vm665 = vcmp.le.s32.totalorder %v664, %v661
      %vm666 = vcmp.le.s32.totalorder %v664, %v662
      %v667 = vsub.s32 %v661, %v664
      %v668 = vsub.s32 %v662, %v664
      %vm669 = vcmp.lt.s32.totalorder %v667, 8
      %vm670 = vcmp.lt.s32.totalorder %v668, 8
      %vm671 = vmand %vm665, %vm669
      %vm672 = vmand %vm666, %vm670
      %v673 = vsel %vm671, 0.0, -1e+09
      %v674 = vsel %vm672, 0.0, -1e+09
      %v675 = vld [vmem:[%s646] sm:$0x1]
      %v677 = vlaneseq
      %v678 = vshrl.u32 %v677, 7
      %v679 = vsub.s32 0, %v678
      %v680 = vrot.slane %v675, %v679
      %v682 = vadd.f32 %v673, %v680
      %v683 = vadd.f32 %v674, %v680
      %vm684 = vcmp.ge.s32.totalorder %v664, 0
      %vm685 = vcmp.lt.s32.totalorder %v664, 8
      %vm686 = vmand %vm684, %vm685
      %v687 = vsel %vm686, 1, 0
      %v688 = vcvt.s32.f32 %v687
      %v689 = vpack.c.bf16 %v688, %v688
      %vm690 = vcmp.ge.s32.totalorder %v664, 8
      %vm691 = vcmp.lt.s32.totalorder %v664, 16
      %vm692 = vmand %vm690, %vm691
      %v693 = vsel %vm692, 1, 0
      %v694 = vcvt.s32.f32 %v693
      %v695 = vpack.c.bf16 %v694, %v694
      %vm696 = vcmp.ge.s32.totalorder %v664, 16
      %vm697 = vcmp.lt.s32.totalorder %v664, 24
      %vm698 = vmand %vm696, %vm697
      %v699 = vsel %vm698, 1, 0
      %v700 = vcvt.s32.f32 %v699
      %v701 = vpack.c.bf16 %v700, %v700
      %vm702 = vcmp.ge.s32.totalorder %v664, 24
      %vm703 = vcmp.lt.s32.totalorder %v664, 32
      %vm704 = vmand %vm702, %vm703
      %v705 = vsel %vm704, 1, 0
      %v706 = vcvt.s32.f32 %v705
      %v707 = vpack.c.bf16 %v706, %v706
      %v708 = vld [vmem:[%s2] sm:$0x1]
      %v709 = vmul.f32 %v658, %v658
      %v710 = vmul.f32 %v659, %v659
      %vm711 = vcmask 261120
      %v712 = vsel %vm711, %v709, 0.0
      %713 = vadd.xlane.f32.xlu0 %v712
      %v714 = vpop.xlane.xlu0 %713
      %v715 = vsel %vm711, %v710, 0.0
      %716 = vadd.xlane.f32.xlu0 %v715
      %v717 = vpop.xlane.xlu0 %716
      %v718 = vrcp.pop 32.0
      %v719 = vmul.f32 %v714, %v718
      %v720 = vmul.f32 %v717, %v718
      %v721 = vadd.f32 %v719, 1e-06
      %v722 = vadd.f32 %v720, 1e-06
      %v723 = vrsqrt.pop %v721
      %v724 = vrsqrt.pop %v722
      %v725 = vmul.f32 %v658, %v723
      %v726 = vmul.f32 %v659, %v724
      %v728 = vlaneseq
      %v729 = vshrl.u32 %v728, 7
      %v730 = vsub.s32 0, %v729
      %v731 = vrot.slane %v708, %v730
      %v733 = vmul.f32 %v725, %v731
      %v734 = vmul.f32 %v726, %v731
      %v735 = vpack.c.bf16 %v734, %v733
      %v736 = vld [vmem:[%s3] sm:$0xf]
      %v737 = vld [vmem:[%s3 + $0x4] sm:$0xf]
      %v738 = vld [vmem:[%s3 + $0x8] sm:$0xf]
      %v739 = vld [vmem:[%s3 + $0xc] sm:$0xf]
      %v740 = vld [vmem:[%s4] sm:$0x1]
      %v742 = vlaneseq
      %v743 = vshrl.u32 %v742, 7
      %v744 = vsub.s32 0, %v743
      %v745 = vrot.slane %v740, %v744
      %v751 = vunpack.c.l.b16 %v736
      %v752 = vunpack.c.l.b16 %v737
      %v753 = vunpack.c.l.b16 %v738
      %v754 = vunpack.c.l.b16 %v739
      %v755 = vpack.c.b16 %v752, %v751
      %v756 = vpack.c.b16 %v754, %v753
      %v760 = vsel %vm711, %v735, 0
      %762 = vmatprep.subr.bf16.mxu0 0
      %763 = vmatpush1.bf16.msra.mxu0 0
      %764 = vmatprep.subr.bf16.mxu0 0
      %765 = vmatpush1.bf16.msra.mxu0 0
      %766 = vmatprep.subr.bf16.mxu0 0
      %767 = vmatpush1.bf16.msra.mxu0 0
      %768 = vmatprep.subr.bf16.mxu0 0
      %769 = vmatpush1.bf16.msra.mxu0 0
      %770 = vmatprep.subr.bf16.mxu0 0
      %771 = vmatpush1.bf16.msra.mxu0 0
      %772 = vmatprep.subr.bf16.mxu0 0
      %773 = vmatpush1.bf16.msra.mxu0 0
      %774 = vmatprep.subr.bf16.mxu0 0
      %775 = vmatpush1.bf16.msra.mxu0 %v756
      %776 = vmatprep.subr.bf16.mxu0 0
      %777 = vmatpush1.bf16.msra.mxu0 %v755
      %778 = vmatprep.subr.bf16.mxu0 0
      %779 = vmatpush2.bf16.msra.mxu0 0
      %780 = vmatprep.subr.bf16.mxu0 0
      %781 = vmatpush2.bf16.msra.mxu0 0
      %782 = vmatprep.subr.bf16.mxu0 0
      %783 = vmatpush2.bf16.msra.mxu0 0
      %784 = vmatprep.subr.bf16.mxu0 0
      %785 = vmatpush2.bf16.msra.mxu0 0
      %786 = vmatprep.subr.bf16.mxu0 0
      %787 = vmatpush2.bf16.msra.mxu0 0
      %788 = vmatprep.subr.bf16.mxu0 0
      %789 = vmatpush2.bf16.msra.mxu0 0
      %790 = vmatprep.subr.bf16.mxu0 0
      %791 = vmatpush2.bf16.msra.mxu0 0
      %792 = vmatprep.subr.bf16.mxu0 0
      %793 = vmatpush2.bf16.msra.mxu0 0
      %794 = vmatprep.mubr.bf16.mxu0 0
      %795 = vmatmul.mubr.bf16.gmra.mxu0 %v760
      %v796 = vpop.f32.mrf.mxu0
      %v797 = vadd.f32 %v745, %v796
      %v798 = vpop.f32.mrf.mxu0
      %v799 = vpop.f32.mrf.mxu0
      %v800 = vadd.f32 %v745, %v799
      %v801 = vpop.f32.mrf.mxu0
      %802 = vdwg.mxu0
      %v803 = vld [vmem:[%s5] sm:$0xf]
      %v804 = vld [vmem:[%s5 + $0x4] sm:$0xf]
      %v805 = vld [vmem:[%s5 + $0x8] sm:$0xf]
      %v806 = vld [vmem:[%s5 + $0xc] sm:$0xf]
      %v807 = vld [vmem:[%s6] sm:$0x1]
      %v809 = vlaneseq
      %v810 = vshrl.u32 %v809, 7
      %v811 = vsub.s32 0, %v810
      %v812 = vrot.slane %v807, %v811
      %v818 = vunpack.c.l.b16 %v803
      %v819 = vunpack.c.l.b16 %v804
      %v820 = vunpack.c.l.b16 %v805
      %v821 = vunpack.c.l.b16 %v806
      %v822 = vpack.c.b16 %v819, %v818
      %v823 = vpack.c.b16 %v821, %v820
      %826 = vmatprep.subr.bf16.mxu0 0
      %827 = vmatpush1.bf16.msra.mxu0 0
      %828 = vmatprep.subr.bf16.mxu0 0
      %829 = vmatpush1.bf16.msra.mxu0 0
      %830 = vmatprep.subr.bf16.mxu0 0
      %831 = vmatpush1.bf16.msra.mxu0 0
      %832 = vmatprep.subr.bf16.mxu0 0
      %833 = vmatpush1.bf16.msra.mxu0 0
      %834 = vmatprep.subr.bf16.mxu0 0
      %835 = vmatpush1.bf16.msra.mxu0 0
      %836 = vmatprep.subr.bf16.mxu0 0
      %837 = vmatpush1.bf16.msra.mxu0 0
      %838 = vmatprep.subr.bf16.mxu0 0
      %839 = vmatpush1.bf16.msra.mxu0 %v823
      %840 = vmatprep.subr.bf16.mxu0 0
      %841 = vmatpush1.bf16.msra.mxu0 %v822
      %842 = vmatprep.subr.bf16.mxu0 0
      %843 = vmatpush2.bf16.msra.mxu0 0
      %844 = vmatprep.subr.bf16.mxu0 0
      %845 = vmatpush2.bf16.msra.mxu0 0
      %846 = vmatprep.subr.bf16.mxu0 0
      %847 = vmatpush2.bf16.msra.mxu0 0
      %848 = vmatprep.subr.bf16.mxu0 0
      %849 = vmatpush2.bf16.msra.mxu0 0
      %850 = vmatprep.subr.bf16.mxu0 0
      %851 = vmatpush2.bf16.msra.mxu0 0
      %852 = vmatprep.subr.bf16.mxu0 0
      %853 = vmatpush2.bf16.msra.mxu0 0
      %854 = vmatprep.subr.bf16.mxu0 0
      %855 = vmatpush2.bf16.msra.mxu0 0
      %856 = vmatprep.subr.bf16.mxu0 0
      %857 = vmatpush2.bf16.msra.mxu0 0
      %858 = vmatprep.mubr.bf16.mxu0 0
      %859 = vmatmul.mubr.bf16.gmra.mxu0 %v760
      %v860 = vpop.f32.mrf.mxu0
      %v861 = vadd.f32 %v812, %v860
      %v862 = vpop.f32.mrf.mxu0
      %v863 = vpop.f32.mrf.mxu0
      %v864 = vadd.f32 %v812, %v863
      %v865 = vpop.f32.mrf.mxu0
      %866 = vdwg.mxu0
      %v867 = vld [vmem:[%s7] sm:$0xf]
      %v868 = vld [vmem:[%s7 + $0x4] sm:$0xf]
      %v869 = vld [vmem:[%s7 + $0x8] sm:$0xf]
      %v870 = vld [vmem:[%s7 + $0xc] sm:$0xf]
      %v871 = vld [vmem:[%s8] sm:$0x1]
      %v873 = vlaneseq
      %v874 = vshrl.u32 %v873, 7
      %v875 = vsub.s32 0, %v874
      %v876 = vrot.slane %v871, %v875
      %v882 = vunpack.c.l.b16 %v867
      %v883 = vunpack.c.l.b16 %v868
      %v884 = vunpack.c.l.b16 %v869
      %v885 = vunpack.c.l.b16 %v870
      %v886 = vpack.c.b16 %v883, %v882
      %v887 = vpack.c.b16 %v885, %v884
      %890 = vmatprep.subr.bf16.mxu0 0
      %891 = vmatpush1.bf16.msra.mxu0 0
      %892 = vmatprep.subr.bf16.mxu0 0
      %893 = vmatpush1.bf16.msra.mxu0 0
      %894 = vmatprep.subr.bf16.mxu0 0
      %895 = vmatpush1.bf16.msra.mxu0 0
      %896 = vmatprep.subr.bf16.mxu0 0
      %897 = vmatpush1.bf16.msra.mxu0 0
      %898 = vmatprep.subr.bf16.mxu0 0
      %899 = vmatpush1.bf16.msra.mxu0 0
      %900 = vmatprep.subr.bf16.mxu0 0
      %901 = vmatpush1.bf16.msra.mxu0 0
      %902 = vmatprep.subr.bf16.mxu0 0
      %903 = vmatpush1.bf16.msra.mxu0 %v887
      %904 = vmatprep.subr.bf16.mxu0 0
      %905 = vmatpush1.bf16.msra.mxu0 %v886
      %906 = vmatprep.subr.bf16.mxu0 0
      %907 = vmatpush2.bf16.msra.mxu0 0
      %908 = vmatprep.subr.bf16.mxu0 0
      %909 = vmatpush2.bf16.msra.mxu0 0
      %910 = vmatprep.subr.bf16.mxu0 0
      %911 = vmatpush2.bf16.msra.mxu0 0
      %912 = vmatprep.subr.bf16.mxu0 0
      %913 = vmatpush2.bf16.msra.mxu0 0
      %914 = vmatprep.subr.bf16.mxu0 0
      %915 = vmatpush2.bf16.msra.mxu0 0
      %916 = vmatprep.subr.bf16.mxu0 0
      %917 = vmatpush2.bf16.msra.mxu0 0
      %918 = vmatprep.subr.bf16.mxu0 0
      %919 = vmatpush2.bf16.msra.mxu0 0
      %920 = vmatprep.subr.bf16.mxu0 0
      %921 = vmatpush2.bf16.msra.mxu0 0
      %922 = vmatprep.mubr.bf16.mxu0 0
      %923 = vmatmul.mubr.bf16.gmra.mxu0 %v760
      %v924 = vpop.f32.mrf.mxu0
      %v925 = vadd.f32 %v876, %v924
      %v926 = vpop.f32.mrf.mxu0
      %v927 = vpop.f32.mrf.mxu0
      %v928 = vadd.f32 %v876, %v927
      %v929 = vpop.f32.mrf.mxu0
      %930 = vdwg.mxu0
      %v931 = vpack.c.bf16 %v800, %v797
      %v932 = vpack.c.bf16 %v864, %v861
      %v933 = vpack.c.bf16 %v928, %v925
      %v934 = vmul.bf16 %v931, %v689
      %v936 = vsel %vm711, %v934, 0
      %v939 = vsel %vm711, %v932, 0
      %941 = vmatprep.subr.bf16.mxu0 0
      %942 = vmatpush1.bf16.xpose.msra.mxu0 0
      %943 = vmatprep.subr.bf16.mxu0 0
      %944 = vmatpush1.bf16.xpose.msra.mxu0 0
      %945 = vmatprep.subr.bf16.mxu0 0
      %946 = vmatpush1.bf16.xpose.msra.mxu0 0
      %947 = vmatprep.subr.bf16.mxu0 0
      %948 = vmatpush1.bf16.xpose.msra.mxu0 0
      %949 = vmatprep.subr.bf16.mxu0 0
      %950 = vmatpush1.bf16.xpose.msra.mxu0 0
      %951 = vmatprep.subr.bf16.mxu0 0
      %952 = vmatpush1.bf16.xpose.msra.mxu0 0
      %953 = vmatprep.subr.bf16.mxu0 0
      %954 = vmatpush1.bf16.xpose.msra.mxu0 0
      %955 = vmatprep.subr.bf16.mxu0 0
      %956 = vmatpush1.bf16.xpose.msra.mxu0 %v939
      %957 = vmatprep.subr.bf16.mxu0 0
      %958 = vmatpush2.bf16.xpose.msra.mxu0 0
      %959 = vmatprep.subr.bf16.mxu0 0
      %960 = vmatpush2.bf16.xpose.msra.mxu0 0
      %961 = vmatprep.subr.bf16.mxu0 0
      %962 = vmatpush2.bf16.xpose.msra.mxu0 0
      %963 = vmatprep.subr.bf16.mxu0 0
      %964 = vmatpush2.bf16.xpose.msra.mxu0 0
      %965 = vmatprep.subr.bf16.mxu0 0
      %966 = vmatpush2.bf16.xpose.msra.mxu0 0
      %967 = vmatprep.subr.bf16.mxu0 0
      %968 = vmatpush2.bf16.xpose.msra.mxu0 0
      %969 = vmatprep.subr.bf16.mxu0 0
      %970 = vmatpush2.bf16.xpose.msra.mxu0 0
      %971 = vmatprep.subr.bf16.mxu0 0
      %972 = vmatpush2.bf16.xpose.msra.mxu0 0
      %973 = vmatprep.mubr.bf16.mxu0 0
      %974 = vmatmul.mubr.bf16.gmra.mxu0 %v936
      %v975 = vpop.f32.mrf.mxu0
      %v976 = vadd.f32 %v682, %v975
      %v977 = vpop.f32.mrf.mxu0
      %v978 = vpop.f32.mrf.mxu0
      %v979 = vadd.f32 %v683, %v978
      %v980 = vpop.f32.mrf.mxu0
      %981 = vdwg.mxu0
      %vm982 = vcmask 130048
      %v983 = vsel %vm982, %v976, -inf
      %984 = vmax.xlane.f32.xlu0 %v983
      %v985 = vpop.xlane.xlu0 %984
      %v986 = vsel %vm982, %v979, -inf
      %987 = vmax.xlane.f32.xlu0 %v986
      %v988 = vpop.xlane.xlu0 %987
      %v989 = vsub.f32 %v976, %v985
      %v990 = vsub.f32 %v979, %v988
      %v991 = vmul.f32 %v989, 1.442695
      %v992 = vpow.pop %v991
      %v993 = vmul.f32 %v990, 1.442695
      %v994 = vpow.pop %v993
      %v995 = vsel %vm982, %v992, 0.0
      %996 = vadd.xlane.f32.xlu0 %v995
      %v997 = vpop.xlane.xlu0 %996
      %v998 = vsel %vm982, %v994, 0.0
      %999 = vadd.xlane.f32.xlu0 %v998
      %v1000 = vpop.xlane.xlu0 %999
      %v1001 = vrcp.pop %v997
      %v1002 = vrcp.pop %v1000
      %v1003 = vmul.f32 %v992, %v1001
      %v1004 = vmul.f32 %v994, %v1002
      %vm1005 = vcmp.gt.f32.partialorder %v985, -5e+08
      %vm1006 = vcmp.gt.f32.partialorder %v988, -5e+08
      %v1007 = vsel %vm1005, 1, 0
      %v1008 = vsel %vm1006, 1, 0
      %vm1009 = vcmp.eq.s32.totalorder %v1007, 1
      %vm1010 = vcmp.eq.s32.totalorder %v1008, 1
      %v1011 = vsel %vm1009, %v1003, 0.0
      %v1012 = vsel %vm1010, %v1004, 0.0
      %v1013 = vpack.c.bf16 %v1012, %v1011
      %v1014 = vmul.bf16 %v933, %v689
      %v1015 = vmul.bf16 %v931, %v695
      %v1017 = vsel %vm711, %v1015, 0
      %1019 = vmatprep.subr.bf16.mxu0 0
      %1020 = vmatpush1.bf16.xpose.msra.mxu0 0
      %1021 = vmatprep.subr.bf16.mxu0 0
      %1022 = vmatpush1.bf16.xpose.msra.mxu0 0
      %1023 = vmatprep.subr.bf16.mxu0 0
      %1024 = vmatpush1.bf16.xpose.msra.mxu0 0
      %1025 = vmatprep.subr.bf16.mxu0 0
      %1026 = vmatpush1.bf16.xpose.msra.mxu0 0
      %1027 = vmatprep.subr.bf16.mxu0 0
      %1028 = vmatpush1.bf16.xpose.msra.mxu0 0
      %1029 = vmatprep.subr.bf16.mxu0 0
      %1030 = vmatpush1.bf16.xpose.msra.mxu0 0
      %1031 = vmatprep.subr.bf16.mxu0 0
      %1032 = vmatpush1.bf16.xpose.msra.mxu0 0
      %1033 = vmatprep.subr.bf16.mxu0 0
      %1034 = vmatpush1.bf16.xpose.msra.mxu0 %v939
      %1035 = vmatprep.subr.bf16.mxu0 0
      %1036 = vmatpush2.bf16.xpose.msra.mxu0 0
      %1037 = vmatprep.subr.bf16.mxu0 0
      %1038 = vmatpush2.bf16.xpose.msra.mxu0 0
      %1039 = vmatprep.subr.bf16.mxu0 0
      %1040 = vmatpush2.bf16.xpose.msra.mxu0 0
      %1041 = vmatprep.subr.bf16.mxu0 0
      %1042 = vmatpush2.bf16.xpose.msra.mxu0 0
      %1043 = vmatprep.subr.bf16.mxu0 0
      %1044 = vmatpush2.bf16.xpose.msra.mxu0 0
      %1045 = vmatprep.subr.bf16.mxu0 0
      %1046 = vmatpush2.bf16.xpose.msra.mxu0 0
      %1047 = vmatprep.subr.bf16.mxu0 0
      %1048 = vmatpush2.bf16.xpose.msra.mxu0 0
      %1049 = vmatprep.subr.bf16.mxu0 0
      %1050 = vmatpush2.bf16.xpose.msra.mxu0 0
      %1051 = vmatprep.mubr.bf16.mxu0 0
      %1052 = vmatmul.mubr.bf16.gmra.mxu0 %v1017
      %v1053 = vpop.f32.mrf.mxu0
      %v1054 = vadd.f32 %v682, %v1053
      %v1055 = vpop.f32.mrf.mxu0
      %v1056 = vpop.f32.mrf.mxu0
      %v1057 = vadd.f32 %v683, %v1056
      %v1058 = vpop.f32.mrf.mxu0
      %1059 = vdwg.mxu0
      %v1060 = vsel %vm982, %v1054, -inf
      %1061 = vmax.xlane.f32.xlu0 %v1060
      %v1062 = vpop.xlane.xlu0 %1061
      %v1063 = vsel %vm982, %v1057, -inf
      %1064 = vmax.xlane.f32.xlu0 %v1063
      %v1065 = vpop.xlane.xlu0 %1064
      %v1066 = vsub.f32 %v1054, %v1062
      %v1067 = vsub.f32 %v1057, %v1065
      %v1068 = vmul.f32 %v1066, 1.442695
      %v1069 = vpow.pop %v1068
      %v1070 = vmul.f32 %v1067, 1.442695
      %v1071 = vpow.pop %v1070
      %v1072 = vsel %vm982, %v1069, 0.0
      %1073 = vadd.xlane.f32.xlu0 %v1072
      %v1074 = vpop.xlane.xlu0 %1073
      %v1075 = vsel %vm982, %v1071, 0.0
      %1076 = vadd.xlane.f32.xlu0 %v1075
      %v1077 = vpop.xlane.xlu0 %1076
      %v1078 = vrcp.pop %v1074
      %v1079 = vrcp.pop %v1077
      %v1080 = vmul.f32 %v1069, %v1078
      %v1081 = vmul.f32 %v1071, %v1079
      %vm1082 = vcmp.gt.f32.partialorder %v1062, -5e+08
      %vm1083 = vcmp.gt.f32.partialorder %v1065, -5e+08
      %v1084 = vsel %vm1082, 1, 0
      %v1085 = vsel %vm1083, 1, 0
      %vm1086 = vcmp.eq.s32.totalorder %v1084, 1
      %vm1087 = vcmp.eq.s32.totalorder %v1085, 1
      %v1088 = vsel %vm1086, %v1080, 0.0
      %v1089 = vsel %vm1087, %v1081, 0.0
      %v1090 = vpack.c.bf16 %v1089, %v1088
      %v1091 = vmul.bf16 %v933, %v695
      %v1093 = vsel %vm982, %v1090, 0
      %1095 = vmatprep.subr.bf16.mxu0 0
      %1096 = vmatpush1.bf16.msra.mxu0 0
      %1097 = vmatprep.subr.bf16.mxu0 0
      %1098 = vmatpush1.bf16.msra.mxu0 0
      %1099 = vmatprep.subr.bf16.mxu0 0
      %1100 = vmatpush1.bf16.msra.mxu0 0
      %1101 = vmatprep.subr.bf16.mxu0 0
      %1102 = vmatpush1.bf16.msra.mxu0 0
      %1103 = vmatprep.subr.bf16.mxu0 0
      %1104 = vmatpush1.bf16.msra.mxu0 0
      %1105 = vmatprep.subr.bf16.mxu0 0
      %1106 = vmatpush1.bf16.msra.mxu0 0
      %1107 = vmatprep.subr.bf16.mxu0 0
      %1108 = vmatpush1.bf16.msra.mxu0 0
      %1109 = vmatprep.subr.bf16.mxu0 0
      %1110 = vmatpush1.bf16.msra.mxu0 %v1091
      %1111 = vmatprep.subr.bf16.mxu0 0
      %1112 = vmatpush2.bf16.msra.mxu0 0
      %1113 = vmatprep.subr.bf16.mxu0 0
      %1114 = vmatpush2.bf16.msra.mxu0 0
      %1115 = vmatprep.subr.bf16.mxu0 0
      %1116 = vmatpush2.bf16.msra.mxu0 0
      %1117 = vmatprep.subr.bf16.mxu0 0
      %1118 = vmatpush2.bf16.msra.mxu0 0
      %1119 = vmatprep.subr.bf16.mxu0 0
      %1120 = vmatpush2.bf16.msra.mxu0 0
      %1121 = vmatprep.subr.bf16.mxu0 0
      %1122 = vmatpush2.bf16.msra.mxu0 0
      %1123 = vmatprep.subr.bf16.mxu0 0
      %1124 = vmatpush2.bf16.msra.mxu0 0
      %1125 = vmatprep.subr.bf16.mxu0 0
      %1126 = vmatpush2.bf16.msra.mxu0 0
      %1127 = vmatprep.mubr.bf16.mxu0 0
      %1128 = vmatmul.mubr.bf16.gmra.mxu0 %v1093
      %v1129 = vpop.f32.mrf.mxu0
      %v1130 = vadd.f32 0.0, %v1129
      %v1131 = vpop.f32.mrf.mxu0
      %v1132 = vpop.f32.mrf.mxu0
      %v1133 = vadd.f32 0.0, %v1132
      %v1134 = vpop.f32.mrf.mxu0
      %1135 = vdwg.mxu0
      %v1137 = vsel %vm982, %v1013, 0
      %1139 = vmatprep.subr.bf16.mxu0 0
      %1140 = vmatpush1.bf16.msra.mxu0 0
      %1141 = vmatprep.subr.bf16.mxu0 0
      %1142 = vmatpush1.bf16.msra.mxu0 0
      %1143 = vmatprep.subr.bf16.mxu0 0
      %1144 = vmatpush1.bf16.msra.mxu0 0
      %1145 = vmatprep.subr.bf16.mxu0 0
      %1146 = vmatpush1.bf16.msra.mxu0 0
      %1147 = vmatprep.subr.bf16.mxu0 0
      %1148 = vmatpush1.bf16.msra.mxu0 0
      %1149 = vmatprep.subr.bf16.mxu0 0
      %1150 = vmatpush1.bf16.msra.mxu0 0
      %1151 = vmatprep.subr.bf16.mxu0 0
      %1152 = vmatpush1.bf16.msra.mxu0 0
      %1153 = vmatprep.subr.bf16.mxu0 0
      %1154 = vmatpush1.bf16.msra.mxu0 %v1014
      %1155 = vmatprep.subr.bf16.mxu0 0
      %1156 = vmatpush2.bf16.msra.mxu0 0
      %1157 = vmatprep.subr.bf16.mxu0 0
      %1158 = vmatpush2.bf16.msra.mxu0 0
      %1159 = vmatprep.subr.bf16.mxu0 0
      %1160 = vmatpush2.bf16.msra.mxu0 0
      %1161 = vmatprep.subr.bf16.mxu0 0
      %1162 = vmatpush2.bf16.msra.mxu0 0
      %1163 = vmatprep.subr.bf16.mxu0 0
      %1164 = vmatpush2.bf16.msra.mxu0 0
      %1165 = vmatprep.subr.bf16.mxu0 0
      %1166 = vmatpush2.bf16.msra.mxu0 0
      %1167 = vmatprep.subr.bf16.mxu0 0
      %1168 = vmatpush2.bf16.msra.mxu0 0
      %1169 = vmatprep.subr.bf16.mxu0 0
      %1170 = vmatpush2.bf16.msra.mxu0 0
      %1171 = vmatprep.mubr.bf16.mxu0 0
      %1172 = vmatmul.mubr.bf16.gmra.mxu0 %v1137
      %v1173 = vpop.f32.mrf.mxu0
      %v1174 = vadd.f32 %v1130, %v1173
      %v1175 = vpop.f32.mrf.mxu0
      %v1176 = vpop.f32.mrf.mxu0
      %v1177 = vadd.f32 %v1133, %v1176
      %v1178 = vpop.f32.mrf.mxu0
      %1179 = vdwg.mxu0
      %v1180 = vmul.bf16 %v931, %v701
      %v1182 = vsel %vm711, %v1180, 0
      %1184 = vmatprep.subr.bf16.mxu0 0
      %1185 = vmatpush1.bf16.xpose.msra.mxu0 0
      %1186 = vmatprep.subr.bf16.mxu0 0
      %1187 = vmatpush1.bf16.xpose.msra.mxu0 0
      %1188 = vmatprep.subr.bf16.mxu0 0
      %1189 = vmatpush1.bf16.xpose.msra.mxu0 0
      %1190 = vmatprep.subr.bf16.mxu0 0
      %1191 = vmatpush1.bf16.xpose.msra.mxu0 0
      %1192 = vmatprep.subr.bf16.mxu0 0
      %1193 = vmatpush1.bf16.xpose.msra.mxu0 0
      %1194 = vmatprep.subr.bf16.mxu0 0
      %1195 = vmatpush1.bf16.xpose.msra.mxu0 0
      %1196 = vmatprep.subr.bf16.mxu0 0
      %1197 = vmatpush1.bf16.xpose.msra.mxu0 0
      %1198 = vmatprep.subr.bf16.mxu0 0
      %1199 = vmatpush1.bf16.xpose.msra.mxu0 %v939
      %1200 = vmatprep.subr.bf16.mxu0 0
      %1201 = vmatpush2.bf16.xpose.msra.mxu0 0
      %1202 = vmatprep.subr.bf16.mxu0 0
      %1203 = vmatpush2.bf16.xpose.msra.mxu0 0
      %1204 = vmatprep.subr.bf16.mxu0 0
      %1205 = vmatpush2.bf16.xpose.msra.mxu0 0
      %1206 = vmatprep.subr.bf16.mxu0 0
      %1207 = vmatpush2.bf16.xpose.msra.mxu0 0
      %1208 = vmatprep.subr.bf16.mxu0 0
      %1209 = vmatpush2.bf16.xpose.msra.mxu0 0
      %1210 = vmatprep.subr.bf16.mxu0 0
      %1211 = vmatpush2.bf16.xpose.msra.mxu0 0
      %1212 = vmatprep.subr.bf16.mxu0 0
      %1213 = vmatpush2.bf16.xpose.msra.mxu0 0
      %1214 = vmatprep.subr.bf16.mxu0 0
      %1215 = vmatpush2.bf16.xpose.msra.mxu0 0
      %1216 = vmatprep.mubr.bf16.mxu0 0
      %1217 = vmatmul.mubr.bf16.gmra.mxu0 %v1182
      %v1218 = vpop.f32.mrf.mxu0
      %v1219 = vadd.f32 %v682, %v1218
      %v1220 = vpop.f32.mrf.mxu0
      %v1221 = vpop.f32.mrf.mxu0
      %v1222 = vadd.f32 %v683, %v1221
      %v1223 = vpop.f32.mrf.mxu0
      %1224 = vdwg.mxu0
      %v1225 = vsel %vm982, %v1219, -inf
      %1226 = vmax.xlane.f32.xlu0 %v1225
      %v1227 = vpop.xlane.xlu0 %1226
      %v1228 = vsel %vm982, %v1222, -inf
      %1229 = vmax.xlane.f32.xlu0 %v1228
      %v1230 = vpop.xlane.xlu0 %1229
      %v1231 = vsub.f32 %v1219, %v1227
      %v1232 = vsub.f32 %v1222, %v1230
      %v1233 = vmul.f32 %v1231, 1.442695
      %v1234 = vpow.pop %v1233
      %v1235 = vmul.f32 %v1232, 1.442695
      %v1236 = vpow.pop %v1235
      %v1237 = vsel %vm982, %v1234, 0.0
      %1238 = vadd.xlane.f32.xlu0 %v1237
      %v1239 = vpop.xlane.xlu0 %1238
      %v1240 = vsel %vm982, %v1236, 0.0
      %1241 = vadd.xlane.f32.xlu0 %v1240
      %v1242 = vpop.xlane.xlu0 %1241
      %v1243 = vrcp.pop %v1239
      %v1244 = vrcp.pop %v1242
      %v1245 = vmul.f32 %v1234, %v1243
      %v1246 = vmul.f32 %v1236, %v1244
      %vm1247 = vcmp.gt.f32.partialorder %v1227, -5e+08
      %vm1248 = vcmp.gt.f32.partialorder %v1230, -5e+08
      %v1249 = vsel %vm1247, 1, 0
      %v1250 = vsel %vm1248, 1, 0
      %vm1251 = vcmp.eq.s32.totalorder %v1249, 1
      %vm1252 = vcmp.eq.s32.totalorder %v1250, 1
      %v1253 = vsel %vm1251, %v1245, 0.0
      %v1254 = vsel %vm1252, %v1246, 0.0
      %v1255 = vpack.c.bf16 %v1254, %v1253
      %v1256 = vmul.bf16 %v933, %v701
      %v1258 = vsel %vm982, %v1255, 0
      %1260 = vmatprep.subr.bf16.mxu0 0
      %1261 = vmatpush1.bf16.msra.mxu0 0
      %1262 = vmatprep.subr.bf16.mxu0 0
      %1263 = vmatpush1.bf16.msra.mxu0 0
      %1264 = vmatprep.subr.bf16.mxu0 0
      %1265 = vmatpush1.bf16.msra.mxu0 0
      %1266 = vmatprep.subr.bf16.mxu0 0
      %1267 = vmatpush1.bf16.msra.mxu0 0
      %1268 = vmatprep.subr.bf16.mxu0 0
      %1269 = vmatpush1.bf16.msra.mxu0 0
      %1270 = vmatprep.subr.bf16.mxu0 0
      %1271 = vmatpush1.bf16.msra.mxu0 0
      %1272 = vmatprep.subr.bf16.mxu0 0
      %1273 = vmatpush1.bf16.msra.mxu0 0
      %1274 = vmatprep.subr.bf16.mxu0 0
      %1275 = vmatpush1.bf16.msra.mxu0 %v1256
      %1276 = vmatprep.subr.bf16.mxu0 0
      %1277 = vmatpush2.bf16.msra.mxu0 0
      %1278 = vmatprep.subr.bf16.mxu0 0
      %1279 = vmatpush2.bf16.msra.mxu0 0
      %1280 = vmatprep.subr.bf16.mxu0 0
      %1281 = vmatpush2.bf16.msra.mxu0 0
      %1282 = vmatprep.subr.bf16.mxu0 0
      %1283 = vmatpush2.bf16.msra.mxu0 0
      %1284 = vmatprep.subr.bf16.mxu0 0
      %1285 = vmatpush2.bf16.msra.mxu0 0
      %1286 = vmatprep.subr.bf16.mxu0 0
      %1287 = vmatpush2.bf16.msra.mxu0 0
      %1288 = vmatprep.subr.bf16.mxu0 0
      %1289 = vmatpush2.bf16.msra.mxu0 0
      %1290 = vmatprep.subr.bf16.mxu0 0
      %1291 = vmatpush2.bf16.msra.mxu0 0
      %1292 = vmatprep.mubr.bf16.mxu0 0
      %1293 = vmatmul.mubr.bf16.gmra.mxu0 %v1258
      %v1294 = vpop.f32.mrf.mxu0
      %v1295 = vadd.f32 0.0, %v1294
      %v1296 = vpop.f32.mrf.mxu0
      %v1297 = vpop.f32.mrf.mxu0
      %v1298 = vadd.f32 0.0, %v1297
      %v1299 = vpop.f32.mrf.mxu0
      %1300 = vdwg.mxu0
      %v1301 = vadd.f32 %v1174, %v1295
      %v1302 = vadd.f32 %v1177, %v1298
      %v1303 = vmul.bf16 %v931, %v707
      %v1305 = vsel %vm711, %v1303, 0
      %1307 = vmatprep.subr.bf16.mxu0 0
      %1308 = vmatpush1.bf16.xpose.msra.mxu0 0
      %1309 = vmatprep.subr.bf16.mxu0 0
      %1310 = vmatpush1.bf16.xpose.msra.mxu0 0
      %1311 = vmatprep.subr.bf16.mxu0 0
      %1312 = vmatpush1.bf16.xpose.msra.mxu0 0
      %1313 = vmatprep.subr.bf16.mxu0 0
      %1314 = vmatpush1.bf16.xpose.msra.mxu0 0
      %1315 = vmatprep.subr.bf16.mxu0 0
      %1316 = vmatpush1.bf16.xpose.msra.mxu0 0
      %1317 = vmatprep.subr.bf16.mxu0 0
      %1318 = vmatpush1.bf16.xpose.msra.mxu0 0
      %1319 = vmatprep.subr.bf16.mxu0 0
      %1320 = vmatpush1.bf16.xpose.msra.mxu0 0
      %1321 = vmatprep.subr.bf16.mxu0 0
      %1322 = vmatpush1.bf16.xpose.msra.mxu0 %v939
      %1323 = vmatprep.subr.bf16.mxu0 0
      %1324 = vmatpush2.bf16.xpose.msra.mxu0 0
      %1325 = vmatprep.subr.bf16.mxu0 0
      %1326 = vmatpush2.bf16.xpose.msra.mxu0 0
      %1327 = vmatprep.subr.bf16.mxu0 0
      %1328 = vmatpush2.bf16.xpose.msra.mxu0 0
      %1329 = vmatprep.subr.bf16.mxu0 0
      %1330 = vmatpush2.bf16.xpose.msra.mxu0 0
      %1331 = vmatprep.subr.bf16.mxu0 0
      %1332 = vmatpush2.bf16.xpose.msra.mxu0 0
      %1333 = vmatprep.subr.bf16.mxu0 0
      %1334 = vmatpush2.bf16.xpose.msra.mxu0 0
      %1335 = vmatprep.subr.bf16.mxu0 0
      %1336 = vmatpush2.bf16.xpose.msra.mxu0 0
      %1337 = vmatprep.subr.bf16.mxu0 0
      %1338 = vmatpush2.bf16.xpose.msra.mxu0 0
      %1339 = vmatprep.mubr.bf16.mxu0 0
      %1340 = vmatmul.mubr.bf16.gmra.mxu0 %v1305
      %v1341 = vpop.f32.mrf.mxu0
      %v1342 = vadd.f32 %v682, %v1341
      %v1343 = vpop.f32.mrf.mxu0
      %v1344 = vpop.f32.mrf.mxu0
      %v1345 = vadd.f32 %v683, %v1344
      %v1346 = vpop.f32.mrf.mxu0
      %1347 = vdwg.mxu0
      %v1348 = vsel %vm982, %v1342, -inf
      %1349 = vmax.xlane.f32.xlu0 %v1348
      %v1350 = vpop.xlane.xlu0 %1349
      %v1351 = vsel %vm982, %v1345, -inf
      %1352 = vmax.xlane.f32.xlu0 %v1351
      %v1353 = vpop.xlane.xlu0 %1352
      %v1354 = vsub.f32 %v1342, %v1350
      %v1355 = vsub.f32 %v1345, %v1353
      %v1356 = vmul.f32 %v1354, 1.442695
      %v1357 = vpow.pop %v1356
      %v1358 = vmul.f32 %v1355, 1.442695
      %v1359 = vpow.pop %v1358
      %v1360 = vsel %vm982, %v1357, 0.0
      %1361 = vadd.xlane.f32.xlu0 %v1360
      %v1362 = vpop.xlane.xlu0 %1361
      %v1363 = vsel %vm982, %v1359, 0.0
      %1364 = vadd.xlane.f32.xlu0 %v1363
      %v1365 = vpop.xlane.xlu0 %1364
      %v1366 = vrcp.pop %v1362
      %v1367 = vrcp.pop %v1365
      %v1368 = vmul.f32 %v1357, %v1366
      %v1369 = vmul.f32 %v1359, %v1367
      %vm1370 = vcmp.gt.f32.partialorder %v1350, -5e+08
      %vm1371 = vcmp.gt.f32.partialorder %v1353, -5e+08
      %v1372 = vsel %vm1370, 1, 0
      %v1373 = vsel %vm1371, 1, 0
      %vm1374 = vcmp.eq.s32.totalorder %v1372, 1
      %vm1375 = vcmp.eq.s32.totalorder %v1373, 1
      %v1376 = vsel %vm1374, %v1368, 0.0
      %v1377 = vsel %vm1375, %v1369, 0.0
      %v1378 = vpack.c.bf16 %v1377, %v1376
      %v1379 = vmul.bf16 %v933, %v707
      %v1381 = vsel %vm982, %v1378, 0
      %1383 = vmatprep.subr.bf16.mxu0 0
      %1384 = vmatpush1.bf16.msra.mxu0 0
      %1385 = vmatprep.subr.bf16.mxu0 0
      %1386 = vmatpush1.bf16.msra.mxu0 0
      %1387 = vmatprep.subr.bf16.mxu0 0
      %1388 = vmatpush1.bf16.msra.mxu0 0
      %1389 = vmatprep.subr.bf16.mxu0 0
      %1390 = vmatpush1.bf16.msra.mxu0 0
      %1391 = vmatprep.subr.bf16.mxu0 0
      %1392 = vmatpush1.bf16.msra.mxu0 0
      %1393 = vmatprep.subr.bf16.mxu0 0
      %1394 = vmatpush1.bf16.msra.mxu0 0
      %1395 = vmatprep.subr.bf16.mxu0 0
      %1396 = vmatpush1.bf16.msra.mxu0 0
      %1397 = vmatprep.subr.bf16.mxu0 0
      %1398 = vmatpush1.bf16.msra.mxu0 %v1379
      %1399 = vmatprep.subr.bf16.mxu0 0
      %1400 = vmatpush2.bf16.msra.mxu0 0
      %1401 = vmatprep.subr.bf16.mxu0 0
      %1402 = vmatpush2.bf16.msra.mxu0 0
      %1403 = vmatprep.subr.bf16.mxu0 0
      %1404 = vmatpush2.bf16.msra.mxu0 0
      %1405 = vmatprep.subr.bf16.mxu0 0
      %1406 = vmatpush2.bf16.msra.mxu0 0
      %1407 = vmatprep.subr.bf16.mxu0 0
      %1408 = vmatpush2.bf16.msra.mxu0 0
      %1409 = vmatprep.subr.bf16.mxu0 0
      %1410 = vmatpush2.bf16.msra.mxu0 0
      %1411 = vmatprep.subr.bf16.mxu0 0
      %1412 = vmatpush2.bf16.msra.mxu0 0
      %1413 = vmatprep.subr.bf16.mxu0 0
      %1414 = vmatpush2.bf16.msra.mxu0 0
      %1415 = vmatprep.mubr.bf16.mxu0 0
      %1416 = vmatmul.mubr.bf16.gmra.mxu0 %v1381
      %v1417 = vpop.f32.mrf.mxu0
      %v1418 = vadd.f32 0.0, %v1417
      %v1419 = vpop.f32.mrf.mxu0
      %v1420 = vpop.f32.mrf.mxu0
      %v1421 = vadd.f32 0.0, %v1420
      %v1422 = vpop.f32.mrf.mxu0
      %1423 = vdwg.mxu0
      %v1424 = vadd.f32 %v1301, %v1418
      %v1425 = vadd.f32 %v1302, %v1421
      %v1426 = vpack.c.bf16 %v1425, %v1424
      %v1427 = vld [vmem:[%s9] sm:$0xf]
      %v1428 = vld [vmem:[%s9 + $0x4] sm:$0xf]
      %v1429 = vld [vmem:[%s9 + $0x8] sm:$0xf]
      %v1430 = vld [vmem:[%s9 + $0xc] sm:$0xf]
      %v1431 = vld [vmem:[%s10] sm:$0x1]
      %v1433 = vlaneseq
      %v1434 = vshrl.u32 %v1433, 7
      %v1435 = vsub.s32 0, %v1434
      %v1436 = vrot.slane %v1431, %v1435
      %v1442 = vunpack.c.l.b16 %v1427
      %v1443 = vunpack.c.l.b16 %v1428
      %v1444 = vunpack.c.l.b16 %v1429
      %v1445 = vunpack.c.l.b16 %v1430
      %v1446 = vpack.c.b16 %v1443, %v1442
      %v1447 = vpack.c.b16 %v1445, %v1444
      %v1451 = vsel %vm711, %v1426, 0
      %1453 = vmatprep.subr.bf16.mxu0 0
      %1454 = vmatpush1.bf16.msra.mxu0 0
      %1455 = vmatprep.subr.bf16.mxu0 0
      %1456 = vmatpush1.bf16.msra.mxu0 0
      %1457 = vmatprep.subr.bf16.mxu0 0
      %1458 = vmatpush1.bf16.msra.mxu0 0
      %1459 = vmatprep.subr.bf16.mxu0 0
      %1460 = vmatpush1.bf16.msra.mxu0 0
      %1461 = vmatprep.subr.bf16.mxu0 0
      %1462 = vmatpush1.bf16.msra.mxu0 0
      %1463 = vmatprep.subr.bf16.mxu0 0
      %1464 = vmatpush1.bf16.msra.mxu0 0
      %1465 = vmatprep.subr.bf16.mxu0 0
      %1466 = vmatpush1.bf16.msra.mxu0 %v1447
      %1467 = vmatprep.subr.bf16.mxu0 0
      %1468 = vmatpush1.bf16.msra.mxu0 %v1446
      %1469 = vmatprep.subr.bf16.mxu0 0
      %1470 = vmatpush2.bf16.msra.mxu0 0
      %1471 = vmatprep.subr.bf16.mxu0 0
      %1472 = vmatpush2.bf16.msra.mxu0 0
      %1473 = vmatprep.subr.bf16.mxu0 0
      %1474 = vmatpush2.bf16.msra.mxu0 0
      %1475 = vmatprep.subr.bf16.mxu0 0
      %1476 = vmatpush2.bf16.msra.mxu0 0
      %1477 = vmatprep.subr.bf16.mxu0 0
      %1478 = vmatpush2.bf16.msra.mxu0 0
      %1479 = vmatprep.subr.bf16.mxu0 0
      %1480 = vmatpush2.bf16.msra.mxu0 0
      %1481 = vmatprep.subr.bf16.mxu0 0
      %1482 = vmatpush2.bf16.msra.mxu0 0
      %1483 = vmatprep.subr.bf16.mxu0 0
      %1484 = vmatpush2.bf16.msra.mxu0 0
      %1485 = vmatprep.mubr.bf16.mxu0 0
      %1486 = vmatmul.mubr.bf16.gmra.mxu0 %v1451
      %v1487 = vpop.f32.mrf.mxu0
      %v1488 = vadd.f32 %v1436, %v1487
      %v1489 = vpop.f32.mrf.mxu0
      %v1490 = vpop.f32.mrf.mxu0
      %v1491 = vadd.f32 %v1436, %v1490
      %v1492 = vpop.f32.mrf.mxu0
      %1493 = vdwg.mxu0
      %v1494 = vadd.f32 %v658, %v1488
      %v1495 = vadd.f32 %v659, %v1491
      %v1496 = vld [vmem:[%s11] sm:$0x1]
      %v1497 = vmul.f32 %v1494, %v1494
      %v1498 = vmul.f32 %v1495, %v1495
      %v1499 = vsel %vm711, %v1497, 0.0
      %1500 = vadd.xlane.f32.xlu0 %v1499
      %v1501 = vpop.xlane.xlu0 %1500
      %v1502 = vsel %vm711, %v1498, 0.0
      %1503 = vadd.xlane.f32.xlu0 %v1502
      %v1504 = vpop.xlane.xlu0 %1503
      %v1505 = vmul.f32 %v1501, %v718
      %v1506 = vmul.f32 %v1504, %v718
      %v1507 = vadd.f32 %v1505, 1e-06
      %v1508 = vadd.f32 %v1506, 1e-06
      %v1509 = vrsqrt.pop %v1507
      %v1510 = vrsqrt.pop %v1508
      %v1511 = vmul.f32 %v1494, %v1509
      %v1512 = vmul.f32 %v1495, %v1510
      %v1514 = vlaneseq
      %v1515 = vshrl.u32 %v1514, 7
      %v1516 = vsub.s32 0, %v1515
      %v1517 = vrot.slane %v1496, %v1516
      %v1519 = vmul.f32 %v1511, %v1517
      %v1520 = vmul.f32 %v1512, %v1517
      %v1521 = vpack.c.bf16 %v1520, %v1519
      %v1522 = vld [vmem:[%s12] sm:$0xf]
      %v1523 = vld [vmem:[%s12 + $0x4] sm:$0xf]
      %v1524 = vld [vmem:[%s12 + $0x8] sm:$0xf]
      %v1525 = vld [vmem:[%s12 + $0xc] sm:$0xf]
      %v1526 = vld [vmem:[%s13] sm:$0x1]
      %v1528 = vlaneseq
      %v1529 = vshrl.u32 %v1528, 7
      %v1530 = vsub.s32 0, %v1529
      %v1531 = vrot.slane %v1526, %v1530
      %v1537 = vunpack.c.l.b16 %v1522
      %v1538 = vunpack.c.l.b16 %v1523
      %v1539 = vunpack.c.l.b16 %v1524
      %v1540 = vunpack.c.l.b16 %v1525
      %v1541 = vpack.c.b16 %v1538, %v1537
      %v1542 = vpack.c.b16 %v1540, %v1539
      %v1546 = vsel %vm711, %v1521, 0
      %1548 = vmatprep.subr.bf16.mxu0 0
      %1549 = vmatpush1.bf16.msra.mxu0 0
      %1550 = vmatprep.subr.bf16.mxu0 0
      %1551 = vmatpush1.bf16.msra.mxu0 0
      %1552 = vmatprep.subr.bf16.mxu0 0
      %1553 = vmatpush1.bf16.msra.mxu0 0
      %1554 = vmatprep.subr.bf16.mxu0 0
      %1555 = vmatpush1.bf16.msra.mxu0 0
      %1556 = vmatprep.subr.bf16.mxu0 0
      %1557 = vmatpush1.bf16.msra.mxu0 0
      %1558 = vmatprep.subr.bf16.mxu0 0
      %1559 = vmatpush1.bf16.msra.mxu0 0
      %1560 = vmatprep.subr.bf16.mxu0 0
      %1561 = vmatpush1.bf16.msra.mxu0 %v1542
      %1562 = vmatprep.subr.bf16.mxu0 0
      %1563 = vmatpush1.bf16.msra.mxu0 %v1541
      %1564 = vmatprep.subr.bf16.mxu0 0
      %1565 = vmatpush2.bf16.msra.mxu0 0
      %1566 = vmatprep.subr.bf16.mxu0 0
      %1567 = vmatpush2.bf16.msra.mxu0 0
      %1568 = vmatprep.subr.bf16.mxu0 0
      %1569 = vmatpush2.bf16.msra.mxu0 0
      %1570 = vmatprep.subr.bf16.mxu0 0
      %1571 = vmatpush2.bf16.msra.mxu0 0
      %1572 = vmatprep.subr.bf16.mxu0 0
      %1573 = vmatpush2.bf16.msra.mxu0 0
      %1574 = vmatprep.subr.bf16.mxu0 0
      %1575 = vmatpush2.bf16.msra.mxu0 0
      %1576 = vmatprep.subr.bf16.mxu0 0
      %1577 = vmatpush2.bf16.msra.mxu0 0
      %1578 = vmatprep.subr.bf16.mxu0 0
      %1579 = vmatpush2.bf16.msra.mxu0 0
      %1580 = vmatprep.mubr.bf16.mxu0 0
      %1581 = vmatmul.mubr.bf16.gmra.mxu0 %v1546
      %v1582 = vpop.f32.mrf.mxu0
      %v1583 = vadd.f32 %v1531, %v1582
      %v1584 = vpop.f32.mrf.mxu0
      %v1585 = vpop.f32.mrf.mxu0
      %v1586 = vadd.f32 %v1531, %v1585
      %v1587 = vpop.f32.mrf.mxu0
      %1588 = vdwg.mxu0
      %v1589 = vmul.f32 %v1583, 0.5
      %v1590 = vmul.f32 %v1586, 0.5
      %v1591 = vmul.f32 %v1583, 0.044715
      %v1592 = vmul.f32 %v1586, 0.044715
      %v1593 = vmul.f32 %v1591, %v1583
      %v1594 = vmul.f32 %v1592, %v1586
      %v1595 = vmul.f32 %v1593, %v1583
      %v1596 = vmul.f32 %v1594, %v1586
      %v1597 = vadd.f32 %v1583, %v1595
      %v1598 = vadd.f32 %v1586, %v1596
      %v1599 = vmul.f32 %v1597, 0.7978846
      %v1600 = vmul.f32 %v1598, 0.7978846
      %v1601 = vtanh.pop %v1599
      %v1602 = vtanh.pop %v1600
      %v1603 = vadd.f32 %v1601, 1.0
      %v1604 = vadd.f32 %v1602, 1.0
      %v1605 = vmul.f32 %v1589, %v1603
      %v1606 = vmul.f32 %v1590, %v1604
      %v1607 = vpack.c.bf16 %v1606, %v1605
      %v1608 = vld [vmem:[%s14] sm:$0xf]
      %v1609 = vld [vmem:[%s14 + $0x4] sm:$0xf]
      %v1610 = vld [vmem:[%s14 + $0x8] sm:$0xf]
      %v1611 = vld [vmem:[%s14 + $0xc] sm:$0xf]
      %v1612 = vld [vmem:[%s14 + $0x10] sm:$0xf]
      %v1613 = vld [vmem:[%s14 + $0x14] sm:$0xf]
      %v1614 = vld [vmem:[%s14 + $0x18] sm:$0xf]
      %v1615 = vld [vmem:[%s14 + $0x1c] sm:$0xf]
      %v1616 = vld [vmem:[%s14 + $0x20] sm:$0xf]
      %v1617 = vld [vmem:[%s14 + $0x24] sm:$0xf]
      %v1618 = vld [vmem:[%s14 + $0x28] sm:$0xf]
      %v1619 = vld [vmem:[%s14 + $0x2c] sm:$0xf]
      %v1620 = vld [vmem:[%s14 + $0x30] sm:$0xf]
      %v1621 = vld [vmem:[%s14 + $0x34] sm:$0xf]
      %v1622 = vld [vmem:[%s14 + $0x38] sm:$0xf]
      %v1623 = vld [vmem:[%s14 + $0x3c] sm:$0xf]
      %v1624 = vld [vmem:[%s15] sm:$0x1]
      %v1626 = vlaneseq
      %v1627 = vshrl.u32 %v1626, 7
      %v1628 = vsub.s32 0, %v1627
      %v1629 = vrot.slane %v1624, %v1628
      %v1647 = vunpack.c.l.b16 %v1608
      %v1648 = vunpack.c.l.b16 %v1609
      %v1649 = vunpack.c.l.b16 %v1610
      %v1650 = vunpack.c.l.b16 %v1611
      %v1651 = vunpack.c.l.b16 %v1612
      %v1652 = vunpack.c.l.b16 %v1613
      %v1653 = vunpack.c.l.b16 %v1614
      %v1654 = vunpack.c.l.b16 %v1615
      %v1655 = vunpack.c.l.b16 %v1616
      %v1656 = vunpack.c.l.b16 %v1617
      %v1657 = vunpack.c.l.b16 %v1618
      %v1658 = vunpack.c.l.b16 %v1619
      %v1659 = vunpack.c.l.b16 %v1620
      %v1660 = vunpack.c.l.b16 %v1621
      %v1661 = vunpack.c.l.b16 %v1622
      %v1662 = vunpack.c.l.b16 %v1623
      %v1663 = vpack.c.b16 %v1648, %v1647
      %v1664 = vpack.c.b16 %v1650, %v1649
      %v1665 = vpack.c.b16 %v1652, %v1651
      %v1666 = vpack.c.b16 %v1654, %v1653
      %v1667 = vpack.c.b16 %v1656, %v1655
      %v1668 = vpack.c.b16 %v1658, %v1657
      %v1669 = vpack.c.b16 %v1660, %v1659
      %v1670 = vpack.c.b16 %v1662, %v1661
      %1679 = vmatprep.subr.bf16.mxu0 0
      %1680 = vmatpush1.bf16.msra.mxu0 %v1670
      %1681 = vmatprep.subr.bf16.mxu0 0
      %1682 = vmatpush1.bf16.msra.mxu0 %v1669
      %1683 = vmatprep.subr.bf16.mxu0 0
      %1684 = vmatpush1.bf16.msra.mxu0 %v1668
      %1685 = vmatprep.subr.bf16.mxu0 0
      %1686 = vmatpush1.bf16.msra.mxu0 %v1667
      %1687 = vmatprep.subr.bf16.mxu0 0
      %1688 = vmatpush1.bf16.msra.mxu0 %v1666
      %1689 = vmatprep.subr.bf16.mxu0 0
      %1690 = vmatpush1.bf16.msra.mxu0 %v1665
      %1691 = vmatprep.subr.bf16.mxu0 0
      %1692 = vmatpush1.bf16.msra.mxu0 %v1664
      %1693 = vmatprep.subr.bf16.mxu0 0
      %1694 = vmatpush1.bf16.msra.mxu0 %v1663
      %1695 = vmatprep.subr.bf16.mxu0 0
      %1696 = vmatpush2.bf16.msra.mxu0 0
      %1697 = vmatprep.subr.bf16.mxu0 0
      %1698 = vmatpush2.bf16.msra.mxu0 0
      %1699 = vmatprep.subr.bf16.mxu0 0
      %1700 = vmatpush2.bf16.msra.mxu0 0
      %1701 = vmatprep.subr.bf16.mxu0 0
      %1702 = vmatpush2.bf16.msra.mxu0 0
      %1703 = vmatprep.subr.bf16.mxu0 0
      %1704 = vmatpush2.bf16.msra.mxu0 0
      %1705 = vmatprep.subr.bf16.mxu0 0
      %1706 = vmatpush2.bf16.msra.mxu0 0
      %1707 = vmatprep.subr.bf16.mxu0 0
      %1708 = vmatpush2.bf16.msra.mxu0 0
      %1709 = vmatprep.subr.bf16.mxu0 0
      %1710 = vmatpush2.bf16.msra.mxu0 0
      %1711 = vmatprep.mubr.bf16.mxu0 0
      %1712 = vmatmul.mubr.bf16.gmra.mxu0 %v1607
      %v1713 = vpop.f32.mrf.mxu0
      %v1714 = vadd.f32 %v1629, %v1713
      %v1715 = vpop.f32.mrf.mxu0
      %v1716 = vpop.f32.mrf.mxu0
      %v1717 = vadd.f32 %v1629, %v1716
      %v1718 = vpop.f32.mrf.mxu0
      %1719 = vdwg.mxu0
      %v1720 = vadd.f32 %v1494, %v1714
      %v1721 = vadd.f32 %v1495, %v1717
      %s1722 = scalar_lea.vmem %s2, 1
      %v1723 = vld [vmem:[%s1722] sm:$0x1]
      %v1724 = vmul.f32 %v1720, %v1720
      %v1725 = vmul.f32 %v1721, %v1721
      %v1726 = vsel %vm711, %v1724, 0.0
      %1727 = vadd.xlane.f32.xlu0 %v1726
      %v1728 = vpop.xlane.xlu0 %1727
      %v1729 = vsel %vm711, %v1725, 0.0
      %1730 = vadd.xlane.f32.xlu0 %v1729
      %v1731 = vpop.xlane.xlu0 %1730
      %v1732 = vmul.f32 %v1728, %v718
      %v1733 = vmul.f32 %v1731, %v718
      %v1734 = vadd.f32 %v1732, 1e-06
      %v1735 = vadd.f32 %v1733, 1e-06
      %v1736 = vrsqrt.pop %v1734
      %v1737 = vrsqrt.pop %v1735
      %v1738 = vmul.f32 %v1720, %v1736
      %v1739 = vmul.f32 %v1721, %v1737
      %v1741 = vlaneseq
      %v1742 = vshrl.u32 %v1741, 7
      %v1743 = vsub.s32 0, %v1742
      %v1744 = vrot.slane %v1723, %v1743
      %v1746 = vmul.f32 %v1738, %v1744
      %v1747 = vmul.f32 %v1739, %v1744
      %v1748 = vpack.c.bf16 %v1747, %v1746
      %s1749 = scalar_lea.vmem %s3, 16
      %v1750 = vld [vmem:[%s1749] sm:$0xf]
      %v1751 = vld [vmem:[%s1749 + $0x4] sm:$0xf]
      %v1752 = vld [vmem:[%s1749 + $0x8] sm:$0xf]
      %v1753 = vld [vmem:[%s1749 + $0xc] sm:$0xf]
      %s1754 = scalar_lea.vmem %s4, 1
      %v1755 = vld [vmem:[%s1754] sm:$0x1]
      %v1757 = vlaneseq
      %v1758 = vshrl.u32 %v1757, 7
      %v1759 = vsub.s32 0, %v1758
      %v1760 = vrot.slane %v1755, %v1759
      %v1766 = vunpack.c.l.b16 %v1750
      %v1767 = vunpack.c.l.b16 %v1751
      %v1768 = vunpack.c.l.b16 %v1752
      %v1769 = vunpack.c.l.b16 %v1753
      %v1770 = vpack.c.b16 %v1767, %v1766
      %v1771 = vpack.c.b16 %v1769, %v1768
      %v1775 = vsel %vm711, %v1748, 0
      %1777 = vmatprep.subr.bf16.mxu0 0
      %1778 = vmatpush1.bf16.msra.mxu0 0
      %1779 = vmatprep.subr.bf16.mxu0 0
      %1780 = vmatpush1.bf16.msra.mxu0 0
      %1781 = vmatprep.subr.bf16.mxu0 0
      %1782 = vmatpush1.bf16.msra.mxu0 0
      %1783 = vmatprep.subr.bf16.mxu0 0
      %1784 = vmatpush1.bf16.msra.mxu0 0
      %1785 = vmatprep.subr.bf16.mxu0 0
      %1786 = vmatpush1.bf16.msra.mxu0 0
      %1787 = vmatprep.subr.bf16.mxu0 0
      %1788 = vmatpush1.bf16.msra.mxu0 0
      %1789 = vmatprep.subr.bf16.mxu0 0
      %1790 = vmatpush1.bf16.msra.mxu0 %v1771
      %1791 = vmatprep.subr.bf16.mxu0 0
      %1792 = vmatpush1.bf16.msra.mxu0 %v1770
      %1793 = vmatprep.subr.bf16.mxu0 0
      %1794 = vmatpush2.bf16.msra.mxu0 0
      %1795 = vmatprep.subr.bf16.mxu0 0
      %1796 = vmatpush2.bf16.msra.mxu0 0
      %1797 = vmatprep.subr.bf16.mxu0 0
      %1798 = vmatpush2.bf16.msra.mxu0 0
      %1799 = vmatprep.subr.bf16.mxu0 0
      %1800 = vmatpush2.bf16.msra.mxu0 0
      %1801 = vmatprep.subr.bf16.mxu0 0
      %1802 = vmatpush2.bf16.msra.mxu0 0
      %1803 = vmatprep.subr.bf16.mxu0 0
      %1804 = vmatpush2.bf16.msra.mxu0 0
      %1805 = vmatprep.subr.bf16.mxu0 0
      %1806 = vmatpush2.bf16.msra.mxu0 0
      %1807 = vmatprep.subr.bf16.mxu0 0
      %1808 = vmatpush2.bf16.msra.mxu0 0
      %1809 = vmatprep.mubr.bf16.mxu0 0
      %1810 = vmatmul.mubr.bf16.gmra.mxu0 %v1775
      %v1811 = vpop.f32.mrf.mxu0
      %v1812 = vadd.f32 %v1760, %v1811
      %v1813 = vpop.f32.mrf.mxu0
      %v1814 = vpop.f32.mrf.mxu0
      %v1815 = vadd.f32 %v1760, %v1814
      %v1816 = vpop.f32.mrf.mxu0
      %1817 = vdwg.mxu0
      %s1818 = scalar_lea.vmem %s5, 16
      %v1819 = vld [vmem:[%s1818] sm:$0xf]
      %v1820 = vld [vmem:[%s1818 + $0x4] sm:$0xf]
      %v1821 = vld [vmem:[%s1818 + $0x8] sm:$0xf]
      %v1822 = vld [vmem:[%s1818 + $0xc] sm:$0xf]
      %s1823 = scalar_lea.vmem %s6, 1
      %v1824 = vld [vmem:[%s1823] sm:$0x1]
      %v1826 = vlaneseq
      %v1827 = vshrl.u32 %v1826, 7
      %v1828 = vsub.s32 0, %v1827
      %v1829 = vrot.slane %v1824, %v1828
      %v1835 = vunpack.c.l.b16 %v1819
      %v1836 = vunpack.c.l.b16 %v1820
      %v1837 = vunpack.c.l.b16 %v1821
      %v1838 = vunpack.c.l.b16 %v1822
      %v1839 = vpack.c.b16 %v1836, %v1835
      %v1840 = vpack.c.b16 %v1838, %v1837
      %1843 = vmatprep.subr.bf16.mxu0 0
      %1844 = vmatpush1.bf16.msra.mxu0 0
      %1845 = vmatprep.subr.bf16.mxu0 0
      %1846 = vmatpush1.bf16.msra.mxu0 0
      %1847 = vmatprep.subr.bf16.mxu0 0
      %1848 = vmatpush1.bf16.msra.mxu0 0
      %1849 = vmatprep.subr.bf16.mxu0 0
      %1850 = vmatpush1.bf16.msra.mxu0 0
      %1851 = vmatprep.subr.bf16.mxu0 0
      %1852 = vmatpush1.bf16.msra.mxu0 0
      %1853 = vmatprep.subr.bf16.mxu0 0
      %1854 = vmatpush1.bf16.msra.mxu0 0
      %1855 = vmatprep.subr.bf16.mxu0 0
      %1856 = vmatpush1.bf16.msra.mxu0 %v1840
      %1857 = vmatprep.subr.bf16.mxu0 0
      %1858 = vmatpush1.bf16.msra.mxu0 %v1839
      %1859 = vmatprep.subr.bf16.mxu0 0
      %1860 = vmatpush2.bf16.msra.mxu0 0
      %1861 = vmatprep.subr.bf16.mxu0 0
      %1862 = vmatpush2.bf16.msra.mxu0 0
      %1863 = vmatprep.subr.bf16.mxu0 0
      %1864 = vmatpush2.bf16.msra.mxu0 0
      %1865 = vmatprep.subr.bf16.mxu0 0
      %1866 = vmatpush2.bf16.msra.mxu0 0
      %1867 = vmatprep.subr.bf16.mxu0 0
      %1868 = vmatpush2.bf16.msra.mxu0 0
      %1869 = vmatprep.subr.bf16.mxu0 0
      %1870 = vmatpush2.bf16.msra.mxu0 0
      %1871 = vmatprep.subr.bf16.mxu0 0
      %1872 = vmatpush2.bf16.msra.mxu0 0
      %1873 = vmatprep.subr.bf16.mxu0 0
      %1874 = vmatpush2.bf16.msra.mxu0 0
      %1875 = vmatprep.mubr.bf16.mxu0 0
      %1876 = vmatmul.mubr.bf16.gmra.mxu0 %v1775
      %v1877 = vpop.f32.mrf.mxu0
      %v1878 = vadd.f32 %v1829, %v1877
      %v1879 = vpop.f32.mrf.mxu0
      %v1880 = vpop.f32.mrf.mxu0
      %v1881 = vadd.f32 %v1829, %v1880
      %v1882 = vpop.f32.mrf.mxu0
      %1883 = vdwg.mxu0
      %s1884 = scalar_lea.vmem %s7, 16
      %v1885 = vld [vmem:[%s1884] sm:$0xf]
      %v1886 = vld [vmem:[%s1884 + $0x4] sm:$0xf]
      %v1887 = vld [vmem:[%s1884 + $0x8] sm:$0xf]
      %v1888 = vld [vmem:[%s1884 + $0xc] sm:$0xf]
      %s1889 = scalar_lea.vmem %s8, 1
      %v1890 = vld [vmem:[%s1889] sm:$0x1]
      %v1892 = vlaneseq
      %v1893 = vshrl.u32 %v1892, 7
      %v1894 = vsub.s32 0, %v1893
      %v1895 = vrot.slane %v1890, %v1894
      %v1901 = vunpack.c.l.b16 %v1885
      %v1902 = vunpack.c.l.b16 %v1886
      %v1903 = vunpack.c.l.b16 %v1887
      %v1904 = vunpack.c.l.b16 %v1888
      %v1905 = vpack.c.b16 %v1902, %v1901
      %v1906 = vpack.c.b16 %v1904, %v1903
      %1909 = vmatprep.subr.bf16.mxu0 0
      %1910 = vmatpush1.bf16.msra.mxu0 0
      %1911 = vmatprep.subr.bf16.mxu0 0
      %1912 = vmatpush1.bf16.msra.mxu0 0
      %1913 = vmatprep.subr.bf16.mxu0 0
      %1914 = vmatpush1.bf16.msra.mxu0 0
      %1915 = vmatprep.subr.bf16.mxu0 0
      %1916 = vmatpush1.bf16.msra.mxu0 0
      %1917 = vmatprep.subr.bf16.mxu0 0
      %1918 = vmatpush1.bf16.msra.mxu0 0
      %1919 = vmatprep.subr.bf16.mxu0 0
      %1920 = vmatpush1.bf16.msra.mxu0 0
      %1921 = vmatprep.subr.bf16.mxu0 0
      %1922 = vmatpush1.bf16.msra.mxu0 %v1906
      %1923 = vmatprep.subr.bf16.mxu0 0
      %1924 = vmatpush1.bf16.msra.mxu0 %v1905
      %1925 = vmatprep.subr.bf16.mxu0 0
      %1926 = vmatpush2.bf16.msra.mxu0 0
      %1927 = vmatprep.subr.bf16.mxu0 0
      %1928 = vmatpush2.bf16.msra.mxu0 0
      %1929 = vmatprep.subr.bf16.mxu0 0
      %1930 = vmatpush2.bf16.msra.mxu0 0
      %1931 = vmatprep.subr.bf16.mxu0 0
      %1932 = vmatpush2.bf16.msra.mxu0 0
      %1933 = vmatprep.subr.bf16.mxu0 0
      %1934 = vmatpush2.bf16.msra.mxu0 0
      %1935 = vmatprep.subr.bf16.mxu0 0
      %1936 = vmatpush2.bf16.msra.mxu0 0
      %1937 = vmatprep.subr.bf16.mxu0 0
      %1938 = vmatpush2.bf16.msra.mxu0 0
      %1939 = vmatprep.subr.bf16.mxu0 0
      %1940 = vmatpush2.bf16.msra.mxu0 0
      %1941 = vmatprep.mubr.bf16.mxu0 0
      %1942 = vmatmul.mubr.bf16.gmra.mxu0 %v1775
      %v1943 = vpop.f32.mrf.mxu0
      %v1944 = vadd.f32 %v1895, %v1943
      %v1945 = vpop.f32.mrf.mxu0
      %v1946 = vpop.f32.mrf.mxu0
      %v1947 = vadd.f32 %v1895, %v1946
      %v1948 = vpop.f32.mrf.mxu0
      %1949 = vdwg.mxu0
      %v1950 = vpack.c.bf16 %v1815, %v1812
      %v1951 = vpack.c.bf16 %v1881, %v1878
      %v1952 = vpack.c.bf16 %v1947, %v1944
      %v1953 = vmul.bf16 %v1950, %v689
      %v1955 = vsel %vm711, %v1953, 0
      %v1958 = vsel %vm711, %v1951, 0
      %1960 = vmatprep.subr.bf16.mxu0 0
      %1961 = vmatpush1.bf16.xpose.msra.mxu0 0
      %1962 = vmatprep.subr.bf16.mxu0 0
      %1963 = vmatpush1.bf16.xpose.msra.mxu0 0
      %1964 = vmatprep.subr.bf16.mxu0 0
      %1965 = vmatpush1.bf16.xpose.msra.mxu0 0
      %1966 = vmatprep.subr.bf16.mxu0 0
      %1967 = vmatpush1.bf16.xpose.msra.mxu0 0
      %1968 = vmatprep.subr.bf16.mxu0 0
      %1969 = vmatpush1.bf16.xpose.msra.mxu0 0
      %1970 = vmatprep.subr.bf16.mxu0 0
      %1971 = vmatpush1.bf16.xpose.msra.mxu0 0
      %1972 = vmatprep.subr.bf16.mxu0 0
      %1973 = vmatpush1.bf16.xpose.msra.mxu0 0
      %1974 = vmatprep.subr.bf16.mxu0 0
      %1975 = vmatpush1.bf16.xpose.msra.mxu0 %v1958
      %1976 = vmatprep.subr.bf16.mxu0 0
      %1977 = vmatpush2.bf16.xpose.msra.mxu0 0
      %1978 = vmatprep.subr.bf16.mxu0 0
      %1979 = vmatpush2.bf16.xpose.msra.mxu0 0
      %1980 = vmatprep.subr.bf16.mxu0 0
      %1981 = vmatpush2.bf16.xpose.msra.mxu0 0
      %1982 = vmatprep.subr.bf16.mxu0 0
      %1983 = vmatpush2.bf16.xpose.msra.mxu0 0
      %1984 = vmatprep.subr.bf16.mxu0 0
      %1985 = vmatpush2.bf16.xpose.msra.mxu0 0
      %1986 = vmatprep.subr.bf16.mxu0 0
      %1987 = vmatpush2.bf16.xpose.msra.mxu0 0
      %1988 = vmatprep.subr.bf16.mxu0 0
      %1989 = vmatpush2.bf16.xpose.msra.mxu0 0
      %1990 = vmatprep.subr.bf16.mxu0 0
      %1991 = vmatpush2.bf16.xpose.msra.mxu0 0
      %1992 = vmatprep.mubr.bf16.mxu0 0
      %1993 = vmatmul.mubr.bf16.gmra.mxu0 %v1955
      %v1994 = vpop.f32.mrf.mxu0
      %v1995 = vadd.f32 %v682, %v1994
      %v1996 = vpop.f32.mrf.mxu0
      %v1997 = vpop.f32.mrf.mxu0
      %v1998 = vadd.f32 %v683, %v1997
      %v1999 = vpop.f32.mrf.mxu0
      %2000 = vdwg.mxu0
      %v2001 = vsel %vm982, %v1995, -inf
      %2002 = vmax.xlane.f32.xlu0 %v2001
      %v2003 = vpop.xlane.xlu0 %2002
      %v2004 = vsel %vm982, %v1998, -inf
      %2005 = vmax.xlane.f32.xlu0 %v2004
      %v2006 = vpop.xlane.xlu0 %2005
      %v2007 = vsub.f32 %v1995, %v2003
      %v2008 = vsub.f32 %v1998, %v2006
      %v2009 = vmul.f32 %v2007, 1.442695
      %v2010 = vpow.pop %v2009
      %v2011 = vmul.f32 %v2008, 1.442695
      %v2012 = vpow.pop %v2011
      %v2013 = vsel %vm982, %v2010, 0.0
      %2014 = vadd.xlane.f32.xlu0 %v2013
      %v2015 = vpop.xlane.xlu0 %2014
      %v2016 = vsel %vm982, %v2012, 0.0
      %2017 = vadd.xlane.f32.xlu0 %v2016
      %v2018 = vpop.xlane.xlu0 %2017
      %v2019 = vrcp.pop %v2015
      %v2020 = vrcp.pop %v2018
      %v2021 = vmul.f32 %v2010, %v2019
      %v2022 = vmul.f32 %v2012, %v2020
      %vm2023 = vcmp.gt.f32.partialorder %v2003, -5e+08
      %vm2024 = vcmp.gt.f32.partialorder %v2006, -5e+08
      %v2025 = vsel %vm2023, 1, 0
      %v2026 = vsel %vm2024, 1, 0
      %vm2027 = vcmp.eq.s32.totalorder %v2025, 1
      %vm2028 = vcmp.eq.s32.totalorder %v2026, 1
      %v2029 = vsel %vm2027, %v2021, 0.0
      %v2030 = vsel %vm2028, %v2022, 0.0
      %v2031 = vpack.c.bf16 %v2030, %v2029
      %v2032 = vmul.bf16 %v1952, %v689
      %v2033 = vmul.bf16 %v1950, %v695
      %v2035 = vsel %vm711, %v2033, 0
      %2037 = vmatprep.subr.bf16.mxu0 0
      %2038 = vmatpush1.bf16.xpose.msra.mxu0 0
      %2039 = vmatprep.subr.bf16.mxu0 0
      %2040 = vmatpush1.bf16.xpose.msra.mxu0 0
      %2041 = vmatprep.subr.bf16.mxu0 0
      %2042 = vmatpush1.bf16.xpose.msra.mxu0 0
      %2043 = vmatprep.subr.bf16.mxu0 0
      %2044 = vmatpush1.bf16.xpose.msra.mxu0 0
      %2045 = vmatprep.subr.bf16.mxu0 0
      %2046 = vmatpush1.bf16.xpose.msra.mxu0 0
      %2047 = vmatprep.subr.bf16.mxu0 0
      %2048 = vmatpush1.bf16.xpose.msra.mxu0 0
      %2049 = vmatprep.subr.bf16.mxu0 0
      %2050 = vmatpush1.bf16.xpose.msra.mxu0 0
      %2051 = vmatprep.subr.bf16.mxu0 0
      %2052 = vmatpush1.bf16.xpose.msra.mxu0 %v1958
      %2053 = vmatprep.subr.bf16.mxu0 0
      %2054 = vmatpush2.bf16.xpose.msra.mxu0 0
      %2055 = vmatprep.subr.bf16.mxu0 0
      %2056 = vmatpush2.bf16.xpose.msra.mxu0 0
      %2057 = vmatprep.subr.bf16.mxu0 0
      %2058 = vmatpush2.bf16.xpose.msra.mxu0 0
      %2059 = vmatprep.subr.bf16.mxu0 0
      %2060 = vmatpush2.bf16.xpose.msra.mxu0 0
      %2061 = vmatprep.subr.bf16.mxu0 0
      %2062 = vmatpush2.bf16.xpose.msra.mxu0 0
      %2063 = vmatprep.subr.bf16.mxu0 0
      %2064 = vmatpush2.bf16.xpose.msra.mxu0 0
      %2065 = vmatprep.subr.bf16.mxu0 0
      %2066 = vmatpush2.bf16.xpose.msra.mxu0 0
      %2067 = vmatprep.subr.bf16.mxu0 0
      %2068 = vmatpush2.bf16.xpose.msra.mxu0 0
      %2069 = vmatprep.mubr.bf16.mxu0 0
      %2070 = vmatmul.mubr.bf16.gmra.mxu0 %v2035
      %v2071 = vpop.f32.mrf.mxu0
      %v2072 = vadd.f32 %v682, %v2071
      %v2073 = vpop.f32.mrf.mxu0
      %v2074 = vpop.f32.mrf.mxu0
      %v2075 = vadd.f32 %v683, %v2074
      %v2076 = vpop.f32.mrf.mxu0
      %2077 = vdwg.mxu0
      %v2078 = vsel %vm982, %v2072, -inf
      %2079 = vmax.xlane.f32.xlu0 %v2078
      %v2080 = vpop.xlane.xlu0 %2079
      %v2081 = vsel %vm982, %v2075, -inf
      %2082 = vmax.xlane.f32.xlu0 %v2081
      %v2083 = vpop.xlane.xlu0 %2082
      %v2084 = vsub.f32 %v2072, %v2080
      %v2085 = vsub.f32 %v2075, %v2083
      %v2086 = vmul.f32 %v2084, 1.442695
      %v2087 = vpow.pop %v2086
      %v2088 = vmul.f32 %v2085, 1.442695
      %v2089 = vpow.pop %v2088
      %v2090 = vsel %vm982, %v2087, 0.0
      %2091 = vadd.xlane.f32.xlu0 %v2090
      %v2092 = vpop.xlane.xlu0 %2091
      %v2093 = vsel %vm982, %v2089, 0.0
      %2094 = vadd.xlane.f32.xlu0 %v2093
      %v2095 = vpop.xlane.xlu0 %2094
      %v2096 = vrcp.pop %v2092
      %v2097 = vrcp.pop %v2095
      %v2098 = vmul.f32 %v2087, %v2096
      %v2099 = vmul.f32 %v2089, %v2097
      %vm2100 = vcmp.gt.f32.partialorder %v2080, -5e+08
      %vm2101 = vcmp.gt.f32.partialorder %v2083, -5e+08
      %v2102 = vsel %vm2100, 1, 0
      %v2103 = vsel %vm2101, 1, 0
      %vm2104 = vcmp.eq.s32.totalorder %v2102, 1
      %vm2105 = vcmp.eq.s32.totalorder %v2103, 1
      %v2106 = vsel %vm2104, %v2098, 0.0
      %v2107 = vsel %vm2105, %v2099, 0.0
      %v2108 = vpack.c.bf16 %v2107, %v2106
      %v2109 = vmul.bf16 %v1952, %v695
      %v2111 = vsel %vm982, %v2108, 0
      %2113 = vmatprep.subr.bf16.mxu0 0
      %2114 = vmatpush1.bf16.msra.mxu0 0
      %2115 = vmatprep.subr.bf16.mxu0 0
      %2116 = vmatpush1.bf16.msra.mxu0 0
      %2117 = vmatprep.subr.bf16.mxu0 0
      %2118 = vmatpush1.bf16.msra.mxu0 0
      %2119 = vmatprep.subr.bf16.mxu0 0
      %2120 = vmatpush1.bf16.msra.mxu0 0
      %2121 = vmatprep.subr.bf16.mxu0 0
      %2122 = vmatpush1.bf16.msra.mxu0 0
      %2123 = vmatprep.subr.bf16.mxu0 0
      %2124 = vmatpush1.bf16.msra.mxu0 0
      %2125 = vmatprep.subr.bf16.mxu0 0
      %2126 = vmatpush1.bf16.msra.mxu0 0
      %2127 = vmatprep.subr.bf16.mxu0 0
      %2128 = vmatpush1.bf16.msra.mxu0 %v2109
      %2129 = vmatprep.subr.bf16.mxu0 0
      %2130 = vmatpush2.bf16.msra.mxu0 0
      %2131 = vmatprep.subr.bf16.mxu0 0
      %2132 = vmatpush2.bf16.msra.mxu0 0
      %2133 = vmatprep.subr.bf16.mxu0 0
      %2134 = vmatpush2.bf16.msra.mxu0 0
      %2135 = vmatprep.subr.bf16.mxu0 0
      %2136 = vmatpush2.bf16.msra.mxu0 0
      %2137 = vmatprep.subr.bf16.mxu0 0
      %2138 = vmatpush2.bf16.msra.mxu0 0
      %2139 = vmatprep.subr.bf16.mxu0 0
      %2140 = vmatpush2.bf16.msra.mxu0 0
      %2141 = vmatprep.subr.bf16.mxu0 0
      %2142 = vmatpush2.bf16.msra.mxu0 0
      %2143 = vmatprep.subr.bf16.mxu0 0
      %2144 = vmatpush2.bf16.msra.mxu0 0
      %2145 = vmatprep.mubr.bf16.mxu0 0
      %2146 = vmatmul.mubr.bf16.gmra.mxu0 %v2111
      %v2147 = vpop.f32.mrf.mxu0
      %v2148 = vadd.f32 0.0, %v2147
      %v2149 = vpop.f32.mrf.mxu0
      %v2150 = vpop.f32.mrf.mxu0
      %v2151 = vadd.f32 0.0, %v2150
      %v2152 = vpop.f32.mrf.mxu0
      %2153 = vdwg.mxu0
      %v2155 = vsel %vm982, %v2031, 0
      %2157 = vmatprep.subr.bf16.mxu0 0
      %2158 = vmatpush1.bf16.msra.mxu0 0
      %2159 = vmatprep.subr.bf16.mxu0 0
      %2160 = vmatpush1.bf16.msra.mxu0 0
      %2161 = vmatprep.subr.bf16.mxu0 0
      %2162 = vmatpush1.bf16.msra.mxu0 0
      %2163 = vmatprep.subr.bf16.mxu0 0
      %2164 = vmatpush1.bf16.msra.mxu0 0
      %2165 = vmatprep.subr.bf16.mxu0 0
      %2166 = vmatpush1.bf16.msra.mxu0 0
      %2167 = vmatprep.subr.bf16.mxu0 0
      %2168 = vmatpush1.bf16.msra.mxu0 0
      %2169 = vmatprep.subr.bf16.mxu0 0
      %2170 = vmatpush1.bf16.msra.mxu0 0
      %2171 = vmatprep.subr.bf16.mxu0 0
      %2172 = vmatpush1.bf16.msra.mxu0 %v2032
      %2173 = vmatprep.subr.bf16.mxu0 0
      %2174 = vmatpush2.bf16.msra.mxu0 0
      %2175 = vmatprep.subr.bf16.mxu0 0
      %2176 = vmatpush2.bf16.msra.mxu0 0
      %2177 = vmatprep.subr.bf16.mxu0 0
      %2178 = vmatpush2.bf16.msra.mxu0 0
      %2179 = vmatprep.subr.bf16.mxu0 0
      %2180 = vmatpush2.bf16.msra.mxu0 0
      %2181 = vmatprep.subr.bf16.mxu0 0
      %2182 = vmatpush2.bf16.msra.mxu0 0
      %2183 = vmatprep.subr.bf16.mxu0 0
      %2184 = vmatpush2.bf16.msra.mxu0 0
      %2185 = vmatprep.subr.bf16.mxu0 0
      %2186 = vmatpush2.bf16.msra.mxu0 0
      %2187 = vmatprep.subr.bf16.mxu0 0
      %2188 = vmatpush2.bf16.msra.mxu0 0
      %2189 = vmatprep.mubr.bf16.mxu0 0
      %2190 = vmatmul.mubr.bf16.gmra.mxu0 %v2155
      %v2191 = vpop.f32.mrf.mxu0
      %v2192 = vadd.f32 %v2148, %v2191
      %v2193 = vpop.f32.mrf.mxu0
      %v2194 = vpop.f32.mrf.mxu0
      %v2195 = vadd.f32 %v2151, %v2194
      %v2196 = vpop.f32.mrf.mxu0
      %2197 = vdwg.mxu0
      %v2198 = vmul.bf16 %v1950, %v701
      %v2200 = vsel %vm711, %v2198, 0
      %2202 = vmatprep.subr.bf16.mxu0 0
      %2203 = vmatpush1.bf16.xpose.msra.mxu0 0
      %2204 = vmatprep.subr.bf16.mxu0 0
      %2205 = vmatpush1.bf16.xpose.msra.mxu0 0
      %2206 = vmatprep.subr.bf16.mxu0 0
      %2207 = vmatpush1.bf16.xpose.msra.mxu0 0
      %2208 = vmatprep.subr.bf16.mxu0 0
      %2209 = vmatpush1.bf16.xpose.msra.mxu0 0
      %2210 = vmatprep.subr.bf16.mxu0 0
      %2211 = vmatpush1.bf16.xpose.msra.mxu0 0
      %2212 = vmatprep.subr.bf16.mxu0 0
      %2213 = vmatpush1.bf16.xpose.msra.mxu0 0
      %2214 = vmatprep.subr.bf16.mxu0 0
      %2215 = vmatpush1.bf16.xpose.msra.mxu0 0
      %2216 = vmatprep.subr.bf16.mxu0 0
      %2217 = vmatpush1.bf16.xpose.msra.mxu0 %v1958
      %2218 = vmatprep.subr.bf16.mxu0 0
      %2219 = vmatpush2.bf16.xpose.msra.mxu0 0
      %2220 = vmatprep.subr.bf16.mxu0 0
      %2221 = vmatpush2.bf16.xpose.msra.mxu0 0
      %2222 = vmatprep.subr.bf16.mxu0 0
      %2223 = vmatpush2.bf16.xpose.msra.mxu0 0
      %2224 = vmatprep.subr.bf16.mxu0 0
      %2225 = vmatpush2.bf16.xpose.msra.mxu0 0
      %2226 = vmatprep.subr.bf16.mxu0 0
      %2227 = vmatpush2.bf16.xpose.msra.mxu0 0
      %2228 = vmatprep.subr.bf16.mxu0 0
      %2229 = vmatpush2.bf16.xpose.msra.mxu0 0
      %2230 = vmatprep.subr.bf16.mxu0 0
      %2231 = vmatpush2.bf16.xpose.msra.mxu0 0
      %2232 = vmatprep.subr.bf16.mxu0 0
      %2233 = vmatpush2.bf16.xpose.msra.mxu0 0
      %2234 = vmatprep.mubr.bf16.mxu0 0
      %2235 = vmatmul.mubr.bf16.gmra.mxu0 %v2200
      %v2236 = vpop.f32.mrf.mxu0
      %v2237 = vadd.f32 %v682, %v2236
      %v2238 = vpop.f32.mrf.mxu0
      %v2239 = vpop.f32.mrf.mxu0
      %v2240 = vadd.f32 %v683, %v2239
      %v2241 = vpop.f32.mrf.mxu0
      %2242 = vdwg.mxu0
      %v2243 = vsel %vm982, %v2237, -inf
      %2244 = vmax.xlane.f32.xlu0 %v2243
      %v2245 = vpop.xlane.xlu0 %2244
      %v2246 = vsel %vm982, %v2240, -inf
      %2247 = vmax.xlane.f32.xlu0 %v2246
      %v2248 = vpop.xlane.xlu0 %2247
      %v2249 = vsub.f32 %v2237, %v2245
      %v2250 = vsub.f32 %v2240, %v2248
      %v2251 = vmul.f32 %v2249, 1.442695
      %v2252 = vpow.pop %v2251
      %v2253 = vmul.f32 %v2250, 1.442695
      %v2254 = vpow.pop %v2253
      %v2255 = vsel %vm982, %v2252, 0.0
      %2256 = vadd.xlane.f32.xlu0 %v2255
      %v2257 = vpop.xlane.xlu0 %2256
      %v2258 = vsel %vm982, %v2254, 0.0
      %2259 = vadd.xlane.f32.xlu0 %v2258
      %v2260 = vpop.xlane.xlu0 %2259
      %v2261 = vrcp.pop %v2257
      %v2262 = vrcp.pop %v2260
      %v2263 = vmul.f32 %v2252, %v2261
      %v2264 = vmul.f32 %v2254, %v2262
      %vm2265 = vcmp.gt.f32.partialorder %v2245, -5e+08
      %vm2266 = vcmp.gt.f32.partialorder %v2248, -5e+08
      %v2267 = vsel %vm2265, 1, 0
      %v2268 = vsel %vm2266, 1, 0
      %vm2269 = vcmp.eq.s32.totalorder %v2267, 1
      %vm2270 = vcmp.eq.s32.totalorder %v2268, 1
      %v2271 = vsel %vm2269, %v2263, 0.0
      %v2272 = vsel %vm2270, %v2264, 0.0
      %v2273 = vpack.c.bf16 %v2272, %v2271
      %v2274 = vmul.bf16 %v1952, %v701
      %v2276 = vsel %vm982, %v2273, 0
      %2278 = vmatprep.subr.bf16.mxu0 0
      %2279 = vmatpush1.bf16.msra.mxu0 0
      %2280 = vmatprep.subr.bf16.mxu0 0
      %2281 = vmatpush1.bf16.msra.mxu0 0
      %2282 = vmatprep.subr.bf16.mxu0 0
      %2283 = vmatpush1.bf16.msra.mxu0 0
      %2284 = vmatprep.subr.bf16.mxu0 0
      %2285 = vmatpush1.bf16.msra.mxu0 0
      %2286 = vmatprep.subr.bf16.mxu0 0
      %2287 = vmatpush1.bf16.msra.mxu0 0
      %2288 = vmatprep.subr.bf16.mxu0 0
      %2289 = vmatpush1.bf16.msra.mxu0 0
      %2290 = vmatprep.subr.bf16.mxu0 0
      %2291 = vmatpush1.bf16.msra.mxu0 0
      %2292 = vmatprep.subr.bf16.mxu0 0
      %2293 = vmatpush1.bf16.msra.mxu0 %v2274
      %2294 = vmatprep.subr.bf16.mxu0 0
      %2295 = vmatpush2.bf16.msra.mxu0 0
      %2296 = vmatprep.subr.bf16.mxu0 0
      %2297 = vmatpush2.bf16.msra.mxu0 0
      %2298 = vmatprep.subr.bf16.mxu0 0
      %2299 = vmatpush2.bf16.msra.mxu0 0
      %2300 = vmatprep.subr.bf16.mxu0 0
      %2301 = vmatpush2.bf16.msra.mxu0 0
      %2302 = vmatprep.subr.bf16.mxu0 0
      %2303 = vmatpush2.bf16.msra.mxu0 0
      %2304 = vmatprep.subr.bf16.mxu0 0
      %2305 = vmatpush2.bf16.msra.mxu0 0
      %2306 = vmatprep.subr.bf16.mxu0 0
      %2307 = vmatpush2.bf16.msra.mxu0 0
      %2308 = vmatprep.subr.bf16.mxu0 0
      %2309 = vmatpush2.bf16.msra.mxu0 0
      %2310 = vmatprep.mubr.bf16.mxu0 0
      %2311 = vmatmul.mubr.bf16.gmra.mxu0 %v2276
      %v2312 = vpop.f32.mrf.mxu0
      %v2313 = vadd.f32 0.0, %v2312
      %v2314 = vpop.f32.mrf.mxu0
      %v2315 = vpop.f32.mrf.mxu0
      %v2316 = vadd.f32 0.0, %v2315
      %v2317 = vpop.f32.mrf.mxu0
      %2318 = vdwg.mxu0
      %v2319 = vadd.f32 %v2192, %v2313
      %v2320 = vadd.f32 %v2195, %v2316
      %v2321 = vmul.bf16 %v1950, %v707
      %v2323 = vsel %vm711, %v2321, 0
      %2325 = vmatprep.subr.bf16.mxu0 0
      %2326 = vmatpush1.bf16.xpose.msra.mxu0 0
      %2327 = vmatprep.subr.bf16.mxu0 0
      %2328 = vmatpush1.bf16.xpose.msra.mxu0 0
      %2329 = vmatprep.subr.bf16.mxu0 0
      %2330 = vmatpush1.bf16.xpose.msra.mxu0 0
      %2331 = vmatprep.subr.bf16.mxu0 0
      %2332 = vmatpush1.bf16.xpose.msra.mxu0 0
      %2333 = vmatprep.subr.bf16.mxu0 0
      %2334 = vmatpush1.bf16.xpose.msra.mxu0 0
      %2335 = vmatprep.subr.bf16.mxu0 0
      %2336 = vmatpush1.bf16.xpose.msra.mxu0 0
      %2337 = vmatprep.subr.bf16.mxu0 0
      %2338 = vmatpush1.bf16.xpose.msra.mxu0 0
      %2339 = vmatprep.subr.bf16.mxu0 0
      %2340 = vmatpush1.bf16.xpose.msra.mxu0 %v1958
      %2341 = vmatprep.subr.bf16.mxu0 0
      %2342 = vmatpush2.bf16.xpose.msra.mxu0 0
      %2343 = vmatprep.subr.bf16.mxu0 0
      %2344 = vmatpush2.bf16.xpose.msra.mxu0 0
      %2345 = vmatprep.subr.bf16.mxu0 0
      %2346 = vmatpush2.bf16.xpose.msra.mxu0 0
      %2347 = vmatprep.subr.bf16.mxu0 0
      %2348 = vmatpush2.bf16.xpose.msra.mxu0 0
      %2349 = vmatprep.subr.bf16.mxu0 0
      %2350 = vmatpush2.bf16.xpose.msra.mxu0 0
      %2351 = vmatprep.subr.bf16.mxu0 0
      %2352 = vmatpush2.bf16.xpose.msra.mxu0 0
      %2353 = vmatprep.subr.bf16.mxu0 0
      %2354 = vmatpush2.bf16.xpose.msra.mxu0 0
      %2355 = vmatprep.subr.bf16.mxu0 0
      %2356 = vmatpush2.bf16.xpose.msra.mxu0 0
      %2357 = vmatprep.mubr.bf16.mxu0 0
      %2358 = vmatmul.mubr.bf16.gmra.mxu0 %v2323
      %v2359 = vpop.f32.mrf.mxu0
      %v2360 = vadd.f32 %v682, %v2359
      %v2361 = vpop.f32.mrf.mxu0
      %v2362 = vpop.f32.mrf.mxu0
      %v2363 = vadd.f32 %v683, %v2362
      %v2364 = vpop.f32.mrf.mxu0
      %2365 = vdwg.mxu0
      %v2366 = vsel %vm982, %v2360, -inf
      %2367 = vmax.xlane.f32.xlu0 %v2366
      %v2368 = vpop.xlane.xlu0 %2367
      %v2369 = vsel %vm982, %v2363, -inf
      %2370 = vmax.xlane.f32.xlu0 %v2369
      %v2371 = vpop.xlane.xlu0 %2370
      %v2372 = vsub.f32 %v2360, %v2368
      %v2373 = vsub.f32 %v2363, %v2371
      %v2374 = vmul.f32 %v2372, 1.442695
      %v2375 = vpow.pop %v2374
      %v2376 = vmul.f32 %v2373, 1.442695
      %v2377 = vpow.pop %v2376
      %v2378 = vsel %vm982, %v2375, 0.0
      %2379 = vadd.xlane.f32.xlu0 %v2378
      %v2380 = vpop.xlane.xlu0 %2379
      %v2381 = vsel %vm982, %v2377, 0.0
      %2382 = vadd.xlane.f32.xlu0 %v2381
      %v2383 = vpop.xlane.xlu0 %2382
      %v2384 = vrcp.pop %v2380
      %v2385 = vrcp.pop %v2383
      %v2386 = vmul.f32 %v2375, %v2384
      %v2387 = vmul.f32 %v2377, %v2385
      %vm2388 = vcmp.gt.f32.partialorder %v2368, -5e+08
      %vm2389 = vcmp.gt.f32.partialorder %v2371, -5e+08
      %v2390 = vsel %vm2388, 1, 0
      %v2391 = vsel %vm2389, 1, 0
      %vm2392 = vcmp.eq.s32.totalorder %v2390, 1
      %vm2393 = vcmp.eq.s32.totalorder %v2391, 1
      %v2394 = vsel %vm2392, %v2386, 0.0
      %v2395 = vsel %vm2393, %v2387, 0.0
      %v2396 = vpack.c.bf16 %v2395, %v2394
      %v2397 = vmul.bf16 %v1952, %v707
      %v2399 = vsel %vm982, %v2396, 0
      %2401 = vmatprep.subr.bf16.mxu0 0
      %2402 = vmatpush1.bf16.msra.mxu0 0
      %2403 = vmatprep.subr.bf16.mxu0 0
      %2404 = vmatpush1.bf16.msra.mxu0 0
      %2405 = vmatprep.subr.bf16.mxu0 0
      %2406 = vmatpush1.bf16.msra.mxu0 0
      %2407 = vmatprep.subr.bf16.mxu0 0
      %2408 = vmatpush1.bf16.msra.mxu0 0
      %2409 = vmatprep.subr.bf16.mxu0 0
      %2410 = vmatpush1.bf16.msra.mxu0 0
      %2411 = vmatprep.subr.bf16.mxu0 0
      %2412 = vmatpush1.bf16.msra.mxu0 0
      %2413 = vmatprep.subr.bf16.mxu0 0
      %2414 = vmatpush1.bf16.msra.mxu0 0
      %2415 = vmatprep.subr.bf16.mxu0 0
      %2416 = vmatpush1.bf16.msra.mxu0 %v2397
      %2417 = vmatprep.subr.bf16.mxu0 0
      %2418 = vmatpush2.bf16.msra.mxu0 0
      %2419 = vmatprep.subr.bf16.mxu0 0
      %2420 = vmatpush2.bf16.msra.mxu0 0
      %2421 = vmatprep.subr.bf16.mxu0 0
      %2422 = vmatpush2.bf16.msra.mxu0 0
      %2423 = vmatprep.subr.bf16.mxu0 0
      %2424 = vmatpush2.bf16.msra.mxu0 0
      %2425 = vmatprep.subr.bf16.mxu0 0
      %2426 = vmatpush2.bf16.msra.mxu0 0
      %2427 = vmatprep.subr.bf16.mxu0 0
      %2428 = vmatpush2.bf16.msra.mxu0 0
      %2429 = vmatprep.subr.bf16.mxu0 0
      %2430 = vmatpush2.bf16.msra.mxu0 0
      %2431 = vmatprep.subr.bf16.mxu0 0
      %2432 = vmatpush2.bf16.msra.mxu0 0
      %2433 = vmatprep.mubr.bf16.mxu0 0
      %2434 = vmatmul.mubr.bf16.gmra.mxu0 %v2399
      %v2435 = vpop.f32.mrf.mxu0
      %v2436 = vadd.f32 0.0, %v2435
      %v2437 = vpop.f32.mrf.mxu0
      %v2438 = vpop.f32.mrf.mxu0
      %v2439 = vadd.f32 0.0, %v2438
      %v2440 = vpop.f32.mrf.mxu0
      %2441 = vdwg.mxu0
      %v2442 = vadd.f32 %v2319, %v2436
      %v2443 = vadd.f32 %v2320, %v2439
      %v2444 = vpack.c.bf16 %v2443, %v2442
      %s2445 = scalar_lea.vmem %s9, 16
      %v2446 = vld [vmem:[%s2445] sm:$0xf]
      %v2447 = vld [vmem:[%s2445 + $0x4] sm:$0xf]
      %v2448 = vld [vmem:[%s2445 + $0x8] sm:$0xf]
      %v2449 = vld [vmem:[%s2445 + $0xc] sm:$0xf]
      %s2450 = scalar_lea.vmem %s10, 1
      %v2451 = vld [vmem:[%s2450] sm:$0x1]
      %v2453 = vlaneseq
      %v2454 = vshrl.u32 %v2453, 7
      %v2455 = vsub.s32 0, %v2454
      %v2456 = vrot.slane %v2451, %v2455
      %v2462 = vunpack.c.l.b16 %v2446
      %v2463 = vunpack.c.l.b16 %v2447
      %v2464 = vunpack.c.l.b16 %v2448
      %v2465 = vunpack.c.l.b16 %v2449
      %v2466 = vpack.c.b16 %v2463, %v2462
      %v2467 = vpack.c.b16 %v2465, %v2464
      %v2471 = vsel %vm711, %v2444, 0
      %2473 = vmatprep.subr.bf16.mxu0 0
      %2474 = vmatpush1.bf16.msra.mxu0 0
      %2475 = vmatprep.subr.bf16.mxu0 0
      %2476 = vmatpush1.bf16.msra.mxu0 0
      %2477 = vmatprep.subr.bf16.mxu0 0
      %2478 = vmatpush1.bf16.msra.mxu0 0
      %2479 = vmatprep.subr.bf16.mxu0 0
      %2480 = vmatpush1.bf16.msra.mxu0 0
      %2481 = vmatprep.subr.bf16.mxu0 0
      %2482 = vmatpush1.bf16.msra.mxu0 0
      %2483 = vmatprep.subr.bf16.mxu0 0
      %2484 = vmatpush1.bf16.msra.mxu0 0
      %2485 = vmatprep.subr.bf16.mxu0 0
      %2486 = vmatpush1.bf16.msra.mxu0 %v2467
      %2487 = vmatprep.subr.bf16.mxu0 0
      %2488 = vmatpush1.bf16.msra.mxu0 %v2466
      %2489 = vmatprep.subr.bf16.mxu0 0
      %2490 = vmatpush2.bf16.msra.mxu0 0
      %2491 = vmatprep.subr.bf16.mxu0 0
      %2492 = vmatpush2.bf16.msra.mxu0 0
      %2493 = vmatprep.subr.bf16.mxu0 0
      %2494 = vmatpush2.bf16.msra.mxu0 0
      %2495 = vmatprep.subr.bf16.mxu0 0
      %2496 = vmatpush2.bf16.msra.mxu0 0
      %2497 = vmatprep.subr.bf16.mxu0 0
      %2498 = vmatpush2.bf16.msra.mxu0 0
      %2499 = vmatprep.subr.bf16.mxu0 0
      %2500 = vmatpush2.bf16.msra.mxu0 0
      %2501 = vmatprep.subr.bf16.mxu0 0
      %2502 = vmatpush2.bf16.msra.mxu0 0
      %2503 = vmatprep.subr.bf16.mxu0 0
      %2504 = vmatpush2.bf16.msra.mxu0 0
      %2505 = vmatprep.mubr.bf16.mxu0 0
      %2506 = vmatmul.mubr.bf16.gmra.mxu0 %v2471
      %v2507 = vpop.f32.mrf.mxu0
      %v2508 = vadd.f32 %v2456, %v2507
      %v2509 = vpop.f32.mrf.mxu0
      %v2510 = vpop.f32.mrf.mxu0
      %v2511 = vadd.f32 %v2456, %v2510
      %v2512 = vpop.f32.mrf.mxu0
      %2513 = vdwg.mxu0
      %v2514 = vadd.f32 %v1720, %v2508
      %v2515 = vadd.f32 %v1721, %v2511
      %s2516 = scalar_lea.vmem %s11, 1
      %v2517 = vld [vmem:[%s2516] sm:$0x1]
      %v2518 = vmul.f32 %v2514, %v2514
      %v2519 = vmul.f32 %v2515, %v2515
      %v2520 = vsel %vm711, %v2518, 0.0
      %2521 = vadd.xlane.f32.xlu0 %v2520
      %v2522 = vpop.xlane.xlu0 %2521
      %v2523 = vsel %vm711, %v2519, 0.0
      %2524 = vadd.xlane.f32.xlu0 %v2523
      %v2525 = vpop.xlane.xlu0 %2524
      %v2526 = vmul.f32 %v2522, %v718
      %v2527 = vmul.f32 %v2525, %v718
      %v2528 = vadd.f32 %v2526, 1e-06
      %v2529 = vadd.f32 %v2527, 1e-06
      %v2530 = vrsqrt.pop %v2528
      %v2531 = vrsqrt.pop %v2529
      %v2532 = vmul.f32 %v2514, %v2530
      %v2533 = vmul.f32 %v2515, %v2531
      %v2535 = vlaneseq
      %v2536 = vshrl.u32 %v2535, 7
      %v2537 = vsub.s32 0, %v2536
      %v2538 = vrot.slane %v2517, %v2537
      %v2540 = vmul.f32 %v2532, %v2538
      %v2541 = vmul.f32 %v2533, %v2538
      %v2542 = vpack.c.bf16 %v2541, %v2540
      %s2543 = scalar_lea.vmem %s12, 16
      %v2544 = vld [vmem:[%s2543] sm:$0xf]
      %v2545 = vld [vmem:[%s2543 + $0x4] sm:$0xf]
      %v2546 = vld [vmem:[%s2543 + $0x8] sm:$0xf]
      %v2547 = vld [vmem:[%s2543 + $0xc] sm:$0xf]
      %s2548 = scalar_lea.vmem %s13, 1
      %v2549 = vld [vmem:[%s2548] sm:$0x1]
      %v2551 = vlaneseq
      %v2552 = vshrl.u32 %v2551, 7
      %v2553 = vsub.s32 0, %v2552
      %v2554 = vrot.slane %v2549, %v2553
      %v2560 = vunpack.c.l.b16 %v2544
      %v2561 = vunpack.c.l.b16 %v2545
      %v2562 = vunpack.c.l.b16 %v2546
      %v2563 = vunpack.c.l.b16 %v2547
      %v2564 = vpack.c.b16 %v2561, %v2560
      %v2565 = vpack.c.b16 %v2563, %v2562
      %v2569 = vsel %vm711, %v2542, 0
      %2571 = vmatprep.subr.bf16.mxu0 0
      %2572 = vmatpush1.bf16.msra.mxu0 0
      %2573 = vmatprep.subr.bf16.mxu0 0
      %2574 = vmatpush1.bf16.msra.mxu0 0
      %2575 = vmatprep.subr.bf16.mxu0 0
      %2576 = vmatpush1.bf16.msra.mxu0 0
      %2577 = vmatprep.subr.bf16.mxu0 0
      %2578 = vmatpush1.bf16.msra.mxu0 0
      %2579 = vmatprep.subr.bf16.mxu0 0
      %2580 = vmatpush1.bf16.msra.mxu0 0
      %2581 = vmatprep.subr.bf16.mxu0 0
      %2582 = vmatpush1.bf16.msra.mxu0 0
      %2583 = vmatprep.subr.bf16.mxu0 0
      %2584 = vmatpush1.bf16.msra.mxu0 %v2565
      %2585 = vmatprep.subr.bf16.mxu0 0
      %2586 = vmatpush1.bf16.msra.mxu0 %v2564
      %2587 = vmatprep.subr.bf16.mxu0 0
      %2588 = vmatpush2.bf16.msra.mxu0 0
      %2589 = vmatprep.subr.bf16.mxu0 0
      %2590 = vmatpush2.bf16.msra.mxu0 0
      %2591 = vmatprep.subr.bf16.mxu0 0
      %2592 = vmatpush2.bf16.msra.mxu0 0
      %2593 = vmatprep.subr.bf16.mxu0 0
      %2594 = vmatpush2.bf16.msra.mxu0 0
      %2595 = vmatprep.subr.bf16.mxu0 0
      %2596 = vmatpush2.bf16.msra.mxu0 0
      %2597 = vmatprep.subr.bf16.mxu0 0
      %2598 = vmatpush2.bf16.msra.mxu0 0
      %2599 = vmatprep.subr.bf16.mxu0 0
      %2600 = vmatpush2.bf16.msra.mxu0 0
      %2601 = vmatprep.subr.bf16.mxu0 0
      %2602 = vmatpush2.bf16.msra.mxu0 0
      %2603 = vmatprep.mubr.bf16.mxu0 0
      %2604 = vmatmul.mubr.bf16.gmra.mxu0 %v2569
      %v2605 = vpop.f32.mrf.mxu0
      %v2606 = vadd.f32 %v2554, %v2605
      %v2607 = vpop.f32.mrf.mxu0
      %v2608 = vpop.f32.mrf.mxu0
      %v2609 = vadd.f32 %v2554, %v2608
      %v2610 = vpop.f32.mrf.mxu0
      %2611 = vdwg.mxu0
      %v2612 = vmul.f32 %v2606, 0.5
      %v2613 = vmul.f32 %v2609, 0.5
      %v2614 = vmul.f32 %v2606, 0.044715
      %v2615 = vmul.f32 %v2609, 0.044715
      %v2616 = vmul.f32 %v2614, %v2606
      %v2617 = vmul.f32 %v2615, %v2609
      %v2618 = vmul.f32 %v2616, %v2606
      %v2619 = vmul.f32 %v2617, %v2609
      %v2620 = vadd.f32 %v2606, %v2618
      %v2621 = vadd.f32 %v2609, %v2619
      %v2622 = vmul.f32 %v2620, 0.7978846
      %v2623 = vmul.f32 %v2621, 0.7978846
      %v2624 = vtanh.pop %v2622
      %v2625 = vtanh.pop %v2623
      %v2626 = vadd.f32 %v2624, 1.0
      %v2627 = vadd.f32 %v2625, 1.0
      %v2628 = vmul.f32 %v2612, %v2626
      %v2629 = vmul.f32 %v2613, %v2627
      %v2630 = vpack.c.bf16 %v2629, %v2628
      %s2631 = scalar_lea.vmem %s14, 64
      %v2632 = vld [vmem:[%s2631] sm:$0xf]
      %v2633 = vld [vmem:[%s2631 + $0x4] sm:$0xf]
      %v2634 = vld [vmem:[%s2631 + $0x8] sm:$0xf]
      %v2635 = vld [vmem:[%s2631 + $0xc] sm:$0xf]
      %v2636 = vld [vmem:[%s2631 + $0x10] sm:$0xf]
      %v2637 = vld [vmem:[%s2631 + $0x14] sm:$0xf]
      %v2638 = vld [vmem:[%s2631 + $0x18] sm:$0xf]
      %v2639 = vld [vmem:[%s2631 + $0x1c] sm:$0xf]
      %v2640 = vld [vmem:[%s2631 + $0x20] sm:$0xf]
      %v2641 = vld [vmem:[%s2631 + $0x24] sm:$0xf]
      %v2642 = vld [vmem:[%s2631 + $0x28] sm:$0xf]
      %v2643 = vld [vmem:[%s2631 + $0x2c] sm:$0xf]
      %v2644 = vld [vmem:[%s2631 + $0x30] sm:$0xf]
      %v2645 = vld [vmem:[%s2631 + $0x34] sm:$0xf]
      %v2646 = vld [vmem:[%s2631 + $0x38] sm:$0xf]
      %v2647 = vld [vmem:[%s2631 + $0x3c] sm:$0xf]
      %s2648 = scalar_lea.vmem %s15, 1
      %v2649 = vld [vmem:[%s2648] sm:$0x1]
      %v2651 = vlaneseq
      %v2652 = vshrl.u32 %v2651, 7
      %v2653 = vsub.s32 0, %v2652
      %v2654 = vrot.slane %v2649, %v2653
      %v2672 = vunpack.c.l.b16 %v2632
      %v2673 = vunpack.c.l.b16 %v2633
      %v2674 = vunpack.c.l.b16 %v2634
      %v2675 = vunpack.c.l.b16 %v2635
      %v2676 = vunpack.c.l.b16 %v2636
      %v2677 = vunpack.c.l.b16 %v2637
      %v2678 = vunpack.c.l.b16 %v2638
      %v2679 = vunpack.c.l.b16 %v2639
      %v2680 = vunpack.c.l.b16 %v2640
      %v2681 = vunpack.c.l.b16 %v2641
      %v2682 = vunpack.c.l.b16 %v2642
      %v2683 = vunpack.c.l.b16 %v2643
      %v2684 = vunpack.c.l.b16 %v2644
      %v2685 = vunpack.c.l.b16 %v2645
      %v2686 = vunpack.c.l.b16 %v2646
      %v2687 = vunpack.c.l.b16 %v2647
      %v2688 = vpack.c.b16 %v2673, %v2672
      %v2689 = vpack.c.b16 %v2675, %v2674
      %v2690 = vpack.c.b16 %v2677, %v2676
      %v2691 = vpack.c.b16 %v2679, %v2678
      %v2692 = vpack.c.b16 %v2681, %v2680
      %v2693 = vpack.c.b16 %v2683, %v2682
      %v2694 = vpack.c.b16 %v2685, %v2684
      %v2695 = vpack.c.b16 %v2687, %v2686
      %2704 = vmatprep.subr.bf16.mxu0 0
      %2705 = vmatpush1.bf16.msra.mxu0 %v2695
      %2706 = vmatprep.subr.bf16.mxu0 0
      %2707 = vmatpush1.bf16.msra.mxu0 %v2694
      %2708 = vmatprep.subr.bf16.mxu0 0
      %2709 = vmatpush1.bf16.msra.mxu0 %v2693
      %2710 = vmatprep.subr.bf16.mxu0 0
      %2711 = vmatpush1.bf16.msra.mxu0 %v2692
      %2712 = vmatprep.subr.bf16.mxu0 0
      %2713 = vmatpush1.bf16.msra.mxu0 %v2691
      %2714 = vmatprep.subr.bf16.mxu0 0
      %2715 = vmatpush1.bf16.msra.mxu0 %v2690
      %2716 = vmatprep.subr.bf16.mxu0 0
      %2717 = vmatpush1.bf16.msra.mxu0 %v2689
      %2718 = vmatprep.subr.bf16.mxu0 0
      %2719 = vmatpush1.bf16.msra.mxu0 %v2688
      %2720 = vmatprep.subr.bf16.mxu0 0
      %2721 = vmatpush2.bf16.msra.mxu0 0
      %2722 = vmatprep.subr.bf16.mxu0 0
      %2723 = vmatpush2.bf16.msra.mxu0 0
      %2724 = vmatprep.subr.bf16.mxu0 0
      %2725 = vmatpush2.bf16.msra.mxu0 0
      %2726 = vmatprep.subr.bf16.mxu0 0
      %2727 = vmatpush2.bf16.msra.mxu0 0
      %2728 = vmatprep.subr.bf16.mxu0 0
      %2729 = vmatpush2.bf16.msra.mxu0 0
      %2730 = vmatprep.subr.bf16.mxu0 0
      %2731 = vmatpush2.bf16.msra.mxu0 0
      %2732 = vmatprep.subr.bf16.mxu0 0
      %2733 = vmatpush2.bf16.msra.mxu0 0
      %2734 = vmatprep.subr.bf16.mxu0 0
      %2735 = vmatpush2.bf16.msra.mxu0 0
      %2736 = vmatprep.mubr.bf16.mxu0 0
      %2737 = vmatmul.mubr.bf16.gmra.mxu0 %v2630
      %v2738 = vpop.f32.mrf.mxu0
      %v2739 = vadd.f32 %v2654, %v2738
      %v2740 = vpop.f32.mrf.mxu0
      %v2741 = vpop.f32.mrf.mxu0
      %v2742 = vadd.f32 %v2654, %v2741
      %v2743 = vpop.f32.mrf.mxu0
      %2744 = vdwg.mxu0
      %v2745 = vadd.f32 %v2514, %v2739
      %v2746 = vadd.f32 %v2515, %v2742
      %v2747 = vld [vmem:[%s16] sm:$0x1]
      %v2748 = vmul.f32 %v2745, %v2745
      %v2749 = vmul.f32 %v2746, %v2746
      %v2750 = vsel %vm711, %v2748, 0.0
      %2751 = vadd.xlane.f32.xlu0 %v2750
      %v2752 = vpop.xlane.xlu0 %2751
      %v2753 = vsel %vm711, %v2749, 0.0
      %2754 = vadd.xlane.f32.xlu0 %v2753
      %v2755 = vpop.xlane.xlu0 %2754
      %v2756 = vmul.f32 %v2752, %v718
      %v2757 = vmul.f32 %v2755, %v718
      %v2758 = vadd.f32 %v2756, 1e-06
      %v2759 = vadd.f32 %v2757, 1e-06
      %v2760 = vrsqrt.pop %v2758
      %v2761 = vrsqrt.pop %v2759
      %v2762 = vmul.f32 %v2745, %v2760
      %v2763 = vmul.f32 %v2746, %v2761
      %v2765 = vlaneseq
      %v2766 = vshrl.u32 %v2765, 7
      %v2767 = vsub.s32 0, %v2766
      %v2768 = vrot.slane %v2747, %v2767
      %v2770 = vmul.f32 %v2762, %v2768
      %v2771 = vmul.f32 %v2763, %v2768
      %v2772 = vpack.c.bf16 %v2771, %v2770
      %v2773 = vld [vmem:[%s17] sm:$0xf]
      %v2774 = vld [vmem:[%s17 + $0x4] sm:$0xf]
      %v2775 = vld [vmem:[%s17 + $0x8] sm:$0xf]
      %v2776 = vld [vmem:[%s17 + $0xc] sm:$0xf]
      %v2777 = vld [vmem:[%s18] sm:$0x1]
      %v2779 = vlaneseq
      %v2780 = vshrl.u32 %v2779, 7
      %v2781 = vsub.s32 0, %v2780
      %v2782 = vrot.slane %v2777, %v2781
      %v2788 = vunpack.c.l.b16 %v2773
      %v2789 = vunpack.c.l.b16 %v2774
      %v2790 = vunpack.c.l.b16 %v2775
      %v2791 = vunpack.c.l.b16 %v2776
      %v2792 = vpack.c.b16 %v2789, %v2788
      %v2793 = vpack.c.b16 %v2791, %v2790
      %v2797 = vsel %vm711, %v2772, 0
      %2799 = vmatprep.subr.bf16.mxu0 0
      %2800 = vmatpush1.bf16.msra.mxu0 0
      %2801 = vmatprep.subr.bf16.mxu0 0
      %2802 = vmatpush1.bf16.msra.mxu0 0
      %2803 = vmatprep.subr.bf16.mxu0 0
      %2804 = vmatpush1.bf16.msra.mxu0 0
      %2805 = vmatprep.subr.bf16.mxu0 0
      %2806 = vmatpush1.bf16.msra.mxu0 0
      %2807 = vmatprep.subr.bf16.mxu0 0
      %2808 = vmatpush1.bf16.msra.mxu0 0
      %2809 = vmatprep.subr.bf16.mxu0 0
      %2810 = vmatpush1.bf16.msra.mxu0 0
      %2811 = vmatprep.subr.bf16.mxu0 0
      %2812 = vmatpush1.bf16.msra.mxu0 %v2793
      %2813 = vmatprep.subr.bf16.mxu0 0
      %2814 = vmatpush1.bf16.msra.mxu0 %v2792
      %2815 = vmatprep.subr.bf16.mxu0 0
      %2816 = vmatpush2.bf16.msra.mxu0 0
      %2817 = vmatprep.subr.bf16.mxu0 0
      %2818 = vmatpush2.bf16.msra.mxu0 0
      %2819 = vmatprep.subr.bf16.mxu0 0
      %2820 = vmatpush2.bf16.msra.mxu0 0
      %2821 = vmatprep.subr.bf16.mxu0 0
      %2822 = vmatpush2.bf16.msra.mxu0 0
      %2823 = vmatprep.subr.bf16.mxu0 0
      %2824 = vmatpush2.bf16.msra.mxu0 0
      %2825 = vmatprep.subr.bf16.mxu0 0
      %2826 = vmatpush2.bf16.msra.mxu0 0
      %2827 = vmatprep.subr.bf16.mxu0 0
      %2828 = vmatpush2.bf16.msra.mxu0 0
      %2829 = vmatprep.subr.bf16.mxu0 0
      %2830 = vmatpush2.bf16.msra.mxu0 0
      %2831 = vmatprep.mubr.bf16.mxu0 0
      %2832 = vmatmul.mubr.bf16.gmra.mxu0 %v2797
      %v2833 = vpop.f32.mrf.mxu0
      %v2834 = vadd.f32 %v2782, %v2833
      %v2835 = vpop.f32.mrf.mxu0
      %v2836 = vpop.f32.mrf.mxu0
      %v2837 = vadd.f32 %v2782, %v2836
      %v2838 = vpop.f32.mrf.mxu0
      %2839 = vdwg.mxu0
      %vm2840 = vcmask 523264
      %v2841 = vsel %vm2840, %v2834, -inf
      %2842 = vmax.xlane.f32.xlu0 %v2841
      %v2843 = vpop.xlane.xlu0 %2842
      %v2844 = vsel %vm2840, %v2837, -inf
      %2845 = vmax.xlane.f32.xlu0 %v2844
      %v2846 = vpop.xlane.xlu0 %2845
      %v2847 = vsub.f32 %v2834, %v2843
      %v2848 = vsub.f32 %v2837, %v2846
      %v2849 = vmul.f32 %v2847, 1.442695
      %v2850 = vpow.pop %v2849
      %v2851 = vmul.f32 %v2848, 1.442695
      %v2852 = vpow.pop %v2851
      %v2853 = vsel %vm2840, %v2850, 0.0
      %2854 = vadd.xlane.f32.xlu0 %v2853
      %v2855 = vpop.xlane.xlu0 %2854
      %v2856 = vsel %vm2840, %v2852, 0.0
      %2857 = vadd.xlane.f32.xlu0 %v2856
      %v2858 = vpop.xlane.xlu0 %2857
      %v2859 = vrcp.pop %v2855
      %v2860 = vmul.f32 %v2850, %v2859
      %v2861 = vrcp.pop %v2858
      %v2862 = vmul.f32 %v2852, %v2861
      %v2863 = vlog2.pop %v2855
      %v2864 = vmul.f32 %v2863, 0.6931472
      %v2865 = vlog2.pop %v2858
      %v2866 = vmul.f32 %v2865, 0.6931472
      %v2867 = vsub.f32 %v2847, %v2864
      %v2868 = vsub.f32 %v2848, %v2866
      %v2869 = vmul.f32 %v2860, %v2867
      %v2870 = vmul.f32 %v2862, %v2868
      %v2871 = vsel %vm2840, %v2869, 0.0
      %2872 = vadd.xlane.f32.xlu0 %v2871
      %v2873 = vpop.xlane.xlu0 %2872
      %v2874 = vsel %vm2840, %v2870, 0.0
      %2875 = vadd.xlane.f32.xlu0 %v2874
      %v2876 = vpop.xlane.xlu0 %2875
      %v2877 = vsub.f32 0.0, %v2873
      %v2878 = vsub.f32 0.0, %v2876
      %v2879 = vsel %vm2840, %v2834, %v2877
      %v2880 = vsel %vm2840, %v2837, %v2878
      %2881 = vst [vmem:[%s656] sm:$0xff] %v2879
      %2882 = vst [vmem:[%s656 + $0x8] sm:$0xff] %v2880
      %s2883 = scalar_lea.vmem %s2, 2
      %v2884 = vld [vmem:[%s2883] sm:$0x1]
      %v2886 = vlaneseq
      %v2887 = vshrl.u32 %v2886, 7
      %v2888 = vsub.s32 0, %v2887
      %v2889 = vrot.slane %v2884, %v2888
      %v2891 = vmul.f32 %v1738, %v2889
      %v2892 = vmul.f32 %v1739, %v2889
      %v2893 = vpack.c.bf16 %v2892, %v2891
      %s2894 = scalar_lea.vmem %s3, 32
      %v2895 = vld [vmem:[%s2894] sm:$0xf]
      %v2896 = vld [vmem:[%s2894 + $0x4] sm:$0xf]
      %v2897 = vld [vmem:[%s2894 + $0x8] sm:$0xf]
      %v2898 = vld [vmem:[%s2894 + $0xc] sm:$0xf]
      %s2899 = scalar_lea.vmem %s4, 2
      %v2900 = vld [vmem:[%s2899] sm:$0x1]
      %v2902 = vlaneseq
      %v2903 = vshrl.u32 %v2902, 7
      %v2904 = vsub.s32 0, %v2903
      %v2905 = vrot.slane %v2900, %v2904
      %v2911 = vunpack.c.l.b16 %v2895
      %v2912 = vunpack.c.l.b16 %v2896
      %v2913 = vunpack.c.l.b16 %v2897
      %v2914 = vunpack.c.l.b16 %v2898
      %v2915 = vpack.c.b16 %v2912, %v2911
      %v2916 = vpack.c.b16 %v2914, %v2913
      %v2920 = vsel %vm711, %v2893, 0
      %2922 = vmatprep.subr.bf16.mxu0 0
      %2923 = vmatpush1.bf16.msra.mxu0 0
      %2924 = vmatprep.subr.bf16.mxu0 0
      %2925 = vmatpush1.bf16.msra.mxu0 0
      %2926 = vmatprep.subr.bf16.mxu0 0
      %2927 = vmatpush1.bf16.msra.mxu0 0
      %2928 = vmatprep.subr.bf16.mxu0 0
      %2929 = vmatpush1.bf16.msra.mxu0 0
      %2930 = vmatprep.subr.bf16.mxu0 0
      %2931 = vmatpush1.bf16.msra.mxu0 0
      %2932 = vmatprep.subr.bf16.mxu0 0
      %2933 = vmatpush1.bf16.msra.mxu0 0
      %2934 = vmatprep.subr.bf16.mxu0 0
      %2935 = vmatpush1.bf16.msra.mxu0 %v2916
      %2936 = vmatprep.subr.bf16.mxu0 0
      %2937 = vmatpush1.bf16.msra.mxu0 %v2915
      %2938 = vmatprep.subr.bf16.mxu0 0
      %2939 = vmatpush2.bf16.msra.mxu0 0
      %2940 = vmatprep.subr.bf16.mxu0 0
      %2941 = vmatpush2.bf16.msra.mxu0 0
      %2942 = vmatprep.subr.bf16.mxu0 0
      %2943 = vmatpush2.bf16.msra.mxu0 0
      %2944 = vmatprep.subr.bf16.mxu0 0
      %2945 = vmatpush2.bf16.msra.mxu0 0
      %2946 = vmatprep.subr.bf16.mxu0 0
      %2947 = vmatpush2.bf16.msra.mxu0 0
      %2948 = vmatprep.subr.bf16.mxu0 0
      %2949 = vmatpush2.bf16.msra.mxu0 0
      %2950 = vmatprep.subr.bf16.mxu0 0
      %2951 = vmatpush2.bf16.msra.mxu0 0
      %2952 = vmatprep.subr.bf16.mxu0 0
      %2953 = vmatpush2.bf16.msra.mxu0 0
      %2954 = vmatprep.mubr.bf16.mxu0 0
      %2955 = vmatmul.mubr.bf16.gmra.mxu0 %v2920
      %v2956 = vpop.f32.mrf.mxu0
      %v2957 = vadd.f32 %v2905, %v2956
      %v2958 = vpop.f32.mrf.mxu0
      %v2959 = vpop.f32.mrf.mxu0
      %v2960 = vadd.f32 %v2905, %v2959
      %v2961 = vpop.f32.mrf.mxu0
      %2962 = vdwg.mxu0
      %s2963 = scalar_lea.vmem %s5, 32
      %v2964 = vld [vmem:[%s2963] sm:$0xf]
      %v2965 = vld [vmem:[%s2963 + $0x4] sm:$0xf]
      %v2966 = vld [vmem:[%s2963 + $0x8] sm:$0xf]
      %v2967 = vld [vmem:[%s2963 + $0xc] sm:$0xf]
      %s2968 = scalar_lea.vmem %s6, 2
      %v2969 = vld [vmem:[%s2968] sm:$0x1]
      %v2971 = vlaneseq
      %v2972 = vshrl.u32 %v2971, 7
      %v2973 = vsub.s32 0, %v2972
      %v2974 = vrot.slane %v2969, %v2973
      %v2980 = vunpack.c.l.b16 %v2964
      %v2981 = vunpack.c.l.b16 %v2965
      %v2982 = vunpack.c.l.b16 %v2966
      %v2983 = vunpack.c.l.b16 %v2967
      %v2984 = vpack.c.b16 %v2981, %v2980
      %v2985 = vpack.c.b16 %v2983, %v2982
      %2988 = vmatprep.subr.bf16.mxu0 0
      %2989 = vmatpush1.bf16.msra.mxu0 0
      %2990 = vmatprep.subr.bf16.mxu0 0
      %2991 = vmatpush1.bf16.msra.mxu0 0
      %2992 = vmatprep.subr.bf16.mxu0 0
      %2993 = vmatpush1.bf16.msra.mxu0 0
      %2994 = vmatprep.subr.bf16.mxu0 0
      %2995 = vmatpush1.bf16.msra.mxu0 0
      %2996 = vmatprep.subr.bf16.mxu0 0
      %2997 = vmatpush1.bf16.msra.mxu0 0
      %2998 = vmatprep.subr.bf16.mxu0 0
      %2999 = vmatpush1.bf16.msra.mxu0 0
      %3000 = vmatprep.subr.bf16.mxu0 0
      %3001 = vmatpush1.bf16.msra.mxu0 %v2985
      %3002 = vmatprep.subr.bf16.mxu0 0
      %3003 = vmatpush1.bf16.msra.mxu0 %v2984
      %3004 = vmatprep.subr.bf16.mxu0 0
      %3005 = vmatpush2.bf16.msra.mxu0 0
      %3006 = vmatprep.subr.bf16.mxu0 0
      %3007 = vmatpush2.bf16.msra.mxu0 0
      %3008 = vmatprep.subr.bf16.mxu0 0
      %3009 = vmatpush2.bf16.msra.mxu0 0
      %3010 = vmatprep.subr.bf16.mxu0 0
      %3011 = vmatpush2.bf16.msra.mxu0 0
      %3012 = vmatprep.subr.bf16.mxu0 0
      %3013 = vmatpush2.bf16.msra.mxu0 0
      %3014 = vmatprep.subr.bf16.mxu0 0
      %3015 = vmatpush2.bf16.msra.mxu0 0
      %3016 = vmatprep.subr.bf16.mxu0 0
      %3017 = vmatpush2.bf16.msra.mxu0 0
      %3018 = vmatprep.subr.bf16.mxu0 0
      %3019 = vmatpush2.bf16.msra.mxu0 0
      %3020 = vmatprep.mubr.bf16.mxu0 0
      %3021 = vmatmul.mubr.bf16.gmra.mxu0 %v2920
      %v3022 = vpop.f32.mrf.mxu0
      %v3023 = vadd.f32 %v2974, %v3022
      %v3024 = vpop.f32.mrf.mxu0
      %v3025 = vpop.f32.mrf.mxu0
      %v3026 = vadd.f32 %v2974, %v3025
      %v3027 = vpop.f32.mrf.mxu0
      %3028 = vdwg.mxu0
      %s3029 = scalar_lea.vmem %s7, 32
      %v3030 = vld [vmem:[%s3029] sm:$0xf]
      %v3031 = vld [vmem:[%s3029 + $0x4] sm:$0xf]
      %v3032 = vld [vmem:[%s3029 + $0x8] sm:$0xf]
      %v3033 = vld [vmem:[%s3029 + $0xc] sm:$0xf]
      %s3034 = scalar_lea.vmem %s8, 2
      %v3035 = vld [vmem:[%s3034] sm:$0x1]
      %v3037 = vlaneseq
      %v3038 = vshrl.u32 %v3037, 7
      %v3039 = vsub.s32 0, %v3038
      %v3040 = vrot.slane %v3035, %v3039
      %v3046 = vunpack.c.l.b16 %v3030
      %v3047 = vunpack.c.l.b16 %v3031
      %v3048 = vunpack.c.l.b16 %v3032
      %v3049 = vunpack.c.l.b16 %v3033
      %v3050 = vpack.c.b16 %v3047, %v3046
      %v3051 = vpack.c.b16 %v3049, %v3048
      %3054 = vmatprep.subr.bf16.mxu0 0
      %3055 = vmatpush1.bf16.msra.mxu0 0
      %3056 = vmatprep.subr.bf16.mxu0 0
      %3057 = vmatpush1.bf16.msra.mxu0 0
      %3058 = vmatprep.subr.bf16.mxu0 0
      %3059 = vmatpush1.bf16.msra.mxu0 0
      %3060 = vmatprep.subr.bf16.mxu0 0
      %3061 = vmatpush1.bf16.msra.mxu0 0
      %3062 = vmatprep.subr.bf16.mxu0 0
      %3063 = vmatpush1.bf16.msra.mxu0 0
      %3064 = vmatprep.subr.bf16.mxu0 0
      %3065 = vmatpush1.bf16.msra.mxu0 0
      %3066 = vmatprep.subr.bf16.mxu0 0
      %3067 = vmatpush1.bf16.msra.mxu0 %v3051
      %3068 = vmatprep.subr.bf16.mxu0 0
      %3069 = vmatpush1.bf16.msra.mxu0 %v3050
      %3070 = vmatprep.subr.bf16.mxu0 0
      %3071 = vmatpush2.bf16.msra.mxu0 0
      %3072 = vmatprep.subr.bf16.mxu0 0
      %3073 = vmatpush2.bf16.msra.mxu0 0
      %3074 = vmatprep.subr.bf16.mxu0 0
      %3075 = vmatpush2.bf16.msra.mxu0 0
      %3076 = vmatprep.subr.bf16.mxu0 0
      %3077 = vmatpush2.bf16.msra.mxu0 0
      %3078 = vmatprep.subr.bf16.mxu0 0
      %3079 = vmatpush2.bf16.msra.mxu0 0
      %3080 = vmatprep.subr.bf16.mxu0 0
      %3081 = vmatpush2.bf16.msra.mxu0 0
      %3082 = vmatprep.subr.bf16.mxu0 0
      %3083 = vmatpush2.bf16.msra.mxu0 0
      %3084 = vmatprep.subr.bf16.mxu0 0
      %3085 = vmatpush2.bf16.msra.mxu0 0
      %3086 = vmatprep.mubr.bf16.mxu0 0
      %3087 = vmatmul.mubr.bf16.gmra.mxu0 %v2920
      %v3088 = vpop.f32.mrf.mxu0
      %v3089 = vadd.f32 %v3040, %v3088
      %v3090 = vpop.f32.mrf.mxu0
      %v3091 = vpop.f32.mrf.mxu0
      %v3092 = vadd.f32 %v3040, %v3091
      %v3093 = vpop.f32.mrf.mxu0
      %3094 = vdwg.mxu0
      %v3095 = vpack.c.bf16 %v2960, %v2957
      %v3096 = vpack.c.bf16 %v3026, %v3023
      %v3097 = vpack.c.bf16 %v3092, %v3089
      %v3098 = vmul.bf16 %v3095, %v689
      %v3100 = vsel %vm711, %v3098, 0
      %v3103 = vsel %vm711, %v3096, 0
      %3105 = vmatprep.subr.bf16.mxu0 0
      %3106 = vmatpush1.bf16.xpose.msra.mxu0 0
      %3107 = vmatprep.subr.bf16.mxu0 0
      %3108 = vmatpush1.bf16.xpose.msra.mxu0 0
      %3109 = vmatprep.subr.bf16.mxu0 0
      %3110 = vmatpush1.bf16.xpose.msra.mxu0 0
      %3111 = vmatprep.subr.bf16.mxu0 0
      %3112 = vmatpush1.bf16.xpose.msra.mxu0 0
      %3113 = vmatprep.subr.bf16.mxu0 0
      %3114 = vmatpush1.bf16.xpose.msra.mxu0 0
      %3115 = vmatprep.subr.bf16.mxu0 0
      %3116 = vmatpush1.bf16.xpose.msra.mxu0 0
      %3117 = vmatprep.subr.bf16.mxu0 0
      %3118 = vmatpush1.bf16.xpose.msra.mxu0 0
      %3119 = vmatprep.subr.bf16.mxu0 0
      %3120 = vmatpush1.bf16.xpose.msra.mxu0 %v3103
      %3121 = vmatprep.subr.bf16.mxu0 0
      %3122 = vmatpush2.bf16.xpose.msra.mxu0 0
      %3123 = vmatprep.subr.bf16.mxu0 0
      %3124 = vmatpush2.bf16.xpose.msra.mxu0 0
      %3125 = vmatprep.subr.bf16.mxu0 0
      %3126 = vmatpush2.bf16.xpose.msra.mxu0 0
      %3127 = vmatprep.subr.bf16.mxu0 0
      %3128 = vmatpush2.bf16.xpose.msra.mxu0 0
      %3129 = vmatprep.subr.bf16.mxu0 0
      %3130 = vmatpush2.bf16.xpose.msra.mxu0 0
      %3131 = vmatprep.subr.bf16.mxu0 0
      %3132 = vmatpush2.bf16.xpose.msra.mxu0 0
      %3133 = vmatprep.subr.bf16.mxu0 0
      %3134 = vmatpush2.bf16.xpose.msra.mxu0 0
      %3135 = vmatprep.subr.bf16.mxu0 0
      %3136 = vmatpush2.bf16.xpose.msra.mxu0 0
      %3137 = vmatprep.mubr.bf16.mxu0 0
      %3138 = vmatmul.mubr.bf16.gmra.mxu0 %v3100
      %v3139 = vpop.f32.mrf.mxu0
      %v3140 = vadd.f32 %v682, %v3139
      %v3141 = vpop.f32.mrf.mxu0
      %v3142 = vpop.f32.mrf.mxu0
      %v3143 = vadd.f32 %v683, %v3142
      %v3144 = vpop.f32.mrf.mxu0
      %3145 = vdwg.mxu0
      %v3146 = vsel %vm982, %v3140, -inf
      %3147 = vmax.xlane.f32.xlu0 %v3146
      %v3148 = vpop.xlane.xlu0 %3147
      %v3149 = vsel %vm982, %v3143, -inf
      %3150 = vmax.xlane.f32.xlu0 %v3149
      %v3151 = vpop.xlane.xlu0 %3150
      %v3152 = vsub.f32 %v3140, %v3148
      %v3153 = vsub.f32 %v3143, %v3151
      %v3154 = vmul.f32 %v3152, 1.442695
      %v3155 = vpow.pop %v3154
      %v3156 = vmul.f32 %v3153, 1.442695
      %v3157 = vpow.pop %v3156
      %v3158 = vsel %vm982, %v3155, 0.0
      %3159 = vadd.xlane.f32.xlu0 %v3158
      %v3160 = vpop.xlane.xlu0 %3159
      %v3161 = vsel %vm982, %v3157, 0.0
      %3162 = vadd.xlane.f32.xlu0 %v3161
      %v3163 = vpop.xlane.xlu0 %3162
      %v3164 = vrcp.pop %v3160
      %v3165 = vrcp.pop %v3163
      %v3166 = vmul.f32 %v3155, %v3164
      %v3167 = vmul.f32 %v3157, %v3165
      %vm3168 = vcmp.gt.f32.partialorder %v3148, -5e+08
      %vm3169 = vcmp.gt.f32.partialorder %v3151, -5e+08
      %v3170 = vsel %vm3168, 1, 0
      %v3171 = vsel %vm3169, 1, 0
      %vm3172 = vcmp.eq.s32.totalorder %v3170, 1
      %vm3173 = vcmp.eq.s32.totalorder %v3171, 1
      %v3174 = vsel %vm3172, %v3166, 0.0
      %v3175 = vsel %vm3173, %v3167, 0.0
      %v3176 = vpack.c.bf16 %v3175, %v3174
      %v3177 = vmul.bf16 %v3097, %v689
      %v3178 = vmul.bf16 %v3095, %v695
      %v3180 = vsel %vm711, %v3178, 0
      %3182 = vmatprep.subr.bf16.mxu0 0
      %3183 = vmatpush1.bf16.xpose.msra.mxu0 0
      %3184 = vmatprep.subr.bf16.mxu0 0
      %3185 = vmatpush1.bf16.xpose.msra.mxu0 0
      %3186 = vmatprep.subr.bf16.mxu0 0
      %3187 = vmatpush1.bf16.xpose.msra.mxu0 0
      %3188 = vmatprep.subr.bf16.mxu0 0
      %3189 = vmatpush1.bf16.xpose.msra.mxu0 0
      %3190 = vmatprep.subr.bf16.mxu0 0
      %3191 = vmatpush1.bf16.xpose.msra.mxu0 0
      %3192 = vmatprep.subr.bf16.mxu0 0
      %3193 = vmatpush1.bf16.xpose.msra.mxu0 0
      %3194 = vmatprep.subr.bf16.mxu0 0
      %3195 = vmatpush1.bf16.xpose.msra.mxu0 0
      %3196 = vmatprep.subr.bf16.mxu0 0
      %3197 = vmatpush1.bf16.xpose.msra.mxu0 %v3103
      %3198 = vmatprep.subr.bf16.mxu0 0
      %3199 = vmatpush2.bf16.xpose.msra.mxu0 0
      %3200 = vmatprep.subr.bf16.mxu0 0
      %3201 = vmatpush2.bf16.xpose.msra.mxu0 0
      %3202 = vmatprep.subr.bf16.mxu0 0
      %3203 = vmatpush2.bf16.xpose.msra.mxu0 0
      %3204 = vmatprep.subr.bf16.mxu0 0
      %3205 = vmatpush2.bf16.xpose.msra.mxu0 0
      %3206 = vmatprep.subr.bf16.mxu0 0
      %3207 = vmatpush2.bf16.xpose.msra.mxu0 0
      %3208 = vmatprep.subr.bf16.mxu0 0
      %3209 = vmatpush2.bf16.xpose.msra.mxu0 0
      %3210 = vmatprep.subr.bf16.mxu0 0
      %3211 = vmatpush2.bf16.xpose.msra.mxu0 0
      %3212 = vmatprep.subr.bf16.mxu0 0
      %3213 = vmatpush2.bf16.xpose.msra.mxu0 0
      %3214 = vmatprep.mubr.bf16.mxu0 0
      %3215 = vmatmul.mubr.bf16.gmra.mxu0 %v3180
      %v3216 = vpop.f32.mrf.mxu0
      %v3217 = vadd.f32 %v682, %v3216
      %v3218 = vpop.f32.mrf.mxu0
      %v3219 = vpop.f32.mrf.mxu0
      %v3220 = vadd.f32 %v683, %v3219
      %v3221 = vpop.f32.mrf.mxu0
      %3222 = vdwg.mxu0
      %v3223 = vsel %vm982, %v3217, -inf
      %3224 = vmax.xlane.f32.xlu0 %v3223
      %v3225 = vpop.xlane.xlu0 %3224
      %v3226 = vsel %vm982, %v3220, -inf
      %3227 = vmax.xlane.f32.xlu0 %v3226
      %v3228 = vpop.xlane.xlu0 %3227
      %v3229 = vsub.f32 %v3217, %v3225
      %v3230 = vsub.f32 %v3220, %v3228
      %v3231 = vmul.f32 %v3229, 1.442695
      %v3232 = vpow.pop %v3231
      %v3233 = vmul.f32 %v3230, 1.442695
      %v3234 = vpow.pop %v3233
      %v3235 = vsel %vm982, %v3232, 0.0
      %3236 = vadd.xlane.f32.xlu0 %v3235
      %v3237 = vpop.xlane.xlu0 %3236
      %v3238 = vsel %vm982, %v3234, 0.0
      %3239 = vadd.xlane.f32.xlu0 %v3238
      %v3240 = vpop.xlane.xlu0 %3239
      %v3241 = vrcp.pop %v3237
      %v3242 = vrcp.pop %v3240
      %v3243 = vmul.f32 %v3232, %v3241
      %v3244 = vmul.f32 %v3234, %v3242
      %vm3245 = vcmp.gt.f32.partialorder %v3225, -5e+08
      %vm3246 = vcmp.gt.f32.partialorder %v3228, -5e+08
      %v3247 = vsel %vm3245, 1, 0
      %v3248 = vsel %vm3246, 1, 0
      %vm3249 = vcmp.eq.s32.totalorder %v3247, 1
      %vm3250 = vcmp.eq.s32.totalorder %v3248, 1
      %v3251 = vsel %vm3249, %v3243, 0.0
      %v3252 = vsel %vm3250, %v3244, 0.0
      %v3253 = vpack.c.bf16 %v3252, %v3251
      %v3254 = vmul.bf16 %v3097, %v695
      %v3256 = vsel %vm982, %v3253, 0
      %3258 = vmatprep.subr.bf16.mxu0 0
      %3259 = vmatpush1.bf16.msra.mxu0 0
      %3260 = vmatprep.subr.bf16.mxu0 0
      %3261 = vmatpush1.bf16.msra.mxu0 0
      %3262 = vmatprep.subr.bf16.mxu0 0
      %3263 = vmatpush1.bf16.msra.mxu0 0
      %3264 = vmatprep.subr.bf16.mxu0 0
      %3265 = vmatpush1.bf16.msra.mxu0 0
      %3266 = vmatprep.subr.bf16.mxu0 0
      %3267 = vmatpush1.bf16.msra.mxu0 0
      %3268 = vmatprep.subr.bf16.mxu0 0
      %3269 = vmatpush1.bf16.msra.mxu0 0
      %3270 = vmatprep.subr.bf16.mxu0 0
      %3271 = vmatpush1.bf16.msra.mxu0 0
      %3272 = vmatprep.subr.bf16.mxu0 0
      %3273 = vmatpush1.bf16.msra.mxu0 %v3254
      %3274 = vmatprep.subr.bf16.mxu0 0
      %3275 = vmatpush2.bf16.msra.mxu0 0
      %3276 = vmatprep.subr.bf16.mxu0 0
      %3277 = vmatpush2.bf16.msra.mxu0 0
      %3278 = vmatprep.subr.bf16.mxu0 0
      %3279 = vmatpush2.bf16.msra.mxu0 0
      %3280 = vmatprep.subr.bf16.mxu0 0
      %3281 = vmatpush2.bf16.msra.mxu0 0
      %3282 = vmatprep.subr.bf16.mxu0 0
      %3283 = vmatpush2.bf16.msra.mxu0 0
      %3284 = vmatprep.subr.bf16.mxu0 0
      %3285 = vmatpush2.bf16.msra.mxu0 0
      %3286 = vmatprep.subr.bf16.mxu0 0
      %3287 = vmatpush2.bf16.msra.mxu0 0
      %3288 = vmatprep.subr.bf16.mxu0 0
      %3289 = vmatpush2.bf16.msra.mxu0 0
      %3290 = vmatprep.mubr.bf16.mxu0 0
      %3291 = vmatmul.mubr.bf16.gmra.mxu0 %v3256
      %v3292 = vpop.f32.mrf.mxu0
      %v3293 = vadd.f32 0.0, %v3292
      %v3294 = vpop.f32.mrf.mxu0
      %v3295 = vpop.f32.mrf.mxu0
      %v3296 = vadd.f32 0.0, %v3295
      %v3297 = vpop.f32.mrf.mxu0
      %3298 = vdwg.mxu0
      %v3300 = vsel %vm982, %v3176, 0
      %3302 = vmatprep.subr.bf16.mxu0 0
      %3303 = vmatpush1.bf16.msra.mxu0 0
      %3304 = vmatprep.subr.bf16.mxu0 0
      %3305 = vmatpush1.bf16.msra.mxu0 0
      %3306 = vmatprep.subr.bf16.mxu0 0
      %3307 = vmatpush1.bf16.msra.mxu0 0
      %3308 = vmatprep.subr.bf16.mxu0 0
      %3309 = vmatpush1.bf16.msra.mxu0 0
      %3310 = vmatprep.subr.bf16.mxu0 0
      %3311 = vmatpush1.bf16.msra.mxu0 0
      %3312 = vmatprep.subr.bf16.mxu0 0
      %3313 = vmatpush1.bf16.msra.mxu0 0
      %3314 = vmatprep.subr.bf16.mxu0 0
      %3315 = vmatpush1.bf16.msra.mxu0 0
      %3316 = vmatprep.subr.bf16.mxu0 0
      %3317 = vmatpush1.bf16.msra.mxu0 %v3177
      %3318 = vmatprep.subr.bf16.mxu0 0
      %3319 = vmatpush2.bf16.msra.mxu0 0
      %3320 = vmatprep.subr.bf16.mxu0 0
      %3321 = vmatpush2.bf16.msra.mxu0 0
      %3322 = vmatprep.subr.bf16.mxu0 0
      %3323 = vmatpush2.bf16.msra.mxu0 0
      %3324 = vmatprep.subr.bf16.mxu0 0
      %3325 = vmatpush2.bf16.msra.mxu0 0
      %3326 = vmatprep.subr.bf16.mxu0 0
      %3327 = vmatpush2.bf16.msra.mxu0 0
      %3328 = vmatprep.subr.bf16.mxu0 0
      %3329 = vmatpush2.bf16.msra.mxu0 0
      %3330 = vmatprep.subr.bf16.mxu0 0
      %3331 = vmatpush2.bf16.msra.mxu0 0
      %3332 = vmatprep.subr.bf16.mxu0 0
      %3333 = vmatpush2.bf16.msra.mxu0 0
      %3334 = vmatprep.mubr.bf16.mxu0 0
      %3335 = vmatmul.mubr.bf16.gmra.mxu0 %v3300
      %v3336 = vpop.f32.mrf.mxu0
      %v3337 = vadd.f32 %v3293, %v3336
      %v3338 = vpop.f32.mrf.mxu0
      %v3339 = vpop.f32.mrf.mxu0
      %v3340 = vadd.f32 %v3296, %v3339
      %v3341 = vpop.f32.mrf.mxu0
      %3342 = vdwg.mxu0
      %v3343 = vmul.bf16 %v3095, %v701
      %v3345 = vsel %vm711, %v3343, 0
      %3347 = vmatprep.subr.bf16.mxu0 0
      %3348 = vmatpush1.bf16.xpose.msra.mxu0 0
      %3349 = vmatprep.subr.bf16.mxu0 0
      %3350 = vmatpush1.bf16.xpose.msra.mxu0 0
      %3351 = vmatprep.subr.bf16.mxu0 0
      %3352 = vmatpush1.bf16.xpose.msra.mxu0 0
      %3353 = vmatprep.subr.bf16.mxu0 0
      %3354 = vmatpush1.bf16.xpose.msra.mxu0 0
      %3355 = vmatprep.subr.bf16.mxu0 0
      %3356 = vmatpush1.bf16.xpose.msra.mxu0 0
      %3357 = vmatprep.subr.bf16.mxu0 0
      %3358 = vmatpush1.bf16.xpose.msra.mxu0 0
      %3359 = vmatprep.subr.bf16.mxu0 0
      %3360 = vmatpush1.bf16.xpose.msra.mxu0 0
      %3361 = vmatprep.subr.bf16.mxu0 0
      %3362 = vmatpush1.bf16.xpose.msra.mxu0 %v3103
      %3363 = vmatprep.subr.bf16.mxu0 0
      %3364 = vmatpush2.bf16.xpose.msra.mxu0 0
      %3365 = vmatprep.subr.bf16.mxu0 0
      %3366 = vmatpush2.bf16.xpose.msra.mxu0 0
      %3367 = vmatprep.subr.bf16.mxu0 0
      %3368 = vmatpush2.bf16.xpose.msra.mxu0 0
      %3369 = vmatprep.subr.bf16.mxu0 0
      %3370 = vmatpush2.bf16.xpose.msra.mxu0 0
      %3371 = vmatprep.subr.bf16.mxu0 0
      %3372 = vmatpush2.bf16.xpose.msra.mxu0 0
      %3373 = vmatprep.subr.bf16.mxu0 0
      %3374 = vmatpush2.bf16.xpose.msra.mxu0 0
      %3375 = vmatprep.subr.bf16.mxu0 0
      %3376 = vmatpush2.bf16.xpose.msra.mxu0 0
      %3377 = vmatprep.subr.bf16.mxu0 0
      %3378 = vmatpush2.bf16.xpose.msra.mxu0 0
      %3379 = vmatprep.mubr.bf16.mxu0 0
      %3380 = vmatmul.mubr.bf16.gmra.mxu0 %v3345
      %v3381 = vpop.f32.mrf.mxu0
      %v3382 = vadd.f32 %v682, %v3381
      %v3383 = vpop.f32.mrf.mxu0
      %v3384 = vpop.f32.mrf.mxu0
      %v3385 = vadd.f32 %v683, %v3384
      %v3386 = vpop.f32.mrf.mxu0
      %3387 = vdwg.mxu0
      %v3388 = vsel %vm982, %v3382, -inf
      %3389 = vmax.xlane.f32.xlu0 %v3388
      %v3390 = vpop.xlane.xlu0 %3389
      %v3391 = vsel %vm982, %v3385, -inf
      %3392 = vmax.xlane.f32.xlu0 %v3391
      %v3393 = vpop.xlane.xlu0 %3392
      %v3394 = vsub.f32 %v3382, %v3390
      %v3395 = vsub.f32 %v3385, %v3393
      %v3396 = vmul.f32 %v3394, 1.442695
      %v3397 = vpow.pop %v3396
      %v3398 = vmul.f32 %v3395, 1.442695
      %v3399 = vpow.pop %v3398
      %v3400 = vsel %vm982, %v3397, 0.0
      %3401 = vadd.xlane.f32.xlu0 %v3400
      %v3402 = vpop.xlane.xlu0 %3401
      %v3403 = vsel %vm982, %v3399, 0.0
      %3404 = vadd.xlane.f32.xlu0 %v3403
      %v3405 = vpop.xlane.xlu0 %3404
      %v3406 = vrcp.pop %v3402
      %v3407 = vrcp.pop %v3405
      %v3408 = vmul.f32 %v3397, %v3406
      %v3409 = vmul.f32 %v3399, %v3407
      %vm3410 = vcmp.gt.f32.partialorder %v3390, -5e+08
      %vm3411 = vcmp.gt.f32.partialorder %v3393, -5e+08
      %v3412 = vsel %vm3410, 1, 0
      %v3413 = vsel %vm3411, 1, 0
      %vm3414 = vcmp.eq.s32.totalorder %v3412, 1
      %vm3415 = vcmp.eq.s32.totalorder %v3413, 1
      %v3416 = vsel %vm3414, %v3408, 0.0
      %v3417 = vsel %vm3415, %v3409, 0.0
      %v3418 = vpack.c.bf16 %v3417, %v3416
      %v3419 = vmul.bf16 %v3097, %v701
      %v3421 = vsel %vm982, %v3418, 0
      %3423 = vmatprep.subr.bf16.mxu0 0
      %3424 = vmatpush1.bf16.msra.mxu0 0
      %3425 = vmatprep.subr.bf16.mxu0 0
      %3426 = vmatpush1.bf16.msra.mxu0 0
      %3427 = vmatprep.subr.bf16.mxu0 0
      %3428 = vmatpush1.bf16.msra.mxu0 0
      %3429 = vmatprep.subr.bf16.mxu0 0
      %3430 = vmatpush1.bf16.msra.mxu0 0
      %3431 = vmatprep.subr.bf16.mxu0 0
      %3432 = vmatpush1.bf16.msra.mxu0 0
      %3433 = vmatprep.subr.bf16.mxu0 0
      %3434 = vmatpush1.bf16.msra.mxu0 0
      %3435 = vmatprep.subr.bf16.mxu0 0
      %3436 = vmatpush1.bf16.msra.mxu0 0
      %3437 = vmatprep.subr.bf16.mxu0 0
      %3438 = vmatpush1.bf16.msra.mxu0 %v3419
      %3439 = vmatprep.subr.bf16.mxu0 0
      %3440 = vmatpush2.bf16.msra.mxu0 0
      %3441 = vmatprep.subr.bf16.mxu0 0
      %3442 = vmatpush2.bf16.msra.mxu0 0
      %3443 = vmatprep.subr.bf16.mxu0 0
      %3444 = vmatpush2.bf16.msra.mxu0 0
      %3445 = vmatprep.subr.bf16.mxu0 0
      %3446 = vmatpush2.bf16.msra.mxu0 0
      %3447 = vmatprep.subr.bf16.mxu0 0
      %3448 = vmatpush2.bf16.msra.mxu0 0
      %3449 = vmatprep.subr.bf16.mxu0 0
      %3450 = vmatpush2.bf16.msra.mxu0 0
      %3451 = vmatprep.subr.bf16.mxu0 0
      %3452 = vmatpush2.bf16.msra.mxu0 0
      %3453 = vmatprep.subr.bf16.mxu0 0
      %3454 = vmatpush2.bf16.msra.mxu0 0
      %3455 = vmatprep.mubr.bf16.mxu0 0
      %3456 = vmatmul.mubr.bf16.gmra.mxu0 %v3421
      %v3457 = vpop.f32.mrf.mxu0
      %v3458 = vadd.f32 0.0, %v3457
      %v3459 = vpop.f32.mrf.mxu0
      %v3460 = vpop.f32.mrf.mxu0
      %v3461 = vadd.f32 0.0, %v3460
      %v3462 = vpop.f32.mrf.mxu0
      %3463 = vdwg.mxu0
      %v3464 = vadd.f32 %v3337, %v3458
      %v3465 = vadd.f32 %v3340, %v3461
      %v3466 = vmul.bf16 %v3095, %v707
      %v3468 = vsel %vm711, %v3466, 0
      %3470 = vmatprep.subr.bf16.mxu0 0
      %3471 = vmatpush1.bf16.xpose.msra.mxu0 0
      %3472 = vmatprep.subr.bf16.mxu0 0
      %3473 = vmatpush1.bf16.xpose.msra.mxu0 0
      %3474 = vmatprep.subr.bf16.mxu0 0
      %3475 = vmatpush1.bf16.xpose.msra.mxu0 0
      %3476 = vmatprep.subr.bf16.mxu0 0
      %3477 = vmatpush1.bf16.xpose.msra.mxu0 0
      %3478 = vmatprep.subr.bf16.mxu0 0
      %3479 = vmatpush1.bf16.xpose.msra.mxu0 0
      %3480 = vmatprep.subr.bf16.mxu0 0
      %3481 = vmatpush1.bf16.xpose.msra.mxu0 0
      %3482 = vmatprep.subr.bf16.mxu0 0
      %3483 = vmatpush1.bf16.xpose.msra.mxu0 0
      %3484 = vmatprep.subr.bf16.mxu0 0
      %3485 = vmatpush1.bf16.xpose.msra.mxu0 %v3103
      %3486 = vmatprep.subr.bf16.mxu0 0
      %3487 = vmatpush2.bf16.xpose.msra.mxu0 0
      %3488 = vmatprep.subr.bf16.mxu0 0
      %3489 = vmatpush2.bf16.xpose.msra.mxu0 0
      %3490 = vmatprep.subr.bf16.mxu0 0
      %3491 = vmatpush2.bf16.xpose.msra.mxu0 0
      %3492 = vmatprep.subr.bf16.mxu0 0
      %3493 = vmatpush2.bf16.xpose.msra.mxu0 0
      %3494 = vmatprep.subr.bf16.mxu0 0
      %3495 = vmatpush2.bf16.xpose.msra.mxu0 0
      %3496 = vmatprep.subr.bf16.mxu0 0
      %3497 = vmatpush2.bf16.xpose.msra.mxu0 0
      %3498 = vmatprep.subr.bf16.mxu0 0
      %3499 = vmatpush2.bf16.xpose.msra.mxu0 0
      %3500 = vmatprep.subr.bf16.mxu0 0
      %3501 = vmatpush2.bf16.xpose.msra.mxu0 0
      %3502 = vmatprep.mubr.bf16.mxu0 0
      %3503 = vmatmul.mubr.bf16.gmra.mxu0 %v3468
      %v3504 = vpop.f32.mrf.mxu0
      %v3505 = vadd.f32 %v682, %v3504
      %v3506 = vpop.f32.mrf.mxu0
      %v3507 = vpop.f32.mrf.mxu0
      %v3508 = vadd.f32 %v683, %v3507
      %v3509 = vpop.f32.mrf.mxu0
      %3510 = vdwg.mxu0
      %v3511 = vsel %vm982, %v3505, -inf
      %3512 = vmax.xlane.f32.xlu0 %v3511
      %v3513 = vpop.xlane.xlu0 %3512
      %v3514 = vsel %vm982, %v3508, -inf
      %3515 = vmax.xlane.f32.xlu0 %v3514
      %v3516 = vpop.xlane.xlu0 %3515
      %v3517 = vsub.f32 %v3505, %v3513
      %v3518 = vsub.f32 %v3508, %v3516
      %v3519 = vmul.f32 %v3517, 1.442695
      %v3520 = vpow.pop %v3519
      %v3521 = vmul.f32 %v3518, 1.442695
      %v3522 = vpow.pop %v3521
      %v3523 = vsel %vm982, %v3520, 0.0
      %3524 = vadd.xlane.f32.xlu0 %v3523
      %v3525 = vpop.xlane.xlu0 %3524
      %v3526 = vsel %vm982, %v3522, 0.0
      %3527 = vadd.xlane.f32.xlu0 %v3526
      %v3528 = vpop.xlane.xlu0 %3527
      %v3529 = vrcp.pop %v3525
      %v3530 = vrcp.pop %v3528
      %v3531 = vmul.f32 %v3520, %v3529
      %v3532 = vmul.f32 %v3522, %v3530
      %vm3533 = vcmp.gt.f32.partialorder %v3513, -5e+08
      %vm3534 = vcmp.gt.f32.partialorder %v3516, -5e+08
      %v3535 = vsel %vm3533, 1, 0
      %v3536 = vsel %vm3534, 1, 0
      %vm3537 = vcmp.eq.s32.totalorder %v3535, 1
      %vm3538 = vcmp.eq.s32.totalorder %v3536, 1
      %v3539 = vsel %vm3537, %v3531, 0.0
      %v3540 = vsel %vm3538, %v3532, 0.0
      %v3541 = vpack.c.bf16 %v3540, %v3539
      %v3542 = vmul.bf16 %v3097, %v707
      %v3544 = vsel %vm982, %v3541, 0
      %3546 = vmatprep.subr.bf16.mxu0 0
      %3547 = vmatpush1.bf16.msra.mxu0 0
      %3548 = vmatprep.subr.bf16.mxu0 0
      %3549 = vmatpush1.bf16.msra.mxu0 0
      %3550 = vmatprep.subr.bf16.mxu0 0
      %3551 = vmatpush1.bf16.msra.mxu0 0
      %3552 = vmatprep.subr.bf16.mxu0 0
      %3553 = vmatpush1.bf16.msra.mxu0 0
      %3554 = vmatprep.subr.bf16.mxu0 0
      %3555 = vmatpush1.bf16.msra.mxu0 0
      %3556 = vmatprep.subr.bf16.mxu0 0
      %3557 = vmatpush1.bf16.msra.mxu0 0
      %3558 = vmatprep.subr.bf16.mxu0 0
      %3559 = vmatpush1.bf16.msra.mxu0 0
      %3560 = vmatprep.subr.bf16.mxu0 0
      %3561 = vmatpush1.bf16.msra.mxu0 %v3542
      %3562 = vmatprep.subr.bf16.mxu0 0
      %3563 = vmatpush2.bf16.msra.mxu0 0
      %3564 = vmatprep.subr.bf16.mxu0 0
      %3565 = vmatpush2.bf16.msra.mxu0 0
      %3566 = vmatprep.subr.bf16.mxu0 0
      %3567 = vmatpush2.bf16.msra.mxu0 0
      %3568 = vmatprep.subr.bf16.mxu0 0
      %3569 = vmatpush2.bf16.msra.mxu0 0
      %3570 = vmatprep.subr.bf16.mxu0 0
      %3571 = vmatpush2.bf16.msra.mxu0 0
      %3572 = vmatprep.subr.bf16.mxu0 0
      %3573 = vmatpush2.bf16.msra.mxu0 0
      %3574 = vmatprep.subr.bf16.mxu0 0
      %3575 = vmatpush2.bf16.msra.mxu0 0
      %3576 = vmatprep.subr.bf16.mxu0 0
      %3577 = vmatpush2.bf16.msra.mxu0 0
      %3578 = vmatprep.mubr.bf16.mxu0 0
      %3579 = vmatmul.mubr.bf16.gmra.mxu0 %v3544
      %v3580 = vpop.f32.mrf.mxu0
      %v3581 = vadd.f32 0.0, %v3580
      %v3582 = vpop.f32.mrf.mxu0
      %v3583 = vpop.f32.mrf.mxu0
      %v3584 = vadd.f32 0.0, %v3583
      %v3585 = vpop.f32.mrf.mxu0
      %3586 = vdwg.mxu0
      %v3587 = vadd.f32 %v3464, %v3581
      %v3588 = vadd.f32 %v3465, %v3584
      %v3589 = vpack.c.bf16 %v3588, %v3587
      %s3590 = scalar_lea.vmem %s9, 32
      %v3591 = vld [vmem:[%s3590] sm:$0xf]
      %v3592 = vld [vmem:[%s3590 + $0x4] sm:$0xf]
      %v3593 = vld [vmem:[%s3590 + $0x8] sm:$0xf]
      %v3594 = vld [vmem:[%s3590 + $0xc] sm:$0xf]
      %s3595 = scalar_lea.vmem %s10, 2
      %v3596 = vld [vmem:[%s3595] sm:$0x1]
      %v3598 = vlaneseq
      %v3599 = vshrl.u32 %v3598, 7
      %v3600 = vsub.s32 0, %v3599
      %v3601 = vrot.slane %v3596, %v3600
      %v3607 = vunpack.c.l.b16 %v3591
      %v3608 = vunpack.c.l.b16 %v3592
      %v3609 = vunpack.c.l.b16 %v3593
      %v3610 = vunpack.c.l.b16 %v3594
      %v3611 = vpack.c.b16 %v3608, %v3607
      %v3612 = vpack.c.b16 %v3610, %v3609
      %v3616 = vsel %vm711, %v3589, 0
      %3618 = vmatprep.subr.bf16.mxu0 0
      %3619 = vmatpush1.bf16.msra.mxu0 0
      %3620 = vmatprep.subr.bf16.mxu0 0
      %3621 = vmatpush1.bf16.msra.mxu0 0
      %3622 = vmatprep.subr.bf16.mxu0 0
      %3623 = vmatpush1.bf16.msra.mxu0 0
      %3624 = vmatprep.subr.bf16.mxu0 0
      %3625 = vmatpush1.bf16.msra.mxu0 0
      %3626 = vmatprep.subr.bf16.mxu0 0
      %3627 = vmatpush1.bf16.msra.mxu0 0
      %3628 = vmatprep.subr.bf16.mxu0 0
      %3629 = vmatpush1.bf16.msra.mxu0 0
      %3630 = vmatprep.subr.bf16.mxu0 0
      %3631 = vmatpush1.bf16.msra.mxu0 %v3612
      %3632 = vmatprep.subr.bf16.mxu0 0
      %3633 = vmatpush1.bf16.msra.mxu0 %v3611
      %3634 = vmatprep.subr.bf16.mxu0 0
      %3635 = vmatpush2.bf16.msra.mxu0 0
      %3636 = vmatprep.subr.bf16.mxu0 0
      %3637 = vmatpush2.bf16.msra.mxu0 0
      %3638 = vmatprep.subr.bf16.mxu0 0
      %3639 = vmatpush2.bf16.msra.mxu0 0
      %3640 = vmatprep.subr.bf16.mxu0 0
      %3641 = vmatpush2.bf16.msra.mxu0 0
      %3642 = vmatprep.subr.bf16.mxu0 0
      %3643 = vmatpush2.bf16.msra.mxu0 0
      %3644 = vmatprep.subr.bf16.mxu0 0
      %3645 = vmatpush2.bf16.msra.mxu0 0
      %3646 = vmatprep.subr.bf16.mxu0 0
      %3647 = vmatpush2.bf16.msra.mxu0 0
      %3648 = vmatprep.subr.bf16.mxu0 0
      %3649 = vmatpush2.bf16.msra.mxu0 0
      %3650 = vmatprep.mubr.bf16.mxu0 0
      %3651 = vmatmul.mubr.bf16.gmra.mxu0 %v3616
      %v3652 = vpop.f32.mrf.mxu0
      %v3653 = vadd.f32 %v3601, %v3652
      %v3654 = vpop.f32.mrf.mxu0
      %v3655 = vpop.f32.mrf.mxu0
      %v3656 = vadd.f32 %v3601, %v3655
      %v3657 = vpop.f32.mrf.mxu0
      %3658 = vdwg.mxu0
      %v3659 = vadd.f32 %v1720, %v3653
      %v3660 = vadd.f32 %v1721, %v3656
      %s3661 = scalar_lea.vmem %s11, 2
      %v3662 = vld [vmem:[%s3661] sm:$0x1]
      %v3663 = vmul.f32 %v3659, %v3659
      %v3664 = vmul.f32 %v3660, %v3660
      %v3665 = vsel %vm711, %v3663, 0.0
      %3666 = vadd.xlane.f32.xlu0 %v3665
      %v3667 = vpop.xlane.xlu0 %3666
      %v3668 = vsel %vm711, %v3664, 0.0
      %3669 = vadd.xlane.f32.xlu0 %v3668
      %v3670 = vpop.xlane.xlu0 %3669
      %v3671 = vmul.f32 %v3667, %v718
      %v3672 = vmul.f32 %v3670, %v718
      %v3673 = vadd.f32 %v3671, 1e-06
      %v3674 = vadd.f32 %v3672, 1e-06
      %v3675 = vrsqrt.pop %v3673
      %v3676 = vrsqrt.pop %v3674
      %v3677 = vmul.f32 %v3659, %v3675
      %v3678 = vmul.f32 %v3660, %v3676
      %v3680 = vlaneseq
      %v3681 = vshrl.u32 %v3680, 7
      %v3682 = vsub.s32 0, %v3681
      %v3683 = vrot.slane %v3662, %v3682
      %v3685 = vmul.f32 %v3677, %v3683
      %v3686 = vmul.f32 %v3678, %v3683
      %v3687 = vpack.c.bf16 %v3686, %v3685
      %s3688 = scalar_lea.vmem %s12, 32
      %v3689 = vld [vmem:[%s3688] sm:$0xf]
      %v3690 = vld [vmem:[%s3688 + $0x4] sm:$0xf]
      %v3691 = vld [vmem:[%s3688 + $0x8] sm:$0xf]
      %v3692 = vld [vmem:[%s3688 + $0xc] sm:$0xf]
      %s3693 = scalar_lea.vmem %s13, 2
      %v3694 = vld [vmem:[%s3693] sm:$0x1]
      %v3696 = vlaneseq
      %v3697 = vshrl.u32 %v3696, 7
      %v3698 = vsub.s32 0, %v3697
      %v3699 = vrot.slane %v3694, %v3698
      %v3705 = vunpack.c.l.b16 %v3689
      %v3706 = vunpack.c.l.b16 %v3690
      %v3707 = vunpack.c.l.b16 %v3691
      %v3708 = vunpack.c.l.b16 %v3692
      %v3709 = vpack.c.b16 %v3706, %v3705
      %v3710 = vpack.c.b16 %v3708, %v3707
      %v3714 = vsel %vm711, %v3687, 0
      %3716 = vmatprep.subr.bf16.mxu0 0
      %3717 = vmatpush1.bf16.msra.mxu0 0
      %3718 = vmatprep.subr.bf16.mxu0 0
      %3719 = vmatpush1.bf16.msra.mxu0 0
      %3720 = vmatprep.subr.bf16.mxu0 0
      %3721 = vmatpush1.bf16.msra.mxu0 0
      %3722 = vmatprep.subr.bf16.mxu0 0
      %3723 = vmatpush1.bf16.msra.mxu0 0
      %3724 = vmatprep.subr.bf16.mxu0 0
      %3725 = vmatpush1.bf16.msra.mxu0 0
      %3726 = vmatprep.subr.bf16.mxu0 0
      %3727 = vmatpush1.bf16.msra.mxu0 0
      %3728 = vmatprep.subr.bf16.mxu0 0
      %3729 = vmatpush1.bf16.msra.mxu0 %v3710
      %3730 = vmatprep.subr.bf16.mxu0 0
      %3731 = vmatpush1.bf16.msra.mxu0 %v3709
      %3732 = vmatprep.subr.bf16.mxu0 0
      %3733 = vmatpush2.bf16.msra.mxu0 0
      %3734 = vmatprep.subr.bf16.mxu0 0
      %3735 = vmatpush2.bf16.msra.mxu0 0
      %3736 = vmatprep.subr.bf16.mxu0 0
      %3737 = vmatpush2.bf16.msra.mxu0 0
      %3738 = vmatprep.subr.bf16.mxu0 0
      %3739 = vmatpush2.bf16.msra.mxu0 0
      %3740 = vmatprep.subr.bf16.mxu0 0
      %3741 = vmatpush2.bf16.msra.mxu0 0
      %3742 = vmatprep.subr.bf16.mxu0 0
      %3743 = vmatpush2.bf16.msra.mxu0 0
      %3744 = vmatprep.subr.bf16.mxu0 0
      %3745 = vmatpush2.bf16.msra.mxu0 0
      %3746 = vmatprep.subr.bf16.mxu0 0
      %3747 = vmatpush2.bf16.msra.mxu0 0
      %3748 = vmatprep.mubr.bf16.mxu0 0
      %3749 = vmatmul.mubr.bf16.gmra.mxu0 %v3714
      %v3750 = vpop.f32.mrf.mxu0
      %v3751 = vadd.f32 %v3699, %v3750
      %v3752 = vpop.f32.mrf.mxu0
      %v3753 = vpop.f32.mrf.mxu0
      %v3754 = vadd.f32 %v3699, %v3753
      %v3755 = vpop.f32.mrf.mxu0
      %3756 = vdwg.mxu0
      %v3757 = vmul.f32 %v3751, 0.5
      %v3758 = vmul.f32 %v3754, 0.5
      %v3759 = vmul.f32 %v3751, 0.044715
      %v3760 = vmul.f32 %v3754, 0.044715
      %v3761 = vmul.f32 %v3759, %v3751
      %v3762 = vmul.f32 %v3760, %v3754
      %v3763 = vmul.f32 %v3761, %v3751
      %v3764 = vmul.f32 %v3762, %v3754
      %v3765 = vadd.f32 %v3751, %v3763
      %v3766 = vadd.f32 %v3754, %v3764
      %v3767 = vmul.f32 %v3765, 0.7978846
      %v3768 = vmul.f32 %v3766, 0.7978846
      %v3769 = vtanh.pop %v3767
      %v3770 = vtanh.pop %v3768
      %v3771 = vadd.f32 %v3769, 1.0
      %v3772 = vadd.f32 %v3770, 1.0
      %v3773 = vmul.f32 %v3757, %v3771
      %v3774 = vmul.f32 %v3758, %v3772
      %v3775 = vpack.c.bf16 %v3774, %v3773
      %s3776 = scalar_lea.vmem %s14, 128
      %v3777 = vld [vmem:[%s3776] sm:$0xf]
      %v3778 = vld [vmem:[%s3776 + $0x4] sm:$0xf]
      %v3779 = vld [vmem:[%s3776 + $0x8] sm:$0xf]
      %v3780 = vld [vmem:[%s3776 + $0xc] sm:$0xf]
      %v3781 = vld [vmem:[%s3776 + $0x10] sm:$0xf]
      %v3782 = vld [vmem:[%s3776 + $0x14] sm:$0xf]
      %v3783 = vld [vmem:[%s3776 + $0x18] sm:$0xf]
      %v3784 = vld [vmem:[%s3776 + $0x1c] sm:$0xf]
      %v3785 = vld [vmem:[%s3776 + $0x20] sm:$0xf]
      %v3786 = vld [vmem:[%s3776 + $0x24] sm:$0xf]
      %v3787 = vld [vmem:[%s3776 + $0x28] sm:$0xf]
      %v3788 = vld [vmem:[%s3776 + $0x2c] sm:$0xf]
      %v3789 = vld [vmem:[%s3776 + $0x30] sm:$0xf]
      %v3790 = vld [vmem:[%s3776 + $0x34] sm:$0xf]
      %v3791 = vld [vmem:[%s3776 + $0x38] sm:$0xf]
      %v3792 = vld [vmem:[%s3776 + $0x3c] sm:$0xf]
      %s3793 = scalar_lea.vmem %s15, 2
      %v3794 = vld [vmem:[%s3793] sm:$0x1]
      %v3796 = vlaneseq
      %v3797 = vshrl.u32 %v3796, 7
      %v3798 = vsub.s32 0, %v3797
      %v3799 = vrot.slane %v3794, %v3798
      %v3817 = vunpack.c.l.b16 %v3777
      %v3818 = vunpack.c.l.b16 %v3778
      %v3819 = vunpack.c.l.b16 %v3779
      %v3820 = vunpack.c.l.b16 %v3780
      %v3821 = vunpack.c.l.b16 %v3781
      %v3822 = vunpack.c.l.b16 %v3782
      %v3823 = vunpack.c.l.b16 %v3783
      %v3824 = vunpack.c.l.b16 %v3784
      %v3825 = vunpack.c.l.b16 %v3785
      %v3826 = vunpack.c.l.b16 %v3786
      %v3827 = vunpack.c.l.b16 %v3787
      %v3828 = vunpack.c.l.b16 %v3788
      %v3829 = vunpack.c.l.b16 %v3789
      %v3830 = vunpack.c.l.b16 %v3790
      %v3831 = vunpack.c.l.b16 %v3791
      %v3832 = vunpack.c.l.b16 %v3792
      %v3833 = vpack.c.b16 %v3818, %v3817
      %v3834 = vpack.c.b16 %v3820, %v3819
      %v3835 = vpack.c.b16 %v3822, %v3821
      %v3836 = vpack.c.b16 %v3824, %v3823
      %v3837 = vpack.c.b16 %v3826, %v3825
      %v3838 = vpack.c.b16 %v3828, %v3827
      %v3839 = vpack.c.b16 %v3830, %v3829
      %v3840 = vpack.c.b16 %v3832, %v3831
      %3849 = vmatprep.subr.bf16.mxu0 0
      %3850 = vmatpush1.bf16.msra.mxu0 %v3840
      %3851 = vmatprep.subr.bf16.mxu0 0
      %3852 = vmatpush1.bf16.msra.mxu0 %v3839
      %3853 = vmatprep.subr.bf16.mxu0 0
      %3854 = vmatpush1.bf16.msra.mxu0 %v3838
      %3855 = vmatprep.subr.bf16.mxu0 0
      %3856 = vmatpush1.bf16.msra.mxu0 %v3837
      %3857 = vmatprep.subr.bf16.mxu0 0
      %3858 = vmatpush1.bf16.msra.mxu0 %v3836
      %3859 = vmatprep.subr.bf16.mxu0 0
      %3860 = vmatpush1.bf16.msra.mxu0 %v3835
      %3861 = vmatprep.subr.bf16.mxu0 0
      %3862 = vmatpush1.bf16.msra.mxu0 %v3834
      %3863 = vmatprep.subr.bf16.mxu0 0
      %3864 = vmatpush1.bf16.msra.mxu0 %v3833
      %3865 = vmatprep.subr.bf16.mxu0 0
      %3866 = vmatpush2.bf16.msra.mxu0 0
      %3867 = vmatprep.subr.bf16.mxu0 0
      %3868 = vmatpush2.bf16.msra.mxu0 0
      %3869 = vmatprep.subr.bf16.mxu0 0
      %3870 = vmatpush2.bf16.msra.mxu0 0
      %3871 = vmatprep.subr.bf16.mxu0 0
      %3872 = vmatpush2.bf16.msra.mxu0 0
      %3873 = vmatprep.subr.bf16.mxu0 0
      %3874 = vmatpush2.bf16.msra.mxu0 0
      %3875 = vmatprep.subr.bf16.mxu0 0
      %3876 = vmatpush2.bf16.msra.mxu0 0
      %3877 = vmatprep.subr.bf16.mxu0 0
      %3878 = vmatpush2.bf16.msra.mxu0 0
      %3879 = vmatprep.subr.bf16.mxu0 0
      %3880 = vmatpush2.bf16.msra.mxu0 0
      %3881 = vmatprep.mubr.bf16.mxu0 0
      %3882 = vmatmul.mubr.bf16.gmra.mxu0 %v3775
      %v3883 = vpop.f32.mrf.mxu0
      %v3884 = vadd.f32 %v3799, %v3883
      %v3885 = vpop.f32.mrf.mxu0
      %v3886 = vpop.f32.mrf.mxu0
      %v3887 = vadd.f32 %v3799, %v3886
      %v3888 = vpop.f32.mrf.mxu0
      %3889 = vdwg.mxu0
      %v3890 = vadd.f32 %v3659, %v3884
      %v3891 = vadd.f32 %v3660, %v3887
      %v3892 = vpack.c.bf16 %v3891, %v3890
      %v3894 = vunpack.c.l.b16 %v3892
      %v3895 = vunpack.c.h.b16 %v3892
      %v3896 = vpack.c.b16 %v3894, %v3894
      %v3897 = vpack.c.b16 %v3895, %v3895
      %vm3900 = vcmask 257024
      %3901 = vst.msk [vmem:[%s651] sm:$0xf] %vm3900, %v3896
      %3902 = vst.msk [vmem:[%s651 + $0x4] sm:$0xf] %vm3900, %v3897
      %p3903 = scmp.lt.s32.totalorder %s32, 1
      %s3904 = scalar_select %p3903, %s32, 1
      %s3905 = smul.addr %s3904, 2
      %s3906 = smul.addr %s3905, 4
      %s3907 = scalar_lea.vmem %s19, %s3906
      %p3908 = scmp.lt.s32.totalorder %s32, 1
      %s3909 = scalar_select %p3908, %s32, 1
      %s3910 = smul.addr %s3909, 2
      %s3911 = smul.addr %s3910, 8
      %s3912 = scalar_lea.vmem %s20, %s3911
      // Predicated region
      $region97: #{_forward.2} parent=95 // pred_check
        %p3913 = pneg %p459
      $region98: #{_forward.2} parent=95 // pred_check_branch
        %3915 = sbr.rel (%p3913) target = $region100
      $region99: #{_forward.2} parent=95 // pred_region
        _
      $region100: #{_forward.2} parent=95 // pred_fallthru
        _
      // Predicated region
      $region101: #{_forward.2} parent=95 // pred_check
        %p3916 = pneg %p485
      $region102: #{_forward.2} parent=95 // pred_check_branch
        %3918 = sbr.rel (%p3916) target = $region104
      $region103: #{_forward.2} parent=95 // pred_region
        _
      $region104: #{_forward.2} parent=95 // pred_fallthru
        _
    $region96: #{_forward.2} parent=5 // pred_fallthru
      _
    %p3919 = scmp.le.s32.totalorder 2, %s27
    // Predicated region
    $region105: #{_forward.2} parent=5 // pred_check
      %p3920 = pneg %p3919
    $region106: #{_forward.2} parent=5 // pred_check_branch
      %3922 = sbr.rel (%p3920) target = $region108
    $region107: #{_forward.2} parent=5 // pred_region
      %s3923 = ssub.s32 %s27, 2
      // Predicated region
      $region109: #{_forward.2} parent=107 // pred_check
        %p3924 = pneg %p465
      $region110: #{_forward.2} parent=107 // pred_check_branch
        %3926 = sbr.rel (%p3924) target = $region112
      $region111: #{_forward.2} parent=107 // pred_region
        %p3927 = scmp.lt.s32.totalorder %s33, 1
        %s3928 = scalar_select %p3927, %s33, 1
        %s3929 = smul.addr %s3928, 2
        %s3930 = smul.addr %s3929, 4
        %s3931 = scalar_lea.vmem %s19, %s3930
      $region112: #{_forward.2} parent=107 // pred_fallthru
        _
      // Predicated region
      $region113: #{_forward.2} parent=107 // pred_check
        %p3932 = pneg %p491
      $region114: #{_forward.2} parent=107 // pred_check_branch
        %3934 = sbr.rel (%p3932) target = $region116
      $region115: #{_forward.2} parent=107 // pred_region
        %p3935 = scmp.lt.s32.totalorder %s33, 1
        %s3936 = scalar_select %p3935, %s33, 1
        %s3937 = smul.addr %s3936, 2
        %s3938 = smul.addr %s3937, 8
        %s3939 = scalar_lea.vmem %s20, %s3938
      $region116: #{_forward.2} parent=107 // pred_fallthru
        _
    $region108: #{_forward.2} parent=5 // pred_fallthru
      _
  $region6: #{_forward.2} parent=0 // loop_footer
    %s31 = sadd.s32 1, %s27
  $region7: #{_forward.2} parent=0 // loop_footer_branch
    %26 = sbr.rel target = $region3
  $region8: #{_forward.2} parent=0 // loop_exit
    _

</llo_original>
